<compile_context>
chip_gen: v5e
topology: v5e:2x2
jax: 0.10.0
libtpu: 0.0.40
codegen_flags: <defaults>
</compile_context>

<pallas_src>
import functools

import jax
import jax.numpy as jnp
from jax.experimental import pallas as pl
from jax.experimental.pallas import tpu as pltpu


# ----------------------------------------------------------------------------
# Pallas kernel: single-pass matmul with fused bias (+ optional ReLU)
# ----------------------------------------------------------------------------
def _mm_bias_kernel(a_ref, b_ref, bias_ref, o_ref, *, relu):
    y = jnp.dot(a_ref[...], b_ref[...], preferred_element_type=jnp.float32)
    y = y + bias_ref[...]
    if relu:
        y = jnp.maximum(y, 0.0)
    o_ref[...] = y.astype(o_ref.dtype)


def _round_up(x, m):
    return (x + m - 1) // m * m


def matmul_bias(a, b, bias, *, relu=False,
                out_dtype=jnp.bfloat16, compute_dtype=jnp.bfloat16):
    """out = relu_opt(a @ b + bias); bias broadcast over rows.

    Full-K single pass (no reduction grid axis); grid only over M tiles.
    """
    M, K = a.shape
    Kb, N = b.shape
    assert K == Kb

    Mp = _round_up(max(M, 8), 8)
    tm = min(Mp, 256)
    Mp = _round_up(Mp, tm)

    a = a.astype(compute_dtype)
    if Mp != M:
        a = jnp.pad(a, ((0, Mp - M), (0, 0)))
    b = b.astype(compute_dtype)
    if bias is None:
        bias_row = jnp.zeros((1, N), jnp.float32)
    else:
        bias_row = bias.astype(jnp.float32).reshape(1, N)

    grid = (Mp // tm,)
    out = pl.pallas_call(
        functools.partial(_mm_bias_kernel, relu=relu),
        out_shape=jax.ShapeDtypeStruct((Mp, N), out_dtype),
        grid_spec=pltpu.PrefetchScalarGridSpec(
            num_scalar_prefetch=0,
            grid=grid,
            in_specs=[
                pl.BlockSpec((tm, K), lambda i: (i, 0)),   # A: tile over M, full K
                pl.BlockSpec((K, N), lambda i: (0, 0)),    # B: whole weight resident
                pl.BlockSpec((1, N), lambda i: (0, 0)),    # bias row
            ],
            out_specs=pl.BlockSpec((tm, N), lambda i: (i, 0)),
        ),
        compiler_params=pltpu.CompilerParams(
            dimension_semantics=("parallel",)),
    )(a, b, bias_row)

    if Mp != M:
        out = out[:M]
    return out


# ----------------------------------------------------------------------------
# Conv = im2col (slicing glue, bf16) + Pallas matmul with folded BN + bias/ReLU
# ----------------------------------------------------------------------------
def im2col(x, kh, kw, stride, dilation, padding):
    """x: NHWC -> (B, Ho, Wo, kh*kw*C) with patch order (kh, kw, Cin)."""
    B, H, W, C = x.shape
    xp = jnp.pad(x, ((0, 0), (padding, padding), (padding, padding), (0, 0)))
    Hp, Wp = H + 2 * padding, W + 2 * padding
    Ho = (Hp - dilation * (kh - 1) - 1) // stride + 1
    Wo = (Wp - dilation * (kw - 1) - 1) // stride + 1
    patches = []
    for i in range(kh):
        for j in range(kw):
            sl = xp[:,
                    i * dilation: i * dilation + (Ho - 1) * stride + 1: stride,
                    j * dilation: j * dilation + (Wo - 1) * stride + 1: stride,
                    :]
            patches.append(sl)
    cols = jnp.concatenate(patches, axis=-1)
    return cols, Ho, Wo


def conv_bn_act(x, w, b, *, stride=1, dilation=1, padding=0, relu=True,
                out_dtype=jnp.bfloat16):
    """x: NHWC. w: (kh, kw, cin, cout) with BN scale already folded in, bf16.
    b: (cout,) f32 folded BN bias (or conv bias). Returns NHWC."""
    kh, kw, cin, cout = w.shape
    cols, Ho, Wo = im2col(x, kh, kw, stride, dilation, padding)
    B = x.shape[0]
    a = cols.reshape(B * Ho * Wo, kh * kw * cin)
    wmat = w.reshape(kh * kw * cin, cout)
    y = matmul_bias(a, wmat, b, relu=relu, out_dtype=out_dtype,
                    compute_dtype=jnp.bfloat16)
    return y.reshape(B, Ho, Wo, cout)


# ----------------------------------------------------------------------------
# Bilinear resize (align_corners=True) as two lane-dense interpolation matmuls
# ----------------------------------------------------------------------------
def bilinear_matrix(in_size, out_size):
    if in_size == 1:
        return jnp.ones((out_size, 1), jnp.float32)
    denom = max(out_size - 1, 1)
    pos = jnp.arange(out_size, dtype=jnp.float32) * (in_size - 1) / denom
    lo = jnp.clip(jnp.floor(pos).astype(jnp.int32), 0, in_size - 2)
    frac = pos - lo.astype(jnp.float32)
    m = ((1.0 - frac)[:, None] * jax.nn.one_hot(lo, in_size, dtype=jnp.float32)
         + frac[:, None] * jax.nn.one_hot(lo + 1, in_size, dtype=jnp.float32))
    return m


def bilinear_resize(x, Ho, Wo):
    """x: NHWC -> (B, Ho, Wo, C), bilinear, align_corners=True.
    Channels stay in the lane dim: both matmuls have lane-dense N."""
    B, H, W, C = x.shape
    if H == Ho and W == Wo:
        return x
    if H == 1 and W == 1:
        return jnp.broadcast_to(x, (B, Ho, Wo, C))
    cdt = x.dtype                       # bf16 for intermediate features, f32 for logits
    Wh = bilinear_matrix(H, Ho).astype(cdt)   # (Ho, H)
    Ww = bilinear_matrix(W, Wo).astype(cdt)   # (Wo, W)

    # H interpolation:  (Ho, H) @ (H, B*W*C)
    xh = jnp.transpose(x, (1, 0, 2, 3)).reshape(H, B * W * C)
    yh = matmul_bias(Wh, xh, None, relu=False, out_dtype=cdt, compute_dtype=cdt)
    y = yh.reshape(Ho, B, W, C)

    # W interpolation:  (Wo, W) @ (W, B*Ho*C)
    xw = jnp.transpose(y, (2, 1, 0, 3)).reshape(W, B * Ho * C)
    yw = matmul_bias(Ww, xw, None, relu=False, out_dtype=cdt, compute_dtype=cdt)
    out = jnp.transpose(yw.reshape(Wo, B, Ho, C), (1, 2, 0, 3))
    return out


# ----------------------------------------------------------------------------
# Parameter construction (deterministic; inference BN folded into W / bias)
# ----------------------------------------------------------------------------
def _conv_bn_params(key, cin, cout, k):
    k1, k2, k3, k4, k5 = jax.random.split(key, 5)
    fan_in = cin * k * k
    w = jax.random.normal(k1, (cout, cin, k, k), jnp.float32) * jnp.sqrt(2.0 / fan_in)
    gamma = 1.0 + 0.05 * jax.random.normal(k2, (cout,), jnp.float32)
    beta = 0.05 * jax.random.normal(k3, (cout,), jnp.float32)
    mean = 0.05 * jax.random.normal(k4, (cout,), jnp.float32)
    var = jnp.abs(1.0 + 0.05 * jax.random.normal(k5, (cout,), jnp.float32))
    eps = 1e-5
    scale = gamma / jnp.sqrt(var + eps)
    bias = beta - mean * scale
    # Fold BN scale into the weight; keep (kh, kw, cin, cout) so reshape to the
    # matmul matrix is layout-trivial and matches the im2col patch order.
    w_folded = jnp.transpose(w, (2, 3, 1, 0)) * scale
    return {"w": w_folded.astype(jnp.bfloat16), "b": bias.astype(jnp.float32)}


def make_params(key, num_classes=2):
    keys = jax.random.split(key, 16)
    p = {}
    # backbone (reduced-channel ResNet-style stand-in; output_stride=16)
    p["stem"] = _conv_bn_params(keys[0], 3, 16, 3)       # /2
    p["layer1"] = _conv_bn_params(keys[1], 16, 32, 3)    # /4  -> low_level_feat
    p["layer2"] = _conv_bn_params(keys[2], 32, 64, 3)    # /8
    p["layer3"] = _conv_bn_params(keys[3], 64, 128, 3)   # /16 -> x
    # ASPP (output_stride=16 -> dilations 1, 6, 12, 18 + image pooling)
    p["aspp1"] = _conv_bn_params(keys[4], 128, 64, 1)
    p["aspp2"] = _conv_bn_params(keys[5], 128, 64, 3)
    p["aspp3"] = _conv_bn_params(keys[6], 128, 64, 3)
    p["aspp4"] = _conv_bn_params(keys[7], 128, 64, 3)
    p["aspp_pool"] = _conv_bn_params(keys[8], 128, 64, 1)
    p["aspp_merge"] = _conv_bn_params(keys[9], 5 * 64, 64, 1)
    # decoder
    p["dec_low"] = _conv_bn_params(keys[10], 32, 48, 1)
    p["dec1"] = _conv_bn_params(keys[11], 64 + 48, 64, 3)
    p["dec2"] = _conv_bn_params(keys[12], 64, 64, 3)
    # classifier (1x1 conv with bias, no BN, no ReLU)
    kcw, kcb = jax.random.split(keys[13])
    p["cls"] = {
        "w": (jax.random.normal(kcw, (1, 1, 64, num_classes), jnp.float32)
              * 0.1).astype(jnp.bfloat16),
        "b": 0.01 * jax.random.normal(kcb, (num_classes,), jnp.float32),
    }
    return p


# ----------------------------------------------------------------------------
# DeepLab forward (NCHW in, NCHW out)
# ----------------------------------------------------------------------------
def deeplab_forward(params, x_nchw):
    x = jnp.transpose(x_nchw, (0, 2, 3, 1)).astype(jnp.bfloat16)   # NHWC, bf16
    H_in, W_in = x.shape[1], x.shape[2]

    # ---- backbone: returns (x, low_level_feat)
    f = conv_bn_act(x, **params["stem"], stride=2, padding=1)
    low = conv_bn_act(f, **params["layer1"], stride=2, padding=1)   # stride 4
    f = conv_bn_act(low, **params["layer2"], stride=2, padding=1)
    f = conv_bn_act(f, **params["layer3"], stride=2, padding=1)     # stride 16

    # ---- ASPP
    b1 = conv_bn_act(f, **params["aspp1"])
    b2 = conv_bn_act(f, **params["aspp2"], dilation=6, padding=6)
    b3 = conv_bn_act(f, **params["aspp3"], dilation=12, padding=12)
    b4 = conv_bn_act(f, **params["aspp4"], dilation=18, padding=18)
    pooled = jnp.mean(f.astype(jnp.float32), axis=(1, 2), keepdims=True)  # image pool
    b5 = conv_bn_act(pooled, **params["aspp_pool"])
    # bilinear resize of a 1x1 map with align_corners is an exact broadcast
    b5 = jnp.broadcast_to(b5, (b5.shape[0], f.shape[1], f.shape[2], b5.shape[3]))
    a = jnp.concatenate([b1, b2, b3, b4, b5], axis=-1)
    a = conv_bn_act(a, **params["aspp_merge"])
    # Dropout(0.5): eval-mode identity

    # ---- decoder
    low = conv_bn_act(low, **params["dec_low"])                     # -> 48 ch
    a = bilinear_resize(a, low.shape[1], low.shape[2])
    d = jnp.concatenate([a, low], axis=-1)
    d = conv_bn_act(d, **params["dec1"], padding=1)
    d = conv_bn_act(d, **params["dec2"], padding=1)
    # classifier: plain conv (bias, no BN, no activation), f32 logits
    logits = conv_bn_act(d, **params["cls"], relu=False, out_dtype=jnp.float32)

    # ---- final bilinear upsample to input size (align_corners=True), f32 path
    out = bilinear_resize(logits, H_in, W_in)
    return jnp.transpose(out, (0, 3, 1, 2))                         # NCHW


if __name__ == "__main__":
    key = jax.random.PRNGKey(0)
    pkey, xkey = jax.random.split(key)
    params = make_params(pkey, num_classes=2)

    # small input consistent with the module's forward (RGB image, NCHW)
    x = jax.random.normal(xkey, (2, 3, 64, 64), jnp.float32)

    fwd = jax.jit(deeplab_forward)
    y = fwd(params, x)
    jax.block_until_ready(y)
    assert y.shape == (2, 2, 64, 64), y.shape
    assert jnp.all(jnp.isfinite(y))
    print("KERNEL_OK")
</pallas_src>

<mosaic_0001>
module attributes {stable_mosaic.version = 11 : i64} {
  func.func @_mm_bias_kernel(%arg0: i32, %arg1: memref<256x27xbf16, #tpu.memory_space<vmem>>, %arg2: memref<27x16xbf16, #tpu.memory_space<vmem>>, %arg3: memref<1x16xf32, #tpu.memory_space<vmem>>, %arg4: memref<256x16xbf16, #tpu.memory_space<vmem>>) attributes {dimension_semantics = [#tpu.dimension_semantics<parallel>], iteration_bounds = array<i64: 8>, scalar_prefetch = 0 : i64, scratch_operands = 0 : i64, tpu.core_type = #tpu.core_type<tc>, window_params = [{transform_indices = @transform_0, window_bounds = array<i64: 256, 27>}, {pipeline_mode = #tpu.pipeline_mode<synchronous>, transform_indices = @transform_1, window_bounds = array<i64: 27, 16>}, {pipeline_mode = #tpu.pipeline_mode<synchronous>, transform_indices = @transform_2, window_bounds = array<i64: 1, 16>}, {transform_indices = @transform_3, window_bounds = array<i64: 256, 16>}]} {
    %c0 = arith.constant 0 : index
    %c0_0 = arith.constant 0 : index
    %0 = vector.load %arg1[%c0, %c0_0] : memref<256x27xbf16, #tpu.memory_space<vmem>>, vector<256x27xbf16>
    %c0_1 = arith.constant 0 : index
    %c0_2 = arith.constant 0 : index
    %1 = vector.load %arg2[%c0_1, %c0_2] : memref<27x16xbf16, #tpu.memory_space<vmem>>, vector<27x16xbf16>
    %cst = arith.constant dense<0.000000e+00> : vector<256x16xf32>
    %2 = tpu.matmul %0, %1, %cst {dimension_numbers = #tpu.dot_dimension_numbers<[1], [0], [0], [1], [0, 0, 1, 1], [], []>} : vector<256x27xbf16>, vector<27x16xbf16>, vector<256x16xf32> -> vector<256x16xf32>
    %c0_3 = arith.constant 0 : index
    %c0_4 = arith.constant 0 : index
    %3 = vector.load %arg3[%c0_3, %c0_4] : memref<1x16xf32, #tpu.memory_space<vmem>>, vector<1x16xf32>
    %4 = vector.broadcast %3 : vector<1x16xf32> to vector<256x16xf32>
    %5 = arith.addf %2, %4 : vector<256x16xf32>
    %cst_5 = arith.constant 0.000000e+00 : f32
    %6 = vector.broadcast %cst_5 : f32 to vector<256x16xf32>
    %7 = arith.maximumf %5, %6 : vector<256x16xf32>
    %8 = arith.truncf %7 : vector<256x16xf32> to vector<256x16xbf16>
    %c0_6 = arith.constant 0 : index
    %c0_7 = arith.constant 0 : index
    %9 = vector.load %arg4[%c0_6, %c0_7] : memref<256x16xbf16, #tpu.memory_space<vmem>>, vector<256x16xbf16>
    tpu.vector_store %arg4[%c0_6, %c0_7], %8 {strides = array<i32>} : memref<256x16xbf16, #tpu.memory_space<vmem>>, vector<256x16xbf16>,
    return
  }
  func.func @transform_0(%arg0: i32) -> (i32, i32) {
    %c0_i32 = arith.constant 0 : i32
    %c0_i32_0 = arith.constant 0 : i32
    return %arg0, %c0_i32 : i32, i32
  }
  func.func @transform_1(%arg0: i32) -> (i32, i32) {
    %c0_i32 = arith.constant 0 : i32
    %c0_i32_0 = arith.constant 0 : i32
    %c0_i32_1 = arith.constant 0 : i32
    return %c0_i32, %c0_i32_0 : i32, i32
  }
  func.func @transform_2(%arg0: i32) -> (i32, i32) {
    %c0_i32 = arith.constant 0 : i32
    %c0_i32_0 = arith.constant 0 : i32
    %c0_i32_1 = arith.constant 0 : i32
    return %c0_i32, %c0_i32_0 : i32, i32
  }
  func.func @transform_3(%arg0: i32) -> (i32, i32) {
    %c0_i32 = arith.constant 0 : i32
    %c0_i32_0 = arith.constant 0 : i32
    return %arg0, %c0_i32 : i32, i32
  }
}

module attributes {stable_mosaic.version = 11 : i64} {
  func.func @_mm_bias_kernel(%arg0: i32, %arg1: memref<256x144xbf16, #tpu.memory_space<vmem>>, %arg2: memref<144x32xbf16, #tpu.memory_space<vmem>>, %arg3: memref<1x32xf32, #tpu.memory_space<vmem>>, %arg4: memref<256x32xbf16, #tpu.memory_space<vmem>>) attributes {dimension_semantics = [#tpu.dimension_semantics<parallel>], iteration_bounds = array<i64: 2>, scalar_prefetch = 0 : i64, scratch_operands = 0 : i64, tpu.core_type = #tpu.core_type<tc>, window_params = [{transform_indices = @transform_0, window_bounds = array<i64: 256, 144>}, {pipeline_mode = #tpu.pipeline_mode<synchronous>, transform_indices = @transform_1, window_bounds = array<i64: 144, 32>}, {pipeline_mode = #tpu.pipeline_mode<synchronous>, transform_indices = @transform_2, window_bounds = array<i64: 1, 32>}, {transform_indices = @transform_3, window_bounds = array<i64: 256, 32>}]} {
    %c0 = arith.constant 0 : index
    %c0_0 = arith.constant 0 : index
    %0 = vector.load %arg1[%c0, %c0_0] : memref<256x144xbf16, #tpu.memory_space<vmem>>, vector<256x144xbf16>
    %c0_1 = arith.constant 0 : index
    %c0_2 = arith.constant 0 : index
    %1 = vector.load %arg2[%c0_1, %c0_2] : memref<144x32xbf16, #tpu.memory_space<vmem>>, vector<144x32xbf16>
    %cst = arith.constant dense<0.000000e+00> : vector<256x32xf32>
    %2 = tpu.matmul %0, %1, %cst {dimension_numbers = #tpu.dot_dimension_numbers<[1], [0], [0], [1], [0, 0, 1, 1], [], []>} : vector<256x144xbf16>, vector<144x32xbf16>, vector<256x32xf32> -> vector<256x32xf32>
    %c0_3 = arith.constant 0 : index
    %c0_4 = arith.constant 0 : index
    %3 = vector.load %arg3[%c0_3, %c0_4] : memref<1x32xf32, #tpu.memory_space<vmem>>, vector<1x32xf32>
    %4 = vector.broadcast %3 : vector<1x32xf32> to vector<256x32xf32>
    %5 = arith.addf %2, %4 : vector<256x32xf32>
    %cst_5 = arith.constant 0.000000e+00 : f32
    %6 = vector.broadcast %cst_5 : f32 to vector<256x32xf32>
    %7 = arith.maximumf %5, %6 : vector<256x32xf32>
    %8 = arith.truncf %7 : vector<256x32xf32> to vector<256x32xbf16>
    %c0_6 = arith.constant 0 : index
    %c0_7 = arith.constant 0 : index
    %9 = vector.load %arg4[%c0_6, %c0_7] : memref<256x32xbf16, #tpu.memory_space<vmem>>, vector<256x32xbf16>
    tpu.vector_store %arg4[%c0_6, %c0_7], %8 {strides = array<i32>} : memref<256x32xbf16, #tpu.memory_space<vmem>>, vector<256x32xbf16>,
    return
  }
  func.func @transform_0(%arg0: i32) -> (i32, i32) {
    %c0_i32 = arith.constant 0 : i32
    %c0_i32_0 = arith.constant 0 : i32
    return %arg0, %c0_i32 : i32, i32
  }
  func.func @transform_1(%arg0: i32) -> (i32, i32) {
    %c0_i32 = arith.constant 0 : i32
    %c0_i32_0 = arith.constant 0 : i32
    %c0_i32_1 = arith.constant 0 : i32
    return %c0_i32, %c0_i32_0 : i32, i32
  }
  func.func @transform_2(%arg0: i32) -> (i32, i32) {
    %c0_i32 = arith.constant 0 : i32
    %c0_i32_0 = arith.constant 0 : i32
    %c0_i32_1 = arith.constant 0 : i32
    return %c0_i32, %c0_i32_0 : i32, i32
  }
  func.func @transform_3(%arg0: i32) -> (i32, i32) {
    %c0_i32 = arith.constant 0 : i32
    %c0_i32_0 = arith.constant 0 : i32
    return %arg0, %c0_i32 : i32, i32
  }
}

module attributes {stable_mosaic.version = 11 : i64} {
  func.func @_mm_bias_kernel(%arg0: i32, %arg1: memref<128x288xbf16, #tpu.memory_space<vmem>>, %arg2: memref<288x64xbf16, #tpu.memory_space<vmem>>, %arg3: memref<1x64xf32, #tpu.memory_space<vmem>>, %arg4: memref<128x64xbf16, #tpu.memory_space<vmem>>) attributes {dimension_semantics = [#tpu.dimension_semantics<parallel>], iteration_bounds = array<i64: 1>, scalar_prefetch = 0 : i64, scratch_operands = 0 : i64, tpu.core_type = #tpu.core_type<tc>, window_params = [{transform_indices = @transform_0, window_bounds = array<i64: 128, 288>}, {pipeline_mode = #tpu.pipeline_mode<synchronous>, transform_indices = @transform_1, window_bounds = array<i64: 288, 64>}, {pipeline_mode = #tpu.pipeline_mode<synchronous>, transform_indices = @transform_2, window_bounds = array<i64: 1, 64>}, {transform_indices = @transform_3, window_bounds = array<i64: 128, 64>}]} {
    %c0 = arith.constant 0 : index
    %c0_0 = arith.constant 0 : index
    %0 = vector.load %arg1[%c0, %c0_0] : memref<128x288xbf16, #tpu.memory_space<vmem>>, vector<128x288xbf16>
    %c0_1 = arith.constant 0 : index
    %c0_2 = arith.constant 0 : index
    %1 = vector.load %arg2[%c0_1, %c0_2] : memref<288x64xbf16, #tpu.memory_space<vmem>>, vector<288x64xbf16>
    %cst = arith.constant dense<0.000000e+00> : vector<128x64xf32>
    %2 = tpu.matmul %0, %1, %cst {dimension_numbers = #tpu.dot_dimension_numbers<[1], [0], [0], [1], [0, 0, 1, 1], [], []>} : vector<128x288xbf16>, vector<288x64xbf16>, vector<128x64xf32> -> vector<128x64xf32>
    %c0_3 = arith.constant 0 : index
    %c0_4 = arith.constant 0 : index
    %3 = vector.load %arg3[%c0_3, %c0_4] : memref<1x64xf32, #tpu.memory_space<vmem>>, vector<1x64xf32>
    %4 = vector.broadcast %3 : vector<1x64xf32> to vector<128x64xf32>
    %5 = arith.addf %2, %4 : vector<128x64xf32>
    %cst_5 = arith.constant 0.000000e+00 : f32
    %6 = vector.broadcast %cst_5 : f32 to vector<128x64xf32>
    %7 = arith.maximumf %5, %6 : vector<128x64xf32>
    %8 = arith.truncf %7 : vector<128x64xf32> to vector<128x64xbf16>
    %c0_6 = arith.constant 0 : index
    %c0_7 = arith.constant 0 : index
    %9 = vector.load %arg4[%c0_6, %c0_7] : memref<128x64xbf16, #tpu.memory_space<vmem>>, vector<128x64xbf16>
    tpu.vector_store %arg4[%c0_6, %c0_7], %8 {strides = array<i32>} : memref<128x64xbf16, #tpu.memory_space<vmem>>, vector<128x64xbf16>,
    return
  }
  func.func @transform_0(%arg0: i32) -> (i32, i32) {
    %c0_i32 = arith.constant 0 : i32
    %c0_i32_0 = arith.constant 0 : i32
    return %arg0, %c0_i32 : i32, i32
  }
  func.func @transform_1(%arg0: i32) -> (i32, i32) {
    %c0_i32 = arith.constant 0 : i32
    %c0_i32_0 = arith.constant 0 : i32
    %c0_i32_1 = arith.constant 0 : i32
    return %c0_i32, %c0_i32_0 : i32, i32
  }
  func.func @transform_2(%arg0: i32) -> (i32, i32) {
    %c0_i32 = arith.constant 0 : i32
    %c0_i32_0 = arith.constant 0 : i32
    %c0_i32_1 = arith.constant 0 : i32
    return %c0_i32, %c0_i32_0 : i32, i32
  }
  func.func @transform_3(%arg0: i32) -> (i32, i32) {
    %c0_i32 = arith.constant 0 : i32
    %c0_i32_0 = arith.constant 0 : i32
    return %arg0, %c0_i32 : i32, i32
  }
}

module attributes {stable_mosaic.version = 11 : i64} {
  func.func @_mm_bias_kernel(%arg0: i32, %arg1: memref<32x576xbf16, #tpu.memory_space<vmem>>, %arg2: memref<576x128xbf16, #tpu.memory_space<vmem>>, %arg3: memref<1x128xf32, #tpu.memory_space<vmem>>, %arg4: memref<32x128xbf16, #tpu.memory_space<vmem>>) attributes {dimension_semantics = [#tpu.dimension_semantics<parallel>], iteration_bounds = array<i64: 1>, scalar_prefetch = 0 : i64, scratch_operands = 0 : i64, tpu.core_type = #tpu.core_type<tc>, window_params = [{transform_indices = @transform_0, window_bounds = array<i64: 32, 576>}, {pipeline_mode = #tpu.pipeline_mode<synchronous>, transform_indices = @transform_1, window_bounds = array<i64: 576, 128>}, {pipeline_mode = #tpu.pipeline_mode<synchronous>, transform_indices = @transform_2, window_bounds = array<i64: 1, 128>}, {transform_indices = @transform_3, window_bounds = array<i64: 32, 128>}]} {
    %c0 = arith.constant 0 : index
    %c0_0 = arith.constant 0 : index
    %0 = vector.load %arg1[%c0, %c0_0] : memref<32x576xbf16, #tpu.memory_space<vmem>>, vector<32x576xbf16>
    %c0_1 = arith.constant 0 : index
    %c0_2 = arith.constant 0 : index
    %1 = vector.load %arg2[%c0_1, %c0_2] : memref<576x128xbf16, #tpu.memory_space<vmem>>, vector<576x128xbf16>
    %cst = arith.constant dense<0.000000e+00> : vector<32x128xf32>
    %2 = tpu.matmul %0, %1, %cst {dimension_numbers = #tpu.dot_dimension_numbers<[1], [0], [0], [1], [0, 0, 1, 1], [], []>} : vector<32x576xbf16>, vector<576x128xbf16>, vector<32x128xf32> -> vector<32x128xf32>
    %c0_3 = arith.constant 0 : index
    %c0_4 = arith.constant 0 : index
    %3 = vector.load %arg3[%c0_3, %c0_4] : memref<1x128xf32, #tpu.memory_space<vmem>>, vector<1x128xf32>
    %4 = vector.broadcast %3 : vector<1x128xf32> to vector<32x128xf32>
    %5 = arith.addf %2, %4 : vector<32x128xf32>
    %cst_5 = arith.constant 0.000000e+00 : f32
    %6 = vector.broadcast %cst_5 : f32 to vector<32x128xf32>
    %7 = arith.maximumf %5, %6 : vector<32x128xf32>
    %8 = arith.truncf %7 : vector<32x128xf32> to vector<32x128xbf16>
    %c0_6 = arith.constant 0 : index
    %c0_7 = arith.constant 0 : index
    %9 = vector.load %arg4[%c0_6, %c0_7] : memref<32x128xbf16, #tpu.memory_space<vmem>>, vector<32x128xbf16>
    tpu.vector_store %arg4[%c0_6, %c0_7], %8 {strides = array<i32>} : memref<32x128xbf16, #tpu.memory_space<vmem>>, vector<32x128xbf16>,
    return
  }
  func.func @transform_0(%arg0: i32) -> (i32, i32) {
    %c0_i32 = arith.constant 0 : i32
    %c0_i32_0 = arith.constant 0 : i32
    return %arg0, %c0_i32 : i32, i32
  }
  func.func @transform_1(%arg0: i32) -> (i32, i32) {
    %c0_i32 = arith.constant 0 : i32
    %c0_i32_0 = arith.constant 0 : i32
    %c0_i32_1 = arith.constant 0 : i32
    return %c0_i32, %c0_i32_0 : i32, i32
  }
  func.func @transform_2(%arg0: i32) -> (i32, i32) {
    %c0_i32 = arith.constant 0 : i32
    %c0_i32_0 = arith.constant 0 : i32
    %c0_i32_1 = arith.constant 0 : i32
    return %c0_i32, %c0_i32_0 : i32, i32
  }
  func.func @transform_3(%arg0: i32) -> (i32, i32) {
    %c0_i32 = arith.constant 0 : i32
    %c0_i32_0 = arith.constant 0 : i32
    return %arg0, %c0_i32 : i32, i32
  }
}

module attributes {stable_mosaic.version = 11 : i64} {
  func.func @_mm_bias_kernel(%arg0: i32, %arg1: memref<8x128xbf16, #tpu.memory_space<vmem>>, %arg2: memref<128x64xbf16, #tpu.memory_space<vmem>>, %arg3: memref<1x64xf32, #tpu.memory_space<vmem>>, %arg4: memref<8x64xbf16, #tpu.memory_space<vmem>>) attributes {dimension_semantics = [#tpu.dimension_semantics<parallel>], iteration_bounds = array<i64: 1>, scalar_prefetch = 0 : i64, scratch_operands = 0 : i64, tpu.core_type = #tpu.core_type<tc>, window_params = [{transform_indices = @transform_0, window_bounds = array<i64: 8, 128>}, {pipeline_mode = #tpu.pipeline_mode<synchronous>, transform_indices = @transform_1, window_bounds = array<i64: 128, 64>}, {pipeline_mode = #tpu.pipeline_mode<synchronous>, transform_indices = @transform_2, window_bounds = array<i64: 1, 64>}, {transform_indices = @transform_3, window_bounds = array<i64: 8, 64>}]} {
    %c0 = arith.constant 0 : index
    %c0_0 = arith.constant 0 : index
    %0 = vector.load %arg1[%c0, %c0_0] : memref<8x128xbf16, #tpu.memory_space<vmem>>, vector<8x128xbf16>
    %c0_1 = arith.constant 0 : index
    %c0_2 = arith.constant 0 : index
    %1 = vector.load %arg2[%c0_1, %c0_2] : memref<128x64xbf16, #tpu.memory_space<vmem>>, vector<128x64xbf16>
    %cst = arith.constant dense<0.000000e+00> : vector<8x64xf32>
    %2 = tpu.matmul %0, %1, %cst {dimension_numbers = #tpu.dot_dimension_numbers<[1], [0], [0], [1], [0, 0, 1, 1], [], []>} : vector<8x128xbf16>, vector<128x64xbf16>, vector<8x64xf32> -> vector<8x64xf32>
    %c0_3 = arith.constant 0 : index
    %c0_4 = arith.constant 0 : index
    %3 = vector.load %arg3[%c0_3, %c0_4] : memref<1x64xf32, #tpu.memory_space<vmem>>, vector<1x64xf32>
    %4 = vector.broadcast %3 : vector<1x64xf32> to vector<8x64xf32>
    %5 = arith.addf %2, %4 : vector<8x64xf32>
    %cst_5 = arith.constant 0.000000e+00 : f32
    %6 = vector.broadcast %cst_5 : f32 to vector<8x64xf32>
    %7 = arith.maximumf %5, %6 : vector<8x64xf32>
    %8 = arith.truncf %7 : vector<8x64xf32> to vector<8x64xbf16>
    %c0_6 = arith.constant 0 : index
    %c0_7 = arith.constant 0 : index
    %9 = vector.load %arg4[%c0_6, %c0_7] : memref<8x64xbf16, #tpu.memory_space<vmem>>, vector<8x64xbf16>
    tpu.vector_store %arg4[%c0_6, %c0_7], %8 {strides = array<i32>} : memref<8x64xbf16, #tpu.memory_space<vmem>>, vector<8x64xbf16>,
    return
  }
  func.func @transform_0(%arg0: i32) -> (i32, i32) {
    %c0_i32 = arith.constant 0 : i32
    %c0_i32_0 = arith.constant 0 : i32
    return %arg0, %c0_i32 : i32, i32
  }
  func.func @transform_1(%arg0: i32) -> (i32, i32) {
    %c0_i32 = arith.constant 0 : i32
    %c0_i32_0 = arith.constant 0 : i32
    %c0_i32_1 = arith.constant 0 : i32
    return %c0_i32, %c0_i32_0 : i32, i32
  }
  func.func @transform_2(%arg0: i32) -> (i32, i32) {
    %c0_i32 = arith.constant 0 : i32
    %c0_i32_0 = arith.constant 0 : i32
    %c0_i32_1 = arith.constant 0 : i32
    return %c0_i32, %c0_i32_0 : i32, i32
  }
  func.func @transform_3(%arg0: i32) -> (i32, i32) {
    %c0_i32 = arith.constant 0 : i32
    %c0_i32_0 = arith.constant 0 : i32
    return %arg0, %c0_i32 : i32, i32
  }
}

module attributes {stable_mosaic.version = 11 : i64} {
  func.func @_mm_bias_kernel(%arg0: i32, %arg1: memref<32x1152xbf16, #tpu.memory_space<vmem>>, %arg2: memref<1152x64xbf16, #tpu.memory_space<vmem>>, %arg3: memref<1x64xf32, #tpu.memory_space<vmem>>, %arg4: memref<32x64xbf16, #tpu.memory_space<vmem>>) attributes {dimension_semantics = [#tpu.dimension_semantics<parallel>], iteration_bounds = array<i64: 1>, scalar_prefetch = 0 : i64, scratch_operands = 0 : i64, tpu.core_type = #tpu.core_type<tc>, window_params = [{transform_indices = @transform_0, window_bounds = array<i64: 32, 1152>}, {pipeline_mode = #tpu.pipeline_mode<synchronous>, transform_indices = @transform_1, window_bounds = array<i64: 1152, 64>}, {pipeline_mode = #tpu.pipeline_mode<synchronous>, transform_indices = @transform_2, window_bounds = array<i64: 1, 64>}, {transform_indices = @transform_3, window_bounds = array<i64: 32, 64>}]} {
    %c0 = arith.constant 0 : index
    %c0_0 = arith.constant 0 : index
    %0 = vector.load %arg1[%c0, %c0_0] : memref<32x1152xbf16, #tpu.memory_space<vmem>>, vector<32x1152xbf16>
    %c0_1 = arith.constant 0 : index
    %c0_2 = arith.constant 0 : index
    %1 = vector.load %arg2[%c0_1, %c0_2] : memref<1152x64xbf16, #tpu.memory_space<vmem>>, vector<1152x64xbf16>
    %cst = arith.constant dense<0.000000e+00> : vector<32x64xf32>
    %2 = tpu.matmul %0, %1, %cst {dimension_numbers = #tpu.dot_dimension_numbers<[1], [0], [0], [1], [0, 0, 1, 1], [], []>} : vector<32x1152xbf16>, vector<1152x64xbf16>, vector<32x64xf32> -> vector<32x64xf32>
    %c0_3 = arith.constant 0 : index
    %c0_4 = arith.constant 0 : index
    %3 = vector.load %arg3[%c0_3, %c0_4] : memref<1x64xf32, #tpu.memory_space<vmem>>, vector<1x64xf32>
    %4 = vector.broadcast %3 : vector<1x64xf32> to vector<32x64xf32>
    %5 = arith.addf %2, %4 : vector<32x64xf32>
    %cst_5 = arith.constant 0.000000e+00 : f32
    %6 = vector.broadcast %cst_5 : f32 to vector<32x64xf32>
    %7 = arith.maximumf %5, %6 : vector<32x64xf32>
    %8 = arith.truncf %7 : vector<32x64xf32> to vector<32x64xbf16>
    %c0_6 = arith.constant 0 : index
    %c0_7 = arith.constant 0 : index
    %9 = vector.load %arg4[%c0_6, %c0_7] : memref<32x64xbf16, #tpu.memory_space<vmem>>, vector<32x64xbf16>
    tpu.vector_store %arg4[%c0_6, %c0_7], %8 {strides = array<i32>} : memref<32x64xbf16, #tpu.memory_space<vmem>>, vector<32x64xbf16>,
    return
  }
  func.func @transform_0(%arg0: i32) -> (i32, i32) {
    %c0_i32 = arith.constant 0 : i32
    %c0_i32_0 = arith.constant 0 : i32
    return %arg0, %c0_i32 : i32, i32
  }
  func.func @transform_1(%arg0: i32) -> (i32, i32) {
    %c0_i32 = arith.constant 0 : i32
    %c0_i32_0 = arith.constant 0 : i32
    %c0_i32_1 = arith.constant 0 : i32
    return %c0_i32, %c0_i32_0 : i32, i32
  }
  func.func @transform_2(%arg0: i32) -> (i32, i32) {
    %c0_i32 = arith.constant 0 : i32
    %c0_i32_0 = arith.constant 0 : i32
    %c0_i32_1 = arith.constant 0 : i32
    return %c0_i32, %c0_i32_0 : i32, i32
  }
  func.func @transform_3(%arg0: i32) -> (i32, i32) {
    %c0_i32 = arith.constant 0 : i32
    %c0_i32_0 = arith.constant 0 : i32
    return %arg0, %c0_i32 : i32, i32
  }
}

module attributes {stable_mosaic.version = 11 : i64} {
  func.func @_mm_bias_kernel(%arg0: i32, %arg1: memref<32x320xbf16, #tpu.memory_space<vmem>>, %arg2: memref<320x64xbf16, #tpu.memory_space<vmem>>, %arg3: memref<1x64xf32, #tpu.memory_space<vmem>>, %arg4: memref<32x64xbf16, #tpu.memory_space<vmem>>) attributes {dimension_semantics = [#tpu.dimension_semantics<parallel>], iteration_bounds = array<i64: 1>, scalar_prefetch = 0 : i64, scratch_operands = 0 : i64, tpu.core_type = #tpu.core_type<tc>, window_params = [{transform_indices = @transform_0, window_bounds = array<i64: 32, 320>}, {pipeline_mode = #tpu.pipeline_mode<synchronous>, transform_indices = @transform_1, window_bounds = array<i64: 320, 64>}, {pipeline_mode = #tpu.pipeline_mode<synchronous>, transform_indices = @transform_2, window_bounds = array<i64: 1, 64>}, {transform_indices = @transform_3, window_bounds = array<i64: 32, 64>}]} {
    %c0 = arith.constant 0 : index
    %c0_0 = arith.constant 0 : index
    %0 = vector.load %arg1[%c0, %c0_0] : memref<32x320xbf16, #tpu.memory_space<vmem>>, vector<32x320xbf16>
    %c0_1 = arith.constant 0 : index
    %c0_2 = arith.constant 0 : index
    %1 = vector.load %arg2[%c0_1, %c0_2] : memref<320x64xbf16, #tpu.memory_space<vmem>>, vector<320x64xbf16>
    %cst = arith.constant dense<0.000000e+00> : vector<32x64xf32>
    %2 = tpu.matmul %0, %1, %cst {dimension_numbers = #tpu.dot_dimension_numbers<[1], [0], [0], [1], [0, 0, 1, 1], [], []>} : vector<32x320xbf16>, vector<320x64xbf16>, vector<32x64xf32> -> vector<32x64xf32>
    %c0_3 = arith.constant 0 : index
    %c0_4 = arith.constant 0 : index
    %3 = vector.load %arg3[%c0_3, %c0_4] : memref<1x64xf32, #tpu.memory_space<vmem>>, vector<1x64xf32>
    %4 = vector.broadcast %3 : vector<1x64xf32> to vector<32x64xf32>
    %5 = arith.addf %2, %4 : vector<32x64xf32>
    %cst_5 = arith.constant 0.000000e+00 : f32
    %6 = vector.broadcast %cst_5 : f32 to vector<32x64xf32>
    %7 = arith.maximumf %5, %6 : vector<32x64xf32>
    %8 = arith.truncf %7 : vector<32x64xf32> to vector<32x64xbf16>
    %c0_6 = arith.constant 0 : index
    %c0_7 = arith.constant 0 : index
    %9 = vector.load %arg4[%c0_6, %c0_7] : memref<32x64xbf16, #tpu.memory_space<vmem>>, vector<32x64xbf16>
    tpu.vector_store %arg4[%c0_6, %c0_7], %8 {strides = array<i32>} : memref<32x64xbf16, #tpu.memory_space<vmem>>, vector<32x64xbf16>,
    return
  }
  func.func @transform_0(%arg0: i32) -> (i32, i32) {
    %c0_i32 = arith.constant 0 : i32
    %c0_i32_0 = arith.constant 0 : i32
    return %arg0, %c0_i32 : i32, i32
  }
  func.func @transform_1(%arg0: i32) -> (i32, i32) {
    %c0_i32 = arith.constant 0 : i32
    %c0_i32_0 = arith.constant 0 : i32
    %c0_i32_1 = arith.constant 0 : i32
    return %c0_i32, %c0_i32_0 : i32, i32
  }
  func.func @transform_2(%arg0: i32) -> (i32, i32) {
    %c0_i32 = arith.constant 0 : i32
    %c0_i32_0 = arith.constant 0 : i32
    %c0_i32_1 = arith.constant 0 : i32
    return %c0_i32, %c0_i32_0 : i32, i32
  }
  func.func @transform_3(%arg0: i32) -> (i32, i32) {
    %c0_i32 = arith.constant 0 : i32
    %c0_i32_0 = arith.constant 0 : i32
    return %arg0, %c0_i32 : i32, i32
  }
}

module attributes {stable_mosaic.version = 11 : i64} {
  func.func @_mm_bias_kernel(%arg0: i32, %arg1: memref<32x128xbf16, #tpu.memory_space<vmem>>, %arg2: memref<128x64xbf16, #tpu.memory_space<vmem>>, %arg3: memref<1x64xf32, #tpu.memory_space<vmem>>, %arg4: memref<32x64xbf16, #tpu.memory_space<vmem>>) attributes {dimension_semantics = [#tpu.dimension_semantics<parallel>], iteration_bounds = array<i64: 1>, scalar_prefetch = 0 : i64, scratch_operands = 0 : i64, tpu.core_type = #tpu.core_type<tc>, window_params = [{transform_indices = @transform_0, window_bounds = array<i64: 32, 128>}, {pipeline_mode = #tpu.pipeline_mode<synchronous>, transform_indices = @transform_1, window_bounds = array<i64: 128, 64>}, {pipeline_mode = #tpu.pipeline_mode<synchronous>, transform_indices = @transform_2, window_bounds = array<i64: 1, 64>}, {transform_indices = @transform_3, window_bounds = array<i64: 32, 64>}]} {
    %c0 = arith.constant 0 : index
    %c0_0 = arith.constant 0 : index
    %0 = vector.load %arg1[%c0, %c0_0] : memref<32x128xbf16, #tpu.memory_space<vmem>>, vector<32x128xbf16>
    %c0_1 = arith.constant 0 : index
    %c0_2 = arith.constant 0 : index
    %1 = vector.load %arg2[%c0_1, %c0_2] : memref<128x64xbf16, #tpu.memory_space<vmem>>, vector<128x64xbf16>
    %cst = arith.constant dense<0.000000e+00> : vector<32x64xf32>
    %2 = tpu.matmul %0, %1, %cst {dimension_numbers = #tpu.dot_dimension_numbers<[1], [0], [0], [1], [0, 0, 1, 1], [], []>} : vector<32x128xbf16>, vector<128x64xbf16>, vector<32x64xf32> -> vector<32x64xf32>
    %c0_3 = arith.constant 0 : index
    %c0_4 = arith.constant 0 : index
    %3 = vector.load %arg3[%c0_3, %c0_4] : memref<1x64xf32, #tpu.memory_space<vmem>>, vector<1x64xf32>
    %4 = vector.broadcast %3 : vector<1x64xf32> to vector<32x64xf32>
    %5 = arith.addf %2, %4 : vector<32x64xf32>
    %cst_5 = arith.constant 0.000000e+00 : f32
    %6 = vector.broadcast %cst_5 : f32 to vector<32x64xf32>
    %7 = arith.maximumf %5, %6 : vector<32x64xf32>
    %8 = arith.truncf %7 : vector<32x64xf32> to vector<32x64xbf16>
    %c0_6 = arith.constant 0 : index
    %c0_7 = arith.constant 0 : index
    %9 = vector.load %arg4[%c0_6, %c0_7] : memref<32x64xbf16, #tpu.memory_space<vmem>>, vector<32x64xbf16>
    tpu.vector_store %arg4[%c0_6, %c0_7], %8 {strides = array<i32>} : memref<32x64xbf16, #tpu.memory_space<vmem>>, vector<32x64xbf16>,
    return
  }
  func.func @transform_0(%arg0: i32) -> (i32, i32) {
    %c0_i32 = arith.constant 0 : i32
    %c0_i32_0 = arith.constant 0 : i32
    return %arg0, %c0_i32 : i32, i32
  }
  func.func @transform_1(%arg0: i32) -> (i32, i32) {
    %c0_i32 = arith.constant 0 : i32
    %c0_i32_0 = arith.constant 0 : i32
    %c0_i32_1 = arith.constant 0 : i32
    return %c0_i32, %c0_i32_0 : i32, i32
  }
  func.func @transform_2(%arg0: i32) -> (i32, i32) {
    %c0_i32 = arith.constant 0 : i32
    %c0_i32_0 = arith.constant 0 : i32
    %c0_i32_1 = arith.constant 0 : i32
    return %c0_i32, %c0_i32_0 : i32, i32
  }
  func.func @transform_3(%arg0: i32) -> (i32, i32) {
    %c0_i32 = arith.constant 0 : i32
    %c0_i32_0 = arith.constant 0 : i32
    return %arg0, %c0_i32 : i32, i32
  }
}

module attributes {stable_mosaic.version = 11 : i64} {
  func.func @_mm_bias_kernel(%arg0: i32, %arg1: memref<16x4xbf16, #tpu.memory_space<vmem>>, %arg2: memref<4x512xbf16, #tpu.memory_space<vmem>>, %arg3: memref<1x512xf32, #tpu.memory_space<vmem>>, %arg4: memref<16x512xbf16, #tpu.memory_space<vmem>>) attributes {dimension_semantics = [#tpu.dimension_semantics<parallel>], iteration_bounds = array<i64: 1>, scalar_prefetch = 0 : i64, scratch_operands = 0 : i64, tpu.core_type = #tpu.core_type<tc>, window_params = [{transform_indices = @transform_0, window_bounds = array<i64: 16, 4>}, {pipeline_mode = #tpu.pipeline_mode<synchronous>, transform_indices = @transform_1, window_bounds = array<i64: 4, 512>}, {pipeline_mode = #tpu.pipeline_mode<synchronous>, transform_indices = @transform_2, window_bounds = array<i64: 1, 512>}, {transform_indices = @transform_3, window_bounds = array<i64: 16, 512>}]} {
    %c0 = arith.constant 0 : index
    %c0_0 = arith.constant 0 : index
    %0 = vector.load %arg1[%c0, %c0_0] : memref<16x4xbf16, #tpu.memory_space<vmem>>, vector<16x4xbf16>
    %c0_1 = arith.constant 0 : index
    %c0_2 = arith.constant 0 : index
    %1 = vector.load %arg2[%c0_1, %c0_2] : memref<4x512xbf16, #tpu.memory_space<vmem>>, vector<4x512xbf16>
    %cst = arith.constant dense<0.000000e+00> : vector<16x512xf32>
    %2 = tpu.matmul %0, %1, %cst {dimension_numbers = #tpu.dot_dimension_numbers<[1], [0], [0], [1], [0, 0, 1, 1], [], []>} : vector<16x4xbf16>, vector<4x512xbf16>, vector<16x512xf32> -> vector<16x512xf32>
    %c0_3 = arith.constant 0 : index
    %c0_4 = arith.constant 0 : index
    %3 = vector.load %arg3[%c0_3, %c0_4] : memref<1x512xf32, #tpu.memory_space<vmem>>, vector<1x512xf32>
    %4 = vector.broadcast %3 : vector<1x512xf32> to vector<16x512xf32>
    %5 = arith.addf %2, %4 : vector<16x512xf32>
    %6 = arith.truncf %5 : vector<16x512xf32> to vector<16x512xbf16>
    %c0_5 = arith.constant 0 : index
    %c0_6 = arith.constant 0 : index
    %7 = vector.load %arg4[%c0_5, %c0_6] : memref<16x512xbf16, #tpu.memory_space<vmem>>, vector<16x512xbf16>
    tpu.vector_store %arg4[%c0_5, %c0_6], %6 {strides = array<i32>} : memref<16x512xbf16, #tpu.memory_space<vmem>>, vector<16x512xbf16>,
    return
  }
  func.func @transform_0(%arg0: i32) -> (i32, i32) {
    %c0_i32 = arith.constant 0 : i32
    %c0_i32_0 = arith.constant 0 : i32
    return %arg0, %c0_i32 : i32, i32
  }
  func.func @transform_1(%arg0: i32) -> (i32, i32) {
    %c0_i32 = arith.constant 0 : i32
    %c0_i32_0 = arith.constant 0 : i32
    %c0_i32_1 = arith.constant 0 : i32
    return %c0_i32, %c0_i32_0 : i32, i32
  }
  func.func @transform_2(%arg0: i32) -> (i32, i32) {
    %c0_i32 = arith.constant 0 : i32
    %c0_i32_0 = arith.constant 0 : i32
    %c0_i32_1 = arith.constant 0 : i32
    return %c0_i32, %c0_i32_0 : i32, i32
  }
  func.func @transform_3(%arg0: i32) -> (i32, i32) {
    %c0_i32 = arith.constant 0 : i32
    %c0_i32_0 = arith.constant 0 : i32
    return %arg0, %c0_i32 : i32, i32
  }
}

module attributes {stable_mosaic.version = 11 : i64} {
  func.func @_mm_bias_kernel(%arg0: i32, %arg1: memref<16x4xbf16, #tpu.memory_space<vmem>>, %arg2: memref<4x2048xbf16, #tpu.memory_space<vmem>>, %arg3: memref<1x2048xf32, #tpu.memory_space<vmem>>, %arg4: memref<16x2048xbf16, #tpu.memory_space<vmem>>) attributes {dimension_semantics = [#tpu.dimension_semantics<parallel>], iteration_bounds = array<i64: 1>, scalar_prefetch = 0 : i64, scratch_operands = 0 : i64, tpu.core_type = #tpu.core_type<tc>, window_params = [{transform_indices = @transform_0, window_bounds = array<i64: 16, 4>}, {pipeline_mode = #tpu.pipeline_mode<synchronous>, transform_indices = @transform_1, window_bounds = array<i64: 4, 2048>}, {pipeline_mode = #tpu.pipeline_mode<synchronous>, transform_indices = @transform_2, window_bounds = array<i64: 1, 2048>}, {transform_indices = @transform_3, window_bounds = array<i64: 16, 2048>}]} {
    %c0 = arith.constant 0 : index
    %c0_0 = arith.constant 0 : index
    %0 = vector.load %arg1[%c0, %c0_0] : memref<16x4xbf16, #tpu.memory_space<vmem>>, vector<16x4xbf16>
    %c0_1 = arith.constant 0 : index
    %c0_2 = arith.constant 0 : index
    %1 = vector.load %arg2[%c0_1, %c0_2] : memref<4x2048xbf16, #tpu.memory_space<vmem>>, vector<4x2048xbf16>
    %cst = arith.constant dense<0.000000e+00> : vector<16x2048xf32>
    %2 = tpu.matmul %0, %1, %cst {dimension_numbers = #tpu.dot_dimension_numbers<[1], [0], [0], [1], [0, 0, 1, 1], [], []>} : vector<16x4xbf16>, vector<4x2048xbf16>, vector<16x2048xf32> -> vector<16x2048xf32>
    %c0_3 = arith.constant 0 : index
    %c0_4 = arith.constant 0 : index
    %3 = vector.load %arg3[%c0_3, %c0_4] : memref<1x2048xf32, #tpu.memory_space<vmem>>, vector<1x2048xf32>
    %4 = vector.broadcast %3 : vector<1x2048xf32> to vector<16x2048xf32>
    %5 = arith.addf %2, %4 : vector<16x2048xf32>
    %6 = arith.truncf %5 : vector<16x2048xf32> to vector<16x2048xbf16>
    %c0_5 = arith.constant 0 : index
    %c0_6 = arith.constant 0 : index
    %7 = vector.load %arg4[%c0_5, %c0_6] : memref<16x2048xbf16, #tpu.memory_space<vmem>>, vector<16x2048xbf16>
    tpu.vector_store %arg4[%c0_5, %c0_6], %6 {strides = array<i32>} : memref<16x2048xbf16, #tpu.memory_space<vmem>>, vector<16x2048xbf16>,
    return
  }
  func.func @transform_0(%arg0: i32) -> (i32, i32) {
    %c0_i32 = arith.constant 0 : i32
    %c0_i32_0 = arith.constant 0 : i32
    return %arg0, %c0_i32 : i32, i32
  }
  func.func @transform_1(%arg0: i32) -> (i32, i32) {
    %c0_i32 = arith.constant 0 : i32
    %c0_i32_0 = arith.constant 0 : i32
    %c0_i32_1 = arith.constant 0 : i32
    return %c0_i32, %c0_i32_0 : i32, i32
  }
  func.func @transform_2(%arg0: i32) -> (i32, i32) {
    %c0_i32 = arith.constant 0 : i32
    %c0_i32_0 = arith.constant 0 : i32
    %c0_i32_1 = arith.constant 0 : i32
    return %c0_i32, %c0_i32_0 : i32, i32
  }
  func.func @transform_3(%arg0: i32) -> (i32, i32) {
    %c0_i32 = arith.constant 0 : i32
    %c0_i32_0 = arith.constant 0 : i32
    return %arg0, %c0_i32 : i32, i32
  }
}

module attributes {stable_mosaic.version = 11 : i64} {
  func.func @_mm_bias_kernel(%arg0: i32, %arg1: memref<256x32xbf16, #tpu.memory_space<vmem>>, %arg2: memref<32x48xbf16, #tpu.memory_space<vmem>>, %arg3: memref<1x48xf32, #tpu.memory_space<vmem>>, %arg4: memref<256x48xbf16, #tpu.memory_space<vmem>>) attributes {dimension_semantics = [#tpu.dimension_semantics<parallel>], iteration_bounds = array<i64: 2>, scalar_prefetch = 0 : i64, scratch_operands = 0 : i64, tpu.core_type = #tpu.core_type<tc>, window_params = [{transform_indices = @transform_0, window_bounds = array<i64: 256, 32>}, {pipeline_mode = #tpu.pipeline_mode<synchronous>, transform_indices = @transform_1, window_bounds = array<i64: 32, 48>}, {pipeline_mode = #tpu.pipeline_mode<synchronous>, transform_indices = @transform_2, window_bounds = array<i64: 1, 48>}, {transform_indices = @transform_3, window_bounds = array<i64: 256, 48>}]} {
    %c0 = arith.constant 0 : index
    %c0_0 = arith.constant 0 : index
    %0 = vector.load %arg1[%c0, %c0_0] : memref<256x32xbf16, #tpu.memory_space<vmem>>, vector<256x32xbf16>
    %c0_1 = arith.constant 0 : index
    %c0_2 = arith.constant 0 : index
    %1 = vector.load %arg2[%c0_1, %c0_2] : memref<32x48xbf16, #tpu.memory_space<vmem>>, vector<32x48xbf16>
    %cst = arith.constant dense<0.000000e+00> : vector<256x48xf32>
    %2 = tpu.matmul %0, %1, %cst {dimension_numbers = #tpu.dot_dimension_numbers<[1], [0], [0], [1], [0, 0, 1, 1], [], []>} : vector<256x32xbf16>, vector<32x48xbf16>, vector<256x48xf32> -> vector<256x48xf32>
    %c0_3 = arith.constant 0 : index
    %c0_4 = arith.constant 0 : index
    %3 = vector.load %arg3[%c0_3, %c0_4] : memref<1x48xf32, #tpu.memory_space<vmem>>, vector<1x48xf32>
    %4 = vector.broadcast %3 : vector<1x48xf32> to vector<256x48xf32>
    %5 = arith.addf %2, %4 : vector<256x48xf32>
    %cst_5 = arith.constant 0.000000e+00 : f32
    %6 = vector.broadcast %cst_5 : f32 to vector<256x48xf32>
    %7 = arith.maximumf %5, %6 : vector<256x48xf32>
    %8 = arith.truncf %7 : vector<256x48xf32> to vector<256x48xbf16>
    %c0_6 = arith.constant 0 : index
    %c0_7 = arith.constant 0 : index
    %9 = vector.load %arg4[%c0_6, %c0_7] : memref<256x48xbf16, #tpu.memory_space<vmem>>, vector<256x48xbf16>
    tpu.vector_store %arg4[%c0_6, %c0_7], %8 {strides = array<i32>} : memref<256x48xbf16, #tpu.memory_space<vmem>>, vector<256x48xbf16>,
    return
  }
  func.func @transform_0(%arg0: i32) -> (i32, i32) {
    %c0_i32 = arith.constant 0 : i32
    %c0_i32_0 = arith.constant 0 : i32
    return %arg0, %c0_i32 : i32, i32
  }
  func.func @transform_1(%arg0: i32) -> (i32, i32) {
    %c0_i32 = arith.constant 0 : i32
    %c0_i32_0 = arith.constant 0 : i32
    %c0_i32_1 = arith.constant 0 : i32
    return %c0_i32, %c0_i32_0 : i32, i32
  }
  func.func @transform_2(%arg0: i32) -> (i32, i32) {
    %c0_i32 = arith.constant 0 : i32
    %c0_i32_0 = arith.constant 0 : i32
    %c0_i32_1 = arith.constant 0 : i32
    return %c0_i32, %c0_i32_0 : i32, i32
  }
  func.func @transform_3(%arg0: i32) -> (i32, i32) {
    %c0_i32 = arith.constant 0 : i32
    %c0_i32_0 = arith.constant 0 : i32
    return %arg0, %c0_i32 : i32, i32
  }
}

module attributes {stable_mosaic.version = 11 : i64} {
  func.func @_mm_bias_kernel(%arg0: i32, %arg1: memref<256x1008xbf16, #tpu.memory_space<vmem>>, %arg2: memref<1008x64xbf16, #tpu.memory_space<vmem>>, %arg3: memref<1x64xf32, #tpu.memory_space<vmem>>, %arg4: memref<256x64xbf16, #tpu.memory_space<vmem>>) attributes {dimension_semantics = [#tpu.dimension_semantics<parallel>], iteration_bounds = array<i64: 2>, scalar_prefetch = 0 : i64, scratch_operands = 0 : i64, tpu.core_type = #tpu.core_type<tc>, window_params = [{transform_indices = @transform_0, window_bounds = array<i64: 256, 1008>}, {pipeline_mode = #tpu.pipeline_mode<synchronous>, transform_indices = @transform_1, window_bounds = array<i64: 1008, 64>}, {pipeline_mode = #tpu.pipeline_mode<synchronous>, transform_indices = @transform_2, window_bounds = array<i64: 1, 64>}, {transform_indices = @transform_3, window_bounds = array<i64: 256, 64>}]} {
    %c0 = arith.constant 0 : index
    %c0_0 = arith.constant 0 : index
    %0 = vector.load %arg1[%c0, %c0_0] : memref<256x1008xbf16, #tpu.memory_space<vmem>>, vector<256x1008xbf16>
    %c0_1 = arith.constant 0 : index
    %c0_2 = arith.constant 0 : index
    %1 = vector.load %arg2[%c0_1, %c0_2] : memref<1008x64xbf16, #tpu.memory_space<vmem>>, vector<1008x64xbf16>
    %cst = arith.constant dense<0.000000e+00> : vector<256x64xf32>
    %2 = tpu.matmul %0, %1, %cst {dimension_numbers = #tpu.dot_dimension_numbers<[1], [0], [0], [1], [0, 0, 1, 1], [], []>} : vector<256x1008xbf16>, vector<1008x64xbf16>, vector<256x64xf32> -> vector<256x64xf32>
    %c0_3 = arith.constant 0 : index
    %c0_4 = arith.constant 0 : index
    %3 = vector.load %arg3[%c0_3, %c0_4] : memref<1x64xf32, #tpu.memory_space<vmem>>, vector<1x64xf32>
    %4 = vector.broadcast %3 : vector<1x64xf32> to vector<256x64xf32>
    %5 = arith.addf %2, %4 : vector<256x64xf32>
    %cst_5 = arith.constant 0.000000e+00 : f32
    %6 = vector.broadcast %cst_5 : f32 to vector<256x64xf32>
    %7 = arith.maximumf %5, %6 : vector<256x64xf32>
    %8 = arith.truncf %7 : vector<256x64xf32> to vector<256x64xbf16>
    %c0_6 = arith.constant 0 : index
    %c0_7 = arith.constant 0 : index
    %9 = vector.load %arg4[%c0_6, %c0_7] : memref<256x64xbf16, #tpu.memory_space<vmem>>, vector<256x64xbf16>
    tpu.vector_store %arg4[%c0_6, %c0_7], %8 {strides = array<i32>} : memref<256x64xbf16, #tpu.memory_space<vmem>>, vector<256x64xbf16>,
    return
  }
  func.func @transform_0(%arg0: i32) -> (i32, i32) {
    %c0_i32 = arith.constant 0 : i32
    %c0_i32_0 = arith.constant 0 : i32
    return %arg0, %c0_i32 : i32, i32
  }
  func.func @transform_1(%arg0: i32) -> (i32, i32) {
    %c0_i32 = arith.constant 0 : i32
    %c0_i32_0 = arith.constant 0 : i32
    %c0_i32_1 = arith.constant 0 : i32
    return %c0_i32, %c0_i32_0 : i32, i32
  }
  func.func @transform_2(%arg0: i32) -> (i32, i32) {
    %c0_i32 = arith.constant 0 : i32
    %c0_i32_0 = arith.constant 0 : i32
    %c0_i32_1 = arith.constant 0 : i32
    return %c0_i32, %c0_i32_0 : i32, i32
  }
  func.func @transform_3(%arg0: i32) -> (i32, i32) {
    %c0_i32 = arith.constant 0 : i32
    %c0_i32_0 = arith.constant 0 : i32
    return %arg0, %c0_i32 : i32, i32
  }
}

module attributes {stable_mosaic.version = 11 : i64} {
  func.func @_mm_bias_kernel(%arg0: i32, %arg1: memref<256x576xbf16, #tpu.memory_space<vmem>>, %arg2: memref<576x64xbf16, #tpu.memory_space<vmem>>, %arg3: memref<1x64xf32, #tpu.memory_space<vmem>>, %arg4: memref<256x64xbf16, #tpu.memory_space<vmem>>) attributes {dimension_semantics = [#tpu.dimension_semantics<parallel>], iteration_bounds = array<i64: 2>, scalar_prefetch = 0 : i64, scratch_operands = 0 : i64, tpu.core_type = #tpu.core_type<tc>, window_params = [{transform_indices = @transform_0, window_bounds = array<i64: 256, 576>}, {pipeline_mode = #tpu.pipeline_mode<synchronous>, transform_indices = @transform_1, window_bounds = array<i64: 576, 64>}, {pipeline_mode = #tpu.pipeline_mode<synchronous>, transform_indices = @transform_2, window_bounds = array<i64: 1, 64>}, {transform_indices = @transform_3, window_bounds = array<i64: 256, 64>}]} {
    %c0 = arith.constant 0 : index
    %c0_0 = arith.constant 0 : index
    %0 = vector.load %arg1[%c0, %c0_0] : memref<256x576xbf16, #tpu.memory_space<vmem>>, vector<256x576xbf16>
    %c0_1 = arith.constant 0 : index
    %c0_2 = arith.constant 0 : index
    %1 = vector.load %arg2[%c0_1, %c0_2] : memref<576x64xbf16, #tpu.memory_space<vmem>>, vector<576x64xbf16>
    %cst = arith.constant dense<0.000000e+00> : vector<256x64xf32>
    %2 = tpu.matmul %0, %1, %cst {dimension_numbers = #tpu.dot_dimension_numbers<[1], [0], [0], [1], [0, 0, 1, 1], [], []>} : vector<256x576xbf16>, vector<576x64xbf16>, vector<256x64xf32> -> vector<256x64xf32>
    %c0_3 = arith.constant 0 : index
    %c0_4 = arith.constant 0 : index
    %3 = vector.load %arg3[%c0_3, %c0_4] : memref<1x64xf32, #tpu.memory_space<vmem>>, vector<1x64xf32>
    %4 = vector.broadcast %3 : vector<1x64xf32> to vector<256x64xf32>
    %5 = arith.addf %2, %4 : vector<256x64xf32>
    %cst_5 = arith.constant 0.000000e+00 : f32
    %6 = vector.broadcast %cst_5 : f32 to vector<256x64xf32>
    %7 = arith.maximumf %5, %6 : vector<256x64xf32>
    %8 = arith.truncf %7 : vector<256x64xf32> to vector<256x64xbf16>
    %c0_6 = arith.constant 0 : index
    %c0_7 = arith.constant 0 : index
    %9 = vector.load %arg4[%c0_6, %c0_7] : memref<256x64xbf16, #tpu.memory_space<vmem>>, vector<256x64xbf16>
    tpu.vector_store %arg4[%c0_6, %c0_7], %8 {strides = array<i32>} : memref<256x64xbf16, #tpu.memory_space<vmem>>, vector<256x64xbf16>,
    return
  }
  func.func @transform_0(%arg0: i32) -> (i32, i32) {
    %c0_i32 = arith.constant 0 : i32
    %c0_i32_0 = arith.constant 0 : i32
    return %arg0, %c0_i32 : i32, i32
  }
  func.func @transform_1(%arg0: i32) -> (i32, i32) {
    %c0_i32 = arith.constant 0 : i32
    %c0_i32_0 = arith.constant 0 : i32
    %c0_i32_1 = arith.constant 0 : i32
    return %c0_i32, %c0_i32_0 : i32, i32
  }
  func.func @transform_2(%arg0: i32) -> (i32, i32) {
    %c0_i32 = arith.constant 0 : i32
    %c0_i32_0 = arith.constant 0 : i32
    %c0_i32_1 = arith.constant 0 : i32
    return %c0_i32, %c0_i32_0 : i32, i32
  }
  func.func @transform_3(%arg0: i32) -> (i32, i32) {
    %c0_i32 = arith.constant 0 : i32
    %c0_i32_0 = arith.constant 0 : i32
    return %arg0, %c0_i32 : i32, i32
  }
}

module attributes {stable_mosaic.version = 11 : i64} {
  func.func @_mm_bias_kernel(%arg0: i32, %arg1: memref<256x64xbf16, #tpu.memory_space<vmem>>, %arg2: memref<64x2xbf16, #tpu.memory_space<vmem>>, %arg3: memref<1x2xf32, #tpu.memory_space<vmem>>, %arg4: memref<256x2xf32, #tpu.memory_space<vmem>>) attributes {dimension_semantics = [#tpu.dimension_semantics<parallel>], iteration_bounds = array<i64: 2>, scalar_prefetch = 0 : i64, scratch_operands = 0 : i64, tpu.core_type = #tpu.core_type<tc>, window_params = [{transform_indices = @transform_0, window_bounds = array<i64: 256, 64>}, {pipeline_mode = #tpu.pipeline_mode<synchronous>, transform_indices = @transform_1, window_bounds = array<i64: 64, 2>}, {pipeline_mode = #tpu.pipeline_mode<synchronous>, transform_indices = @transform_2, window_bounds = array<i64: 1, 2>}, {transform_indices = @transform_3, window_bounds = array<i64: 256, 2>}]} {
    %c0 = arith.constant 0 : index
    %c0_0 = arith.constant 0 : index
    %0 = vector.load %arg1[%c0, %c0_0] : memref<256x64xbf16, #tpu.memory_space<vmem>>, vector<256x64xbf16>
    %c0_1 = arith.constant 0 : index
    %c0_2 = arith.constant 0 : index
    %1 = vector.load %arg2[%c0_1, %c0_2] : memref<64x2xbf16, #tpu.memory_space<vmem>>, vector<64x2xbf16>
    %cst = arith.constant dense<0.000000e+00> : vector<256x2xf32>
    %2 = tpu.matmul %0, %1, %cst {dimension_numbers = #tpu.dot_dimension_numbers<[1], [0], [0], [1], [0, 0, 1, 1], [], []>} : vector<256x64xbf16>, vector<64x2xbf16>, vector<256x2xf32> -> vector<256x2xf32>
    %c0_3 = arith.constant 0 : index
    %c0_4 = arith.constant 0 : index
    %3 = vector.load %arg3[%c0_3, %c0_4] : memref<1x2xf32, #tpu.memory_space<vmem>>, vector<1x2xf32>
    %4 = vector.broadcast %3 : vector<1x2xf32> to vector<256x2xf32>
    %5 = arith.addf %2, %4 : vector<256x2xf32>
    %c0_5 = arith.constant 0 : index
    %c0_6 = arith.constant 0 : index
    %6 = vector.load %arg4[%c0_5, %c0_6] : memref<256x2xf32, #tpu.memory_space<vmem>>, vector<256x2xf32>
    tpu.vector_store %arg4[%c0_5, %c0_6], %5 {strides = array<i32>} : memref<256x2xf32, #tpu.memory_space<vmem>>, vector<256x2xf32>,
    return
  }
  func.func @transform_0(%arg0: i32) -> (i32, i32) {
    %c0_i32 = arith.constant 0 : i32
    %c0_i32_0 = arith.constant 0 : i32
    return %arg0, %c0_i32 : i32, i32
  }
  func.func @transform_1(%arg0: i32) -> (i32, i32) {
    %c0_i32 = arith.constant 0 : i32
    %c0_i32_0 = arith.constant 0 : i32
    %c0_i32_1 = arith.constant 0 : i32
    return %c0_i32, %c0_i32_0 : i32, i32
  }
  func.func @transform_2(%arg0: i32) -> (i32, i32) {
    %c0_i32 = arith.constant 0 : i32
    %c0_i32_0 = arith.constant 0 : i32
    %c0_i32_1 = arith.constant 0 : i32
    return %c0_i32, %c0_i32_0 : i32, i32
  }
  func.func @transform_3(%arg0: i32) -> (i32, i32) {
    %c0_i32 = arith.constant 0 : i32
    %c0_i32_0 = arith.constant 0 : i32
    return %arg0, %c0_i32 : i32, i32
  }
}

module attributes {stable_mosaic.version = 11 : i64} {
  func.func @_mm_bias_kernel(%arg0: i32, %arg1: memref<64x16xf32, #tpu.memory_space<vmem>>, %arg2: memref<16x256xf32, #tpu.memory_space<vmem>>, %arg3: memref<1x256xf32, #tpu.memory_space<vmem>>, %arg4: memref<64x256xf32, #tpu.memory_space<vmem>>) attributes {dimension_semantics = [#tpu.dimension_semantics<parallel>], iteration_bounds = array<i64: 1>, scalar_prefetch = 0 : i64, scratch_operands = 0 : i64, tpu.core_type = #tpu.core_type<tc>, window_params = [{transform_indices = @transform_0, window_bounds = array<i64: 64, 16>}, {pipeline_mode = #tpu.pipeline_mode<synchronous>, transform_indices = @transform_1, window_bounds = array<i64: 16, 256>}, {pipeline_mode = #tpu.pipeline_mode<synchronous>, transform_indices = @transform_2, window_bounds = array<i64: 1, 256>}, {transform_indices = @transform_3, window_bounds = array<i64: 64, 256>}]} {
    %c0 = arith.constant 0 : index
    %c0_0 = arith.constant 0 : index
    %0 = vector.load %arg1[%c0, %c0_0] : memref<64x16xf32, #tpu.memory_space<vmem>>, vector<64x16xf32>
    %c0_1 = arith.constant 0 : index
    %c0_2 = arith.constant 0 : index
    %1 = vector.load %arg2[%c0_1, %c0_2] : memref<16x256xf32, #tpu.memory_space<vmem>>, vector<16x256xf32>
    %cst = arith.constant dense<0.000000e+00> : vector<64x256xf32>
    %2 = tpu.matmul %0, %1, %cst {dimension_numbers = #tpu.dot_dimension_numbers<[1], [0], [0], [1], [0, 0, 1, 1], [], []>} : vector<64x16xf32>, vector<16x256xf32>, vector<64x256xf32> -> vector<64x256xf32>
    %c0_3 = arith.constant 0 : index
    %c0_4 = arith.constant 0 : index
    %3 = vector.load %arg3[%c0_3, %c0_4] : memref<1x256xf32, #tpu.memory_space<vmem>>, vector<1x256xf32>
    %4 = vector.broadcast %3 : vector<1x256xf32> to vector<64x256xf32>
    %5 = arith.addf %2, %4 : vector<64x256xf32>
    %c0_5 = arith.constant 0 : index
    %c0_6 = arith.constant 0 : index
    %6 = vector.load %arg4[%c0_5, %c0_6] : memref<64x256xf32, #tpu.memory_space<vmem>>, vector<64x256xf32>
    tpu.vector_store %arg4[%c0_5, %c0_6], %5 {strides = array<i32>} : memref<64x256xf32, #tpu.memory_space<vmem>>, vector<64x256xf32>,
    return
  }
  func.func @transform_0(%arg0: i32) -> (i32, i32) {
    %c0_i32 = arith.constant 0 : i32
    %c0_i32_0 = arith.constant 0 : i32
    return %arg0, %c0_i32 : i32, i32
  }
  func.func @transform_1(%arg0: i32) -> (i32, i32) {
    %c0_i32 = arith.constant 0 : i32
    %c0_i32_0 = arith.constant 0 : i32
    %c0_i32_1 = arith.constant 0 : i32
    return %c0_i32, %c0_i32_0 : i32, i32
  }
  func.func @transform_2(%arg0: i32) -> (i32, i32) {
    %c0_i32 = arith.constant 0 : i32
    %c0_i32_0 = arith.constant 0 : i32
    %c0_i32_1 = arith.constant 0 : i32
    return %c0_i32, %c0_i32_0 : i32, i32
  }
  func.func @transform_3(%arg0: i32) -> (i32, i32) {
    %c0_i32 = arith.constant 0 : i32
    %c0_i32_0 = arith.constant 0 : i32
    return %arg0, %c0_i32 : i32, i32
  }
}

module attributes {stable_mosaic.version = 11 : i64} {
  func.func @_mm_bias_kernel(%arg0: i32, %arg1: memref<64x16xf32, #tpu.memory_space<vmem>>, %arg2: memref<16x64xf32, #tpu.memory_space<vmem>>, %arg3: memref<1x64xf32, #tpu.memory_space<vmem>>, %arg4: memref<64x64xf32, #tpu.memory_space<vmem>>) attributes {dimension_semantics = [#tpu.dimension_semantics<parallel>], iteration_bounds = array<i64: 1>, scalar_prefetch = 0 : i64, scratch_operands = 0 : i64, tpu.core_type = #tpu.core_type<tc>, window_params = [{transform_indices = @transform_0, window_bounds = array<i64: 64, 16>}, {pipeline_mode = #tpu.pipeline_mode<synchronous>, transform_indices = @transform_1, window_bounds = array<i64: 16, 64>}, {pipeline_mode = #tpu.pipeline_mode<synchronous>, transform_indices = @transform_2, window_bounds = array<i64: 1, 64>}, {transform_indices = @transform_3, window_bounds = array<i64: 64, 64>}]} {
    %c0 = arith.constant 0 : index
    %c0_0 = arith.constant 0 : index
    %0 = vector.load %arg1[%c0, %c0_0] : memref<64x16xf32, #tpu.memory_space<vmem>>, vector<64x16xf32>
    %c0_1 = arith.constant 0 : index
    %c0_2 = arith.constant 0 : index
    %1 = vector.load %arg2[%c0_1, %c0_2] : memref<16x64xf32, #tpu.memory_space<vmem>>, vector<16x64xf32>
    %cst = arith.constant dense<0.000000e+00> : vector<64x64xf32>
    %2 = tpu.matmul %0, %1, %cst {dimension_numbers = #tpu.dot_dimension_numbers<[1], [0], [0], [1], [0, 0, 1, 1], [], []>} : vector<64x16xf32>, vector<16x64xf32>, vector<64x64xf32> -> vector<64x64xf32>
    %c0_3 = arith.constant 0 : index
    %c0_4 = arith.constant 0 : index
    %3 = vector.load %arg3[%c0_3, %c0_4] : memref<1x64xf32, #tpu.memory_space<vmem>>, vector<1x64xf32>
    %4 = vector.broadcast %3 : vector<1x64xf32> to vector<64x64xf32>
    %5 = arith.addf %2, %4 : vector<64x64xf32>
    %c0_5 = arith.constant 0 : index
    %c0_6 = arith.constant 0 : index
    %6 = vector.load %arg4[%c0_5, %c0_6] : memref<64x64xf32, #tpu.memory_space<vmem>>, vector<64x64xf32>
    tpu.vector_store %arg4[%c0_5, %c0_6], %5 {strides = array<i32>} : memref<64x64xf32, #tpu.memory_space<vmem>>, vector<64x64xf32>,
    return
  }
  func.func @transform_0(%arg0: i32) -> (i32, i32) {
    %c0_i32 = arith.constant 0 : i32
    %c0_i32_0 = arith.constant 0 : i32
    return %arg0, %c0_i32 : i32, i32
  }
  func.func @transform_1(%arg0: i32) -> (i32, i32) {
    %c0_i32 = arith.constant 0 : i32
    %c0_i32_0 = arith.constant 0 : i32
    %c0_i32_1 = arith.constant 0 : i32
    return %c0_i32, %c0_i32_0 : i32, i32
  }
  func.func @transform_2(%arg0: i32) -> (i32, i32) {
    %c0_i32 = arith.constant 0 : i32
    %c0_i32_0 = arith.constant 0 : i32
    %c0_i32_1 = arith.constant 0 : i32
    return %c0_i32, %c0_i32_0 : i32, i32
  }
  func.func @transform_3(%arg0: i32) -> (i32, i32) {
    %c0_i32 = arith.constant 0 : i32
    %c0_i32_0 = arith.constant 0 : i32
    return %arg0, %c0_i32 : i32, i32
  }
}

</mosaic_0001>

<llo_original>
// kernel: deeplab_forward.18
$region0: #{deeplab_forward.18}
  #allocation0 [shape = 'u32[]', space=smem, size = 0x4, offset = 0x4, fixed_abs, tag = 'smem constant byte address 0x4 - core index']
  #allocation1 [shape = 'u32[72,128]{1,0:T(1,128)}', space=vmem, size = 0x9000, scoped, tag = 'internal scratch']
  %s0 = inlined_call_operand.vmem [shape: bf16[2048,27], index: 0, kind: input, shape index: {}]
  %s1 = inlined_call_operand.vmem [shape: bf16[27,16], index: 1, kind: input, shape index: {}]
  %s2 = inlined_call_operand.vmem [shape: f32[1,16], index: 2, kind: input, shape index: {}]
  %s3 = inlined_call_operand.vmem [shape: bf16[2048,16], index: 3, kind: output, shape index: {}]
  %s4 = sld [smem:[#allocation0]]
  $region45: #{deeplab_forward.18} parent=0
    _
  %s6 = ssub.s32 1, %s4
  %s7 = scalar_select 0, %s6, %s4
  loop: start=0, step=1, limit=10
  $region2: #{deeplab_forward.18} parent=0 // loop_pre_header
    _
  $region3: #{deeplab_forward.18} parent=0 // loop_header
    %s9 = sphi 0, %s13
    %p10 = scmp.ge.s32.totalorder %s9, 10
    %s19 = sphi 0, %s21
    %s22 = sphi 0, %s19
    %s23 = sphi 0, %s22
    %s39 = sphi 0, %s23
    %s43 = sphi 0, %s43
    %s45 = sphi 0, %s43
    %s46 = sphi 0, %s45
    %s60 = sphi 0, %s46
    %s64 = sphi 0, %s64
    %s66 = sphi 0, %s64
    %s67 = sphi 0, %s66
    %s81 = sphi 0, %s67
    %s87 = sphi 0, %s89
    %s90 = sphi 0, %s87
    %s91 = sphi 0, %s90
    %s107 = sphi 0, %s91
  $region4: #{deeplab_forward.18} parent=0 // loop_header_branch
    %12 = sbr.rel (%p10) target = $region8
  $region5: #{deeplab_forward.18} parent=0 // loop_body
    %s14 = ssub.s32 %s9, 1
    %s15 = ssub.s32 %s9, 2
    %s16 = sadd.s32 %s9, 1
    %s17 = ssub.s32 %s9, %s16
    %p18 = scmp.eq.s32.totalorder %s17, 0
    %s20 = sadd.s32 %s19, 1
    %s21 = scalar_select %p18, %s19, %s20
    %p24 = pneg %p18
    %p25 = scmp.eq.s32.totalorder %s9, 7
    %p26 = por %p24, %p25
    %p27 = scmp.ne.s32.totalorder %s19, %s22
    %p28 = scmp.eq.s32.totalorder %s9, 0
    %p29 = por %p27, %p28
    %p30 = scmp.ne.s32.totalorder %s19, %s22
    %p31 = scmp.eq.s32.totalorder %s14, 7
    %p32 = por %p30, %p31
    %p33 = scmp.ne.s32.totalorder %s22, %s23
    %p34 = scmp.eq.s32.totalorder %s14, 0
    %p35 = por %p33, %p34
    %p36 = scmp.ne.s32.totalorder %s22, %s23
    %p37 = scmp.eq.s32.totalorder %s15, 7
    %p38 = por %p36, %p37
    %p40 = scmp.ne.s32.totalorder %s23, %s39
    %p41 = scmp.eq.s32.totalorder %s15, 0
    %p42 = por %p40, %p41
    %s44 = sadd.s32 %s43, 1
    %p47 = scmp.eq.s32.totalorder %s9, 7
    %p48 = scmp.ne.s32.totalorder %s43, %s45
    %p49 = scmp.eq.s32.totalorder %s9, 0
    %p50 = por %p48, %p49
    %p51 = scmp.ne.s32.totalorder %s43, %s45
    %p52 = scmp.eq.s32.totalorder %s14, 7
    %p53 = por %p51, %p52
    %p54 = scmp.ne.s32.totalorder %s45, %s46
    %p55 = scmp.eq.s32.totalorder %s14, 0
    %p56 = por %p54, %p55
    %p57 = scmp.ne.s32.totalorder %s45, %s46
    %p58 = scmp.eq.s32.totalorder %s15, 7
    %p59 = por %p57, %p58
    %p61 = scmp.ne.s32.totalorder %s46, %s60
    %p62 = scmp.eq.s32.totalorder %s15, 0
    %p63 = por %p61, %p62
    %s65 = sadd.s32 %s64, 1
    %p68 = scmp.eq.s32.totalorder %s9, 7
    %p69 = scmp.ne.s32.totalorder %s64, %s66
    %p70 = scmp.eq.s32.totalorder %s9, 0
    %p71 = por %p69, %p70
    %p72 = scmp.ne.s32.totalorder %s64, %s66
    %p73 = scmp.eq.s32.totalorder %s14, 7
    %p74 = por %p72, %p73
    %p75 = scmp.ne.s32.totalorder %s66, %s67
    %p76 = scmp.eq.s32.totalorder %s14, 0
    %p77 = por %p75, %p76
    %p78 = scmp.ne.s32.totalorder %s66, %s67
    %p79 = scmp.eq.s32.totalorder %s15, 7
    %p80 = por %p78, %p79
    %p82 = scmp.ne.s32.totalorder %s67, %s81
    %p83 = scmp.eq.s32.totalorder %s15, 0
    %p84 = por %p82, %p83
    %s85 = ssub.s32 %s9, %s16
    %p86 = scmp.eq.s32.totalorder %s85, 0
    %s88 = sadd.s32 %s87, 1
    %s89 = scalar_select %p86, %s87, %s88
    %p92 = pneg %p86
    %p93 = scmp.eq.s32.totalorder %s9, 7
    %p94 = por %p92, %p93
    %p95 = scmp.ne.s32.totalorder %s87, %s90
    %p96 = scmp.eq.s32.totalorder %s9, 0
    %p97 = por %p95, %p96
    %p98 = scmp.ne.s32.totalorder %s87, %s90
    %p99 = scmp.eq.s32.totalorder %s14, 7
    %p100 = por %p98, %p99
    %p101 = scmp.ne.s32.totalorder %s90, %s91
    %p102 = scmp.eq.s32.totalorder %s14, 0
    %p103 = por %p101, %p102
    %p104 = scmp.ne.s32.totalorder %s90, %s91
    %p105 = scmp.eq.s32.totalorder %s15, 7
    %p106 = por %p104, %p105
    %p108 = scmp.ne.s32.totalorder %s91, %s107
    %p109 = scmp.eq.s32.totalorder %s15, 0
    %p110 = por %p108, %p109
    %p111 = scmp.le.s32.totalorder 1, %s9
    %p112 = scmp.lt.s32.totalorder %s9, 9
    %p113 = pnand %p111, %p112
    %p114 = pneg %p113
    // Predicated region
    $region9: #{deeplab_forward.18} parent=5 // pred_check
      _
    $region10: #{deeplab_forward.18} parent=5 // pred_check_branch
      %116 = sbr.rel (%p113) target = $region12
    $region11: #{deeplab_forward.18} parent=5 // pred_region
      %s117 = ssub.s32 %s9, 1
      // Predicated region
      $region13: #{deeplab_forward.18} parent=11 // pred_check
        %p118 = pneg %p56
      $region14: #{deeplab_forward.18} parent=11 // pred_check_branch
        %120 = sbr.rel (%p118) target = $region16
      $region15: #{deeplab_forward.18} parent=11 // pred_region
        _
      $region16: #{deeplab_forward.18} parent=11 // pred_fallthru
        _
      // Predicated region
      $region17: #{deeplab_forward.18} parent=11 // pred_check
        %p121 = pneg %p77
      $region18: #{deeplab_forward.18} parent=11 // pred_check_branch
        %123 = sbr.rel (%p121) target = $region20
      $region19: #{deeplab_forward.18} parent=11 // pred_region
        _
      $region20: #{deeplab_forward.18} parent=11 // pred_fallthru
        _
    $region12: #{deeplab_forward.18} parent=5 // pred_fallthru
      _
    %p124 = scmp.lt.s32.totalorder %s9, 8
    // Predicated region
    $region21: #{deeplab_forward.18} parent=5 // pred_check
      %p125 = pneg %p124
    $region22: #{deeplab_forward.18} parent=5 // pred_check_branch
      %127 = sbr.rel (%p125) target = $region24
    $region23: #{deeplab_forward.18} parent=5 // pred_region
      // Predicated region
      $region25: #{deeplab_forward.18} parent=23 // pred_check
        %p128 = pneg %p29
      $region26: #{deeplab_forward.18} parent=23 // pred_check_branch
        %130 = sbr.rel (%p128) target = $region28
      $region27: #{deeplab_forward.18} parent=23 // pred_region
        %s131 = smul.u32 32, %s9
        %p132 = scmp.lt.s32.totalorder %s131, 255
        %s133 = scalar_select %p132, %s131, 255
        %s134 = smul.addr %s133, 4
        %s135 = scalar_lea.vmem %s0, %s134
        %s136 = smul.u32 32, %s9
      $region28: #{deeplab_forward.18} parent=23 // pred_fallthru
        _
    $region24: #{deeplab_forward.18} parent=5 // pred_fallthru
      _
    %p137 = scmp.le.s32.totalorder 1, %s9
    %p138 = scmp.lt.s32.totalorder %s9, 9
    %p139 = pnand %p137, %p138
    %p140 = pneg %p139
    // Predicated region
    $region29: #{deeplab_forward.18} parent=5 // pred_check
      _
    $region30: #{deeplab_forward.18} parent=5 // pred_check_branch
      %142 = sbr.rel (%p139) target = $region32
    $region31: #{deeplab_forward.18} parent=5 // pred_region
      %s143 = ssub.s32 %s9, 1
      %s144 = smul.u32 32, %s14
      %p145 = scmp.lt.s32.totalorder %s144, 255
      %s146 = scalar_select %p145, %s144, 255
      %s147 = smul.addr %s146, 4
      %s148 = scalar_lea.vmem %s0, %s147
      %p149 = pneg %p35
      %p150 = pneg %p32
      %p151 = pneg %p56
      %p152 = pneg %p53
      %p153 = pneg %p77
      %p154 = pneg %p74
      %p155 = pneg %p103
      %p156 = pneg %p100
      %s157 = smul.u32 32, %s14
      %p158 = scmp.lt.s32.totalorder %s157, 255
      %s159 = scalar_select %p158, %s157, 255
      %s160 = smul.addr %s159, 4
      %s161 = scalar_lea.vmem %s3, %s160
      %s162 = smul.u32 32, %s14
      %p163 = scmp.lt.s32.totalorder %s162, 255
      %s164 = scalar_select %p163, %s162, 255
      %s165 = smul.addr %s164, 4
      %s166 = scalar_lea.vmem %s0, %s165
      %s167 = smul.u32 32, %s14
      %s168 = smul.u32 32, %s14
      %p169 = scmp.lt.s32.totalorder %s168, 255
      %s170 = scalar_select %p169, %s168, 255
      %s171 = smul.addr %s170, 4
      %s172 = scalar_lea.vmem %s3, %s171
      %s173 = smul.u32 32, %s14
      %v175 = vld [vmem:[%s166] sm:$0xf]
      %v176 = vld [vmem:[%s166 + $0x4] sm:$0xf]
      %v177 = vld [vmem:[%s166 + $0x8] sm:$0xf]
      %v178 = vld [vmem:[%s166 + $0xc] sm:$0xf]
      %v179 = vld [vmem:[%s166 + $0x10] sm:$0xf]
      %v180 = vld [vmem:[%s166 + $0x14] sm:$0xf]
      %v181 = vld [vmem:[%s166 + $0x18] sm:$0xf]
      %v182 = vld [vmem:[%s166 + $0x1c] sm:$0xf]
      %v183 = vld [vmem:[%s166 + $0x20] sm:$0xf]
      %v184 = vld [vmem:[%s166 + $0x24] sm:$0xf]
      %v185 = vld [vmem:[%s166 + $0x28] sm:$0xf]
      %v186 = vld [vmem:[%s166 + $0x2c] sm:$0xf]
      %v187 = vld [vmem:[%s166 + $0x30] sm:$0xf]
      %v188 = vld [vmem:[%s166 + $0x34] sm:$0xf]
      %v189 = vld [vmem:[%s166 + $0x38] sm:$0xf]
      %v190 = vld [vmem:[%s166 + $0x3c] sm:$0xf]
      %v191 = vld [vmem:[%s166 + $0x40] sm:$0xf]
      %v192 = vld [vmem:[%s166 + $0x44] sm:$0xf]
      %v193 = vld [vmem:[%s166 + $0x48] sm:$0xf]
      %v194 = vld [vmem:[%s166 + $0x4c] sm:$0xf]
      %v195 = vld [vmem:[%s166 + $0x50] sm:$0xf]
      %v196 = vld [vmem:[%s166 + $0x54] sm:$0xf]
      %v197 = vld [vmem:[%s166 + $0x58] sm:$0xf]
      %v198 = vld [vmem:[%s166 + $0x5c] sm:$0xf]
      %v199 = vld [vmem:[%s166 + $0x60] sm:$0xf]
      %v200 = vld [vmem:[%s166 + $0x64] sm:$0xf]
      %v201 = vld [vmem:[%s166 + $0x68] sm:$0xf]
      %v202 = vld [vmem:[%s166 + $0x6c] sm:$0xf]
      %v203 = vld [vmem:[%s166 + $0x70] sm:$0xf]
      %v204 = vld [vmem:[%s166 + $0x74] sm:$0xf]
      %v205 = vld [vmem:[%s166 + $0x78] sm:$0xf]
      %v206 = vld [vmem:[%s166 + $0x7c] sm:$0xf]
      %v207 = vld [vmem:[%s1] sm:$0xf]
      %v208 = vld [vmem:[%s1 + $0x4] sm:$0xf]
      %v209 = vld [vmem:[%s1 + $0x8] sm:$0xf]
      %v210 = vld [vmem:[%s1 + $0xc] sm:$0x3]
      %v211 = vld [vmem:[%s2] sm:$0x1]
      %v213 = vperm.slane %v211, 0
      %v247 = vunpack.c.l.b16 %v175
      %v248 = vunpack.c.l.b16 %v176
      %v249 = vunpack.c.l.b16 %v177
      %v250 = vunpack.c.l.b16 %v178
      %v251 = vunpack.c.l.b16 %v179
      %v252 = vunpack.c.l.b16 %v180
      %v253 = vunpack.c.l.b16 %v181
      %v254 = vunpack.c.l.b16 %v182
      %v255 = vunpack.c.l.b16 %v183
      %v256 = vunpack.c.l.b16 %v184
      %v257 = vunpack.c.l.b16 %v185
      %v258 = vunpack.c.l.b16 %v186
      %v259 = vunpack.c.l.b16 %v187
      %v260 = vunpack.c.l.b16 %v188
      %v261 = vunpack.c.l.b16 %v189
      %v262 = vunpack.c.l.b16 %v190
      %v263 = vunpack.c.l.b16 %v191
      %v264 = vunpack.c.l.b16 %v192
      %v265 = vunpack.c.l.b16 %v193
      %v266 = vunpack.c.l.b16 %v194
      %v267 = vunpack.c.l.b16 %v195
      %v268 = vunpack.c.l.b16 %v196
      %v269 = vunpack.c.l.b16 %v197
      %v270 = vunpack.c.l.b16 %v198
      %v271 = vunpack.c.l.b16 %v199
      %v272 = vunpack.c.l.b16 %v200
      %v273 = vunpack.c.l.b16 %v201
      %v274 = vunpack.c.l.b16 %v202
      %v275 = vunpack.c.l.b16 %v203
      %v276 = vunpack.c.l.b16 %v204
      %v277 = vunpack.c.l.b16 %v205
      %v278 = vunpack.c.l.b16 %v206
      %v279 = vpack.c.b16 %v248, %v247
      %v280 = vpack.c.b16 %v250, %v249
      %v281 = vpack.c.b16 %v252, %v251
      %v282 = vpack.c.b16 %v254, %v253
      %v283 = vpack.c.b16 %v256, %v255
      %v284 = vpack.c.b16 %v258, %v257
      %v285 = vpack.c.b16 %v260, %v259
      %v286 = vpack.c.b16 %v262, %v261
      %v287 = vpack.c.b16 %v264, %v263
      %v288 = vpack.c.b16 %v266, %v265
      %v289 = vpack.c.b16 %v268, %v267
      %v290 = vpack.c.b16 %v270, %v269
      %v291 = vpack.c.b16 %v272, %v271
      %v292 = vpack.c.b16 %v274, %v273
      %v293 = vpack.c.b16 %v276, %v275
      %v294 = vpack.c.b16 %v278, %v277
      %v299 = vunpack.c.l.b16 %v207
      %v300 = vunpack.c.l.b16 %v208
      %v301 = vunpack.c.l.b16 %v209
      %v302 = vunpack.c.l.b16 %v210
      %v303 = vpack.c.b16 %v300, %v299
      %v304 = vpack.c.b16 %v302, %v301
      %vm306 = vcmask 220160
      %v308 = vsel %vm306, %v279, 0
      %v311 = vsel %vm306, %v280, 0
      %v314 = vsel %vm306, %v281, 0
      %v317 = vsel %vm306, %v282, 0
      %v320 = vsel %vm306, %v283, 0
      %v323 = vsel %vm306, %v284, 0
      %v326 = vsel %vm306, %v285, 0
      %v329 = vsel %vm306, %v286, 0
      %v332 = vsel %vm306, %v287, 0
      %v335 = vsel %vm306, %v288, 0
      %v338 = vsel %vm306, %v289, 0
      %v341 = vsel %vm306, %v290, 0
      %v344 = vsel %vm306, %v291, 0
      %v347 = vsel %vm306, %v292, 0
      %v350 = vsel %vm306, %v293, 0
      %v353 = vsel %vm306, %v294, 0
      %vm355 = vcmask 1044480
      %vm356 = vcmask 1045504
      %v357 = vsel %vm355, 4294967295, 65535
      %v358 = vsel %vm356, %v357, 0
      %v360 = vand.u32 %v304, %v358
      %362 = vmatpush.bf16.msra.mxu0 0
      %363 = vmatpush.bf16.msra.mxu0 0
      %364 = vmatpush.bf16.msra.mxu0 0
      %365 = vmatpush.bf16.msra.mxu0 0
      %366 = vmatpush.bf16.msra.mxu0 0
      %367 = vmatpush.bf16.msra.mxu0 0
      %368 = vmatpush.bf16.msra.mxu0 %v360
      %369 = vmatpush.bf16.msra.mxu0 %v303
      %370 = vmatmul.bf16.gmra.mxu0 %v308
      %v371 = vpop.f32.mrf.mxu0
      %v372 = vadd.f32 %v213, %v371
      %v373 = vpop.f32.mrf.mxu0
      %v374 = vadd.f32 %v213, %v373
      %375 = vmatmul.bf16.gmra.mxu0 %v311
      %v376 = vpop.f32.mrf.mxu0
      %v377 = vadd.f32 %v213, %v376
      %v378 = vpop.f32.mrf.mxu0
      %v379 = vadd.f32 %v213, %v378
      %380 = vmatmul.bf16.gmra.mxu0 %v314
      %v381 = vpop.f32.mrf.mxu0
      %v382 = vadd.f32 %v213, %v381
      %v383 = vpop.f32.mrf.mxu0
      %v384 = vadd.f32 %v213, %v383
      %385 = vmatmul.bf16.gmra.mxu0 %v317
      %v386 = vpop.f32.mrf.mxu0
      %v387 = vadd.f32 %v213, %v386
      %v388 = vpop.f32.mrf.mxu0
      %v389 = vadd.f32 %v213, %v388
      %390 = vmatmul.bf16.gmra.mxu0 %v320
      %v391 = vpop.f32.mrf.mxu0
      %v392 = vadd.f32 %v213, %v391
      %v393 = vpop.f32.mrf.mxu0
      %v394 = vadd.f32 %v213, %v393
      %395 = vmatmul.bf16.gmra.mxu0 %v323
      %v396 = vpop.f32.mrf.mxu0
      %v397 = vadd.f32 %v213, %v396
      %v398 = vpop.f32.mrf.mxu0
      %v399 = vadd.f32 %v213, %v398
      %400 = vmatmul.bf16.gmra.mxu0 %v326
      %v401 = vpop.f32.mrf.mxu0
      %v402 = vadd.f32 %v213, %v401
      %v403 = vpop.f32.mrf.mxu0
      %v404 = vadd.f32 %v213, %v403
      %405 = vmatmul.bf16.gmra.mxu0 %v329
      %v406 = vpop.f32.mrf.mxu0
      %v407 = vadd.f32 %v213, %v406
      %v408 = vpop.f32.mrf.mxu0
      %v409 = vadd.f32 %v213, %v408
      %410 = vmatmul.bf16.gmra.mxu0 %v332
      %v411 = vpop.f32.mrf.mxu0
      %v412 = vadd.f32 %v213, %v411
      %v413 = vpop.f32.mrf.mxu0
      %v414 = vadd.f32 %v213, %v413
      %415 = vmatmul.bf16.gmra.mxu0 %v335
      %v416 = vpop.f32.mrf.mxu0
      %v417 = vadd.f32 %v213, %v416
      %v418 = vpop.f32.mrf.mxu0
      %v419 = vadd.f32 %v213, %v418
      %420 = vmatmul.bf16.gmra.mxu0 %v338
      %v421 = vpop.f32.mrf.mxu0
      %v422 = vadd.f32 %v213, %v421
      %v423 = vpop.f32.mrf.mxu0
      %v424 = vadd.f32 %v213, %v423
      %425 = vmatmul.bf16.gmra.mxu0 %v341
      %v426 = vpop.f32.mrf.mxu0
      %v427 = vadd.f32 %v213, %v426
      %v428 = vpop.f32.mrf.mxu0
      %v429 = vadd.f32 %v213, %v428
      %430 = vmatmul.bf16.gmra.mxu0 %v344
      %v431 = vpop.f32.mrf.mxu0
      %v432 = vadd.f32 %v213, %v431
      %v433 = vpop.f32.mrf.mxu0
      %v434 = vadd.f32 %v213, %v433
      %435 = vmatmul.bf16.gmra.mxu0 %v347
      %v436 = vpop.f32.mrf.mxu0
      %v437 = vadd.f32 %v213, %v436
      %v438 = vpop.f32.mrf.mxu0
      %v439 = vadd.f32 %v213, %v438
      %440 = vmatmul.bf16.gmra.mxu0 %v350
      %v441 = vpop.f32.mrf.mxu0
      %v442 = vadd.f32 %v213, %v441
      %v443 = vpop.f32.mrf.mxu0
      %v444 = vadd.f32 %v213, %v443
      %445 = vmatmul.bf16.gmra.mxu0 %v353
      %v446 = vpop.f32.mrf.mxu0
      %v447 = vadd.f32 %v213, %v446
      %v448 = vpop.f32.mrf.mxu0
      %v449 = vadd.f32 %v213, %v448
      %450 = vdwg.mxu0
      %v451 = vmax.f32 %v372, 0.0
      %v452 = vmax.f32 %v374, 0.0
      %v453 = vmax.f32 %v377, 0.0
      %v454 = vmax.f32 %v379, 0.0
      %v455 = vmax.f32 %v382, 0.0
      %v456 = vmax.f32 %v384, 0.0
      %v457 = vmax.f32 %v387, 0.0
      %v458 = vmax.f32 %v389, 0.0
      %v459 = vmax.f32 %v392, 0.0
      %v460 = vmax.f32 %v394, 0.0
      %v461 = vmax.f32 %v397, 0.0
      %v462 = vmax.f32 %v399, 0.0
      %v463 = vmax.f32 %v402, 0.0
      %v464 = vmax.f32 %v404, 0.0
      %v465 = vmax.f32 %v407, 0.0
      %v466 = vmax.f32 %v409, 0.0
      %v467 = vmax.f32 %v412, 0.0
      %v468 = vmax.f32 %v414, 0.0
      %v469 = vmax.f32 %v417, 0.0
      %v470 = vmax.f32 %v419, 0.0
      %v471 = vmax.f32 %v422, 0.0
      %v472 = vmax.f32 %v424, 0.0
      %v473 = vmax.f32 %v427, 0.0
      %v474 = vmax.f32 %v429, 0.0
      %v475 = vmax.f32 %v432, 0.0
      %v476 = vmax.f32 %v434, 0.0
      %v477 = vmax.f32 %v437, 0.0
      %v478 = vmax.f32 %v439, 0.0
      %v479 = vmax.f32 %v442, 0.0
      %v480 = vmax.f32 %v444, 0.0
      %v481 = vmax.f32 %v447, 0.0
      %v482 = vmax.f32 %v449, 0.0
      %v483 = vpack.c.bf16 %v451, %v451
      %v484 = vpack.c.bf16 %v452, %v452
      %v485 = vpack.c.bf16 %v453, %v453
      %v486 = vpack.c.bf16 %v454, %v454
      %v487 = vpack.c.bf16 %v455, %v455
      %v488 = vpack.c.bf16 %v456, %v456
      %v489 = vpack.c.bf16 %v457, %v457
      %v490 = vpack.c.bf16 %v458, %v458
      %v491 = vpack.c.bf16 %v459, %v459
      %v492 = vpack.c.bf16 %v460, %v460
      %v493 = vpack.c.bf16 %v461, %v461
      %v494 = vpack.c.bf16 %v462, %v462
      %v495 = vpack.c.bf16 %v463, %v463
      %v496 = vpack.c.bf16 %v464, %v464
      %v497 = vpack.c.bf16 %v465, %v465
      %v498 = vpack.c.bf16 %v466, %v466
      %v499 = vpack.c.bf16 %v467, %v467
      %v500 = vpack.c.bf16 %v468, %v468
      %v501 = vpack.c.bf16 %v469, %v469
      %v502 = vpack.c.bf16 %v470, %v470
      %v503 = vpack.c.bf16 %v471, %v471
      %v504 = vpack.c.bf16 %v472, %v472
      %v505 = vpack.c.bf16 %v473, %v473
      %v506 = vpack.c.bf16 %v474, %v474
      %v507 = vpack.c.bf16 %v475, %v475
      %v508 = vpack.c.bf16 %v476, %v476
      %v509 = vpack.c.bf16 %v477, %v477
      %v510 = vpack.c.bf16 %v478, %v478
      %v511 = vpack.c.bf16 %v479, %v479
      %v512 = vpack.c.bf16 %v480, %v480
      %v513 = vpack.c.bf16 %v481, %v481
      %v514 = vpack.c.bf16 %v482, %v482
      %vm515 = vcmask 125952
      %516 = vst.msk [vmem:[%s172] sm:$0xf] %vm515, %v483
      %517 = vst.msk [vmem:[%s172 + $0x4] sm:$0xf] %vm515, %v484
      %518 = vst.msk [vmem:[%s172 + $0x8] sm:$0xf] %vm515, %v485
      %519 = vst.msk [vmem:[%s172 + $0xc] sm:$0xf] %vm515, %v486
      %520 = vst.msk [vmem:[%s172 + $0x10] sm:$0xf] %vm515, %v487
      %521 = vst.msk [vmem:[%s172 + $0x14] sm:$0xf] %vm515, %v488
      %522 = vst.msk [vmem:[%s172 + $0x18] sm:$0xf] %vm515, %v489
      %523 = vst.msk [vmem:[%s172 + $0x1c] sm:$0xf] %vm515, %v490
      %524 = vst.msk [vmem:[%s172 + $0x20] sm:$0xf] %vm515, %v491
      %525 = vst.msk [vmem:[%s172 + $0x24] sm:$0xf] %vm515, %v492
      %526 = vst.msk [vmem:[%s172 + $0x28] sm:$0xf] %vm515, %v493
      %527 = vst.msk [vmem:[%s172 + $0x2c] sm:$0xf] %vm515, %v494
      %528 = vst.msk [vmem:[%s172 + $0x30] sm:$0xf] %vm515, %v495
      %529 = vst.msk [vmem:[%s172 + $0x34] sm:$0xf] %vm515, %v496
      %530 = vst.msk [vmem:[%s172 + $0x38] sm:$0xf] %vm515, %v497
      %531 = vst.msk [vmem:[%s172 + $0x3c] sm:$0xf] %vm515, %v498
      %532 = vst.msk [vmem:[%s172 + $0x40] sm:$0xf] %vm515, %v499
      %533 = vst.msk [vmem:[%s172 + $0x44] sm:$0xf] %vm515, %v500
      %534 = vst.msk [vmem:[%s172 + $0x48] sm:$0xf] %vm515, %v501
      %535 = vst.msk [vmem:[%s172 + $0x4c] sm:$0xf] %vm515, %v502
      %536 = vst.msk [vmem:[%s172 + $0x50] sm:$0xf] %vm515, %v503
      %537 = vst.msk [vmem:[%s172 + $0x54] sm:$0xf] %vm515, %v504
      %538 = vst.msk [vmem:[%s172 + $0x58] sm:$0xf] %vm515, %v505
      %539 = vst.msk [vmem:[%s172 + $0x5c] sm:$0xf] %vm515, %v506
      %540 = vst.msk [vmem:[%s172 + $0x60] sm:$0xf] %vm515, %v507
      %541 = vst.msk [vmem:[%s172 + $0x64] sm:$0xf] %vm515, %v508
      %542 = vst.msk [vmem:[%s172 + $0x68] sm:$0xf] %vm515, %v509
      %543 = vst.msk [vmem:[%s172 + $0x6c] sm:$0xf] %vm515, %v510
      %544 = vst.msk [vmem:[%s172 + $0x70] sm:$0xf] %vm515, %v511
      %545 = vst.msk [vmem:[%s172 + $0x74] sm:$0xf] %vm515, %v512
      %546 = vst.msk [vmem:[%s172 + $0x78] sm:$0xf] %vm515, %v513
      %547 = vst.msk [vmem:[%s172 + $0x7c] sm:$0xf] %vm515, %v514
      %s548 = smul.u32 32, %s14
      %p549 = scmp.lt.s32.totalorder %s548, 255
      %s550 = scalar_select %p549, %s548, 255
      %s551 = smul.addr %s550, 4
      %s552 = scalar_lea.vmem %s3, %s551
      // Predicated region
      $region33: #{deeplab_forward.18} parent=31 // pred_check
        %p553 = pneg %p100
      $region34: #{deeplab_forward.18} parent=31 // pred_check_branch
        %555 = sbr.rel (%p553) target = $region36
      $region35: #{deeplab_forward.18} parent=31 // pred_region
        %s556 = smul.u32 32, %s14
      $region36: #{deeplab_forward.18} parent=31 // pred_fallthru
        _
    $region32: #{deeplab_forward.18} parent=5 // pred_fallthru
      _
    %p557 = scmp.le.s32.totalorder 2, %s9
    // Predicated region
    $region37: #{deeplab_forward.18} parent=5 // pred_check
      %p558 = pneg %p557
    $region38: #{deeplab_forward.18} parent=5 // pred_check_branch
      %560 = sbr.rel (%p558) target = $region40
    $region39: #{deeplab_forward.18} parent=5 // pred_region
      %s561 = ssub.s32 %s9, 2
      // Predicated region
      $region41: #{deeplab_forward.18} parent=39 // pred_check
        %p562 = pneg %p106
      $region42: #{deeplab_forward.18} parent=39 // pred_check_branch
        %564 = sbr.rel (%p562) target = $region44
      $region43: #{deeplab_forward.18} parent=39 // pred_region
        %s565 = smul.u32 32, %s15
        %p566 = scmp.lt.s32.totalorder %s565, 255
        %s567 = scalar_select %p566, %s565, 255
        %s568 = smul.addr %s567, 4
        %s569 = scalar_lea.vmem %s3, %s568
      $region44: #{deeplab_forward.18} parent=39 // pred_fallthru
        _
    $region40: #{deeplab_forward.18} parent=5 // pred_fallthru
      _
  $region6: #{deeplab_forward.18} parent=0 // loop_footer
    %s13 = sadd.s32 1, %s9
  $region7: #{deeplab_forward.18} parent=0 // loop_footer_branch
    %8 = sbr.rel target = $region3
  $region8: #{deeplab_forward.18} parent=0 // loop_exit
    _

// kernel: deeplab_forward.19
$region0: #{deeplab_forward.19}
  #allocation0 [shape = 'u32[]', space=smem, size = 0x4, offset = 0x4, fixed_abs, tag = 'smem constant byte address 0x4 - core index']
  #allocation1 [shape = 'u32[72,128]{1,0:T(1,128)}', space=vmem, size = 0x9000, scoped, tag = 'internal scratch']
  %s0 = inlined_call_operand.vmem [shape: bf16[512,144], index: 0, kind: input, shape index: {}]
  %s1 = inlined_call_operand.vmem [shape: bf16[144,32], index: 1, kind: input, shape index: {}]
  %s2 = inlined_call_operand.vmem [shape: f32[1,32], index: 2, kind: input, shape index: {}]
  %s3 = inlined_call_operand.vmem [shape: bf16[512,32], index: 3, kind: output, shape index: {}]
  %s4 = sld [smem:[#allocation0]]
  $region45: #{deeplab_forward.19} parent=0
    _
  %s6 = ssub.s32 1, %s4
  %s7 = scalar_select 0, %s6, %s4
  loop: start=0, step=1, limit=4
  $region2: #{deeplab_forward.19} parent=0 // loop_pre_header
    _
  $region3: #{deeplab_forward.19} parent=0 // loop_header
    %s9 = sphi 0, %s13
    %p10 = scmp.ge.s32.totalorder %s9, 4
    %s19 = sphi 0, %s21
    %s22 = sphi 0, %s19
    %s23 = sphi 0, %s22
    %s39 = sphi 0, %s23
    %s43 = sphi 0, %s43
    %s45 = sphi 0, %s43
    %s46 = sphi 0, %s45
    %s60 = sphi 0, %s46
    %s64 = sphi 0, %s64
    %s66 = sphi 0, %s64
    %s67 = sphi 0, %s66
    %s81 = sphi 0, %s67
    %s87 = sphi 0, %s89
    %s90 = sphi 0, %s87
    %s91 = sphi 0, %s90
    %s107 = sphi 0, %s91
  $region4: #{deeplab_forward.19} parent=0 // loop_header_branch
    %12 = sbr.rel (%p10) target = $region8
  $region5: #{deeplab_forward.19} parent=0 // loop_body
    %s14 = ssub.s32 %s9, 1
    %s15 = ssub.s32 %s9, 2
    %s16 = sadd.s32 %s9, 1
    %s17 = ssub.s32 %s9, %s16
    %p18 = scmp.eq.s32.totalorder %s17, 0
    %s20 = sadd.s32 %s19, 1
    %s21 = scalar_select %p18, %s19, %s20
    %p24 = pneg %p18
    %p25 = scmp.eq.s32.totalorder %s9, 1
    %p26 = por %p24, %p25
    %p27 = scmp.ne.s32.totalorder %s19, %s22
    %p28 = scmp.eq.s32.totalorder %s9, 0
    %p29 = por %p27, %p28
    %p30 = scmp.ne.s32.totalorder %s19, %s22
    %p31 = scmp.eq.s32.totalorder %s14, 1
    %p32 = por %p30, %p31
    %p33 = scmp.ne.s32.totalorder %s22, %s23
    %p34 = scmp.eq.s32.totalorder %s14, 0
    %p35 = por %p33, %p34
    %p36 = scmp.ne.s32.totalorder %s22, %s23
    %p37 = scmp.eq.s32.totalorder %s15, 1
    %p38 = por %p36, %p37
    %p40 = scmp.ne.s32.totalorder %s23, %s39
    %p41 = scmp.eq.s32.totalorder %s15, 0
    %p42 = por %p40, %p41
    %s44 = sadd.s32 %s43, 1
    %p47 = scmp.eq.s32.totalorder %s9, 1
    %p48 = scmp.ne.s32.totalorder %s43, %s45
    %p49 = scmp.eq.s32.totalorder %s9, 0
    %p50 = por %p48, %p49
    %p51 = scmp.ne.s32.totalorder %s43, %s45
    %p52 = scmp.eq.s32.totalorder %s14, 1
    %p53 = por %p51, %p52
    %p54 = scmp.ne.s32.totalorder %s45, %s46
    %p55 = scmp.eq.s32.totalorder %s14, 0
    %p56 = por %p54, %p55
    %p57 = scmp.ne.s32.totalorder %s45, %s46
    %p58 = scmp.eq.s32.totalorder %s15, 1
    %p59 = por %p57, %p58
    %p61 = scmp.ne.s32.totalorder %s46, %s60
    %p62 = scmp.eq.s32.totalorder %s15, 0
    %p63 = por %p61, %p62
    %s65 = sadd.s32 %s64, 1
    %p68 = scmp.eq.s32.totalorder %s9, 1
    %p69 = scmp.ne.s32.totalorder %s64, %s66
    %p70 = scmp.eq.s32.totalorder %s9, 0
    %p71 = por %p69, %p70
    %p72 = scmp.ne.s32.totalorder %s64, %s66
    %p73 = scmp.eq.s32.totalorder %s14, 1
    %p74 = por %p72, %p73
    %p75 = scmp.ne.s32.totalorder %s66, %s67
    %p76 = scmp.eq.s32.totalorder %s14, 0
    %p77 = por %p75, %p76
    %p78 = scmp.ne.s32.totalorder %s66, %s67
    %p79 = scmp.eq.s32.totalorder %s15, 1
    %p80 = por %p78, %p79
    %p82 = scmp.ne.s32.totalorder %s67, %s81
    %p83 = scmp.eq.s32.totalorder %s15, 0
    %p84 = por %p82, %p83
    %s85 = ssub.s32 %s9, %s16
    %p86 = scmp.eq.s32.totalorder %s85, 0
    %s88 = sadd.s32 %s87, 1
    %s89 = scalar_select %p86, %s87, %s88
    %p92 = pneg %p86
    %p93 = scmp.eq.s32.totalorder %s9, 1
    %p94 = por %p92, %p93
    %p95 = scmp.ne.s32.totalorder %s87, %s90
    %p96 = scmp.eq.s32.totalorder %s9, 0
    %p97 = por %p95, %p96
    %p98 = scmp.ne.s32.totalorder %s87, %s90
    %p99 = scmp.eq.s32.totalorder %s14, 1
    %p100 = por %p98, %p99
    %p101 = scmp.ne.s32.totalorder %s90, %s91
    %p102 = scmp.eq.s32.totalorder %s14, 0
    %p103 = por %p101, %p102
    %p104 = scmp.ne.s32.totalorder %s90, %s91
    %p105 = scmp.eq.s32.totalorder %s15, 1
    %p106 = por %p104, %p105
    %p108 = scmp.ne.s32.totalorder %s91, %s107
    %p109 = scmp.eq.s32.totalorder %s15, 0
    %p110 = por %p108, %p109
    %p111 = scmp.le.s32.totalorder 1, %s9
    %p112 = scmp.lt.s32.totalorder %s9, 3
    %p113 = pnand %p111, %p112
    %p114 = pneg %p113
    // Predicated region
    $region9: #{deeplab_forward.19} parent=5 // pred_check
      _
    $region10: #{deeplab_forward.19} parent=5 // pred_check_branch
      %116 = sbr.rel (%p113) target = $region12
    $region11: #{deeplab_forward.19} parent=5 // pred_region
      %s117 = ssub.s32 %s9, 1
      // Predicated region
      $region13: #{deeplab_forward.19} parent=11 // pred_check
        %p118 = pneg %p56
      $region14: #{deeplab_forward.19} parent=11 // pred_check_branch
        %120 = sbr.rel (%p118) target = $region16
      $region15: #{deeplab_forward.19} parent=11 // pred_region
        _
      $region16: #{deeplab_forward.19} parent=11 // pred_fallthru
        _
      // Predicated region
      $region17: #{deeplab_forward.19} parent=11 // pred_check
        %p121 = pneg %p77
      $region18: #{deeplab_forward.19} parent=11 // pred_check_branch
        %123 = sbr.rel (%p121) target = $region20
      $region19: #{deeplab_forward.19} parent=11 // pred_region
        _
      $region20: #{deeplab_forward.19} parent=11 // pred_fallthru
        _
    $region12: #{deeplab_forward.19} parent=5 // pred_fallthru
      _
    %p124 = scmp.lt.s32.totalorder %s9, 2
    // Predicated region
    $region21: #{deeplab_forward.19} parent=5 // pred_check
      %p125 = pneg %p124
    $region22: #{deeplab_forward.19} parent=5 // pred_check_branch
      %127 = sbr.rel (%p125) target = $region24
    $region23: #{deeplab_forward.19} parent=5 // pred_region
      // Predicated region
      $region25: #{deeplab_forward.19} parent=23 // pred_check
        %p128 = pneg %p29
      $region26: #{deeplab_forward.19} parent=23 // pred_check_branch
        %130 = sbr.rel (%p128) target = $region28
      $region27: #{deeplab_forward.19} parent=23 // pred_region
        %s131 = smul.u32 32, %s9
        %p132 = scmp.lt.s32.totalorder %s131, 63
        %s133 = scalar_select %p132, %s131, 63
        %s134 = smul.addr %s133, 2
        %s135 = smul.addr %s134, 4
        %s136 = scalar_lea.vmem %s0, %s135
        %s137 = smul.u32 32, %s9
      $region28: #{deeplab_forward.19} parent=23 // pred_fallthru
        _
    $region24: #{deeplab_forward.19} parent=5 // pred_fallthru
      _
    %p138 = scmp.le.s32.totalorder 1, %s9
    %p139 = scmp.lt.s32.totalorder %s9, 3
    %p140 = pnand %p138, %p139
    %p141 = pneg %p140
    // Predicated region
    $region29: #{deeplab_forward.19} parent=5 // pred_check
      _
    $region30: #{deeplab_forward.19} parent=5 // pred_check_branch
      %143 = sbr.rel (%p140) target = $region32
    $region31: #{deeplab_forward.19} parent=5 // pred_region
      %s144 = ssub.s32 %s9, 1
      %s145 = smul.u32 32, %s14
      %p146 = scmp.lt.s32.totalorder %s145, 63
      %s147 = scalar_select %p146, %s145, 63
      %s148 = smul.addr %s147, 2
      %s149 = smul.addr %s148, 4
      %s150 = scalar_lea.vmem %s0, %s149
      %p151 = pneg %p35
      %p152 = pneg %p32
      %p153 = pneg %p56
      %p154 = pneg %p53
      %p155 = pneg %p77
      %p156 = pneg %p74
      %p157 = pneg %p103
      %p158 = pneg %p100
      %s159 = smul.u32 32, %s14
      %p160 = scmp.lt.s32.totalorder %s159, 63
      %s161 = scalar_select %p160, %s159, 63
      %s162 = smul.addr %s161, 4
      %s163 = scalar_lea.vmem %s3, %s162
      %s164 = smul.u32 32, %s14
      %p165 = scmp.lt.s32.totalorder %s164, 63
      %s166 = scalar_select %p165, %s164, 63
      %s167 = smul.addr %s166, 2
      %s168 = smul.addr %s167, 4
      %s169 = scalar_lea.vmem %s0, %s168
      %s170 = smul.u32 32, %s14
      %s171 = smul.u32 32, %s14
      %p172 = scmp.lt.s32.totalorder %s171, 63
      %s173 = scalar_select %p172, %s171, 63
      %s174 = smul.addr %s173, 4
      %s175 = scalar_lea.vmem %s3, %s174
      %s176 = smul.u32 32, %s14
      %v178 = vld [vmem:[%s169] sm:$0xff]
      %v179 = vld [vmem:[%s169 + $0x8] sm:$0xff]
      %v180 = vld [vmem:[%s169 + $0x10] sm:$0xff]
      %v181 = vld [vmem:[%s169 + $0x18] sm:$0xff]
      %v182 = vld [vmem:[%s169 + $0x20] sm:$0xff]
      %v183 = vld [vmem:[%s169 + $0x28] sm:$0xff]
      %v184 = vld [vmem:[%s169 + $0x30] sm:$0xff]
      %v185 = vld [vmem:[%s169 + $0x38] sm:$0xff]
      %v186 = vld [vmem:[%s169 + $0x40] sm:$0xff]
      %v187 = vld [vmem:[%s169 + $0x48] sm:$0xff]
      %v188 = vld [vmem:[%s169 + $0x50] sm:$0xff]
      %v189 = vld [vmem:[%s169 + $0x58] sm:$0xff]
      %v190 = vld [vmem:[%s169 + $0x60] sm:$0xff]
      %v191 = vld [vmem:[%s169 + $0x68] sm:$0xff]
      %v192 = vld [vmem:[%s169 + $0x70] sm:$0xff]
      %v193 = vld [vmem:[%s169 + $0x78] sm:$0xff]
      %v194 = vld [vmem:[%s169 + $0x80] sm:$0xff]
      %v195 = vld [vmem:[%s169 + $0x88] sm:$0xff]
      %v196 = vld [vmem:[%s169 + $0x90] sm:$0xff]
      %v197 = vld [vmem:[%s169 + $0x98] sm:$0xff]
      %v198 = vld [vmem:[%s169 + $0xa0] sm:$0xff]
      %v199 = vld [vmem:[%s169 + $0xa8] sm:$0xff]
      %v200 = vld [vmem:[%s169 + $0xb0] sm:$0xff]
      %v201 = vld [vmem:[%s169 + $0xb8] sm:$0xff]
      %v202 = vld [vmem:[%s169 + $0xc0] sm:$0xff]
      %v203 = vld [vmem:[%s169 + $0xc8] sm:$0xff]
      %v204 = vld [vmem:[%s169 + $0xd0] sm:$0xff]
      %v205 = vld [vmem:[%s169 + $0xd8] sm:$0xff]
      %v206 = vld [vmem:[%s169 + $0xe0] sm:$0xff]
      %v207 = vld [vmem:[%s169 + $0xe8] sm:$0xff]
      %v208 = vld [vmem:[%s169 + $0xf0] sm:$0xff]
      %v209 = vld [vmem:[%s169 + $0xf8] sm:$0xff]
      %v210 = vld [vmem:[%s1] sm:$0xf]
      %v211 = vld [vmem:[%s1 + $0x4] sm:$0xf]
      %v212 = vld [vmem:[%s1 + $0x8] sm:$0xf]
      %v213 = vld [vmem:[%s1 + $0xc] sm:$0xf]
      %v214 = vld [vmem:[%s1 + $0x10] sm:$0xf]
      %v215 = vld [vmem:[%s1 + $0x14] sm:$0xf]
      %v216 = vld [vmem:[%s1 + $0x18] sm:$0xf]
      %v217 = vld [vmem:[%s1 + $0x1c] sm:$0xf]
      %v218 = vld [vmem:[%s1 + $0x20] sm:$0xf]
      %v219 = vld [vmem:[%s1 + $0x24] sm:$0xf]
      %v220 = vld [vmem:[%s1 + $0x28] sm:$0xf]
      %v221 = vld [vmem:[%s1 + $0x2c] sm:$0xf]
      %v222 = vld [vmem:[%s1 + $0x30] sm:$0xf]
      %v223 = vld [vmem:[%s1 + $0x34] sm:$0xf]
      %v224 = vld [vmem:[%s1 + $0x38] sm:$0xf]
      %v225 = vld [vmem:[%s1 + $0x3c] sm:$0xf]
      %v226 = vld [vmem:[%s1 + $0x40] sm:$0xf]
      %v227 = vld [vmem:[%s1 + $0x44] sm:$0xf]
      %v228 = vld [vmem:[%s2] sm:$0x1]
      %v230 = vperm.slane %v228, 0
      %v264 = vunpack.c.l.b16 %v178
      %v265 = vunpack.c.h.b16 %v178
      %v266 = vunpack.c.l.b16 %v179
      %v267 = vunpack.c.h.b16 %v179
      %v268 = vunpack.c.l.b16 %v180
      %v269 = vunpack.c.h.b16 %v180
      %v270 = vunpack.c.l.b16 %v181
      %v271 = vunpack.c.h.b16 %v181
      %v272 = vunpack.c.l.b16 %v182
      %v273 = vunpack.c.h.b16 %v182
      %v274 = vunpack.c.l.b16 %v183
      %v275 = vunpack.c.h.b16 %v183
      %v276 = vunpack.c.l.b16 %v184
      %v277 = vunpack.c.h.b16 %v184
      %v278 = vunpack.c.l.b16 %v185
      %v279 = vunpack.c.h.b16 %v185
      %v280 = vunpack.c.l.b16 %v186
      %v281 = vunpack.c.h.b16 %v186
      %v282 = vunpack.c.l.b16 %v187
      %v283 = vunpack.c.h.b16 %v187
      %v284 = vunpack.c.l.b16 %v188
      %v285 = vunpack.c.h.b16 %v188
      %v286 = vunpack.c.l.b16 %v189
      %v287 = vunpack.c.h.b16 %v189
      %v288 = vunpack.c.l.b16 %v190
      %v289 = vunpack.c.h.b16 %v190
      %v290 = vunpack.c.l.b16 %v191
      %v291 = vunpack.c.h.b16 %v191
      %v292 = vunpack.c.l.b16 %v192
      %v293 = vunpack.c.h.b16 %v192
      %v294 = vunpack.c.l.b16 %v193
      %v295 = vunpack.c.h.b16 %v193
      %v296 = vunpack.c.l.b16 %v194
      %v297 = vunpack.c.h.b16 %v194
      %v298 = vunpack.c.l.b16 %v195
      %v299 = vunpack.c.h.b16 %v195
      %v300 = vunpack.c.l.b16 %v196
      %v301 = vunpack.c.h.b16 %v196
      %v302 = vunpack.c.l.b16 %v197
      %v303 = vunpack.c.h.b16 %v197
      %v304 = vunpack.c.l.b16 %v198
      %v305 = vunpack.c.h.b16 %v198
      %v306 = vunpack.c.l.b16 %v199
      %v307 = vunpack.c.h.b16 %v199
      %v308 = vunpack.c.l.b16 %v200
      %v309 = vunpack.c.h.b16 %v200
      %v310 = vunpack.c.l.b16 %v201
      %v311 = vunpack.c.h.b16 %v201
      %v312 = vunpack.c.l.b16 %v202
      %v313 = vunpack.c.h.b16 %v202
      %v314 = vunpack.c.l.b16 %v203
      %v315 = vunpack.c.h.b16 %v203
      %v316 = vunpack.c.l.b16 %v204
      %v317 = vunpack.c.h.b16 %v204
      %v318 = vunpack.c.l.b16 %v205
      %v319 = vunpack.c.h.b16 %v205
      %v320 = vunpack.c.l.b16 %v206
      %v321 = vunpack.c.h.b16 %v206
      %v322 = vunpack.c.l.b16 %v207
      %v323 = vunpack.c.h.b16 %v207
      %v324 = vunpack.c.l.b16 %v208
      %v325 = vunpack.c.h.b16 %v208
      %v326 = vunpack.c.l.b16 %v209
      %v327 = vunpack.c.h.b16 %v209
      %v328 = vpack.c.b16 %v266, %v264
      %v329 = vpack.c.b16 %v267, %v265
      %v330 = vpack.c.b16 %v270, %v268
      %v331 = vpack.c.b16 %v271, %v269
      %v332 = vpack.c.b16 %v274, %v272
      %v333 = vpack.c.b16 %v275, %v273
      %v334 = vpack.c.b16 %v278, %v276
      %v335 = vpack.c.b16 %v279, %v277
      %v336 = vpack.c.b16 %v282, %v280
      %v337 = vpack.c.b16 %v283, %v281
      %v338 = vpack.c.b16 %v286, %v284
      %v339 = vpack.c.b16 %v287, %v285
      %v340 = vpack.c.b16 %v290, %v288
      %v341 = vpack.c.b16 %v291, %v289
      %v342 = vpack.c.b16 %v294, %v292
      %v343 = vpack.c.b16 %v295, %v293
      %v344 = vpack.c.b16 %v298, %v296
      %v345 = vpack.c.b16 %v299, %v297
      %v346 = vpack.c.b16 %v302, %v300
      %v347 = vpack.c.b16 %v303, %v301
      %v348 = vpack.c.b16 %v306, %v304
      %v349 = vpack.c.b16 %v307, %v305
      %v350 = vpack.c.b16 %v310, %v308
      %v351 = vpack.c.b16 %v311, %v309
      %v352 = vpack.c.b16 %v314, %v312
      %v353 = vpack.c.b16 %v315, %v313
      %v354 = vpack.c.b16 %v318, %v316
      %v355 = vpack.c.b16 %v319, %v317
      %v356 = vpack.c.b16 %v322, %v320
      %v357 = vpack.c.b16 %v323, %v321
      %v358 = vpack.c.b16 %v326, %v324
      %v359 = vpack.c.b16 %v327, %v325
      %v394 = vunpack.c.l.b16 %v210
      %v395 = vunpack.c.l.b16 %v211
      %v396 = vunpack.c.l.b16 %v212
      %v397 = vunpack.c.l.b16 %v213
      %v398 = vunpack.c.l.b16 %v214
      %v399 = vunpack.c.l.b16 %v215
      %v400 = vunpack.c.l.b16 %v216
      %v401 = vunpack.c.l.b16 %v217
      %v402 = vunpack.c.l.b16 %v218
      %v403 = vunpack.c.l.b16 %v219
      %v404 = vunpack.c.l.b16 %v220
      %v405 = vunpack.c.l.b16 %v221
      %v406 = vunpack.c.l.b16 %v222
      %v407 = vunpack.c.l.b16 %v223
      %v408 = vunpack.c.l.b16 %v224
      %v409 = vunpack.c.l.b16 %v225
      %v410 = vunpack.c.l.b16 %v226
      %v411 = vunpack.c.l.b16 %v227
      %v412 = vpack.c.b16 %v395, %v394
      %v413 = vpack.c.b16 %v397, %v396
      %v414 = vpack.c.b16 %v399, %v398
      %v415 = vpack.c.b16 %v401, %v400
      %v416 = vpack.c.b16 %v403, %v402
      %v417 = vpack.c.b16 %v405, %v404
      %v418 = vpack.c.b16 %v407, %v406
      %v419 = vpack.c.b16 %v409, %v408
      %v420 = vpack.c.b16 %v411, %v410
      %vm430 = vcmask 130048
      %v432 = vsel %vm430, %v329, 0
      %v435 = vsel %vm430, %v331, 0
      %v438 = vsel %vm430, %v333, 0
      %v441 = vsel %vm430, %v335, 0
      %v444 = vsel %vm430, %v337, 0
      %v447 = vsel %vm430, %v339, 0
      %v450 = vsel %vm430, %v341, 0
      %v453 = vsel %vm430, %v343, 0
      %v456 = vsel %vm430, %v345, 0
      %v459 = vsel %vm430, %v347, 0
      %v462 = vsel %vm430, %v349, 0
      %v465 = vsel %vm430, %v351, 0
      %v468 = vsel %vm430, %v353, 0
      %v471 = vsel %vm430, %v355, 0
      %v474 = vsel %vm430, %v357, 0
      %v477 = vsel %vm430, %v359, 0
      %479 = vmatpush.bf16.msra.mxu0 %v419
      %480 = vmatpush.bf16.msra.mxu0 %v418
      %481 = vmatpush.bf16.msra.mxu0 %v417
      %482 = vmatpush.bf16.msra.mxu0 %v416
      %483 = vmatpush.bf16.msra.mxu0 %v415
      %484 = vmatpush.bf16.msra.mxu0 %v414
      %485 = vmatpush.bf16.msra.mxu0 %v413
      %486 = vmatpush.bf16.msra.mxu0 %v412
      %487 = vmatmul.bf16.gmra.mxu0 %v328
      %v488 = vpop.f32.mrf.mxu0
      %v489 = vadd.f32 %v230, %v488
      %v490 = vpop.f32.mrf.mxu0
      %v491 = vadd.f32 %v230, %v490
      %492 = vmatmul.bf16.gmra.mxu0 %v330
      %v493 = vpop.f32.mrf.mxu0
      %v494 = vadd.f32 %v230, %v493
      %v495 = vpop.f32.mrf.mxu0
      %v496 = vadd.f32 %v230, %v495
      %497 = vmatmul.bf16.gmra.mxu0 %v332
      %v498 = vpop.f32.mrf.mxu0
      %v499 = vadd.f32 %v230, %v498
      %v500 = vpop.f32.mrf.mxu0
      %v501 = vadd.f32 %v230, %v500
      %502 = vmatmul.bf16.gmra.mxu0 %v334
      %v503 = vpop.f32.mrf.mxu0
      %v504 = vadd.f32 %v230, %v503
      %v505 = vpop.f32.mrf.mxu0
      %v506 = vadd.f32 %v230, %v505
      %507 = vmatmul.bf16.gmra.mxu0 %v336
      %v508 = vpop.f32.mrf.mxu0
      %v509 = vadd.f32 %v230, %v508
      %v510 = vpop.f32.mrf.mxu0
      %v511 = vadd.f32 %v230, %v510
      %512 = vmatmul.bf16.gmra.mxu0 %v338
      %v513 = vpop.f32.mrf.mxu0
      %v514 = vadd.f32 %v230, %v513
      %v515 = vpop.f32.mrf.mxu0
      %v516 = vadd.f32 %v230, %v515
      %517 = vmatmul.bf16.gmra.mxu0 %v340
      %v518 = vpop.f32.mrf.mxu0
      %v519 = vadd.f32 %v230, %v518
      %v520 = vpop.f32.mrf.mxu0
      %v521 = vadd.f32 %v230, %v520
      %522 = vmatmul.bf16.gmra.mxu0 %v342
      %v523 = vpop.f32.mrf.mxu0
      %v524 = vadd.f32 %v230, %v523
      %v525 = vpop.f32.mrf.mxu0
      %v526 = vadd.f32 %v230, %v525
      %527 = vmatmul.bf16.gmra.mxu0 %v344
      %v528 = vpop.f32.mrf.mxu0
      %v529 = vadd.f32 %v230, %v528
      %v530 = vpop.f32.mrf.mxu0
      %v531 = vadd.f32 %v230, %v530
      %532 = vmatmul.bf16.gmra.mxu0 %v346
      %v533 = vpop.f32.mrf.mxu0
      %v534 = vadd.f32 %v230, %v533
      %v535 = vpop.f32.mrf.mxu0
      %v536 = vadd.f32 %v230, %v535
      %537 = vmatmul.bf16.gmra.mxu0 %v348
      %v538 = vpop.f32.mrf.mxu0
      %v539 = vadd.f32 %v230, %v538
      %v540 = vpop.f32.mrf.mxu0
      %v541 = vadd.f32 %v230, %v540
      %542 = vmatmul.bf16.gmra.mxu0 %v350
      %v543 = vpop.f32.mrf.mxu0
      %v544 = vadd.f32 %v230, %v543
      %v545 = vpop.f32.mrf.mxu0
      %v546 = vadd.f32 %v230, %v545
      %547 = vmatmul.bf16.gmra.mxu0 %v352
      %v548 = vpop.f32.mrf.mxu0
      %v549 = vadd.f32 %v230, %v548
      %v550 = vpop.f32.mrf.mxu0
      %v551 = vadd.f32 %v230, %v550
      %552 = vmatmul.bf16.gmra.mxu0 %v354
      %v553 = vpop.f32.mrf.mxu0
      %v554 = vadd.f32 %v230, %v553
      %v555 = vpop.f32.mrf.mxu0
      %v556 = vadd.f32 %v230, %v555
      %557 = vmatmul.bf16.gmra.mxu0 %v356
      %v558 = vpop.f32.mrf.mxu0
      %v559 = vadd.f32 %v230, %v558
      %v560 = vpop.f32.mrf.mxu0
      %v561 = vadd.f32 %v230, %v560
      %562 = vmatmul.bf16.gmra.mxu0 %v358
      %v563 = vpop.f32.mrf.mxu0
      %v564 = vadd.f32 %v230, %v563
      %v565 = vpop.f32.mrf.mxu0
      %v566 = vadd.f32 %v230, %v565
      %567 = vdwg.mxu0
      %568 = vmatpush.bf16.msra.mxu0 0
      %569 = vmatpush.bf16.msra.mxu0 0
      %570 = vmatpush.bf16.msra.mxu0 0
      %571 = vmatpush.bf16.msra.mxu0 0
      %572 = vmatpush.bf16.msra.mxu0 0
      %573 = vmatpush.bf16.msra.mxu0 0
      %574 = vmatpush.bf16.msra.mxu0 0
      %575 = vmatpush.bf16.msra.mxu0 %v420
      %576 = vmatmul.bf16.gmra.mxu0 %v432
      %v577 = vpop.f32.mrf.mxu0
      %v578 = vadd.f32 %v489, %v577
      %v579 = vpop.f32.mrf.mxu0
      %v580 = vadd.f32 %v491, %v579
      %581 = vmatmul.bf16.gmra.mxu0 %v435
      %v582 = vpop.f32.mrf.mxu0
      %v583 = vadd.f32 %v494, %v582
      %v584 = vpop.f32.mrf.mxu0
      %v585 = vadd.f32 %v496, %v584
      %586 = vmatmul.bf16.gmra.mxu0 %v438
      %v587 = vpop.f32.mrf.mxu0
      %v588 = vadd.f32 %v499, %v587
      %v589 = vpop.f32.mrf.mxu0
      %v590 = vadd.f32 %v501, %v589
      %591 = vmatmul.bf16.gmra.mxu0 %v441
      %v592 = vpop.f32.mrf.mxu0
      %v593 = vadd.f32 %v504, %v592
      %v594 = vpop.f32.mrf.mxu0
      %v595 = vadd.f32 %v506, %v594
      %596 = vmatmul.bf16.gmra.mxu0 %v444
      %v597 = vpop.f32.mrf.mxu0
      %v598 = vadd.f32 %v509, %v597
      %v599 = vpop.f32.mrf.mxu0
      %v600 = vadd.f32 %v511, %v599
      %601 = vmatmul.bf16.gmra.mxu0 %v447
      %v602 = vpop.f32.mrf.mxu0
      %v603 = vadd.f32 %v514, %v602
      %v604 = vpop.f32.mrf.mxu0
      %v605 = vadd.f32 %v516, %v604
      %606 = vmatmul.bf16.gmra.mxu0 %v450
      %v607 = vpop.f32.mrf.mxu0
      %v608 = vadd.f32 %v519, %v607
      %v609 = vpop.f32.mrf.mxu0
      %v610 = vadd.f32 %v521, %v609
      %611 = vmatmul.bf16.gmra.mxu0 %v453
      %v612 = vpop.f32.mrf.mxu0
      %v613 = vadd.f32 %v524, %v612
      %v614 = vpop.f32.mrf.mxu0
      %v615 = vadd.f32 %v526, %v614
      %616 = vmatmul.bf16.gmra.mxu0 %v456
      %v617 = vpop.f32.mrf.mxu0
      %v618 = vadd.f32 %v529, %v617
      %v619 = vpop.f32.mrf.mxu0
      %v620 = vadd.f32 %v531, %v619
      %621 = vmatmul.bf16.gmra.mxu0 %v459
      %v622 = vpop.f32.mrf.mxu0
      %v623 = vadd.f32 %v534, %v622
      %v624 = vpop.f32.mrf.mxu0
      %v625 = vadd.f32 %v536, %v624
      %626 = vmatmul.bf16.gmra.mxu0 %v462
      %v627 = vpop.f32.mrf.mxu0
      %v628 = vadd.f32 %v539, %v627
      %v629 = vpop.f32.mrf.mxu0
      %v630 = vadd.f32 %v541, %v629
      %631 = vmatmul.bf16.gmra.mxu0 %v465
      %v632 = vpop.f32.mrf.mxu0
      %v633 = vadd.f32 %v544, %v632
      %v634 = vpop.f32.mrf.mxu0
      %v635 = vadd.f32 %v546, %v634
      %636 = vmatmul.bf16.gmra.mxu0 %v468
      %v637 = vpop.f32.mrf.mxu0
      %v638 = vadd.f32 %v549, %v637
      %v639 = vpop.f32.mrf.mxu0
      %v640 = vadd.f32 %v551, %v639
      %641 = vmatmul.bf16.gmra.mxu0 %v471
      %v642 = vpop.f32.mrf.mxu0
      %v643 = vadd.f32 %v554, %v642
      %v644 = vpop.f32.mrf.mxu0
      %v645 = vadd.f32 %v556, %v644
      %646 = vmatmul.bf16.gmra.mxu0 %v474
      %v647 = vpop.f32.mrf.mxu0
      %v648 = vadd.f32 %v559, %v647
      %v649 = vpop.f32.mrf.mxu0
      %v650 = vadd.f32 %v561, %v649
      %651 = vmatmul.bf16.gmra.mxu0 %v477
      %v652 = vpop.f32.mrf.mxu0
      %v653 = vadd.f32 %v564, %v652
      %v654 = vpop.f32.mrf.mxu0
      %v655 = vadd.f32 %v566, %v654
      %656 = vdwg.mxu0
      %v657 = vmax.f32 %v578, 0.0
      %v658 = vmax.f32 %v580, 0.0
      %v659 = vmax.f32 %v583, 0.0
      %v660 = vmax.f32 %v585, 0.0
      %v661 = vmax.f32 %v588, 0.0
      %v662 = vmax.f32 %v590, 0.0
      %v663 = vmax.f32 %v593, 0.0
      %v664 = vmax.f32 %v595, 0.0
      %v665 = vmax.f32 %v598, 0.0
      %v666 = vmax.f32 %v600, 0.0
      %v667 = vmax.f32 %v603, 0.0
      %v668 = vmax.f32 %v605, 0.0
      %v669 = vmax.f32 %v608, 0.0
      %v670 = vmax.f32 %v610, 0.0
      %v671 = vmax.f32 %v613, 0.0
      %v672 = vmax.f32 %v615, 0.0
      %v673 = vmax.f32 %v618, 0.0
      %v674 = vmax.f32 %v620, 0.0
      %v675 = vmax.f32 %v623, 0.0
      %v676 = vmax.f32 %v625, 0.0
      %v677 = vmax.f32 %v628, 0.0
      %v678 = vmax.f32 %v630, 0.0
      %v679 = vmax.f32 %v633, 0.0
      %v680 = vmax.f32 %v635, 0.0
      %v681 = vmax.f32 %v638, 0.0
      %v682 = vmax.f32 %v640, 0.0
      %v683 = vmax.f32 %v643, 0.0
      %v684 = vmax.f32 %v645, 0.0
      %v685 = vmax.f32 %v648, 0.0
      %v686 = vmax.f32 %v650, 0.0
      %v687 = vmax.f32 %v653, 0.0
      %v688 = vmax.f32 %v655, 0.0
      %v689 = vpack.c.bf16 %v657, %v657
      %v690 = vpack.c.bf16 %v658, %v658
      %v691 = vpack.c.bf16 %v659, %v659
      %v692 = vpack.c.bf16 %v660, %v660
      %v693 = vpack.c.bf16 %v661, %v661
      %v694 = vpack.c.bf16 %v662, %v662
      %v695 = vpack.c.bf16 %v663, %v663
      %v696 = vpack.c.bf16 %v664, %v664
      %v697 = vpack.c.bf16 %v665, %v665
      %v698 = vpack.c.bf16 %v666, %v666
      %v699 = vpack.c.bf16 %v667, %v667
      %v700 = vpack.c.bf16 %v668, %v668
      %v701 = vpack.c.bf16 %v669, %v669
      %v702 = vpack.c.bf16 %v670, %v670
      %v703 = vpack.c.bf16 %v671, %v671
      %v704 = vpack.c.bf16 %v672, %v672
      %v705 = vpack.c.bf16 %v673, %v673
      %v706 = vpack.c.bf16 %v674, %v674
      %v707 = vpack.c.bf16 %v675, %v675
      %v708 = vpack.c.bf16 %v676, %v676
      %v709 = vpack.c.bf16 %v677, %v677
      %v710 = vpack.c.bf16 %v678, %v678
      %v711 = vpack.c.bf16 %v679, %v679
      %v712 = vpack.c.bf16 %v680, %v680
      %v713 = vpack.c.bf16 %v681, %v681
      %v714 = vpack.c.bf16 %v682, %v682
      %v715 = vpack.c.bf16 %v683, %v683
      %v716 = vpack.c.bf16 %v684, %v684
      %v717 = vpack.c.bf16 %v685, %v685
      %v718 = vpack.c.bf16 %v686, %v686
      %v719 = vpack.c.bf16 %v687, %v687
      %v720 = vpack.c.bf16 %v688, %v688
      %vm721 = vcmask 257024
      %722 = vst.msk [vmem:[%s175] sm:$0xf] %vm721, %v689
      %723 = vst.msk [vmem:[%s175 + $0x4] sm:$0xf] %vm721, %v690
      %724 = vst.msk [vmem:[%s175 + $0x8] sm:$0xf] %vm721, %v691
      %725 = vst.msk [vmem:[%s175 + $0xc] sm:$0xf] %vm721, %v692
      %726 = vst.msk [vmem:[%s175 + $0x10] sm:$0xf] %vm721, %v693
      %727 = vst.msk [vmem:[%s175 + $0x14] sm:$0xf] %vm721, %v694
      %728 = vst.msk [vmem:[%s175 + $0x18] sm:$0xf] %vm721, %v695
      %729 = vst.msk [vmem:[%s175 + $0x1c] sm:$0xf] %vm721, %v696
      %730 = vst.msk [vmem:[%s175 + $0x20] sm:$0xf] %vm721, %v697
      %731 = vst.msk [vmem:[%s175 + $0x24] sm:$0xf] %vm721, %v698
      %732 = vst.msk [vmem:[%s175 + $0x28] sm:$0xf] %vm721, %v699
      %733 = vst.msk [vmem:[%s175 + $0x2c] sm:$0xf] %vm721, %v700
      %734 = vst.msk [vmem:[%s175 + $0x30] sm:$0xf] %vm721, %v701
      %735 = vst.msk [vmem:[%s175 + $0x34] sm:$0xf] %vm721, %v702
      %736 = vst.msk [vmem:[%s175 + $0x38] sm:$0xf] %vm721, %v703
      %737 = vst.msk [vmem:[%s175 + $0x3c] sm:$0xf] %vm721, %v704
      %738 = vst.msk [vmem:[%s175 + $0x40] sm:$0xf] %vm721, %v705
      %739 = vst.msk [vmem:[%s175 + $0x44] sm:$0xf] %vm721, %v706
      %740 = vst.msk [vmem:[%s175 + $0x48] sm:$0xf] %vm721, %v707
      %741 = vst.msk [vmem:[%s175 + $0x4c] sm:$0xf] %vm721, %v708
      %742 = vst.msk [vmem:[%s175 + $0x50] sm:$0xf] %vm721, %v709
      %743 = vst.msk [vmem:[%s175 + $0x54] sm:$0xf] %vm721, %v710
      %744 = vst.msk [vmem:[%s175 + $0x58] sm:$0xf] %vm721, %v711
      %745 = vst.msk [vmem:[%s175 + $0x5c] sm:$0xf] %vm721, %v712
      %746 = vst.msk [vmem:[%s175 + $0x60] sm:$0xf] %vm721, %v713
      %747 = vst.msk [vmem:[%s175 + $0x64] sm:$0xf] %vm721, %v714
      %748 = vst.msk [vmem:[%s175 + $0x68] sm:$0xf] %vm721, %v715
      %749 = vst.msk [vmem:[%s175 + $0x6c] sm:$0xf] %vm721, %v716
      %750 = vst.msk [vmem:[%s175 + $0x70] sm:$0xf] %vm721, %v717
      %751 = vst.msk [vmem:[%s175 + $0x74] sm:$0xf] %vm721, %v718
      %752 = vst.msk [vmem:[%s175 + $0x78] sm:$0xf] %vm721, %v719
      %753 = vst.msk [vmem:[%s175 + $0x7c] sm:$0xf] %vm721, %v720
      %s754 = smul.u32 32, %s14
      %p755 = scmp.lt.s32.totalorder %s754, 63
      %s756 = scalar_select %p755, %s754, 63
      %s757 = smul.addr %s756, 4
      %s758 = scalar_lea.vmem %s3, %s757
      // Predicated region
      $region33: #{deeplab_forward.19} parent=31 // pred_check
        %p759 = pneg %p100
      $region34: #{deeplab_forward.19} parent=31 // pred_check_branch
        %761 = sbr.rel (%p759) target = $region36
      $region35: #{deeplab_forward.19} parent=31 // pred_region
        %s762 = smul.u32 32, %s14
      $region36: #{deeplab_forward.19} parent=31 // pred_fallthru
        _
    $region32: #{deeplab_forward.19} parent=5 // pred_fallthru
      _
    %p763 = scmp.le.s32.totalorder 2, %s9
    // Predicated region
    $region37: #{deeplab_forward.19} parent=5 // pred_check
      %p764 = pneg %p763
    $region38: #{deeplab_forward.19} parent=5 // pred_check_branch
      %766 = sbr.rel (%p764) target = $region40
    $region39: #{deeplab_forward.19} parent=5 // pred_region
      %s767 = ssub.s32 %s9, 2
      // Predicated region
      $region41: #{deeplab_forward.19} parent=39 // pred_check
        %p768 = pneg %p106
      $region42: #{deeplab_forward.19} parent=39 // pred_check_branch
        %770 = sbr.rel (%p768) target = $region44
      $region43: #{deeplab_forward.19} parent=39 // pred_region
        %s771 = smul.u32 32, %s15
        %p772 = scmp.lt.s32.totalorder %s771, 63
        %s773 = scalar_select %p772, %s771, 63
        %s774 = smul.addr %s773, 4
        %s775 = scalar_lea.vmem %s3, %s774
      $region44: #{deeplab_forward.19} parent=39 // pred_fallthru
        _
    $region40: #{deeplab_forward.19} parent=5 // pred_fallthru
      _
  $region6: #{deeplab_forward.19} parent=0 // loop_footer
    %s13 = sadd.s32 1, %s9
  $region7: #{deeplab_forward.19} parent=0 // loop_footer_branch
    %8 = sbr.rel target = $region3
  $region8: #{deeplab_forward.19} parent=0 // loop_exit
    _

// kernel: deeplab_forward.20
$region0: #{deeplab_forward.20}
  #allocation0 [shape = 'u32[]', space=smem, size = 0x4, offset = 0x4, fixed_abs, tag = 'smem constant byte address 0x4 - core index']
  #allocation1 [shape = 'u32[72,128]{1,0:T(1,128)}', space=vmem, size = 0x9000, scoped, tag = 'internal scratch']
  %s0 = inlined_call_operand.vmem [shape: bf16[128,288], index: 0, kind: input, shape index: {}]
  %s1 = inlined_call_operand.vmem [shape: bf16[288,64], index: 1, kind: input, shape index: {}]
  %s2 = inlined_call_operand.vmem [shape: f32[1,64], index: 2, kind: input, shape index: {}]
  %s3 = inlined_call_operand.vmem [shape: bf16[128,64], index: 3, kind: output, shape index: {}]
  %s4 = sld [smem:[#allocation0]]
  $region22: #{deeplab_forward.20} parent=0
    _
  %s6 = ssub.s32 1, %s4
  %s7 = scalar_select 0, %s6, %s4
  // Predicated region
  $region2: #{deeplab_forward.20} parent=0 // pred_check
    _
  $region3: #{deeplab_forward.20} parent=0 // pred_check_branch
    %9 = sbr.rel (0) target = $region5
  $region4: #{deeplab_forward.20} parent=0 // pred_region
    _
  $region5: #{deeplab_forward.20} parent=0 // pred_fallthru
    _
  // Predicated region
  $region6: #{deeplab_forward.20} parent=0 // pred_check
    _
  $region7: #{deeplab_forward.20} parent=0 // pred_check_branch
    %11 = sbr.rel (0) target = $region9
  $region8: #{deeplab_forward.20} parent=0 // pred_region
    _
  $region9: #{deeplab_forward.20} parent=0 // pred_fallthru
    _
  // Predicated region
  $region10: #{deeplab_forward.20} parent=0 // pred_check
    _
  $region11: #{deeplab_forward.20} parent=0 // pred_check_branch
    %13 = sbr.rel (0) target = $region13
  $region12: #{deeplab_forward.20} parent=0 // pred_region
    _
  $region13: #{deeplab_forward.20} parent=0 // pred_fallthru
    _
  %v15 = vld [vmem:[%s0] sm:$0xff]
  %v16 = vld [vmem:[%s0 + $0x8] sm:$0xf]
  %v17 = vld [vmem:[%s0 + $0xc] sm:$0xff]
  %v18 = vld [vmem:[%s0 + $0x14] sm:$0xf]
  %v19 = vld [vmem:[%s0 + $0x18] sm:$0xff]
  %v20 = vld [vmem:[%s0 + $0x20] sm:$0xf]
  %v21 = vld [vmem:[%s0 + $0x24] sm:$0xff]
  %v22 = vld [vmem:[%s0 + $0x2c] sm:$0xf]
  %v23 = vld [vmem:[%s0 + $0x30] sm:$0xff]
  %v24 = vld [vmem:[%s0 + $0x38] sm:$0xf]
  %v25 = vld [vmem:[%s0 + $0x3c] sm:$0xff]
  %v26 = vld [vmem:[%s0 + $0x44] sm:$0xf]
  %v27 = vld [vmem:[%s0 + $0x48] sm:$0xff]
  %v28 = vld [vmem:[%s0 + $0x50] sm:$0xf]
  %v29 = vld [vmem:[%s0 + $0x54] sm:$0xff]
  %v30 = vld [vmem:[%s0 + $0x5c] sm:$0xf]
  %v31 = vld [vmem:[%s0 + $0x60] sm:$0xff]
  %v32 = vld [vmem:[%s0 + $0x68] sm:$0xf]
  %v33 = vld [vmem:[%s0 + $0x6c] sm:$0xff]
  %v34 = vld [vmem:[%s0 + $0x74] sm:$0xf]
  %v35 = vld [vmem:[%s0 + $0x78] sm:$0xff]
  %v36 = vld [vmem:[%s0 + $0x80] sm:$0xf]
  %v37 = vld [vmem:[%s0 + $0x84] sm:$0xff]
  %v38 = vld [vmem:[%s0 + $0x8c] sm:$0xf]
  %v39 = vld [vmem:[%s0 + $0x90] sm:$0xff]
  %v40 = vld [vmem:[%s0 + $0x98] sm:$0xf]
  %v41 = vld [vmem:[%s0 + $0x9c] sm:$0xff]
  %v42 = vld [vmem:[%s0 + $0xa4] sm:$0xf]
  %v43 = vld [vmem:[%s0 + $0xa8] sm:$0xff]
  %v44 = vld [vmem:[%s0 + $0xb0] sm:$0xf]
  %v45 = vld [vmem:[%s0 + $0xb4] sm:$0xff]
  %v46 = vld [vmem:[%s0 + $0xbc] sm:$0xf]
  %v47 = vld [vmem:[%s1] sm:$0xf]
  %v48 = vld [vmem:[%s1 + $0x4] sm:$0xf]
  %v49 = vld [vmem:[%s1 + $0x8] sm:$0xf]
  %v50 = vld [vmem:[%s1 + $0xc] sm:$0xf]
  %v51 = vld [vmem:[%s1 + $0x10] sm:$0xf]
  %v52 = vld [vmem:[%s1 + $0x14] sm:$0xf]
  %v53 = vld [vmem:[%s1 + $0x18] sm:$0xf]
  %v54 = vld [vmem:[%s1 + $0x1c] sm:$0xf]
  %v55 = vld [vmem:[%s1 + $0x20] sm:$0xf]
  %v56 = vld [vmem:[%s1 + $0x24] sm:$0xf]
  %v57 = vld [vmem:[%s1 + $0x28] sm:$0xf]
  %v58 = vld [vmem:[%s1 + $0x2c] sm:$0xf]
  %v59 = vld [vmem:[%s1 + $0x30] sm:$0xf]
  %v60 = vld [vmem:[%s1 + $0x34] sm:$0xf]
  %v61 = vld [vmem:[%s1 + $0x38] sm:$0xf]
  %v62 = vld [vmem:[%s1 + $0x3c] sm:$0xf]
  %v63 = vld [vmem:[%s1 + $0x40] sm:$0xf]
  %v64 = vld [vmem:[%s1 + $0x44] sm:$0xf]
  %v65 = vld [vmem:[%s1 + $0x48] sm:$0xf]
  %v66 = vld [vmem:[%s1 + $0x4c] sm:$0xf]
  %v67 = vld [vmem:[%s1 + $0x50] sm:$0xf]
  %v68 = vld [vmem:[%s1 + $0x54] sm:$0xf]
  %v69 = vld [vmem:[%s1 + $0x58] sm:$0xf]
  %v70 = vld [vmem:[%s1 + $0x5c] sm:$0xf]
  %v71 = vld [vmem:[%s1 + $0x60] sm:$0xf]
  %v72 = vld [vmem:[%s1 + $0x64] sm:$0xf]
  %v73 = vld [vmem:[%s1 + $0x68] sm:$0xf]
  %v74 = vld [vmem:[%s1 + $0x6c] sm:$0xf]
  %v75 = vld [vmem:[%s1 + $0x70] sm:$0xf]
  %v76 = vld [vmem:[%s1 + $0x74] sm:$0xf]
  %v77 = vld [vmem:[%s1 + $0x78] sm:$0xf]
  %v78 = vld [vmem:[%s1 + $0x7c] sm:$0xf]
  %v79 = vld [vmem:[%s1 + $0x80] sm:$0xf]
  %v80 = vld [vmem:[%s1 + $0x84] sm:$0xf]
  %v81 = vld [vmem:[%s1 + $0x88] sm:$0xf]
  %v82 = vld [vmem:[%s1 + $0x8c] sm:$0xf]
  %v83 = vld [vmem:[%s2] sm:$0x1]
  %v85 = vperm.slane %v83, 0
  %v119 = vunpack.c.l.b16 %v15
  %v120 = vunpack.c.h.b16 %v15
  %v121 = vunpack.c.l.b16 %v16
  %v122 = vunpack.c.l.b16 %v17
  %v123 = vunpack.c.h.b16 %v17
  %v124 = vunpack.c.l.b16 %v18
  %v125 = vunpack.c.l.b16 %v19
  %v126 = vunpack.c.h.b16 %v19
  %v127 = vunpack.c.l.b16 %v20
  %v128 = vunpack.c.l.b16 %v21
  %v129 = vunpack.c.h.b16 %v21
  %v130 = vunpack.c.l.b16 %v22
  %v131 = vunpack.c.l.b16 %v23
  %v132 = vunpack.c.h.b16 %v23
  %v133 = vunpack.c.l.b16 %v24
  %v134 = vunpack.c.l.b16 %v25
  %v135 = vunpack.c.h.b16 %v25
  %v136 = vunpack.c.l.b16 %v26
  %v137 = vunpack.c.l.b16 %v27
  %v138 = vunpack.c.h.b16 %v27
  %v139 = vunpack.c.l.b16 %v28
  %v140 = vunpack.c.l.b16 %v29
  %v141 = vunpack.c.h.b16 %v29
  %v142 = vunpack.c.l.b16 %v30
  %v143 = vunpack.c.l.b16 %v31
  %v144 = vunpack.c.h.b16 %v31
  %v145 = vunpack.c.l.b16 %v32
  %v146 = vunpack.c.l.b16 %v33
  %v147 = vunpack.c.h.b16 %v33
  %v148 = vunpack.c.l.b16 %v34
  %v149 = vunpack.c.l.b16 %v35
  %v150 = vunpack.c.h.b16 %v35
  %v151 = vunpack.c.l.b16 %v36
  %v152 = vunpack.c.l.b16 %v37
  %v153 = vunpack.c.h.b16 %v37
  %v154 = vunpack.c.l.b16 %v38
  %v155 = vunpack.c.l.b16 %v39
  %v156 = vunpack.c.h.b16 %v39
  %v157 = vunpack.c.l.b16 %v40
  %v158 = vunpack.c.l.b16 %v41
  %v159 = vunpack.c.h.b16 %v41
  %v160 = vunpack.c.l.b16 %v42
  %v161 = vunpack.c.l.b16 %v43
  %v162 = vunpack.c.h.b16 %v43
  %v163 = vunpack.c.l.b16 %v44
  %v164 = vunpack.c.l.b16 %v45
  %v165 = vunpack.c.h.b16 %v45
  %v166 = vunpack.c.l.b16 %v46
  %v167 = vpack.c.b16 %v122, %v119
  %v168 = vpack.c.b16 %v123, %v120
  %v169 = vpack.c.b16 %v124, %v121
  %v170 = vpack.c.b16 %v128, %v125
  %v171 = vpack.c.b16 %v129, %v126
  %v172 = vpack.c.b16 %v130, %v127
  %v173 = vpack.c.b16 %v134, %v131
  %v174 = vpack.c.b16 %v135, %v132
  %v175 = vpack.c.b16 %v136, %v133
  %v176 = vpack.c.b16 %v140, %v137
  %v177 = vpack.c.b16 %v141, %v138
  %v178 = vpack.c.b16 %v142, %v139
  %v179 = vpack.c.b16 %v146, %v143
  %v180 = vpack.c.b16 %v147, %v144
  %v181 = vpack.c.b16 %v148, %v145
  %v182 = vpack.c.b16 %v152, %v149
  %v183 = vpack.c.b16 %v153, %v150
  %v184 = vpack.c.b16 %v154, %v151
  %v185 = vpack.c.b16 %v158, %v155
  %v186 = vpack.c.b16 %v159, %v156
  %v187 = vpack.c.b16 %v160, %v157
  %v188 = vpack.c.b16 %v164, %v161
  %v189 = vpack.c.b16 %v165, %v162
  %v190 = vpack.c.b16 %v166, %v163
  %v243 = vunpack.c.l.b16 %v47
  %v244 = vunpack.c.l.b16 %v48
  %v245 = vunpack.c.l.b16 %v49
  %v246 = vunpack.c.l.b16 %v50
  %v247 = vunpack.c.l.b16 %v51
  %v248 = vunpack.c.l.b16 %v52
  %v249 = vunpack.c.l.b16 %v53
  %v250 = vunpack.c.l.b16 %v54
  %v251 = vunpack.c.l.b16 %v55
  %v252 = vunpack.c.l.b16 %v56
  %v253 = vunpack.c.l.b16 %v57
  %v254 = vunpack.c.l.b16 %v58
  %v255 = vunpack.c.l.b16 %v59
  %v256 = vunpack.c.l.b16 %v60
  %v257 = vunpack.c.l.b16 %v61
  %v258 = vunpack.c.l.b16 %v62
  %v259 = vunpack.c.l.b16 %v63
  %v260 = vunpack.c.l.b16 %v64
  %v261 = vunpack.c.l.b16 %v65
  %v262 = vunpack.c.l.b16 %v66
  %v263 = vunpack.c.l.b16 %v67
  %v264 = vunpack.c.l.b16 %v68
  %v265 = vunpack.c.l.b16 %v69
  %v266 = vunpack.c.l.b16 %v70
  %v267 = vunpack.c.l.b16 %v71
  %v268 = vunpack.c.l.b16 %v72
  %v269 = vunpack.c.l.b16 %v73
  %v270 = vunpack.c.l.b16 %v74
  %v271 = vunpack.c.l.b16 %v75
  %v272 = vunpack.c.l.b16 %v76
  %v273 = vunpack.c.l.b16 %v77
  %v274 = vunpack.c.l.b16 %v78
  %v275 = vunpack.c.l.b16 %v79
  %v276 = vunpack.c.l.b16 %v80
  %v277 = vunpack.c.l.b16 %v81
  %v278 = vunpack.c.l.b16 %v82
  %v279 = vpack.c.b16 %v244, %v243
  %v280 = vpack.c.b16 %v246, %v245
  %v281 = vpack.c.b16 %v248, %v247
  %v282 = vpack.c.b16 %v250, %v249
  %v283 = vpack.c.b16 %v252, %v251
  %v284 = vpack.c.b16 %v254, %v253
  %v285 = vpack.c.b16 %v256, %v255
  %v286 = vpack.c.b16 %v258, %v257
  %v287 = vpack.c.b16 %v260, %v259
  %v288 = vpack.c.b16 %v262, %v261
  %v289 = vpack.c.b16 %v264, %v263
  %v290 = vpack.c.b16 %v266, %v265
  %v291 = vpack.c.b16 %v268, %v267
  %v292 = vpack.c.b16 %v270, %v269
  %v293 = vpack.c.b16 %v272, %v271
  %v294 = vpack.c.b16 %v274, %v273
  %v295 = vpack.c.b16 %v276, %v275
  %v296 = vpack.c.b16 %v278, %v277
  %vm315 = vcmask 261120
  %v317 = vsel %vm315, %v169, 0
  %v320 = vsel %vm315, %v172, 0
  %v323 = vsel %vm315, %v175, 0
  %v326 = vsel %vm315, %v178, 0
  %v329 = vsel %vm315, %v181, 0
  %v332 = vsel %vm315, %v184, 0
  %v335 = vsel %vm315, %v187, 0
  %v338 = vsel %vm315, %v190, 0
  %340 = vmatpush.bf16.msra.mxu0 %v286
  %341 = vmatpush.bf16.msra.mxu0 %v285
  %342 = vmatpush.bf16.msra.mxu0 %v284
  %343 = vmatpush.bf16.msra.mxu0 %v283
  %344 = vmatpush.bf16.msra.mxu0 %v282
  %345 = vmatpush.bf16.msra.mxu0 %v281
  %346 = vmatpush.bf16.msra.mxu0 %v280
  %347 = vmatpush.bf16.msra.mxu0 %v279
  %348 = vmatmul.bf16.gmra.mxu0 %v167
  %v349 = vpop.f32.mrf.mxu0
  %v350 = vadd.f32 %v85, %v349
  %v351 = vpop.f32.mrf.mxu0
  %v352 = vadd.f32 %v85, %v351
  %353 = vmatmul.bf16.gmra.mxu0 %v170
  %v354 = vpop.f32.mrf.mxu0
  %v355 = vadd.f32 %v85, %v354
  %v356 = vpop.f32.mrf.mxu0
  %v357 = vadd.f32 %v85, %v356
  %358 = vmatmul.bf16.gmra.mxu0 %v173
  %v359 = vpop.f32.mrf.mxu0
  %v360 = vadd.f32 %v85, %v359
  %v361 = vpop.f32.mrf.mxu0
  %v362 = vadd.f32 %v85, %v361
  %363 = vmatmul.bf16.gmra.mxu0 %v176
  %v364 = vpop.f32.mrf.mxu0
  %v365 = vadd.f32 %v85, %v364
  %v366 = vpop.f32.mrf.mxu0
  %v367 = vadd.f32 %v85, %v366
  %368 = vmatmul.bf16.gmra.mxu0 %v179
  %v369 = vpop.f32.mrf.mxu0
  %v370 = vadd.f32 %v85, %v369
  %v371 = vpop.f32.mrf.mxu0
  %v372 = vadd.f32 %v85, %v371
  %373 = vmatmul.bf16.gmra.mxu0 %v182
  %v374 = vpop.f32.mrf.mxu0
  %v375 = vadd.f32 %v85, %v374
  %v376 = vpop.f32.mrf.mxu0
  %v377 = vadd.f32 %v85, %v376
  %378 = vmatmul.bf16.gmra.mxu0 %v185
  %v379 = vpop.f32.mrf.mxu0
  %v380 = vadd.f32 %v85, %v379
  %v381 = vpop.f32.mrf.mxu0
  %v382 = vadd.f32 %v85, %v381
  %383 = vmatmul.bf16.gmra.mxu0 %v188
  %v384 = vpop.f32.mrf.mxu0
  %v385 = vadd.f32 %v85, %v384
  %v386 = vpop.f32.mrf.mxu0
  %v387 = vadd.f32 %v85, %v386
  %388 = vdwg.mxu0
  %389 = vmatpush.bf16.msra.mxu0 %v294
  %390 = vmatpush.bf16.msra.mxu0 %v293
  %391 = vmatpush.bf16.msra.mxu0 %v292
  %392 = vmatpush.bf16.msra.mxu0 %v291
  %393 = vmatpush.bf16.msra.mxu0 %v290
  %394 = vmatpush.bf16.msra.mxu0 %v289
  %395 = vmatpush.bf16.msra.mxu0 %v288
  %396 = vmatpush.bf16.msra.mxu0 %v287
  %397 = vmatmul.bf16.gmra.mxu0 %v168
  %v398 = vpop.f32.mrf.mxu0
  %v399 = vadd.f32 %v350, %v398
  %v400 = vpop.f32.mrf.mxu0
  %v401 = vadd.f32 %v352, %v400
  %402 = vmatmul.bf16.gmra.mxu0 %v171
  %v403 = vpop.f32.mrf.mxu0
  %v404 = vadd.f32 %v355, %v403
  %v405 = vpop.f32.mrf.mxu0
  %v406 = vadd.f32 %v357, %v405
  %407 = vmatmul.bf16.gmra.mxu0 %v174
  %v408 = vpop.f32.mrf.mxu0
  %v409 = vadd.f32 %v360, %v408
  %v410 = vpop.f32.mrf.mxu0
  %v411 = vadd.f32 %v362, %v410
  %412 = vmatmul.bf16.gmra.mxu0 %v177
  %v413 = vpop.f32.mrf.mxu0
  %v414 = vadd.f32 %v365, %v413
  %v415 = vpop.f32.mrf.mxu0
  %v416 = vadd.f32 %v367, %v415
  %417 = vmatmul.bf16.gmra.mxu0 %v180
  %v418 = vpop.f32.mrf.mxu0
  %v419 = vadd.f32 %v370, %v418
  %v420 = vpop.f32.mrf.mxu0
  %v421 = vadd.f32 %v372, %v420
  %422 = vmatmul.bf16.gmra.mxu0 %v183
  %v423 = vpop.f32.mrf.mxu0
  %v424 = vadd.f32 %v375, %v423
  %v425 = vpop.f32.mrf.mxu0
  %v426 = vadd.f32 %v377, %v425
  %427 = vmatmul.bf16.gmra.mxu0 %v186
  %v428 = vpop.f32.mrf.mxu0
  %v429 = vadd.f32 %v380, %v428
  %v430 = vpop.f32.mrf.mxu0
  %v431 = vadd.f32 %v382, %v430
  %432 = vmatmul.bf16.gmra.mxu0 %v189
  %v433 = vpop.f32.mrf.mxu0
  %v434 = vadd.f32 %v385, %v433
  %v435 = vpop.f32.mrf.mxu0
  %v436 = vadd.f32 %v387, %v435
  %437 = vdwg.mxu0
  %438 = vmatpush.bf16.msra.mxu0 0
  %439 = vmatpush.bf16.msra.mxu0 0
  %440 = vmatpush.bf16.msra.mxu0 0
  %441 = vmatpush.bf16.msra.mxu0 0
  %442 = vmatpush.bf16.msra.mxu0 0
  %443 = vmatpush.bf16.msra.mxu0 0
  %444 = vmatpush.bf16.msra.mxu0 %v296
  %445 = vmatpush.bf16.msra.mxu0 %v295
  %446 = vmatmul.bf16.gmra.mxu0 %v317
  %v447 = vpop.f32.mrf.mxu0
  %v448 = vadd.f32 %v399, %v447
  %v449 = vpop.f32.mrf.mxu0
  %v450 = vadd.f32 %v401, %v449
  %451 = vmatmul.bf16.gmra.mxu0 %v320
  %v452 = vpop.f32.mrf.mxu0
  %v453 = vadd.f32 %v404, %v452
  %v454 = vpop.f32.mrf.mxu0
  %v455 = vadd.f32 %v406, %v454
  %456 = vmatmul.bf16.gmra.mxu0 %v323
  %v457 = vpop.f32.mrf.mxu0
  %v458 = vadd.f32 %v409, %v457
  %v459 = vpop.f32.mrf.mxu0
  %v460 = vadd.f32 %v411, %v459
  %461 = vmatmul.bf16.gmra.mxu0 %v326
  %v462 = vpop.f32.mrf.mxu0
  %v463 = vadd.f32 %v414, %v462
  %v464 = vpop.f32.mrf.mxu0
  %v465 = vadd.f32 %v416, %v464
  %466 = vmatmul.bf16.gmra.mxu0 %v329
  %v467 = vpop.f32.mrf.mxu0
  %v468 = vadd.f32 %v419, %v467
  %v469 = vpop.f32.mrf.mxu0
  %v470 = vadd.f32 %v421, %v469
  %471 = vmatmul.bf16.gmra.mxu0 %v332
  %v472 = vpop.f32.mrf.mxu0
  %v473 = vadd.f32 %v424, %v472
  %v474 = vpop.f32.mrf.mxu0
  %v475 = vadd.f32 %v426, %v474
  %476 = vmatmul.bf16.gmra.mxu0 %v335
  %v477 = vpop.f32.mrf.mxu0
  %v478 = vadd.f32 %v429, %v477
  %v479 = vpop.f32.mrf.mxu0
  %v480 = vadd.f32 %v431, %v479
  %481 = vmatmul.bf16.gmra.mxu0 %v338
  %v482 = vpop.f32.mrf.mxu0
  %v483 = vadd.f32 %v434, %v482
  %v484 = vpop.f32.mrf.mxu0
  %v485 = vadd.f32 %v436, %v484
  %486 = vdwg.mxu0
  %v487 = vmax.f32 %v448, 0.0
  %v488 = vmax.f32 %v450, 0.0
  %v489 = vmax.f32 %v453, 0.0
  %v490 = vmax.f32 %v455, 0.0
  %v491 = vmax.f32 %v458, 0.0
  %v492 = vmax.f32 %v460, 0.0
  %v493 = vmax.f32 %v463, 0.0
  %v494 = vmax.f32 %v465, 0.0
  %v495 = vmax.f32 %v468, 0.0
  %v496 = vmax.f32 %v470, 0.0
  %v497 = vmax.f32 %v473, 0.0
  %v498 = vmax.f32 %v475, 0.0
  %v499 = vmax.f32 %v478, 0.0
  %v500 = vmax.f32 %v480, 0.0
  %v501 = vmax.f32 %v483, 0.0
  %v502 = vmax.f32 %v485, 0.0
  %v503 = vpack.c.bf16 %v487, %v487
  %v504 = vpack.c.bf16 %v488, %v488
  %v505 = vpack.c.bf16 %v489, %v489
  %v506 = vpack.c.bf16 %v490, %v490
  %v507 = vpack.c.bf16 %v491, %v491
  %v508 = vpack.c.bf16 %v492, %v492
  %v509 = vpack.c.bf16 %v493, %v493
  %v510 = vpack.c.bf16 %v494, %v494
  %v511 = vpack.c.bf16 %v495, %v495
  %v512 = vpack.c.bf16 %v496, %v496
  %v513 = vpack.c.bf16 %v497, %v497
  %v514 = vpack.c.bf16 %v498, %v498
  %v515 = vpack.c.bf16 %v499, %v499
  %v516 = vpack.c.bf16 %v500, %v500
  %v517 = vpack.c.bf16 %v501, %v501
  %v518 = vpack.c.bf16 %v502, %v502
  %vm519 = vcmask 519168
  %520 = vst.msk [vmem:[%s3] sm:$0xf] %vm519, %v503
  %521 = vst.msk [vmem:[%s3 + $0x4] sm:$0xf] %vm519, %v504
  %522 = vst.msk [vmem:[%s3 + $0x8] sm:$0xf] %vm519, %v505
  %523 = vst.msk [vmem:[%s3 + $0xc] sm:$0xf] %vm519, %v506
  %524 = vst.msk [vmem:[%s3 + $0x10] sm:$0xf] %vm519, %v507
  %525 = vst.msk [vmem:[%s3 + $0x14] sm:$0xf] %vm519, %v508
  %526 = vst.msk [vmem:[%s3 + $0x18] sm:$0xf] %vm519, %v509
  %527 = vst.msk [vmem:[%s3 + $0x1c] sm:$0xf] %vm519, %v510
  %528 = vst.msk [vmem:[%s3 + $0x20] sm:$0xf] %vm519, %v511
  %529 = vst.msk [vmem:[%s3 + $0x24] sm:$0xf] %vm519, %v512
  %530 = vst.msk [vmem:[%s3 + $0x28] sm:$0xf] %vm519, %v513
  %531 = vst.msk [vmem:[%s3 + $0x2c] sm:$0xf] %vm519, %v514
  %532 = vst.msk [vmem:[%s3 + $0x30] sm:$0xf] %vm519, %v515
  %533 = vst.msk [vmem:[%s3 + $0x34] sm:$0xf] %vm519, %v516
  %534 = vst.msk [vmem:[%s3 + $0x38] sm:$0xf] %vm519, %v517
  %535 = vst.msk [vmem:[%s3 + $0x3c] sm:$0xf] %vm519, %v518
  // Predicated region
  $region14: #{deeplab_forward.20} parent=0 // pred_check
    _
  $region15: #{deeplab_forward.20} parent=0 // pred_check_branch
    %537 = sbr.rel (0) target = $region17
  $region16: #{deeplab_forward.20} parent=0 // pred_region
    _
  $region17: #{deeplab_forward.20} parent=0 // pred_fallthru
    _
  // Predicated region
  $region18: #{deeplab_forward.20} parent=0 // pred_check
    _
  $region19: #{deeplab_forward.20} parent=0 // pred_check_branch
    %539 = sbr.rel (0) target = $region21
  $region20: #{deeplab_forward.20} parent=0 // pred_region
    _
  $region21: #{deeplab_forward.20} parent=0 // pred_fallthru
    _

// kernel: deeplab_forward.21
$region0: #{deeplab_forward.21}
  #allocation0 [shape = 'u32[]', space=smem, size = 0x4, offset = 0x4, fixed_abs, tag = 'smem constant byte address 0x4 - core index']
  #allocation1 [shape = 'u32[72,128]{1,0:T(1,128)}', space=vmem, size = 0x9000, scoped, tag = 'internal scratch']
  %s0 = inlined_call_operand.vmem [shape: bf16[32,576], index: 0, kind: input, shape index: {}]
  %s1 = inlined_call_operand.vmem [shape: bf16[576,128], index: 1, kind: input, shape index: {}]
  %s2 = inlined_call_operand.vmem [shape: f32[1,128], index: 2, kind: input, shape index: {}]
  %s3 = inlined_call_operand.vmem [shape: bf16[32,128], index: 3, kind: output, shape index: {}]
  %s4 = sld [smem:[#allocation0]]
  $region22: #{deeplab_forward.21} parent=0
    _
  %s6 = ssub.s32 1, %s4
  %s7 = scalar_select 0, %s6, %s4
  // Predicated region
  $region2: #{deeplab_forward.21} parent=0 // pred_check
    _
  $region3: #{deeplab_forward.21} parent=0 // pred_check_branch
    %9 = sbr.rel (0) target = $region5
  $region4: #{deeplab_forward.21} parent=0 // pred_region
    _
  $region5: #{deeplab_forward.21} parent=0 // pred_fallthru
    _
  // Predicated region
  $region6: #{deeplab_forward.21} parent=0 // pred_check
    _
  $region7: #{deeplab_forward.21} parent=0 // pred_check_branch
    %11 = sbr.rel (0) target = $region9
  $region8: #{deeplab_forward.21} parent=0 // pred_region
    _
  $region9: #{deeplab_forward.21} parent=0 // pred_fallthru
    _
  // Predicated region
  $region10: #{deeplab_forward.21} parent=0 // pred_check
    _
  $region11: #{deeplab_forward.21} parent=0 // pred_check_branch
    %13 = sbr.rel (0) target = $region13
  $region12: #{deeplab_forward.21} parent=0 // pred_region
    _
  $region13: #{deeplab_forward.21} parent=0 // pred_fallthru
    _
  %v15 = vld [vmem:[%s0] sm:$0xff]
  %v16 = vld [vmem:[%s0 + $0x8] sm:$0xff]
  %v17 = vld [vmem:[%s0 + $0x10] sm:$0xf]
  %v18 = vld [vmem:[%s0 + $0x14] sm:$0xff]
  %v19 = vld [vmem:[%s0 + $0x1c] sm:$0xff]
  %v20 = vld [vmem:[%s0 + $0x24] sm:$0xf]
  %v21 = vld [vmem:[%s0 + $0x28] sm:$0xff]
  %v22 = vld [vmem:[%s0 + $0x30] sm:$0xff]
  %v23 = vld [vmem:[%s0 + $0x38] sm:$0xf]
  %v24 = vld [vmem:[%s0 + $0x3c] sm:$0xff]
  %v25 = vld [vmem:[%s0 + $0x44] sm:$0xff]
  %v26 = vld [vmem:[%s0 + $0x4c] sm:$0xf]
  %v27 = vld [vmem:[%s1] sm:$0xf]
  %v28 = vld [vmem:[%s1 + $0x4] sm:$0xf]
  %v29 = vld [vmem:[%s1 + $0x8] sm:$0xf]
  %v30 = vld [vmem:[%s1 + $0xc] sm:$0xf]
  %v31 = vld [vmem:[%s1 + $0x10] sm:$0xf]
  %v32 = vld [vmem:[%s1 + $0x14] sm:$0xf]
  %v33 = vld [vmem:[%s1 + $0x18] sm:$0xf]
  %v34 = vld [vmem:[%s1 + $0x1c] sm:$0xf]
  %v35 = vld [vmem:[%s1 + $0x20] sm:$0xf]
  %v36 = vld [vmem:[%s1 + $0x24] sm:$0xf]
  %v37 = vld [vmem:[%s1 + $0x28] sm:$0xf]
  %v38 = vld [vmem:[%s1 + $0x2c] sm:$0xf]
  %v39 = vld [vmem:[%s1 + $0x30] sm:$0xf]
  %v40 = vld [vmem:[%s1 + $0x34] sm:$0xf]
  %v41 = vld [vmem:[%s1 + $0x38] sm:$0xf]
  %v42 = vld [vmem:[%s1 + $0x3c] sm:$0xf]
  %v43 = vld [vmem:[%s1 + $0x40] sm:$0xf]
  %v44 = vld [vmem:[%s1 + $0x44] sm:$0xf]
  %v45 = vld [vmem:[%s1 + $0x48] sm:$0xf]
  %v46 = vld [vmem:[%s1 + $0x4c] sm:$0xf]
  %v47 = vld [vmem:[%s1 + $0x50] sm:$0xf]
  %v48 = vld [vmem:[%s1 + $0x54] sm:$0xf]
  %v49 = vld [vmem:[%s1 + $0x58] sm:$0xf]
  %v50 = vld [vmem:[%s1 + $0x5c] sm:$0xf]
  %v51 = vld [vmem:[%s1 + $0x60] sm:$0xf]
  %v52 = vld [vmem:[%s1 + $0x64] sm:$0xf]
  %v53 = vld [vmem:[%s1 + $0x68] sm:$0xf]
  %v54 = vld [vmem:[%s1 + $0x6c] sm:$0xf]
  %v55 = vld [vmem:[%s1 + $0x70] sm:$0xf]
  %v56 = vld [vmem:[%s1 + $0x74] sm:$0xf]
  %v57 = vld [vmem:[%s1 + $0x78] sm:$0xf]
  %v58 = vld [vmem:[%s1 + $0x7c] sm:$0xf]
  %v59 = vld [vmem:[%s1 + $0x80] sm:$0xf]
  %v60 = vld [vmem:[%s1 + $0x84] sm:$0xf]
  %v61 = vld [vmem:[%s1 + $0x88] sm:$0xf]
  %v62 = vld [vmem:[%s1 + $0x8c] sm:$0xf]
  %v63 = vld [vmem:[%s1 + $0x90] sm:$0xf]
  %v64 = vld [vmem:[%s1 + $0x94] sm:$0xf]
  %v65 = vld [vmem:[%s1 + $0x98] sm:$0xf]
  %v66 = vld [vmem:[%s1 + $0x9c] sm:$0xf]
  %v67 = vld [vmem:[%s1 + $0xa0] sm:$0xf]
  %v68 = vld [vmem:[%s1 + $0xa4] sm:$0xf]
  %v69 = vld [vmem:[%s1 + $0xa8] sm:$0xf]
  %v70 = vld [vmem:[%s1 + $0xac] sm:$0xf]
  %v71 = vld [vmem:[%s1 + $0xb0] sm:$0xf]
  %v72 = vld [vmem:[%s1 + $0xb4] sm:$0xf]
  %v73 = vld [vmem:[%s1 + $0xb8] sm:$0xf]
  %v74 = vld [vmem:[%s1 + $0xbc] sm:$0xf]
  %v75 = vld [vmem:[%s1 + $0xc0] sm:$0xf]
  %v76 = vld [vmem:[%s1 + $0xc4] sm:$0xf]
  %v77 = vld [vmem:[%s1 + $0xc8] sm:$0xf]
  %v78 = vld [vmem:[%s1 + $0xcc] sm:$0xf]
  %v79 = vld [vmem:[%s1 + $0xd0] sm:$0xf]
  %v80 = vld [vmem:[%s1 + $0xd4] sm:$0xf]
  %v81 = vld [vmem:[%s1 + $0xd8] sm:$0xf]
  %v82 = vld [vmem:[%s1 + $0xdc] sm:$0xf]
  %v83 = vld [vmem:[%s1 + $0xe0] sm:$0xf]
  %v84 = vld [vmem:[%s1 + $0xe4] sm:$0xf]
  %v85 = vld [vmem:[%s1 + $0xe8] sm:$0xf]
  %v86 = vld [vmem:[%s1 + $0xec] sm:$0xf]
  %v87 = vld [vmem:[%s1 + $0xf0] sm:$0xf]
  %v88 = vld [vmem:[%s1 + $0xf4] sm:$0xf]
  %v89 = vld [vmem:[%s1 + $0xf8] sm:$0xf]
  %v90 = vld [vmem:[%s1 + $0xfc] sm:$0xf]
  %v91 = vld [vmem:[%s1 + $0x100] sm:$0xf]
  %v92 = vld [vmem:[%s1 + $0x104] sm:$0xf]
  %v93 = vld [vmem:[%s1 + $0x108] sm:$0xf]
  %v94 = vld [vmem:[%s1 + $0x10c] sm:$0xf]
  %v95 = vld [vmem:[%s1 + $0x110] sm:$0xf]
  %v96 = vld [vmem:[%s1 + $0x114] sm:$0xf]
  %v97 = vld [vmem:[%s1 + $0x118] sm:$0xf]
  %v98 = vld [vmem:[%s1 + $0x11c] sm:$0xf]
  %v99 = vld [vmem:[%s2] sm:$0x1]
  %v101 = vperm.slane %v99, 0
  %v115 = vunpack.c.l.b16 %v15
  %v116 = vunpack.c.h.b16 %v15
  %v117 = vunpack.c.l.b16 %v16
  %v118 = vunpack.c.h.b16 %v16
  %v119 = vunpack.c.l.b16 %v17
  %v120 = vunpack.c.l.b16 %v18
  %v121 = vunpack.c.h.b16 %v18
  %v122 = vunpack.c.l.b16 %v19
  %v123 = vunpack.c.h.b16 %v19
  %v124 = vunpack.c.l.b16 %v20
  %v125 = vunpack.c.l.b16 %v21
  %v126 = vunpack.c.h.b16 %v21
  %v127 = vunpack.c.l.b16 %v22
  %v128 = vunpack.c.h.b16 %v22
  %v129 = vunpack.c.l.b16 %v23
  %v130 = vunpack.c.l.b16 %v24
  %v131 = vunpack.c.h.b16 %v24
  %v132 = vunpack.c.l.b16 %v25
  %v133 = vunpack.c.h.b16 %v25
  %v134 = vunpack.c.l.b16 %v26
  %v135 = vpack.c.b16 %v120, %v115
  %v136 = vpack.c.b16 %v121, %v116
  %v137 = vpack.c.b16 %v122, %v117
  %v138 = vpack.c.b16 %v123, %v118
  %v139 = vpack.c.b16 %v124, %v119
  %v140 = vpack.c.b16 %v130, %v125
  %v141 = vpack.c.b16 %v131, %v126
  %v142 = vpack.c.b16 %v132, %v127
  %v143 = vpack.c.b16 %v133, %v128
  %v144 = vpack.c.b16 %v134, %v129
  %v225 = vunpack.c.l.b16 %v27
  %v226 = vunpack.c.l.b16 %v28
  %v227 = vunpack.c.l.b16 %v29
  %v228 = vunpack.c.l.b16 %v30
  %v229 = vunpack.c.l.b16 %v31
  %v230 = vunpack.c.l.b16 %v32
  %v231 = vunpack.c.l.b16 %v33
  %v232 = vunpack.c.l.b16 %v34
  %v233 = vunpack.c.l.b16 %v35
  %v234 = vunpack.c.l.b16 %v36
  %v235 = vunpack.c.l.b16 %v37
  %v236 = vunpack.c.l.b16 %v38
  %v237 = vunpack.c.l.b16 %v39
  %v238 = vunpack.c.l.b16 %v40
  %v239 = vunpack.c.l.b16 %v41
  %v240 = vunpack.c.l.b16 %v42
  %v241 = vunpack.c.l.b16 %v43
  %v242 = vunpack.c.l.b16 %v44
  %v243 = vunpack.c.l.b16 %v45
  %v244 = vunpack.c.l.b16 %v46
  %v245 = vunpack.c.l.b16 %v47
  %v246 = vunpack.c.l.b16 %v48
  %v247 = vunpack.c.l.b16 %v49
  %v248 = vunpack.c.l.b16 %v50
  %v249 = vunpack.c.l.b16 %v51
  %v250 = vunpack.c.l.b16 %v52
  %v251 = vunpack.c.l.b16 %v53
  %v252 = vunpack.c.l.b16 %v54
  %v253 = vunpack.c.l.b16 %v55
  %v254 = vunpack.c.l.b16 %v56
  %v255 = vunpack.c.l.b16 %v57
  %v256 = vunpack.c.l.b16 %v58
  %v257 = vunpack.c.l.b16 %v59
  %v258 = vunpack.c.l.b16 %v60
  %v259 = vunpack.c.l.b16 %v61
  %v260 = vunpack.c.l.b16 %v62
  %v261 = vunpack.c.l.b16 %v63
  %v262 = vunpack.c.l.b16 %v64
  %v263 = vunpack.c.l.b16 %v65
  %v264 = vunpack.c.l.b16 %v66
  %v265 = vunpack.c.l.b16 %v67
  %v266 = vunpack.c.l.b16 %v68
  %v267 = vunpack.c.l.b16 %v69
  %v268 = vunpack.c.l.b16 %v70
  %v269 = vunpack.c.l.b16 %v71
  %v270 = vunpack.c.l.b16 %v72
  %v271 = vunpack.c.l.b16 %v73
  %v272 = vunpack.c.l.b16 %v74
  %v273 = vunpack.c.l.b16 %v75
  %v274 = vunpack.c.l.b16 %v76
  %v275 = vunpack.c.l.b16 %v77
  %v276 = vunpack.c.l.b16 %v78
  %v277 = vunpack.c.l.b16 %v79
  %v278 = vunpack.c.l.b16 %v80
  %v279 = vunpack.c.l.b16 %v81
  %v280 = vunpack.c.l.b16 %v82
  %v281 = vunpack.c.l.b16 %v83
  %v282 = vunpack.c.l.b16 %v84
  %v283 = vunpack.c.l.b16 %v85
  %v284 = vunpack.c.l.b16 %v86
  %v285 = vunpack.c.l.b16 %v87
  %v286 = vunpack.c.l.b16 %v88
  %v287 = vunpack.c.l.b16 %v89
  %v288 = vunpack.c.l.b16 %v90
  %v289 = vunpack.c.l.b16 %v91
  %v290 = vunpack.c.l.b16 %v92
  %v291 = vunpack.c.l.b16 %v93
  %v292 = vunpack.c.l.b16 %v94
  %v293 = vunpack.c.l.b16 %v95
  %v294 = vunpack.c.l.b16 %v96
  %v295 = vunpack.c.l.b16 %v97
  %v296 = vunpack.c.l.b16 %v98
  %v297 = vpack.c.b16 %v226, %v225
  %v298 = vpack.c.b16 %v228, %v227
  %v299 = vpack.c.b16 %v230, %v229
  %v300 = vpack.c.b16 %v232, %v231
  %v301 = vpack.c.b16 %v234, %v233
  %v302 = vpack.c.b16 %v236, %v235
  %v303 = vpack.c.b16 %v238, %v237
  %v304 = vpack.c.b16 %v240, %v239
  %v305 = vpack.c.b16 %v242, %v241
  %v306 = vpack.c.b16 %v244, %v243
  %v307 = vpack.c.b16 %v246, %v245
  %v308 = vpack.c.b16 %v248, %v247
  %v309 = vpack.c.b16 %v250, %v249
  %v310 = vpack.c.b16 %v252, %v251
  %v311 = vpack.c.b16 %v254, %v253
  %v312 = vpack.c.b16 %v256, %v255
  %v313 = vpack.c.b16 %v258, %v257
  %v314 = vpack.c.b16 %v260, %v259
  %v315 = vpack.c.b16 %v262, %v261
  %v316 = vpack.c.b16 %v264, %v263
  %v317 = vpack.c.b16 %v266, %v265
  %v318 = vpack.c.b16 %v268, %v267
  %v319 = vpack.c.b16 %v270, %v269
  %v320 = vpack.c.b16 %v272, %v271
  %v321 = vpack.c.b16 %v274, %v273
  %v322 = vpack.c.b16 %v276, %v275
  %v323 = vpack.c.b16 %v278, %v277
  %v324 = vpack.c.b16 %v280, %v279
  %v325 = vpack.c.b16 %v282, %v281
  %v326 = vpack.c.b16 %v284, %v283
  %v327 = vpack.c.b16 %v286, %v285
  %v328 = vpack.c.b16 %v288, %v287
  %v329 = vpack.c.b16 %v290, %v289
  %v330 = vpack.c.b16 %v292, %v291
  %v331 = vpack.c.b16 %v294, %v293
  %v332 = vpack.c.b16 %v296, %v295
  %vm369 = vcmask 523264
  %v371 = vsel %vm369, %v139, 0
  %v374 = vsel %vm369, %v144, 0
  %376 = vmatpush.bf16.msra.mxu0 %v304
  %377 = vmatpush.bf16.msra.mxu0 %v303
  %378 = vmatpush.bf16.msra.mxu0 %v302
  %379 = vmatpush.bf16.msra.mxu0 %v301
  %380 = vmatpush.bf16.msra.mxu0 %v300
  %381 = vmatpush.bf16.msra.mxu0 %v299
  %382 = vmatpush.bf16.msra.mxu0 %v298
  %383 = vmatpush.bf16.msra.mxu0 %v297
  %384 = vmatmul.bf16.gmra.mxu0 %v135
  %v385 = vpop.f32.mrf.mxu0
  %v386 = vadd.f32 %v101, %v385
  %v387 = vpop.f32.mrf.mxu0
  %v388 = vadd.f32 %v101, %v387
  %389 = vmatmul.bf16.gmra.mxu0 %v140
  %v390 = vpop.f32.mrf.mxu0
  %v391 = vadd.f32 %v101, %v390
  %v392 = vpop.f32.mrf.mxu0
  %v393 = vadd.f32 %v101, %v392
  %394 = vdwg.mxu0
  %395 = vmatpush.bf16.msra.mxu0 %v312
  %396 = vmatpush.bf16.msra.mxu0 %v311
  %397 = vmatpush.bf16.msra.mxu0 %v310
  %398 = vmatpush.bf16.msra.mxu0 %v309
  %399 = vmatpush.bf16.msra.mxu0 %v308
  %400 = vmatpush.bf16.msra.mxu0 %v307
  %401 = vmatpush.bf16.msra.mxu0 %v306
  %402 = vmatpush.bf16.msra.mxu0 %v305
  %403 = vmatmul.bf16.gmra.mxu0 %v136
  %v404 = vpop.f32.mrf.mxu0
  %v405 = vadd.f32 %v386, %v404
  %v406 = vpop.f32.mrf.mxu0
  %v407 = vadd.f32 %v388, %v406
  %408 = vmatmul.bf16.gmra.mxu0 %v141
  %v409 = vpop.f32.mrf.mxu0
  %v410 = vadd.f32 %v391, %v409
  %v411 = vpop.f32.mrf.mxu0
  %v412 = vadd.f32 %v393, %v411
  %413 = vdwg.mxu0
  %414 = vmatpush.bf16.msra.mxu0 %v320
  %415 = vmatpush.bf16.msra.mxu0 %v319
  %416 = vmatpush.bf16.msra.mxu0 %v318
  %417 = vmatpush.bf16.msra.mxu0 %v317
  %418 = vmatpush.bf16.msra.mxu0 %v316
  %419 = vmatpush.bf16.msra.mxu0 %v315
  %420 = vmatpush.bf16.msra.mxu0 %v314
  %421 = vmatpush.bf16.msra.mxu0 %v313
  %422 = vmatmul.bf16.gmra.mxu0 %v137
  %v423 = vpop.f32.mrf.mxu0
  %v424 = vadd.f32 %v405, %v423
  %v425 = vpop.f32.mrf.mxu0
  %v426 = vadd.f32 %v407, %v425
  %427 = vmatmul.bf16.gmra.mxu0 %v142
  %v428 = vpop.f32.mrf.mxu0
  %v429 = vadd.f32 %v410, %v428
  %v430 = vpop.f32.mrf.mxu0
  %v431 = vadd.f32 %v412, %v430
  %432 = vdwg.mxu0
  %433 = vmatpush.bf16.msra.mxu0 %v328
  %434 = vmatpush.bf16.msra.mxu0 %v327
  %435 = vmatpush.bf16.msra.mxu0 %v326
  %436 = vmatpush.bf16.msra.mxu0 %v325
  %437 = vmatpush.bf16.msra.mxu0 %v324
  %438 = vmatpush.bf16.msra.mxu0 %v323
  %439 = vmatpush.bf16.msra.mxu0 %v322
  %440 = vmatpush.bf16.msra.mxu0 %v321
  %441 = vmatmul.bf16.gmra.mxu0 %v138
  %v442 = vpop.f32.mrf.mxu0
  %v443 = vadd.f32 %v424, %v442
  %v444 = vpop.f32.mrf.mxu0
  %v445 = vadd.f32 %v426, %v444
  %446 = vmatmul.bf16.gmra.mxu0 %v143
  %v447 = vpop.f32.mrf.mxu0
  %v448 = vadd.f32 %v429, %v447
  %v449 = vpop.f32.mrf.mxu0
  %v450 = vadd.f32 %v431, %v449
  %451 = vdwg.mxu0
  %452 = vmatpush.bf16.msra.mxu0 0
  %453 = vmatpush.bf16.msra.mxu0 0
  %454 = vmatpush.bf16.msra.mxu0 0
  %455 = vmatpush.bf16.msra.mxu0 0
  %456 = vmatpush.bf16.msra.mxu0 %v332
  %457 = vmatpush.bf16.msra.mxu0 %v331
  %458 = vmatpush.bf16.msra.mxu0 %v330
  %459 = vmatpush.bf16.msra.mxu0 %v329
  %460 = vmatmul.bf16.gmra.mxu0 %v371
  %v461 = vpop.f32.mrf.mxu0
  %v462 = vadd.f32 %v443, %v461
  %v463 = vpop.f32.mrf.mxu0
  %v464 = vadd.f32 %v445, %v463
  %465 = vmatmul.bf16.gmra.mxu0 %v374
  %v466 = vpop.f32.mrf.mxu0
  %v467 = vadd.f32 %v448, %v466
  %v468 = vpop.f32.mrf.mxu0
  %v469 = vadd.f32 %v450, %v468
  %470 = vdwg.mxu0
  %v471 = vmax.f32 %v462, 0.0
  %v472 = vmax.f32 %v464, 0.0
  %v473 = vmax.f32 %v467, 0.0
  %v474 = vmax.f32 %v469, 0.0
  %v475 = vpack.c.bf16 %v471, %v471
  %v476 = vpack.c.bf16 %v472, %v472
  %v477 = vpack.c.bf16 %v473, %v473
  %v478 = vpack.c.bf16 %v474, %v474
  %479 = vst [vmem:[%s3] sm:$0xf] %v475
  %480 = vst [vmem:[%s3 + $0x4] sm:$0xf] %v476
  %481 = vst [vmem:[%s3 + $0x8] sm:$0xf] %v477
  %482 = vst [vmem:[%s3 + $0xc] sm:$0xf] %v478
  // Predicated region
  $region14: #{deeplab_forward.21} parent=0 // pred_check
    _
  $region15: #{deeplab_forward.21} parent=0 // pred_check_branch
    %484 = sbr.rel (0) target = $region17
  $region16: #{deeplab_forward.21} parent=0 // pred_region
    _
  $region17: #{deeplab_forward.21} parent=0 // pred_fallthru
    _
  // Predicated region
  $region18: #{deeplab_forward.21} parent=0 // pred_check
    _
  $region19: #{deeplab_forward.21} parent=0 // pred_check_branch
    %486 = sbr.rel (0) target = $region21
  $region20: #{deeplab_forward.21} parent=0 // pred_region
    _
  $region21: #{deeplab_forward.21} parent=0 // pred_fallthru
    _

// kernel: deeplab_forward.26
$region0: #{deeplab_forward.26}
  #allocation0 [shape = 'u32[]', space=smem, size = 0x4, offset = 0x4, fixed_abs, tag = 'smem constant byte address 0x4 - core index']
  #allocation1 [shape = 'u32[72,128]{1,0:T(1,128)}', space=vmem, size = 0x9000, scoped, tag = 'internal scratch']
  %s0 = inlined_call_operand.vmem [shape: bf16[8,128], index: 0, kind: input, shape index: {}]
  %s1 = inlined_call_operand.vmem [shape: bf16[128,64], index: 1, kind: input, shape index: {}]
  %s2 = inlined_call_operand.vmem [shape: f32[1,64], index: 2, kind: input, shape index: {}]
  %s3 = inlined_call_operand.vmem [shape: bf16[8,64], index: 3, kind: output, shape index: {}]
  %s4 = sld [smem:[#allocation0]]
  $region22: #{deeplab_forward.26} parent=0
    _
  %s6 = ssub.s32 1, %s4
  %s7 = scalar_select 0, %s6, %s4
  // Predicated region
  $region2: #{deeplab_forward.26} parent=0 // pred_check
    _
  $region3: #{deeplab_forward.26} parent=0 // pred_check_branch
    %9 = sbr.rel (0) target = $region5
  $region4: #{deeplab_forward.26} parent=0 // pred_region
    _
  $region5: #{deeplab_forward.26} parent=0 // pred_fallthru
    _
  // Predicated region
  $region6: #{deeplab_forward.26} parent=0 // pred_check
    _
  $region7: #{deeplab_forward.26} parent=0 // pred_check_branch
    %11 = sbr.rel (0) target = $region9
  $region8: #{deeplab_forward.26} parent=0 // pred_region
    _
  $region9: #{deeplab_forward.26} parent=0 // pred_fallthru
    _
  // Predicated region
  $region10: #{deeplab_forward.26} parent=0 // pred_check
    _
  $region11: #{deeplab_forward.26} parent=0 // pred_check_branch
    %13 = sbr.rel (0) target = $region13
  $region12: #{deeplab_forward.26} parent=0 // pred_region
    _
  $region13: #{deeplab_forward.26} parent=0 // pred_fallthru
    _
  %v14 = vld [vmem:[%s0] sm:$0xf]
  %v15 = vld [vmem:[%s1] sm:$0xf]
  %v16 = vld [vmem:[%s1 + $0x4] sm:$0xf]
  %v17 = vld [vmem:[%s1 + $0x8] sm:$0xf]
  %v18 = vld [vmem:[%s1 + $0xc] sm:$0xf]
  %v19 = vld [vmem:[%s1 + $0x10] sm:$0xf]
  %v20 = vld [vmem:[%s1 + $0x14] sm:$0xf]
  %v21 = vld [vmem:[%s1 + $0x18] sm:$0xf]
  %v22 = vld [vmem:[%s1 + $0x1c] sm:$0xf]
  %v23 = vld [vmem:[%s1 + $0x20] sm:$0xf]
  %v24 = vld [vmem:[%s1 + $0x24] sm:$0xf]
  %v25 = vld [vmem:[%s1 + $0x28] sm:$0xf]
  %v26 = vld [vmem:[%s1 + $0x2c] sm:$0xf]
  %v27 = vld [vmem:[%s1 + $0x30] sm:$0xf]
  %v28 = vld [vmem:[%s1 + $0x34] sm:$0xf]
  %v29 = vld [vmem:[%s1 + $0x38] sm:$0xf]
  %v30 = vld [vmem:[%s1 + $0x3c] sm:$0xf]
  %v31 = vld [vmem:[%s2] sm:$0x1]
  %v33 = vperm.slane %v31, 0
  %v51 = vunpack.c.l.b16 %v15
  %v52 = vunpack.c.l.b16 %v16
  %v53 = vunpack.c.l.b16 %v17
  %v54 = vunpack.c.l.b16 %v18
  %v55 = vunpack.c.l.b16 %v19
  %v56 = vunpack.c.l.b16 %v20
  %v57 = vunpack.c.l.b16 %v21
  %v58 = vunpack.c.l.b16 %v22
  %v59 = vunpack.c.l.b16 %v23
  %v60 = vunpack.c.l.b16 %v24
  %v61 = vunpack.c.l.b16 %v25
  %v62 = vunpack.c.l.b16 %v26
  %v63 = vunpack.c.l.b16 %v27
  %v64 = vunpack.c.l.b16 %v28
  %v65 = vunpack.c.l.b16 %v29
  %v66 = vunpack.c.l.b16 %v30
  %v67 = vpack.c.b16 %v52, %v51
  %v68 = vpack.c.b16 %v54, %v53
  %v69 = vpack.c.b16 %v56, %v55
  %v70 = vpack.c.b16 %v58, %v57
  %v71 = vpack.c.b16 %v60, %v59
  %v72 = vpack.c.b16 %v62, %v61
  %v73 = vpack.c.b16 %v64, %v63
  %v74 = vpack.c.b16 %v66, %v65
  %83 = vmatpush.bf16.msra.mxu0 %v74
  %84 = vmatpush.bf16.msra.mxu0 %v73
  %85 = vmatpush.bf16.msra.mxu0 %v72
  %86 = vmatpush.bf16.msra.mxu0 %v71
  %87 = vmatpush.bf16.msra.mxu0 %v70
  %88 = vmatpush.bf16.msra.mxu0 %v69
  %89 = vmatpush.bf16.msra.mxu0 %v68
  %90 = vmatpush.bf16.msra.mxu0 %v67
  %91 = vmatmul.bf16.gmra.mxu0 %v14
  %v92 = vpop.f32.mrf.mxu0
  %v93 = vadd.f32 %v33, %v92
  %v94 = vpop.f32.mrf.mxu0
  %95 = vdwg.mxu0
  %v96 = vmax.f32 %v93, 0.0
  %v97 = vpack.c.bf16 %v96, %v96
  %vm98 = vcmask 519168
  %99 = vst.msk [vmem:[%s3] sm:$0xf] %vm98, %v97
  // Predicated region
  $region14: #{deeplab_forward.26} parent=0 // pred_check
    _
  $region15: #{deeplab_forward.26} parent=0 // pred_check_branch
    %101 = sbr.rel (0) target = $region17
  $region16: #{deeplab_forward.26} parent=0 // pred_region
    _
  $region17: #{deeplab_forward.26} parent=0 // pred_fallthru
    _
  // Predicated region
  $region18: #{deeplab_forward.26} parent=0 // pred_check
    _
  $region19: #{deeplab_forward.26} parent=0 // pred_check_branch
    %103 = sbr.rel (0) target = $region21
  $region20: #{deeplab_forward.26} parent=0 // pred_region
    _
  $region21: #{deeplab_forward.26} parent=0 // pred_fallthru
    _

// kernel: deeplab_forward.27
$region0: #{deeplab_forward.27}
  #allocation0 [shape = 'u32[]', space=smem, size = 0x4, offset = 0x4, fixed_abs, tag = 'smem constant byte address 0x4 - core index']
  #allocation1 [shape = 'u32[72,128]{1,0:T(1,128)}', space=vmem, size = 0x9000, scoped, tag = 'internal scratch']
  %s0 = inlined_call_operand.vmem [shape: bf16[32,320], index: 0, kind: input, shape index: {}]
  %s1 = inlined_call_operand.vmem [shape: bf16[320,64], index: 1, kind: input, shape index: {}]
  %s2 = inlined_call_operand.vmem [shape: f32[1,64], index: 2, kind: input, shape index: {}]
  %s3 = inlined_call_operand.vmem [shape: bf16[32,64], index: 3, kind: output, shape index: {}]
  %s4 = sld [smem:[#allocation0]]
  $region22: #{deeplab_forward.27} parent=0
    _
  %s6 = ssub.s32 1, %s4
  %s7 = scalar_select 0, %s6, %s4
  // Predicated region
  $region2: #{deeplab_forward.27} parent=0 // pred_check
    _
  $region3: #{deeplab_forward.27} parent=0 // pred_check_branch
    %9 = sbr.rel (0) target = $region5
  $region4: #{deeplab_forward.27} parent=0 // pred_region
    _
  $region5: #{deeplab_forward.27} parent=0 // pred_fallthru
    _
  // Predicated region
  $region6: #{deeplab_forward.27} parent=0 // pred_check
    _
  $region7: #{deeplab_forward.27} parent=0 // pred_check_branch
    %11 = sbr.rel (0) target = $region9
  $region8: #{deeplab_forward.27} parent=0 // pred_region
    _
  $region9: #{deeplab_forward.27} parent=0 // pred_fallthru
    _
  // Predicated region
  $region10: #{deeplab_forward.27} parent=0 // pred_check
    _
  $region11: #{deeplab_forward.27} parent=0 // pred_check_branch
    %13 = sbr.rel (0) target = $region13
  $region12: #{deeplab_forward.27} parent=0 // pred_region
    _
  $region13: #{deeplab_forward.27} parent=0 // pred_fallthru
    _
  %v15 = vld [vmem:[%s0] sm:$0xff]
  %v16 = vld [vmem:[%s0 + $0x8] sm:$0xf]
  %v17 = vld [vmem:[%s0 + $0xc] sm:$0xff]
  %v18 = vld [vmem:[%s0 + $0x14] sm:$0xf]
  %v19 = vld [vmem:[%s0 + $0x18] sm:$0xff]
  %v20 = vld [vmem:[%s0 + $0x20] sm:$0xf]
  %v21 = vld [vmem:[%s0 + $0x24] sm:$0xff]
  %v22 = vld [vmem:[%s0 + $0x2c] sm:$0xf]
  %v23 = vld [vmem:[%s1] sm:$0xf]
  %v24 = vld [vmem:[%s1 + $0x4] sm:$0xf]
  %v25 = vld [vmem:[%s1 + $0x8] sm:$0xf]
  %v26 = vld [vmem:[%s1 + $0xc] sm:$0xf]
  %v27 = vld [vmem:[%s1 + $0x10] sm:$0xf]
  %v28 = vld [vmem:[%s1 + $0x14] sm:$0xf]
  %v29 = vld [vmem:[%s1 + $0x18] sm:$0xf]
  %v30 = vld [vmem:[%s1 + $0x1c] sm:$0xf]
  %v31 = vld [vmem:[%s1 + $0x20] sm:$0xf]
  %v32 = vld [vmem:[%s1 + $0x24] sm:$0xf]
  %v33 = vld [vmem:[%s1 + $0x28] sm:$0xf]
  %v34 = vld [vmem:[%s1 + $0x2c] sm:$0xf]
  %v35 = vld [vmem:[%s1 + $0x30] sm:$0xf]
  %v36 = vld [vmem:[%s1 + $0x34] sm:$0xf]
  %v37 = vld [vmem:[%s1 + $0x38] sm:$0xf]
  %v38 = vld [vmem:[%s1 + $0x3c] sm:$0xf]
  %v39 = vld [vmem:[%s1 + $0x40] sm:$0xf]
  %v40 = vld [vmem:[%s1 + $0x44] sm:$0xf]
  %v41 = vld [vmem:[%s1 + $0x48] sm:$0xf]
  %v42 = vld [vmem:[%s1 + $0x4c] sm:$0xf]
  %v43 = vld [vmem:[%s1 + $0x50] sm:$0xf]
  %v44 = vld [vmem:[%s1 + $0x54] sm:$0xf]
  %v45 = vld [vmem:[%s1 + $0x58] sm:$0xf]
  %v46 = vld [vmem:[%s1 + $0x5c] sm:$0xf]
  %v47 = vld [vmem:[%s1 + $0x60] sm:$0xf]
  %v48 = vld [vmem:[%s1 + $0x64] sm:$0xf]
  %v49 = vld [vmem:[%s1 + $0x68] sm:$0xf]
  %v50 = vld [vmem:[%s1 + $0x6c] sm:$0xf]
  %v51 = vld [vmem:[%s1 + $0x70] sm:$0xf]
  %v52 = vld [vmem:[%s1 + $0x74] sm:$0xf]
  %v53 = vld [vmem:[%s1 + $0x78] sm:$0xf]
  %v54 = vld [vmem:[%s1 + $0x7c] sm:$0xf]
  %v55 = vld [vmem:[%s1 + $0x80] sm:$0xf]
  %v56 = vld [vmem:[%s1 + $0x84] sm:$0xf]
  %v57 = vld [vmem:[%s1 + $0x88] sm:$0xf]
  %v58 = vld [vmem:[%s1 + $0x8c] sm:$0xf]
  %v59 = vld [vmem:[%s1 + $0x90] sm:$0xf]
  %v60 = vld [vmem:[%s1 + $0x94] sm:$0xf]
  %v61 = vld [vmem:[%s1 + $0x98] sm:$0xf]
  %v62 = vld [vmem:[%s1 + $0x9c] sm:$0xf]
  %v63 = vld [vmem:[%s2] sm:$0x1]
  %v65 = vperm.slane %v63, 0
  %v75 = vunpack.c.l.b16 %v15
  %v76 = vunpack.c.h.b16 %v15
  %v77 = vunpack.c.l.b16 %v16
  %v78 = vunpack.c.l.b16 %v17
  %v79 = vunpack.c.h.b16 %v17
  %v80 = vunpack.c.l.b16 %v18
  %v81 = vunpack.c.l.b16 %v19
  %v82 = vunpack.c.h.b16 %v19
  %v83 = vunpack.c.l.b16 %v20
  %v84 = vunpack.c.l.b16 %v21
  %v85 = vunpack.c.h.b16 %v21
  %v86 = vunpack.c.l.b16 %v22
  %v87 = vpack.c.b16 %v78, %v75
  %v88 = vpack.c.b16 %v79, %v76
  %v89 = vpack.c.b16 %v80, %v77
  %v90 = vpack.c.b16 %v84, %v81
  %v91 = vpack.c.b16 %v85, %v82
  %v92 = vpack.c.b16 %v86, %v83
  %v137 = vunpack.c.l.b16 %v23
  %v138 = vunpack.c.l.b16 %v24
  %v139 = vunpack.c.l.b16 %v25
  %v140 = vunpack.c.l.b16 %v26
  %v141 = vunpack.c.l.b16 %v27
  %v142 = vunpack.c.l.b16 %v28
  %v143 = vunpack.c.l.b16 %v29
  %v144 = vunpack.c.l.b16 %v30
  %v145 = vunpack.c.l.b16 %v31
  %v146 = vunpack.c.l.b16 %v32
  %v147 = vunpack.c.l.b16 %v33
  %v148 = vunpack.c.l.b16 %v34
  %v149 = vunpack.c.l.b16 %v35
  %v150 = vunpack.c.l.b16 %v36
  %v151 = vunpack.c.l.b16 %v37
  %v152 = vunpack.c.l.b16 %v38
  %v153 = vunpack.c.l.b16 %v39
  %v154 = vunpack.c.l.b16 %v40
  %v155 = vunpack.c.l.b16 %v41
  %v156 = vunpack.c.l.b16 %v42
  %v157 = vunpack.c.l.b16 %v43
  %v158 = vunpack.c.l.b16 %v44
  %v159 = vunpack.c.l.b16 %v45
  %v160 = vunpack.c.l.b16 %v46
  %v161 = vunpack.c.l.b16 %v47
  %v162 = vunpack.c.l.b16 %v48
  %v163 = vunpack.c.l.b16 %v49
  %v164 = vunpack.c.l.b16 %v50
  %v165 = vunpack.c.l.b16 %v51
  %v166 = vunpack.c.l.b16 %v52
  %v167 = vunpack.c.l.b16 %v53
  %v168 = vunpack.c.l.b16 %v54
  %v169 = vunpack.c.l.b16 %v55
  %v170 = vunpack.c.l.b16 %v56
  %v171 = vunpack.c.l.b16 %v57
  %v172 = vunpack.c.l.b16 %v58
  %v173 = vunpack.c.l.b16 %v59
  %v174 = vunpack.c.l.b16 %v60
  %v175 = vunpack.c.l.b16 %v61
  %v176 = vunpack.c.l.b16 %v62
  %v177 = vpack.c.b16 %v138, %v137
  %v178 = vpack.c.b16 %v140, %v139
  %v179 = vpack.c.b16 %v142, %v141
  %v180 = vpack.c.b16 %v144, %v143
  %v181 = vpack.c.b16 %v146, %v145
  %v182 = vpack.c.b16 %v148, %v147
  %v183 = vpack.c.b16 %v150, %v149
  %v184 = vpack.c.b16 %v152, %v151
  %v185 = vpack.c.b16 %v154, %v153
  %v186 = vpack.c.b16 %v156, %v155
  %v187 = vpack.c.b16 %v158, %v157
  %v188 = vpack.c.b16 %v160, %v159
  %v189 = vpack.c.b16 %v162, %v161
  %v190 = vpack.c.b16 %v164, %v163
  %v191 = vpack.c.b16 %v166, %v165
  %v192 = vpack.c.b16 %v168, %v167
  %v193 = vpack.c.b16 %v170, %v169
  %v194 = vpack.c.b16 %v172, %v171
  %v195 = vpack.c.b16 %v174, %v173
  %v196 = vpack.c.b16 %v176, %v175
  %vm217 = vcmask 523264
  %v219 = vsel %vm217, %v89, 0
  %v222 = vsel %vm217, %v92, 0
  %224 = vmatpush.bf16.msra.mxu0 %v184
  %225 = vmatpush.bf16.msra.mxu0 %v183
  %226 = vmatpush.bf16.msra.mxu0 %v182
  %227 = vmatpush.bf16.msra.mxu0 %v181
  %228 = vmatpush.bf16.msra.mxu0 %v180
  %229 = vmatpush.bf16.msra.mxu0 %v179
  %230 = vmatpush.bf16.msra.mxu0 %v178
  %231 = vmatpush.bf16.msra.mxu0 %v177
  %232 = vmatmul.bf16.gmra.mxu0 %v87
  %v233 = vpop.f32.mrf.mxu0
  %v234 = vadd.f32 %v65, %v233
  %v235 = vpop.f32.mrf.mxu0
  %v236 = vadd.f32 %v65, %v235
  %237 = vmatmul.bf16.gmra.mxu0 %v90
  %v238 = vpop.f32.mrf.mxu0
  %v239 = vadd.f32 %v65, %v238
  %v240 = vpop.f32.mrf.mxu0
  %v241 = vadd.f32 %v65, %v240
  %242 = vdwg.mxu0
  %243 = vmatpush.bf16.msra.mxu0 %v192
  %244 = vmatpush.bf16.msra.mxu0 %v191
  %245 = vmatpush.bf16.msra.mxu0 %v190
  %246 = vmatpush.bf16.msra.mxu0 %v189
  %247 = vmatpush.bf16.msra.mxu0 %v188
  %248 = vmatpush.bf16.msra.mxu0 %v187
  %249 = vmatpush.bf16.msra.mxu0 %v186
  %250 = vmatpush.bf16.msra.mxu0 %v185
  %251 = vmatmul.bf16.gmra.mxu0 %v88
  %v252 = vpop.f32.mrf.mxu0
  %v253 = vadd.f32 %v234, %v252
  %v254 = vpop.f32.mrf.mxu0
  %v255 = vadd.f32 %v236, %v254
  %256 = vmatmul.bf16.gmra.mxu0 %v91
  %v257 = vpop.f32.mrf.mxu0
  %v258 = vadd.f32 %v239, %v257
  %v259 = vpop.f32.mrf.mxu0
  %v260 = vadd.f32 %v241, %v259
  %261 = vdwg.mxu0
  %262 = vmatpush.bf16.msra.mxu0 0
  %263 = vmatpush.bf16.msra.mxu0 0
  %264 = vmatpush.bf16.msra.mxu0 0
  %265 = vmatpush.bf16.msra.mxu0 0
  %266 = vmatpush.bf16.msra.mxu0 %v196
  %267 = vmatpush.bf16.msra.mxu0 %v195
  %268 = vmatpush.bf16.msra.mxu0 %v194
  %269 = vmatpush.bf16.msra.mxu0 %v193
  %270 = vmatmul.bf16.gmra.mxu0 %v219
  %v271 = vpop.f32.mrf.mxu0
  %v272 = vadd.f32 %v253, %v271
  %v273 = vpop.f32.mrf.mxu0
  %v274 = vadd.f32 %v255, %v273
  %275 = vmatmul.bf16.gmra.mxu0 %v222
  %v276 = vpop.f32.mrf.mxu0
  %v277 = vadd.f32 %v258, %v276
  %v278 = vpop.f32.mrf.mxu0
  %v279 = vadd.f32 %v260, %v278
  %280 = vdwg.mxu0
  %v281 = vmax.f32 %v272, 0.0
  %v282 = vmax.f32 %v274, 0.0
  %v283 = vmax.f32 %v277, 0.0
  %v284 = vmax.f32 %v279, 0.0
  %v285 = vpack.c.bf16 %v281, %v281
  %v286 = vpack.c.bf16 %v282, %v282
  %v287 = vpack.c.bf16 %v283, %v283
  %v288 = vpack.c.bf16 %v284, %v284
  %vm289 = vcmask 519168
  %290 = vst.msk [vmem:[%s3] sm:$0xf] %vm289, %v285
  %291 = vst.msk [vmem:[%s3 + $0x4] sm:$0xf] %vm289, %v286
  %292 = vst.msk [vmem:[%s3 + $0x8] sm:$0xf] %vm289, %v287
  %293 = vst.msk [vmem:[%s3 + $0xc] sm:$0xf] %vm289, %v288
  // Predicated region
  $region14: #{deeplab_forward.27} parent=0 // pred_check
    _
  $region15: #{deeplab_forward.27} parent=0 // pred_check_branch
    %295 = sbr.rel (0) target = $region17
  $region16: #{deeplab_forward.27} parent=0 // pred_region
    _
  $region17: #{deeplab_forward.27} parent=0 // pred_fallthru
    _
  // Predicated region
  $region18: #{deeplab_forward.27} parent=0 // pred_check
    _
  $region19: #{deeplab_forward.27} parent=0 // pred_check_branch
    %297 = sbr.rel (0) target = $region21
  $region20: #{deeplab_forward.27} parent=0 // pred_region
    _
  $region21: #{deeplab_forward.27} parent=0 // pred_fallthru
    _

// kernel: deeplab_forward.22
$region0: #{deeplab_forward.22}
  #allocation0 [shape = 'u32[]', space=smem, size = 0x4, offset = 0x4, fixed_abs, tag = 'smem constant byte address 0x4 - core index']
  #allocation1 [shape = 'u32[72,128]{1,0:T(1,128)}', space=vmem, size = 0x9000, scoped, tag = 'internal scratch']
  %s0 = inlined_call_operand.vmem [shape: bf16[32,128], index: 0, kind: input, shape index: {}]
  %s1 = inlined_call_operand.vmem [shape: bf16[128,64], index: 1, kind: input, shape index: {}]
  %s2 = inlined_call_operand.vmem [shape: f32[1,64], index: 2, kind: input, shape index: {}]
  %s3 = inlined_call_operand.vmem [shape: bf16[32,64], index: 3, kind: output, shape index: {}]
  %s4 = sld [smem:[#allocation0]]
  $region22: #{deeplab_forward.22} parent=0
    _
  %s6 = ssub.s32 1, %s4
  %s7 = scalar_select 0, %s6, %s4
  // Predicated region
  $region2: #{deeplab_forward.22} parent=0 // pred_check
    _
  $region3: #{deeplab_forward.22} parent=0 // pred_check_branch
    %9 = sbr.rel (0) target = $region5
  $region4: #{deeplab_forward.22} parent=0 // pred_region
    _
  $region5: #{deeplab_forward.22} parent=0 // pred_fallthru
    _
  // Predicated region
  $region6: #{deeplab_forward.22} parent=0 // pred_check
    _
  $region7: #{deeplab_forward.22} parent=0 // pred_check_branch
    %11 = sbr.rel (0) target = $region9
  $region8: #{deeplab_forward.22} parent=0 // pred_region
    _
  $region9: #{deeplab_forward.22} parent=0 // pred_fallthru
    _
  // Predicated region
  $region10: #{deeplab_forward.22} parent=0 // pred_check
    _
  $region11: #{deeplab_forward.22} parent=0 // pred_check_branch
    %13 = sbr.rel (0) target = $region13
  $region12: #{deeplab_forward.22} parent=0 // pred_region
    _
  $region13: #{deeplab_forward.22} parent=0 // pred_fallthru
    _
  %v14 = vld [vmem:[%s0] sm:$0xf]
  %v15 = vld [vmem:[%s0 + $0x4] sm:$0xf]
  %v16 = vld [vmem:[%s0 + $0x8] sm:$0xf]
  %v17 = vld [vmem:[%s0 + $0xc] sm:$0xf]
  %v18 = vld [vmem:[%s1] sm:$0xf]
  %v19 = vld [vmem:[%s1 + $0x4] sm:$0xf]
  %v20 = vld [vmem:[%s1 + $0x8] sm:$0xf]
  %v21 = vld [vmem:[%s1 + $0xc] sm:$0xf]
  %v22 = vld [vmem:[%s1 + $0x10] sm:$0xf]
  %v23 = vld [vmem:[%s1 + $0x14] sm:$0xf]
  %v24 = vld [vmem:[%s1 + $0x18] sm:$0xf]
  %v25 = vld [vmem:[%s1 + $0x1c] sm:$0xf]
  %v26 = vld [vmem:[%s1 + $0x20] sm:$0xf]
  %v27 = vld [vmem:[%s1 + $0x24] sm:$0xf]
  %v28 = vld [vmem:[%s1 + $0x28] sm:$0xf]
  %v29 = vld [vmem:[%s1 + $0x2c] sm:$0xf]
  %v30 = vld [vmem:[%s1 + $0x30] sm:$0xf]
  %v31 = vld [vmem:[%s1 + $0x34] sm:$0xf]
  %v32 = vld [vmem:[%s1 + $0x38] sm:$0xf]
  %v33 = vld [vmem:[%s1 + $0x3c] sm:$0xf]
  %v34 = vld [vmem:[%s2] sm:$0x1]
  %v36 = vperm.slane %v34, 0
  %v42 = vunpack.c.l.b16 %v14
  %v43 = vunpack.c.l.b16 %v15
  %v44 = vunpack.c.l.b16 %v16
  %v45 = vunpack.c.l.b16 %v17
  %v46 = vpack.c.b16 %v43, %v42
  %v47 = vpack.c.b16 %v45, %v44
  %v66 = vunpack.c.l.b16 %v18
  %v67 = vunpack.c.l.b16 %v19
  %v68 = vunpack.c.l.b16 %v20
  %v69 = vunpack.c.l.b16 %v21
  %v70 = vunpack.c.l.b16 %v22
  %v71 = vunpack.c.l.b16 %v23
  %v72 = vunpack.c.l.b16 %v24
  %v73 = vunpack.c.l.b16 %v25
  %v74 = vunpack.c.l.b16 %v26
  %v75 = vunpack.c.l.b16 %v27
  %v76 = vunpack.c.l.b16 %v28
  %v77 = vunpack.c.l.b16 %v29
  %v78 = vunpack.c.l.b16 %v30
  %v79 = vunpack.c.l.b16 %v31
  %v80 = vunpack.c.l.b16 %v32
  %v81 = vunpack.c.l.b16 %v33
  %v82 = vpack.c.b16 %v67, %v66
  %v83 = vpack.c.b16 %v69, %v68
  %v84 = vpack.c.b16 %v71, %v70
  %v85 = vpack.c.b16 %v73, %v72
  %v86 = vpack.c.b16 %v75, %v74
  %v87 = vpack.c.b16 %v77, %v76
  %v88 = vpack.c.b16 %v79, %v78
  %v89 = vpack.c.b16 %v81, %v80
  %98 = vmatpush.bf16.msra.mxu0 %v89
  %99 = vmatpush.bf16.msra.mxu0 %v88
  %100 = vmatpush.bf16.msra.mxu0 %v87
  %101 = vmatpush.bf16.msra.mxu0 %v86
  %102 = vmatpush.bf16.msra.mxu0 %v85
  %103 = vmatpush.bf16.msra.mxu0 %v84
  %104 = vmatpush.bf16.msra.mxu0 %v83
  %105 = vmatpush.bf16.msra.mxu0 %v82
  %106 = vmatmul.bf16.gmra.mxu0 %v46
  %v107 = vpop.f32.mrf.mxu0
  %v108 = vadd.f32 %v36, %v107
  %v109 = vpop.f32.mrf.mxu0
  %v110 = vadd.f32 %v36, %v109
  %111 = vmatmul.bf16.gmra.mxu0 %v47
  %v112 = vpop.f32.mrf.mxu0
  %v113 = vadd.f32 %v36, %v112
  %v114 = vpop.f32.mrf.mxu0
  %v115 = vadd.f32 %v36, %v114
  %116 = vdwg.mxu0
  %v117 = vmax.f32 %v108, 0.0
  %v118 = vmax.f32 %v110, 0.0
  %v119 = vmax.f32 %v113, 0.0
  %v120 = vmax.f32 %v115, 0.0
  %v121 = vpack.c.bf16 %v117, %v117
  %v122 = vpack.c.bf16 %v118, %v118
  %v123 = vpack.c.bf16 %v119, %v119
  %v124 = vpack.c.bf16 %v120, %v120
  %vm125 = vcmask 519168
  %126 = vst.msk [vmem:[%s3] sm:$0xf] %vm125, %v121
  %127 = vst.msk [vmem:[%s3 + $0x4] sm:$0xf] %vm125, %v122
  %128 = vst.msk [vmem:[%s3 + $0x8] sm:$0xf] %vm125, %v123
  %129 = vst.msk [vmem:[%s3 + $0xc] sm:$0xf] %vm125, %v124
  // Predicated region
  $region14: #{deeplab_forward.22} parent=0 // pred_check
    _
  $region15: #{deeplab_forward.22} parent=0 // pred_check_branch
    %131 = sbr.rel (0) target = $region17
  $region16: #{deeplab_forward.22} parent=0 // pred_region
    _
  $region17: #{deeplab_forward.22} parent=0 // pred_fallthru
    _
  // Predicated region
  $region18: #{deeplab_forward.22} parent=0 // pred_check
    _
  $region19: #{deeplab_forward.22} parent=0 // pred_check_branch
    %133 = sbr.rel (0) target = $region21
  $region20: #{deeplab_forward.22} parent=0 // pred_region
    _
  $region21: #{deeplab_forward.22} parent=0 // pred_fallthru
    _

// kernel: deeplab_forward.23
$region0: #{deeplab_forward.23}
  #allocation0 [shape = 'u32[]', space=smem, size = 0x4, offset = 0x4, fixed_abs, tag = 'smem constant byte address 0x4 - core index']
  #allocation1 [shape = 'u32[72,128]{1,0:T(1,128)}', space=vmem, size = 0x9000, scoped, tag = 'internal scratch']
  %s0 = inlined_call_operand.vmem [shape: bf16[32,1152], index: 0, kind: input, shape index: {}]
  %s1 = inlined_call_operand.vmem [shape: bf16[1152,64], index: 1, kind: input, shape index: {}]
  %s2 = inlined_call_operand.vmem [shape: f32[1,64], index: 2, kind: input, shape index: {}]
  %s3 = inlined_call_operand.vmem [shape: bf16[32,64], index: 3, kind: output, shape index: {}]
  %s4 = sld [smem:[#allocation0]]
  $region22: #{deeplab_forward.23} parent=0
    _
  %s6 = ssub.s32 1, %s4
  %s7 = scalar_select 0, %s6, %s4
  // Predicated region
  $region2: #{deeplab_forward.23} parent=0 // pred_check
    _
  $region3: #{deeplab_forward.23} parent=0 // pred_check_branch
    %9 = sbr.rel (0) target = $region5
  $region4: #{deeplab_forward.23} parent=0 // pred_region
    _
  $region5: #{deeplab_forward.23} parent=0 // pred_fallthru
    _
  // Predicated region
  $region6: #{deeplab_forward.23} parent=0 // pred_check
    _
  $region7: #{deeplab_forward.23} parent=0 // pred_check_branch
    %11 = sbr.rel (0) target = $region9
  $region8: #{deeplab_forward.23} parent=0 // pred_region
    _
  $region9: #{deeplab_forward.23} parent=0 // pred_fallthru
    _
  // Predicated region
  $region10: #{deeplab_forward.23} parent=0 // pred_check
    _
  $region11: #{deeplab_forward.23} parent=0 // pred_check_branch
    %13 = sbr.rel (0) target = $region13
  $region12: #{deeplab_forward.23} parent=0 // pred_region
    _
  $region13: #{deeplab_forward.23} parent=0 // pred_fallthru
    _
  %v14 = vld [vmem:[%s0] sm:$0xff]
  %v15 = vld [vmem:[%s0 + $0x8] sm:$0xff]
  %v16 = vld [vmem:[%s0 + $0x10] sm:$0xff]
  %v17 = vld [vmem:[%s0 + $0x18] sm:$0xff]
  %v18 = vld [vmem:[%s0 + $0x20] sm:$0xf]
  %v19 = vld [vmem:[%s0 + $0x24] sm:$0xff]
  %v20 = vld [vmem:[%s0 + $0x2c] sm:$0xff]
  %v21 = vld [vmem:[%s0 + $0x34] sm:$0xff]
  %v22 = vld [vmem:[%s0 + $0x3c] sm:$0xff]
  %v23 = vld [vmem:[%s0 + $0x44] sm:$0xf]
  %v24 = vld [vmem:[%s0 + $0x48] sm:$0xff]
  %v25 = vld [vmem:[%s0 + $0x50] sm:$0xff]
  %v26 = vld [vmem:[%s0 + $0x58] sm:$0xff]
  %v27 = vld [vmem:[%s0 + $0x60] sm:$0xff]
  %v28 = vld [vmem:[%s0 + $0x68] sm:$0xf]
  %v29 = vld [vmem:[%s0 + $0x6c] sm:$0xff]
  %v30 = vld [vmem:[%s0 + $0x74] sm:$0xff]
  %v31 = vld [vmem:[%s0 + $0x7c] sm:$0xff]
  %v32 = vld [vmem:[%s0 + $0x84] sm:$0xff]
  %v33 = vld [vmem:[%s0 + $0x8c] sm:$0xf]
  %v34 = vld [vmem:[%s1] sm:$0xf]
  %v35 = vld [vmem:[%s1 + $0x4] sm:$0xf]
  %v36 = vld [vmem:[%s1 + $0x8] sm:$0xf]
  %v37 = vld [vmem:[%s1 + $0xc] sm:$0xf]
  %v38 = vld [vmem:[%s1 + $0x10] sm:$0xf]
  %v39 = vld [vmem:[%s1 + $0x14] sm:$0xf]
  %v40 = vld [vmem:[%s1 + $0x18] sm:$0xf]
  %v41 = vld [vmem:[%s1 + $0x1c] sm:$0xf]
  %v42 = vld [vmem:[%s1 + $0x20] sm:$0xf]
  %v43 = vld [vmem:[%s1 + $0x24] sm:$0xf]
  %v44 = vld [vmem:[%s1 + $0x28] sm:$0xf]
  %v45 = vld [vmem:[%s1 + $0x2c] sm:$0xf]
  %v46 = vld [vmem:[%s1 + $0x30] sm:$0xf]
  %v47 = vld [vmem:[%s1 + $0x34] sm:$0xf]
  %v48 = vld [vmem:[%s1 + $0x38] sm:$0xf]
  %v49 = vld [vmem:[%s1 + $0x3c] sm:$0xf]
  %v50 = vld [vmem:[%s1 + $0x40] sm:$0xf]
  %v51 = vld [vmem:[%s1 + $0x44] sm:$0xf]
  %v52 = vld [vmem:[%s1 + $0x48] sm:$0xf]
  %v53 = vld [vmem:[%s1 + $0x4c] sm:$0xf]
  %v54 = vld [vmem:[%s1 + $0x50] sm:$0xf]
  %v55 = vld [vmem:[%s1 + $0x54] sm:$0xf]
  %v56 = vld [vmem:[%s1 + $0x58] sm:$0xf]
  %v57 = vld [vmem:[%s1 + $0x5c] sm:$0xf]
  %v58 = vld [vmem:[%s1 + $0x60] sm:$0xf]
  %v59 = vld [vmem:[%s1 + $0x64] sm:$0xf]
  %v60 = vld [vmem:[%s1 + $0x68] sm:$0xf]
  %v61 = vld [vmem:[%s1 + $0x6c] sm:$0xf]
  %v62 = vld [vmem:[%s1 + $0x70] sm:$0xf]
  %v63 = vld [vmem:[%s1 + $0x74] sm:$0xf]
  %v64 = vld [vmem:[%s1 + $0x78] sm:$0xf]
  %v65 = vld [vmem:[%s1 + $0x7c] sm:$0xf]
  %v66 = vld [vmem:[%s1 + $0x80] sm:$0xf]
  %v67 = vld [vmem:[%s1 + $0x84] sm:$0xf]
  %v68 = vld [vmem:[%s1 + $0x88] sm:$0xf]
  %v69 = vld [vmem:[%s1 + $0x8c] sm:$0xf]
  %v70 = vld [vmem:[%s1 + $0x90] sm:$0xf]
  %v71 = vld [vmem:[%s1 + $0x94] sm:$0xf]
  %v72 = vld [vmem:[%s1 + $0x98] sm:$0xf]
  %v73 = vld [vmem:[%s1 + $0x9c] sm:$0xf]
  %v74 = vld [vmem:[%s1 + $0xa0] sm:$0xf]
  %v75 = vld [vmem:[%s1 + $0xa4] sm:$0xf]
  %v76 = vld [vmem:[%s1 + $0xa8] sm:$0xf]
  %v77 = vld [vmem:[%s1 + $0xac] sm:$0xf]
  %v78 = vld [vmem:[%s1 + $0xb0] sm:$0xf]
  %v79 = vld [vmem:[%s1 + $0xb4] sm:$0xf]
  %v80 = vld [vmem:[%s1 + $0xb8] sm:$0xf]
  %v81 = vld [vmem:[%s1 + $0xbc] sm:$0xf]
  %v82 = vld [vmem:[%s1 + $0xc0] sm:$0xf]
  %v83 = vld [vmem:[%s1 + $0xc4] sm:$0xf]
  %v84 = vld [vmem:[%s1 + $0xc8] sm:$0xf]
  %v85 = vld [vmem:[%s1 + $0xcc] sm:$0xf]
  %v86 = vld [vmem:[%s1 + $0xd0] sm:$0xf]
  %v87 = vld [vmem:[%s1 + $0xd4] sm:$0xf]
  %v88 = vld [vmem:[%s1 + $0xd8] sm:$0xf]
  %v89 = vld [vmem:[%s1 + $0xdc] sm:$0xf]
  %v90 = vld [vmem:[%s1 + $0xe0] sm:$0xf]
  %v91 = vld [vmem:[%s1 + $0xe4] sm:$0xf]
  %v92 = vld [vmem:[%s1 + $0xe8] sm:$0xf]
  %v93 = vld [vmem:[%s1 + $0xec] sm:$0xf]
  %v94 = vld [vmem:[%s1 + $0xf0] sm:$0xf]
  %v95 = vld [vmem:[%s1 + $0xf4] sm:$0xf]
  %v96 = vld [vmem:[%s1 + $0xf8] sm:$0xf]
  %v97 = vld [vmem:[%s1 + $0xfc] sm:$0xf]
  %v98 = vld [vmem:[%s1 + $0x100] sm:$0xf]
  %v99 = vld [vmem:[%s1 + $0x104] sm:$0xf]
  %v100 = vld [vmem:[%s1 + $0x108] sm:$0xf]
  %v101 = vld [vmem:[%s1 + $0x10c] sm:$0xf]
  %v102 = vld [vmem:[%s1 + $0x110] sm:$0xf]
  %v103 = vld [vmem:[%s1 + $0x114] sm:$0xf]
  %v104 = vld [vmem:[%s1 + $0x118] sm:$0xf]
  %v105 = vld [vmem:[%s1 + $0x11c] sm:$0xf]
  %v106 = vld [vmem:[%s1 + $0x120] sm:$0xf]
  %v107 = vld [vmem:[%s1 + $0x124] sm:$0xf]
  %v108 = vld [vmem:[%s1 + $0x128] sm:$0xf]
  %v109 = vld [vmem:[%s1 + $0x12c] sm:$0xf]
  %v110 = vld [vmem:[%s1 + $0x130] sm:$0xf]
  %v111 = vld [vmem:[%s1 + $0x134] sm:$0xf]
  %v112 = vld [vmem:[%s1 + $0x138] sm:$0xf]
  %v113 = vld [vmem:[%s1 + $0x13c] sm:$0xf]
  %v114 = vld [vmem:[%s1 + $0x140] sm:$0xf]
  %v115 = vld [vmem:[%s1 + $0x144] sm:$0xf]
  %v116 = vld [vmem:[%s1 + $0x148] sm:$0xf]
  %v117 = vld [vmem:[%s1 + $0x14c] sm:$0xf]
  %v118 = vld [vmem:[%s1 + $0x150] sm:$0xf]
  %v119 = vld [vmem:[%s1 + $0x154] sm:$0xf]
  %v120 = vld [vmem:[%s1 + $0x158] sm:$0xf]
  %v121 = vld [vmem:[%s1 + $0x15c] sm:$0xf]
  %v122 = vld [vmem:[%s1 + $0x160] sm:$0xf]
  %v123 = vld [vmem:[%s1 + $0x164] sm:$0xf]
  %v124 = vld [vmem:[%s1 + $0x168] sm:$0xf]
  %v125 = vld [vmem:[%s1 + $0x16c] sm:$0xf]
  %v126 = vld [vmem:[%s1 + $0x170] sm:$0xf]
  %v127 = vld [vmem:[%s1 + $0x174] sm:$0xf]
  %v128 = vld [vmem:[%s1 + $0x178] sm:$0xf]
  %v129 = vld [vmem:[%s1 + $0x17c] sm:$0xf]
  %v130 = vld [vmem:[%s1 + $0x180] sm:$0xf]
  %v131 = vld [vmem:[%s1 + $0x184] sm:$0xf]
  %v132 = vld [vmem:[%s1 + $0x188] sm:$0xf]
  %v133 = vld [vmem:[%s1 + $0x18c] sm:$0xf]
  %v134 = vld [vmem:[%s1 + $0x190] sm:$0xf]
  %v135 = vld [vmem:[%s1 + $0x194] sm:$0xf]
  %v136 = vld [vmem:[%s1 + $0x198] sm:$0xf]
  %v137 = vld [vmem:[%s1 + $0x19c] sm:$0xf]
  %v138 = vld [vmem:[%s1 + $0x1a0] sm:$0xf]
  %v139 = vld [vmem:[%s1 + $0x1a4] sm:$0xf]
  %v140 = vld [vmem:[%s1 + $0x1a8] sm:$0xf]
  %v141 = vld [vmem:[%s1 + $0x1ac] sm:$0xf]
  %v142 = vld [vmem:[%s1 + $0x1b0] sm:$0xf]
  %v143 = vld [vmem:[%s1 + $0x1b4] sm:$0xf]
  %v144 = vld [vmem:[%s1 + $0x1b8] sm:$0xf]
  %v145 = vld [vmem:[%s1 + $0x1bc] sm:$0xf]
  %v146 = vld [vmem:[%s1 + $0x1c0] sm:$0xf]
  %v147 = vld [vmem:[%s1 + $0x1c4] sm:$0xf]
  %v148 = vld [vmem:[%s1 + $0x1c8] sm:$0xf]
  %v149 = vld [vmem:[%s1 + $0x1cc] sm:$0xf]
  %v150 = vld [vmem:[%s1 + $0x1d0] sm:$0xf]
  %v151 = vld [vmem:[%s1 + $0x1d4] sm:$0xf]
  %v152 = vld [vmem:[%s1 + $0x1d8] sm:$0xf]
  %v153 = vld [vmem:[%s1 + $0x1dc] sm:$0xf]
  %v154 = vld [vmem:[%s1 + $0x1e0] sm:$0xf]
  %v155 = vld [vmem:[%s1 + $0x1e4] sm:$0xf]
  %v156 = vld [vmem:[%s1 + $0x1e8] sm:$0xf]
  %v157 = vld [vmem:[%s1 + $0x1ec] sm:$0xf]
  %v158 = vld [vmem:[%s1 + $0x1f0] sm:$0xf]
  %v159 = vld [vmem:[%s1 + $0x1f4] sm:$0xf]
  %v160 = vld [vmem:[%s1 + $0x1f8] sm:$0xf]
  %v161 = vld [vmem:[%s1 + $0x1fc] sm:$0xf]
  %v162 = vld [vmem:[%s1 + $0x200] sm:$0xf]
  %v163 = vld [vmem:[%s1 + $0x204] sm:$0xf]
  %v164 = vld [vmem:[%s1 + $0x208] sm:$0xf]
  %v165 = vld [vmem:[%s1 + $0x20c] sm:$0xf]
  %v166 = vld [vmem:[%s1 + $0x210] sm:$0xf]
  %v167 = vld [vmem:[%s1 + $0x214] sm:$0xf]
  %v168 = vld [vmem:[%s1 + $0x218] sm:$0xf]
  %v169 = vld [vmem:[%s1 + $0x21c] sm:$0xf]
  %v170 = vld [vmem:[%s1 + $0x220] sm:$0xf]
  %v171 = vld [vmem:[%s1 + $0x224] sm:$0xf]
  %v172 = vld [vmem:[%s1 + $0x228] sm:$0xf]
  %v173 = vld [vmem:[%s1 + $0x22c] sm:$0xf]
  %v174 = vld [vmem:[%s1 + $0x230] sm:$0xf]
  %v175 = vld [vmem:[%s1 + $0x234] sm:$0xf]
  %v176 = vld [vmem:[%s1 + $0x238] sm:$0xf]
  %v177 = vld [vmem:[%s1 + $0x23c] sm:$0xf]
  %v178 = vld [vmem:[%s2] sm:$0x1]
  %v180 = vperm.slane %v178, 0
  %v202 = vunpack.c.l.b16 %v14
  %v203 = vunpack.c.h.b16 %v14
  %v204 = vunpack.c.l.b16 %v15
  %v205 = vunpack.c.h.b16 %v15
  %v206 = vunpack.c.l.b16 %v16
  %v207 = vunpack.c.h.b16 %v16
  %v208 = vunpack.c.l.b16 %v17
  %v209 = vunpack.c.h.b16 %v17
  %v210 = vunpack.c.l.b16 %v18
  %v211 = vunpack.c.l.b16 %v19
  %v212 = vunpack.c.h.b16 %v19
  %v213 = vunpack.c.l.b16 %v20
  %v214 = vunpack.c.h.b16 %v20
  %v215 = vunpack.c.l.b16 %v21
  %v216 = vunpack.c.h.b16 %v21
  %v217 = vunpack.c.l.b16 %v22
  %v218 = vunpack.c.h.b16 %v22
  %v219 = vunpack.c.l.b16 %v23
  %v220 = vunpack.c.l.b16 %v24
  %v221 = vunpack.c.h.b16 %v24
  %v222 = vunpack.c.l.b16 %v25
  %v223 = vunpack.c.h.b16 %v25
  %v224 = vunpack.c.l.b16 %v26
  %v225 = vunpack.c.h.b16 %v26
  %v226 = vunpack.c.l.b16 %v27
  %v227 = vunpack.c.h.b16 %v27
  %v228 = vunpack.c.l.b16 %v28
  %v229 = vunpack.c.l.b16 %v29
  %v230 = vunpack.c.h.b16 %v29
  %v231 = vunpack.c.l.b16 %v30
  %v232 = vunpack.c.h.b16 %v30
  %v233 = vunpack.c.l.b16 %v31
  %v234 = vunpack.c.h.b16 %v31
  %v235 = vunpack.c.l.b16 %v32
  %v236 = vunpack.c.h.b16 %v32
  %v237 = vunpack.c.l.b16 %v33
  %v238 = vpack.c.b16 %v211, %v202
  %v239 = vpack.c.b16 %v212, %v203
  %v240 = vpack.c.b16 %v213, %v204
  %v241 = vpack.c.b16 %v214, %v205
  %v242 = vpack.c.b16 %v215, %v206
  %v243 = vpack.c.b16 %v216, %v207
  %v244 = vpack.c.b16 %v217, %v208
  %v245 = vpack.c.b16 %v218, %v209
  %v246 = vpack.c.b16 %v219, %v210
  %v247 = vpack.c.b16 %v229, %v220
  %v248 = vpack.c.b16 %v230, %v221
  %v249 = vpack.c.b16 %v231, %v222
  %v250 = vpack.c.b16 %v232, %v223
  %v251 = vpack.c.b16 %v233, %v224
  %v252 = vpack.c.b16 %v234, %v225
  %v253 = vpack.c.b16 %v235, %v226
  %v254 = vpack.c.b16 %v236, %v227
  %v255 = vpack.c.b16 %v237, %v228
  %v418 = vunpack.c.l.b16 %v34
  %v419 = vunpack.c.l.b16 %v35
  %v420 = vunpack.c.l.b16 %v36
  %v421 = vunpack.c.l.b16 %v37
  %v422 = vunpack.c.l.b16 %v38
  %v423 = vunpack.c.l.b16 %v39
  %v424 = vunpack.c.l.b16 %v40
  %v425 = vunpack.c.l.b16 %v41
  %v426 = vunpack.c.l.b16 %v42
  %v427 = vunpack.c.l.b16 %v43
  %v428 = vunpack.c.l.b16 %v44
  %v429 = vunpack.c.l.b16 %v45
  %v430 = vunpack.c.l.b16 %v46
  %v431 = vunpack.c.l.b16 %v47
  %v432 = vunpack.c.l.b16 %v48
  %v433 = vunpack.c.l.b16 %v49
  %v434 = vunpack.c.l.b16 %v50
  %v435 = vunpack.c.l.b16 %v51
  %v436 = vunpack.c.l.b16 %v52
  %v437 = vunpack.c.l.b16 %v53
  %v438 = vunpack.c.l.b16 %v54
  %v439 = vunpack.c.l.b16 %v55
  %v440 = vunpack.c.l.b16 %v56
  %v441 = vunpack.c.l.b16 %v57
  %v442 = vunpack.c.l.b16 %v58
  %v443 = vunpack.c.l.b16 %v59
  %v444 = vunpack.c.l.b16 %v60
  %v445 = vunpack.c.l.b16 %v61
  %v446 = vunpack.c.l.b16 %v62
  %v447 = vunpack.c.l.b16 %v63
  %v448 = vunpack.c.l.b16 %v64
  %v449 = vunpack.c.l.b16 %v65
  %v450 = vunpack.c.l.b16 %v66
  %v451 = vunpack.c.l.b16 %v67
  %v452 = vunpack.c.l.b16 %v68
  %v453 = vunpack.c.l.b16 %v69
  %v454 = vunpack.c.l.b16 %v70
  %v455 = vunpack.c.l.b16 %v71
  %v456 = vunpack.c.l.b16 %v72
  %v457 = vunpack.c.l.b16 %v73
  %v458 = vunpack.c.l.b16 %v74
  %v459 = vunpack.c.l.b16 %v75
  %v460 = vunpack.c.l.b16 %v76
  %v461 = vunpack.c.l.b16 %v77
  %v462 = vunpack.c.l.b16 %v78
  %v463 = vunpack.c.l.b16 %v79
  %v464 = vunpack.c.l.b16 %v80
  %v465 = vunpack.c.l.b16 %v81
  %v466 = vunpack.c.l.b16 %v82
  %v467 = vunpack.c.l.b16 %v83
  %v468 = vunpack.c.l.b16 %v84
  %v469 = vunpack.c.l.b16 %v85
  %v470 = vunpack.c.l.b16 %v86
  %v471 = vunpack.c.l.b16 %v87
  %v472 = vunpack.c.l.b16 %v88
  %v473 = vunpack.c.l.b16 %v89
  %v474 = vunpack.c.l.b16 %v90
  %v475 = vunpack.c.l.b16 %v91
  %v476 = vunpack.c.l.b16 %v92
  %v477 = vunpack.c.l.b16 %v93
  %v478 = vunpack.c.l.b16 %v94
  %v479 = vunpack.c.l.b16 %v95
  %v480 = vunpack.c.l.b16 %v96
  %v481 = vunpack.c.l.b16 %v97
  %v482 = vunpack.c.l.b16 %v98
  %v483 = vunpack.c.l.b16 %v99
  %v484 = vunpack.c.l.b16 %v100
  %v485 = vunpack.c.l.b16 %v101
  %v486 = vunpack.c.l.b16 %v102
  %v487 = vunpack.c.l.b16 %v103
  %v488 = vunpack.c.l.b16 %v104
  %v489 = vunpack.c.l.b16 %v105
  %v490 = vunpack.c.l.b16 %v106
  %v491 = vunpack.c.l.b16 %v107
  %v492 = vunpack.c.l.b16 %v108
  %v493 = vunpack.c.l.b16 %v109
  %v494 = vunpack.c.l.b16 %v110
  %v495 = vunpack.c.l.b16 %v111
  %v496 = vunpack.c.l.b16 %v112
  %v497 = vunpack.c.l.b16 %v113
  %v498 = vunpack.c.l.b16 %v114
  %v499 = vunpack.c.l.b16 %v115
  %v500 = vunpack.c.l.b16 %v116
  %v501 = vunpack.c.l.b16 %v117
  %v502 = vunpack.c.l.b16 %v118
  %v503 = vunpack.c.l.b16 %v119
  %v504 = vunpack.c.l.b16 %v120
  %v505 = vunpack.c.l.b16 %v121
  %v506 = vunpack.c.l.b16 %v122
  %v507 = vunpack.c.l.b16 %v123
  %v508 = vunpack.c.l.b16 %v124
  %v509 = vunpack.c.l.b16 %v125
  %v510 = vunpack.c.l.b16 %v126
  %v511 = vunpack.c.l.b16 %v127
  %v512 = vunpack.c.l.b16 %v128
  %v513 = vunpack.c.l.b16 %v129
  %v514 = vunpack.c.l.b16 %v130
  %v515 = vunpack.c.l.b16 %v131
  %v516 = vunpack.c.l.b16 %v132
  %v517 = vunpack.c.l.b16 %v133
  %v518 = vunpack.c.l.b16 %v134
  %v519 = vunpack.c.l.b16 %v135
  %v520 = vunpack.c.l.b16 %v136
  %v521 = vunpack.c.l.b16 %v137
  %v522 = vunpack.c.l.b16 %v138
  %v523 = vunpack.c.l.b16 %v139
  %v524 = vunpack.c.l.b16 %v140
  %v525 = vunpack.c.l.b16 %v141
  %v526 = vunpack.c.l.b16 %v142
  %v527 = vunpack.c.l.b16 %v143
  %v528 = vunpack.c.l.b16 %v144
  %v529 = vunpack.c.l.b16 %v145
  %v530 = vunpack.c.l.b16 %v146
  %v531 = vunpack.c.l.b16 %v147
  %v532 = vunpack.c.l.b16 %v148
  %v533 = vunpack.c.l.b16 %v149
  %v534 = vunpack.c.l.b16 %v150
  %v535 = vunpack.c.l.b16 %v151
  %v536 = vunpack.c.l.b16 %v152
  %v537 = vunpack.c.l.b16 %v153
  %v538 = vunpack.c.l.b16 %v154
  %v539 = vunpack.c.l.b16 %v155
  %v540 = vunpack.c.l.b16 %v156
  %v541 = vunpack.c.l.b16 %v157
  %v542 = vunpack.c.l.b16 %v158
  %v543 = vunpack.c.l.b16 %v159
  %v544 = vunpack.c.l.b16 %v160
  %v545 = vunpack.c.l.b16 %v161
  %v546 = vunpack.c.l.b16 %v162
  %v547 = vunpack.c.l.b16 %v163
  %v548 = vunpack.c.l.b16 %v164
  %v549 = vunpack.c.l.b16 %v165
  %v550 = vunpack.c.l.b16 %v166
  %v551 = vunpack.c.l.b16 %v167
  %v552 = vunpack.c.l.b16 %v168
  %v553 = vunpack.c.l.b16 %v169
  %v554 = vunpack.c.l.b16 %v170
  %v555 = vunpack.c.l.b16 %v171
  %v556 = vunpack.c.l.b16 %v172
  %v557 = vunpack.c.l.b16 %v173
  %v558 = vunpack.c.l.b16 %v174
  %v559 = vunpack.c.l.b16 %v175
  %v560 = vunpack.c.l.b16 %v176
  %v561 = vunpack.c.l.b16 %v177
  %v562 = vpack.c.b16 %v419, %v418
  %v563 = vpack.c.b16 %v421, %v420
  %v564 = vpack.c.b16 %v423, %v422
  %v565 = vpack.c.b16 %v425, %v424
  %v566 = vpack.c.b16 %v427, %v426
  %v567 = vpack.c.b16 %v429, %v428
  %v568 = vpack.c.b16 %v431, %v430
  %v569 = vpack.c.b16 %v433, %v432
  %v570 = vpack.c.b16 %v435, %v434
  %v571 = vpack.c.b16 %v437, %v436
  %v572 = vpack.c.b16 %v439, %v438
  %v573 = vpack.c.b16 %v441, %v440
  %v574 = vpack.c.b16 %v443, %v442
  %v575 = vpack.c.b16 %v445, %v444
  %v576 = vpack.c.b16 %v447, %v446
  %v577 = vpack.c.b16 %v449, %v448
  %v578 = vpack.c.b16 %v451, %v450
  %v579 = vpack.c.b16 %v453, %v452
  %v580 = vpack.c.b16 %v455, %v454
  %v581 = vpack.c.b16 %v457, %v456
  %v582 = vpack.c.b16 %v459, %v458
  %v583 = vpack.c.b16 %v461, %v460
  %v584 = vpack.c.b16 %v463, %v462
  %v585 = vpack.c.b16 %v465, %v464
  %v586 = vpack.c.b16 %v467, %v466
  %v587 = vpack.c.b16 %v469, %v468
  %v588 = vpack.c.b16 %v471, %v470
  %v589 = vpack.c.b16 %v473, %v472
  %v590 = vpack.c.b16 %v475, %v474
  %v591 = vpack.c.b16 %v477, %v476
  %v592 = vpack.c.b16 %v479, %v478
  %v593 = vpack.c.b16 %v481, %v480
  %v594 = vpack.c.b16 %v483, %v482
  %v595 = vpack.c.b16 %v485, %v484
  %v596 = vpack.c.b16 %v487, %v486
  %v597 = vpack.c.b16 %v489, %v488
  %v598 = vpack.c.b16 %v491, %v490
  %v599 = vpack.c.b16 %v493, %v492
  %v600 = vpack.c.b16 %v495, %v494
  %v601 = vpack.c.b16 %v497, %v496
  %v602 = vpack.c.b16 %v499, %v498
  %v603 = vpack.c.b16 %v501, %v500
  %v604 = vpack.c.b16 %v503, %v502
  %v605 = vpack.c.b16 %v505, %v504
  %v606 = vpack.c.b16 %v507, %v506
  %v607 = vpack.c.b16 %v509, %v508
  %v608 = vpack.c.b16 %v511, %v510
  %v609 = vpack.c.b16 %v513, %v512
  %v610 = vpack.c.b16 %v515, %v514
  %v611 = vpack.c.b16 %v517, %v516
  %v612 = vpack.c.b16 %v519, %v518
  %v613 = vpack.c.b16 %v521, %v520
  %v614 = vpack.c.b16 %v523, %v522
  %v615 = vpack.c.b16 %v525, %v524
  %v616 = vpack.c.b16 %v527, %v526
  %v617 = vpack.c.b16 %v529, %v528
  %v618 = vpack.c.b16 %v531, %v530
  %v619 = vpack.c.b16 %v533, %v532
  %v620 = vpack.c.b16 %v535, %v534
  %v621 = vpack.c.b16 %v537, %v536
  %v622 = vpack.c.b16 %v539, %v538
  %v623 = vpack.c.b16 %v541, %v540
  %v624 = vpack.c.b16 %v543, %v542
  %v625 = vpack.c.b16 %v545, %v544
  %v626 = vpack.c.b16 %v547, %v546
  %v627 = vpack.c.b16 %v549, %v548
  %v628 = vpack.c.b16 %v551, %v550
  %v629 = vpack.c.b16 %v553, %v552
  %v630 = vpack.c.b16 %v555, %v554
  %v631 = vpack.c.b16 %v557, %v556
  %v632 = vpack.c.b16 %v559, %v558
  %v633 = vpack.c.b16 %v561, %v560
  %706 = vmatpush.bf16.msra.mxu0 %v569
  %707 = vmatpush.bf16.msra.mxu0 %v568
  %708 = vmatpush.bf16.msra.mxu0 %v567
  %709 = vmatpush.bf16.msra.mxu0 %v566
  %710 = vmatpush.bf16.msra.mxu0 %v565
  %711 = vmatpush.bf16.msra.mxu0 %v564
  %712 = vmatpush.bf16.msra.mxu0 %v563
  %713 = vmatpush.bf16.msra.mxu0 %v562
  %714 = vmatmul.bf16.gmra.mxu0 %v238
  %v715 = vpop.f32.mrf.mxu0
  %v716 = vadd.f32 %v180, %v715
  %v717 = vpop.f32.mrf.mxu0
  %v718 = vadd.f32 %v180, %v717
  %719 = vmatmul.bf16.gmra.mxu0 %v247
  %v720 = vpop.f32.mrf.mxu0
  %v721 = vadd.f32 %v180, %v720
  %v722 = vpop.f32.mrf.mxu0
  %v723 = vadd.f32 %v180, %v722
  %724 = vdwg.mxu0
  %725 = vmatpush.bf16.msra.mxu0 %v577
  %726 = vmatpush.bf16.msra.mxu0 %v576
  %727 = vmatpush.bf16.msra.mxu0 %v575
  %728 = vmatpush.bf16.msra.mxu0 %v574
  %729 = vmatpush.bf16.msra.mxu0 %v573
  %730 = vmatpush.bf16.msra.mxu0 %v572
  %731 = vmatpush.bf16.msra.mxu0 %v571
  %732 = vmatpush.bf16.msra.mxu0 %v570
  %733 = vmatmul.bf16.gmra.mxu0 %v239
  %v734 = vpop.f32.mrf.mxu0
  %v735 = vadd.f32 %v716, %v734
  %v736 = vpop.f32.mrf.mxu0
  %v737 = vadd.f32 %v718, %v736
  %738 = vmatmul.bf16.gmra.mxu0 %v248
  %v739 = vpop.f32.mrf.mxu0
  %v740 = vadd.f32 %v721, %v739
  %v741 = vpop.f32.mrf.mxu0
  %v742 = vadd.f32 %v723, %v741
  %743 = vdwg.mxu0
  %744 = vmatpush.bf16.msra.mxu0 %v585
  %745 = vmatpush.bf16.msra.mxu0 %v584
  %746 = vmatpush.bf16.msra.mxu0 %v583
  %747 = vmatpush.bf16.msra.mxu0 %v582
  %748 = vmatpush.bf16.msra.mxu0 %v581
  %749 = vmatpush.bf16.msra.mxu0 %v580
  %750 = vmatpush.bf16.msra.mxu0 %v579
  %751 = vmatpush.bf16.msra.mxu0 %v578
  %752 = vmatmul.bf16.gmra.mxu0 %v240
  %v753 = vpop.f32.mrf.mxu0
  %v754 = vadd.f32 %v735, %v753
  %v755 = vpop.f32.mrf.mxu0
  %v756 = vadd.f32 %v737, %v755
  %757 = vmatmul.bf16.gmra.mxu0 %v249
  %v758 = vpop.f32.mrf.mxu0
  %v759 = vadd.f32 %v740, %v758
  %v760 = vpop.f32.mrf.mxu0
  %v761 = vadd.f32 %v742, %v760
  %762 = vdwg.mxu0
  %763 = vmatpush.bf16.msra.mxu0 %v593
  %764 = vmatpush.bf16.msra.mxu0 %v592
  %765 = vmatpush.bf16.msra.mxu0 %v591
  %766 = vmatpush.bf16.msra.mxu0 %v590
  %767 = vmatpush.bf16.msra.mxu0 %v589
  %768 = vmatpush.bf16.msra.mxu0 %v588
  %769 = vmatpush.bf16.msra.mxu0 %v587
  %770 = vmatpush.bf16.msra.mxu0 %v586
  %771 = vmatmul.bf16.gmra.mxu0 %v241
  %v772 = vpop.f32.mrf.mxu0
  %v773 = vadd.f32 %v754, %v772
  %v774 = vpop.f32.mrf.mxu0
  %v775 = vadd.f32 %v756, %v774
  %776 = vmatmul.bf16.gmra.mxu0 %v250
  %v777 = vpop.f32.mrf.mxu0
  %v778 = vadd.f32 %v759, %v777
  %v779 = vpop.f32.mrf.mxu0
  %v780 = vadd.f32 %v761, %v779
  %781 = vdwg.mxu0
  %782 = vmatpush.bf16.msra.mxu0 %v601
  %783 = vmatpush.bf16.msra.mxu0 %v600
  %784 = vmatpush.bf16.msra.mxu0 %v599
  %785 = vmatpush.bf16.msra.mxu0 %v598
  %786 = vmatpush.bf16.msra.mxu0 %v597
  %787 = vmatpush.bf16.msra.mxu0 %v596
  %788 = vmatpush.bf16.msra.mxu0 %v595
  %789 = vmatpush.bf16.msra.mxu0 %v594
  %790 = vmatmul.bf16.gmra.mxu0 %v242
  %v791 = vpop.f32.mrf.mxu0
  %v792 = vadd.f32 %v773, %v791
  %v793 = vpop.f32.mrf.mxu0
  %v794 = vadd.f32 %v775, %v793
  %795 = vmatmul.bf16.gmra.mxu0 %v251
  %v796 = vpop.f32.mrf.mxu0
  %v797 = vadd.f32 %v778, %v796
  %v798 = vpop.f32.mrf.mxu0
  %v799 = vadd.f32 %v780, %v798
  %800 = vdwg.mxu0
  %801 = vmatpush.bf16.msra.mxu0 %v609
  %802 = vmatpush.bf16.msra.mxu0 %v608
  %803 = vmatpush.bf16.msra.mxu0 %v607
  %804 = vmatpush.bf16.msra.mxu0 %v606
  %805 = vmatpush.bf16.msra.mxu0 %v605
  %806 = vmatpush.bf16.msra.mxu0 %v604
  %807 = vmatpush.bf16.msra.mxu0 %v603
  %808 = vmatpush.bf16.msra.mxu0 %v602
  %809 = vmatmul.bf16.gmra.mxu0 %v243
  %v810 = vpop.f32.mrf.mxu0
  %v811 = vadd.f32 %v792, %v810
  %v812 = vpop.f32.mrf.mxu0
  %v813 = vadd.f32 %v794, %v812
  %814 = vmatmul.bf16.gmra.mxu0 %v252
  %v815 = vpop.f32.mrf.mxu0
  %v816 = vadd.f32 %v797, %v815
  %v817 = vpop.f32.mrf.mxu0
  %v818 = vadd.f32 %v799, %v817
  %819 = vdwg.mxu0
  %820 = vmatpush.bf16.msra.mxu0 %v617
  %821 = vmatpush.bf16.msra.mxu0 %v616
  %822 = vmatpush.bf16.msra.mxu0 %v615
  %823 = vmatpush.bf16.msra.mxu0 %v614
  %824 = vmatpush.bf16.msra.mxu0 %v613
  %825 = vmatpush.bf16.msra.mxu0 %v612
  %826 = vmatpush.bf16.msra.mxu0 %v611
  %827 = vmatpush.bf16.msra.mxu0 %v610
  %828 = vmatmul.bf16.gmra.mxu0 %v244
  %v829 = vpop.f32.mrf.mxu0
  %v830 = vadd.f32 %v811, %v829
  %v831 = vpop.f32.mrf.mxu0
  %v832 = vadd.f32 %v813, %v831
  %833 = vmatmul.bf16.gmra.mxu0 %v253
  %v834 = vpop.f32.mrf.mxu0
  %v835 = vadd.f32 %v816, %v834
  %v836 = vpop.f32.mrf.mxu0
  %v837 = vadd.f32 %v818, %v836
  %838 = vdwg.mxu0
  %839 = vmatpush.bf16.msra.mxu0 %v625
  %840 = vmatpush.bf16.msra.mxu0 %v624
  %841 = vmatpush.bf16.msra.mxu0 %v623
  %842 = vmatpush.bf16.msra.mxu0 %v622
  %843 = vmatpush.bf16.msra.mxu0 %v621
  %844 = vmatpush.bf16.msra.mxu0 %v620
  %845 = vmatpush.bf16.msra.mxu0 %v619
  %846 = vmatpush.bf16.msra.mxu0 %v618
  %847 = vmatmul.bf16.gmra.mxu0 %v245
  %v848 = vpop.f32.mrf.mxu0
  %v849 = vadd.f32 %v830, %v848
  %v850 = vpop.f32.mrf.mxu0
  %v851 = vadd.f32 %v832, %v850
  %852 = vmatmul.bf16.gmra.mxu0 %v254
  %v853 = vpop.f32.mrf.mxu0
  %v854 = vadd.f32 %v835, %v853
  %v855 = vpop.f32.mrf.mxu0
  %v856 = vadd.f32 %v837, %v855
  %857 = vdwg.mxu0
  %858 = vmatpush.bf16.msra.mxu0 %v633
  %859 = vmatpush.bf16.msra.mxu0 %v632
  %860 = vmatpush.bf16.msra.mxu0 %v631
  %861 = vmatpush.bf16.msra.mxu0 %v630
  %862 = vmatpush.bf16.msra.mxu0 %v629
  %863 = vmatpush.bf16.msra.mxu0 %v628
  %864 = vmatpush.bf16.msra.mxu0 %v627
  %865 = vmatpush.bf16.msra.mxu0 %v626
  %866 = vmatmul.bf16.gmra.mxu0 %v246
  %v867 = vpop.f32.mrf.mxu0
  %v868 = vadd.f32 %v849, %v867
  %v869 = vpop.f32.mrf.mxu0
  %v870 = vadd.f32 %v851, %v869
  %871 = vmatmul.bf16.gmra.mxu0 %v255
  %v872 = vpop.f32.mrf.mxu0
  %v873 = vadd.f32 %v854, %v872
  %v874 = vpop.f32.mrf.mxu0
  %v875 = vadd.f32 %v856, %v874
  %876 = vdwg.mxu0
  %v877 = vmax.f32 %v868, 0.0
  %v878 = vmax.f32 %v870, 0.0
  %v879 = vmax.f32 %v873, 0.0
  %v880 = vmax.f32 %v875, 0.0
  %v881 = vpack.c.bf16 %v877, %v877
  %v882 = vpack.c.bf16 %v878, %v878
  %v883 = vpack.c.bf16 %v879, %v879
  %v884 = vpack.c.bf16 %v880, %v880
  %vm885 = vcmask 519168
  %886 = vst.msk [vmem:[%s3] sm:$0xf] %vm885, %v881
  %887 = vst.msk [vmem:[%s3 + $0x4] sm:$0xf] %vm885, %v882
  %888 = vst.msk [vmem:[%s3 + $0x8] sm:$0xf] %vm885, %v883
  %889 = vst.msk [vmem:[%s3 + $0xc] sm:$0xf] %vm885, %v884
  // Predicated region
  $region14: #{deeplab_forward.23} parent=0 // pred_check
    _
  $region15: #{deeplab_forward.23} parent=0 // pred_check_branch
    %891 = sbr.rel (0) target = $region17
  $region16: #{deeplab_forward.23} parent=0 // pred_region
    _
  $region17: #{deeplab_forward.23} parent=0 // pred_fallthru
    _
  // Predicated region
  $region18: #{deeplab_forward.23} parent=0 // pred_check
    _
  $region19: #{deeplab_forward.23} parent=0 // pred_check_branch
    %893 = sbr.rel (0) target = $region21
  $region20: #{deeplab_forward.23} parent=0 // pred_region
    _
  $region21: #{deeplab_forward.23} parent=0 // pred_fallthru
    _

// kernel: deeplab_forward.29
$region0: #{deeplab_forward.29}
  #allocation0 [shape = 'u32[]', space=smem, size = 0x4, offset = 0x4, fixed_abs, tag = 'smem constant byte address 0x4 - core index']
  #allocation1 [shape = 'u32[72,128]{1,0:T(1,128)}', space=vmem, size = 0x9000, scoped, tag = 'internal scratch']
  %s0 = inlined_call_operand.vmem [shape: bf16[16,4], index: 0, kind: input, shape index: {}]
  %s1 = inlined_call_operand.vmem [shape: bf16[4,512], index: 1, kind: input, shape index: {}]
  %s2 = inlined_call_operand.vmem [shape: f32[1,512], index: 2, kind: input, shape index: {}]
  %s3 = inlined_call_operand.vmem [shape: bf16[16,512], index: 3, kind: output, shape index: {}]
  %s4 = sld [smem:[#allocation0]]
  $region22: #{deeplab_forward.29} parent=0
    _
  %s6 = ssub.s32 1, %s4
  %s7 = scalar_select 0, %s6, %s4
  // Predicated region
  $region2: #{deeplab_forward.29} parent=0 // pred_check
    _
  $region3: #{deeplab_forward.29} parent=0 // pred_check_branch
    %9 = sbr.rel (0) target = $region5
  $region4: #{deeplab_forward.29} parent=0 // pred_region
    _
  $region5: #{deeplab_forward.29} parent=0 // pred_fallthru
    _
  // Predicated region
  $region6: #{deeplab_forward.29} parent=0 // pred_check
    _
  $region7: #{deeplab_forward.29} parent=0 // pred_check_branch
    %11 = sbr.rel (0) target = $region9
  $region8: #{deeplab_forward.29} parent=0 // pred_region
    _
  $region9: #{deeplab_forward.29} parent=0 // pred_fallthru
    _
  // Predicated region
  $region10: #{deeplab_forward.29} parent=0 // pred_check
    _
  $region11: #{deeplab_forward.29} parent=0 // pred_check_branch
    %13 = sbr.rel (0) target = $region13
  $region12: #{deeplab_forward.29} parent=0 // pred_region
    _
  $region13: #{deeplab_forward.29} parent=0 // pred_fallthru
    _
  %v15 = vld [vmem:[%s0] sm:$0xf]
  %v16 = vld [vmem:[%s0 + $0x4] sm:$0xf]
  %v17 = vld [vmem:[%s1] sm:$0xff]
  %v18 = vld [vmem:[%s2] sm:$0xf]
  %v20 = vperm.slane %v18, 0
  %v21 = vperm.slane %v18, 1
  %v22 = vperm.slane %v18, 2
  %v23 = vperm.slane %v18, 3
  %v30 = vunpack.c.l.b16 %v15
  %v31 = vunpack.c.l.b16 %v16
  %v32 = vpack.c.b16 %v31, %v30
  %34 = vst [vmem:[#allocation1] ss:$4 sm:$0xff] %v17
  %v35 = vld.sshfl [vmem:[#allocation1] sm:$0xff pattern:$0x73625140]
  %v36 = vld.sshfl [vmem:[#allocation1 + $0x8] sm:$0xff pattern:$0x73625140]
  %v37 = vld.sshfl [vmem:[#allocation1 + $0x10] sm:$0xff pattern:$0x73625140]
  %v38 = vld.sshfl [vmem:[#allocation1 + $0x18] sm:$0xff pattern:$0x73625140]
  %vm39 = vcmask 31744
  %v41 = vsel %vm39, %v32, 0
  %vm43 = vcmask 1041408
  %v44 = vsel %vm43, %v35, 0
  %v46 = vsel %vm43, %v36, 0
  %v48 = vsel %vm43, %v37, 0
  %v50 = vsel %vm43, %v38, 0
  %52 = vmatpush.bf16.msra.mxu0 0
  %53 = vmatpush.bf16.msra.mxu0 0
  %54 = vmatpush.bf16.msra.mxu0 0
  %55 = vmatpush.bf16.msra.mxu0 0
  %56 = vmatpush.bf16.msra.mxu0 0
  %57 = vmatpush.bf16.msra.mxu0 0
  %58 = vmatpush.bf16.msra.mxu0 0
  %59 = vmatpush.bf16.msra.mxu0 %v44
  %60 = vmatmul.bf16.gmra.mxu0 %v41
  %v61 = vpop.f32.mrf.mxu0
  %v62 = vadd.f32 %v20, %v61
  %v63 = vpop.f32.mrf.mxu0
  %v64 = vadd.f32 %v20, %v63
  %65 = vdwg.mxu0
  %66 = vmatpush.bf16.msra.mxu0 0
  %67 = vmatpush.bf16.msra.mxu0 0
  %68 = vmatpush.bf16.msra.mxu0 0
  %69 = vmatpush.bf16.msra.mxu0 0
  %70 = vmatpush.bf16.msra.mxu0 0
  %71 = vmatpush.bf16.msra.mxu0 0
  %72 = vmatpush.bf16.msra.mxu0 0
  %73 = vmatpush.bf16.msra.mxu0 %v46
  %74 = vmatmul.bf16.gmra.mxu0 %v41
  %v75 = vpop.f32.mrf.mxu0
  %v76 = vadd.f32 %v21, %v75
  %v77 = vpop.f32.mrf.mxu0
  %v78 = vadd.f32 %v21, %v77
  %79 = vdwg.mxu0
  %80 = vmatpush.bf16.msra.mxu0 0
  %81 = vmatpush.bf16.msra.mxu0 0
  %82 = vmatpush.bf16.msra.mxu0 0
  %83 = vmatpush.bf16.msra.mxu0 0
  %84 = vmatpush.bf16.msra.mxu0 0
  %85 = vmatpush.bf16.msra.mxu0 0
  %86 = vmatpush.bf16.msra.mxu0 0
  %87 = vmatpush.bf16.msra.mxu0 %v48
  %88 = vmatmul.bf16.gmra.mxu0 %v41
  %v89 = vpop.f32.mrf.mxu0
  %v90 = vadd.f32 %v22, %v89
  %v91 = vpop.f32.mrf.mxu0
  %v92 = vadd.f32 %v22, %v91
  %93 = vdwg.mxu0
  %94 = vmatpush.bf16.msra.mxu0 0
  %95 = vmatpush.bf16.msra.mxu0 0
  %96 = vmatpush.bf16.msra.mxu0 0
  %97 = vmatpush.bf16.msra.mxu0 0
  %98 = vmatpush.bf16.msra.mxu0 0
  %99 = vmatpush.bf16.msra.mxu0 0
  %100 = vmatpush.bf16.msra.mxu0 0
  %101 = vmatpush.bf16.msra.mxu0 %v50
  %102 = vmatmul.bf16.gmra.mxu0 %v41
  %v103 = vpop.f32.mrf.mxu0
  %v104 = vadd.f32 %v23, %v103
  %v105 = vpop.f32.mrf.mxu0
  %v106 = vadd.f32 %v23, %v105
  %107 = vdwg.mxu0
  %v108 = vpack.c.bf16 %v76, %v62
  %v109 = vpack.c.bf16 %v104, %v90
  %v110 = vpack.c.bf16 %v78, %v64
  %v111 = vpack.c.bf16 %v106, %v92
  %112 = vst [vmem:[%s3] sm:$0xff] %v108
  %113 = vst [vmem:[%s3 + $0x8] sm:$0xff] %v109
  %114 = vst [vmem:[%s3 + $0x10] sm:$0xff] %v110
  %115 = vst [vmem:[%s3 + $0x18] sm:$0xff] %v111
  // Predicated region
  $region14: #{deeplab_forward.29} parent=0 // pred_check
    _
  $region15: #{deeplab_forward.29} parent=0 // pred_check_branch
    %117 = sbr.rel (0) target = $region17
  $region16: #{deeplab_forward.29} parent=0 // pred_region
    _
  $region17: #{deeplab_forward.29} parent=0 // pred_fallthru
    _
  // Predicated region
  $region18: #{deeplab_forward.29} parent=0 // pred_check
    _
  $region19: #{deeplab_forward.29} parent=0 // pred_check_branch
    %119 = sbr.rel (0) target = $region21
  $region20: #{deeplab_forward.29} parent=0 // pred_region
    _
  $region21: #{deeplab_forward.29} parent=0 // pred_fallthru
    _

// kernel: deeplab_forward.30
$region0: #{deeplab_forward.30}
  #allocation0 [shape = 'u32[]', space=smem, size = 0x4, offset = 0x4, fixed_abs, tag = 'smem constant byte address 0x4 - core index']
  #allocation1 [shape = 'u32[72,128]{1,0:T(1,128)}', space=vmem, size = 0x9000, scoped, tag = 'internal scratch']
  %s0 = inlined_call_operand.vmem [shape: bf16[16,4], index: 0, kind: input, shape index: {}]
  %s1 = inlined_call_operand.vmem [shape: bf16[4,2048], index: 1, kind: input, shape index: {}]
  %s2 = inlined_call_operand.vmem [shape: f32[1,2048], index: 2, kind: input, shape index: {}]
  %s3 = inlined_call_operand.vmem [shape: bf16[16,2048], index: 3, kind: output, shape index: {}]
  %s4 = sld [smem:[#allocation0]]
  $region22: #{deeplab_forward.30} parent=0
    _
  %s6 = ssub.s32 1, %s4
  %s7 = scalar_select 0, %s6, %s4
  // Predicated region
  $region2: #{deeplab_forward.30} parent=0 // pred_check
    _
  $region3: #{deeplab_forward.30} parent=0 // pred_check_branch
    %9 = sbr.rel (0) target = $region5
  $region4: #{deeplab_forward.30} parent=0 // pred_region
    _
  $region5: #{deeplab_forward.30} parent=0 // pred_fallthru
    _
  // Predicated region
  $region6: #{deeplab_forward.30} parent=0 // pred_check
    _
  $region7: #{deeplab_forward.30} parent=0 // pred_check_branch
    %11 = sbr.rel (0) target = $region9
  $region8: #{deeplab_forward.30} parent=0 // pred_region
    _
  $region9: #{deeplab_forward.30} parent=0 // pred_fallthru
    _
  // Predicated region
  $region10: #{deeplab_forward.30} parent=0 // pred_check
    _
  $region11: #{deeplab_forward.30} parent=0 // pred_check_branch
    %13 = sbr.rel (0) target = $region13
  $region12: #{deeplab_forward.30} parent=0 // pred_region
    _
  $region13: #{deeplab_forward.30} parent=0 // pred_fallthru
    _
  %v15 = vld [vmem:[%s0] sm:$0xf]
  %v16 = vld [vmem:[%s0 + $0x4] sm:$0xf]
  %v17 = vld [vmem:[%s1] sm:$0xff]
  %v18 = vld [vmem:[%s1 + $0x8] sm:$0xff]
  %v19 = vld [vmem:[%s1 + $0x10] sm:$0xff]
  %v20 = vld [vmem:[%s1 + $0x18] sm:$0xff]
  %v21 = vld [vmem:[%s2] sm:$0xff]
  %v22 = vld [vmem:[%s2 + $0x8] sm:$0xff]
  %v25 = vperm.slane %v21, 0
  %v26 = vperm.slane %v21, 1
  %v27 = vperm.slane %v21, 2
  %v28 = vperm.slane %v21, 3
  %v29 = vperm.slane %v21, 4
  %v30 = vperm.slane %v21, 5
  %v31 = vperm.slane %v21, 6
  %v32 = vperm.slane %v21, 7
  %v33 = vperm.slane %v22, 0
  %v34 = vperm.slane %v22, 1
  %v35 = vperm.slane %v22, 2
  %v36 = vperm.slane %v22, 3
  %v37 = vperm.slane %v22, 4
  %v38 = vperm.slane %v22, 5
  %v39 = vperm.slane %v22, 6
  %v40 = vperm.slane %v22, 7
  %v59 = vunpack.c.l.b16 %v15
  %v60 = vunpack.c.l.b16 %v16
  %v61 = vpack.c.b16 %v60, %v59
  %63 = vst [vmem:[#allocation1] ss:$4 sm:$0xff] %v17
  %s65 = scalar_lea.vmem [#allocation1], 32
  %66 = vst [vmem:[%s65] ss:$4 sm:$0xff] %v18
  %v67 = vld.sshfl [vmem:[#allocation1] sm:$0xff pattern:$0x73625140]
  %v68 = vld.sshfl [vmem:[#allocation1 + $0x8] sm:$0xff pattern:$0x73625140]
  %v69 = vld.sshfl [vmem:[#allocation1 + $0x10] sm:$0xff pattern:$0x73625140]
  %v70 = vld.sshfl [vmem:[#allocation1 + $0x18] sm:$0xff pattern:$0x73625140]
  %v71 = vld.sshfl [vmem:[#allocation1 + $0x20] sm:$0xff pattern:$0x73625140]
  %v72 = vld.sshfl [vmem:[#allocation1 + $0x28] sm:$0xff pattern:$0x73625140]
  %v73 = vld.sshfl [vmem:[#allocation1 + $0x30] sm:$0xff pattern:$0x73625140]
  %v74 = vld.sshfl [vmem:[#allocation1 + $0x38] sm:$0xff pattern:$0x73625140]
  %76 = vst [vmem:[#allocation1] ss:$4 sm:$0xff] %v19
  %78 = vst [vmem:[%s65] ss:$4 sm:$0xff] %v20
  %v79 = vld.sshfl [vmem:[#allocation1] sm:$0xff pattern:$0x73625140]
  %v80 = vld.sshfl [vmem:[#allocation1 + $0x8] sm:$0xff pattern:$0x73625140]
  %v81 = vld.sshfl [vmem:[#allocation1 + $0x10] sm:$0xff pattern:$0x73625140]
  %v82 = vld.sshfl [vmem:[#allocation1 + $0x18] sm:$0xff pattern:$0x73625140]
  %v83 = vld.sshfl [vmem:[#allocation1 + $0x20] sm:$0xff pattern:$0x73625140]
  %v84 = vld.sshfl [vmem:[#allocation1 + $0x28] sm:$0xff pattern:$0x73625140]
  %v85 = vld.sshfl [vmem:[#allocation1 + $0x30] sm:$0xff pattern:$0x73625140]
  %v86 = vld.sshfl [vmem:[#allocation1 + $0x38] sm:$0xff pattern:$0x73625140]
  %vm87 = vcmask 31744
  %v89 = vsel %vm87, %v61, 0
  %vm91 = vcmask 1041408
  %v92 = vsel %vm91, %v67, 0
  %v94 = vsel %vm91, %v68, 0
  %v96 = vsel %vm91, %v69, 0
  %v98 = vsel %vm91, %v70, 0
  %v100 = vsel %vm91, %v71, 0
  %v102 = vsel %vm91, %v72, 0
  %v104 = vsel %vm91, %v73, 0
  %v106 = vsel %vm91, %v74, 0
  %v108 = vsel %vm91, %v79, 0
  %v110 = vsel %vm91, %v80, 0
  %v112 = vsel %vm91, %v81, 0
  %v114 = vsel %vm91, %v82, 0
  %v116 = vsel %vm91, %v83, 0
  %v118 = vsel %vm91, %v84, 0
  %v120 = vsel %vm91, %v85, 0
  %v122 = vsel %vm91, %v86, 0
  %124 = vmatpush.bf16.msra.mxu0 0
  %125 = vmatpush.bf16.msra.mxu0 0
  %126 = vmatpush.bf16.msra.mxu0 0
  %127 = vmatpush.bf16.msra.mxu0 0
  %128 = vmatpush.bf16.msra.mxu0 0
  %129 = vmatpush.bf16.msra.mxu0 0
  %130 = vmatpush.bf16.msra.mxu0 0
  %131 = vmatpush.bf16.msra.mxu0 %v92
  %132 = vmatmul.bf16.gmra.mxu0 %v89
  %v133 = vpop.f32.mrf.mxu0
  %v134 = vadd.f32 %v25, %v133
  %v135 = vpop.f32.mrf.mxu0
  %v136 = vadd.f32 %v25, %v135
  %137 = vdwg.mxu0
  %138 = vmatpush.bf16.msra.mxu0 0
  %139 = vmatpush.bf16.msra.mxu0 0
  %140 = vmatpush.bf16.msra.mxu0 0
  %141 = vmatpush.bf16.msra.mxu0 0
  %142 = vmatpush.bf16.msra.mxu0 0
  %143 = vmatpush.bf16.msra.mxu0 0
  %144 = vmatpush.bf16.msra.mxu0 0
  %145 = vmatpush.bf16.msra.mxu0 %v94
  %146 = vmatmul.bf16.gmra.mxu0 %v89
  %v147 = vpop.f32.mrf.mxu0
  %v148 = vadd.f32 %v26, %v147
  %v149 = vpop.f32.mrf.mxu0
  %v150 = vadd.f32 %v26, %v149
  %151 = vdwg.mxu0
  %152 = vmatpush.bf16.msra.mxu0 0
  %153 = vmatpush.bf16.msra.mxu0 0
  %154 = vmatpush.bf16.msra.mxu0 0
  %155 = vmatpush.bf16.msra.mxu0 0
  %156 = vmatpush.bf16.msra.mxu0 0
  %157 = vmatpush.bf16.msra.mxu0 0
  %158 = vmatpush.bf16.msra.mxu0 0
  %159 = vmatpush.bf16.msra.mxu0 %v96
  %160 = vmatmul.bf16.gmra.mxu0 %v89
  %v161 = vpop.f32.mrf.mxu0
  %v162 = vadd.f32 %v27, %v161
  %v163 = vpop.f32.mrf.mxu0
  %v164 = vadd.f32 %v27, %v163
  %165 = vdwg.mxu0
  %166 = vmatpush.bf16.msra.mxu0 0
  %167 = vmatpush.bf16.msra.mxu0 0
  %168 = vmatpush.bf16.msra.mxu0 0
  %169 = vmatpush.bf16.msra.mxu0 0
  %170 = vmatpush.bf16.msra.mxu0 0
  %171 = vmatpush.bf16.msra.mxu0 0
  %172 = vmatpush.bf16.msra.mxu0 0
  %173 = vmatpush.bf16.msra.mxu0 %v98
  %174 = vmatmul.bf16.gmra.mxu0 %v89
  %v175 = vpop.f32.mrf.mxu0
  %v176 = vadd.f32 %v28, %v175
  %v177 = vpop.f32.mrf.mxu0
  %v178 = vadd.f32 %v28, %v177
  %179 = vdwg.mxu0
  %180 = vmatpush.bf16.msra.mxu0 0
  %181 = vmatpush.bf16.msra.mxu0 0
  %182 = vmatpush.bf16.msra.mxu0 0
  %183 = vmatpush.bf16.msra.mxu0 0
  %184 = vmatpush.bf16.msra.mxu0 0
  %185 = vmatpush.bf16.msra.mxu0 0
  %186 = vmatpush.bf16.msra.mxu0 0
  %187 = vmatpush.bf16.msra.mxu0 %v100
  %188 = vmatmul.bf16.gmra.mxu0 %v89
  %v189 = vpop.f32.mrf.mxu0
  %v190 = vadd.f32 %v29, %v189
  %v191 = vpop.f32.mrf.mxu0
  %v192 = vadd.f32 %v29, %v191
  %193 = vdwg.mxu0
  %194 = vmatpush.bf16.msra.mxu0 0
  %195 = vmatpush.bf16.msra.mxu0 0
  %196 = vmatpush.bf16.msra.mxu0 0
  %197 = vmatpush.bf16.msra.mxu0 0
  %198 = vmatpush.bf16.msra.mxu0 0
  %199 = vmatpush.bf16.msra.mxu0 0
  %200 = vmatpush.bf16.msra.mxu0 0
  %201 = vmatpush.bf16.msra.mxu0 %v102
  %202 = vmatmul.bf16.gmra.mxu0 %v89
  %v203 = vpop.f32.mrf.mxu0
  %v204 = vadd.f32 %v30, %v203
  %v205 = vpop.f32.mrf.mxu0
  %v206 = vadd.f32 %v30, %v205
  %207 = vdwg.mxu0
  %208 = vmatpush.bf16.msra.mxu0 0
  %209 = vmatpush.bf16.msra.mxu0 0
  %210 = vmatpush.bf16.msra.mxu0 0
  %211 = vmatpush.bf16.msra.mxu0 0
  %212 = vmatpush.bf16.msra.mxu0 0
  %213 = vmatpush.bf16.msra.mxu0 0
  %214 = vmatpush.bf16.msra.mxu0 0
  %215 = vmatpush.bf16.msra.mxu0 %v104
  %216 = vmatmul.bf16.gmra.mxu0 %v89
  %v217 = vpop.f32.mrf.mxu0
  %v218 = vadd.f32 %v31, %v217
  %v219 = vpop.f32.mrf.mxu0
  %v220 = vadd.f32 %v31, %v219
  %221 = vdwg.mxu0
  %222 = vmatpush.bf16.msra.mxu0 0
  %223 = vmatpush.bf16.msra.mxu0 0
  %224 = vmatpush.bf16.msra.mxu0 0
  %225 = vmatpush.bf16.msra.mxu0 0
  %226 = vmatpush.bf16.msra.mxu0 0
  %227 = vmatpush.bf16.msra.mxu0 0
  %228 = vmatpush.bf16.msra.mxu0 0
  %229 = vmatpush.bf16.msra.mxu0 %v106
  %230 = vmatmul.bf16.gmra.mxu0 %v89
  %v231 = vpop.f32.mrf.mxu0
  %v232 = vadd.f32 %v32, %v231
  %v233 = vpop.f32.mrf.mxu0
  %v234 = vadd.f32 %v32, %v233
  %235 = vdwg.mxu0
  %236 = vmatpush.bf16.msra.mxu0 0
  %237 = vmatpush.bf16.msra.mxu0 0
  %238 = vmatpush.bf16.msra.mxu0 0
  %239 = vmatpush.bf16.msra.mxu0 0
  %240 = vmatpush.bf16.msra.mxu0 0
  %241 = vmatpush.bf16.msra.mxu0 0
  %242 = vmatpush.bf16.msra.mxu0 0
  %243 = vmatpush.bf16.msra.mxu0 %v108
  %244 = vmatmul.bf16.gmra.mxu0 %v89
  %v245 = vpop.f32.mrf.mxu0
  %v246 = vadd.f32 %v33, %v245
  %v247 = vpop.f32.mrf.mxu0
  %v248 = vadd.f32 %v33, %v247
  %249 = vdwg.mxu0
  %250 = vmatpush.bf16.msra.mxu0 0
  %251 = vmatpush.bf16.msra.mxu0 0
  %252 = vmatpush.bf16.msra.mxu0 0
  %253 = vmatpush.bf16.msra.mxu0 0
  %254 = vmatpush.bf16.msra.mxu0 0
  %255 = vmatpush.bf16.msra.mxu0 0
  %256 = vmatpush.bf16.msra.mxu0 0
  %257 = vmatpush.bf16.msra.mxu0 %v110
  %258 = vmatmul.bf16.gmra.mxu0 %v89
  %v259 = vpop.f32.mrf.mxu0
  %v260 = vadd.f32 %v34, %v259
  %v261 = vpop.f32.mrf.mxu0
  %v262 = vadd.f32 %v34, %v261
  %263 = vdwg.mxu0
  %264 = vmatpush.bf16.msra.mxu0 0
  %265 = vmatpush.bf16.msra.mxu0 0
  %266 = vmatpush.bf16.msra.mxu0 0
  %267 = vmatpush.bf16.msra.mxu0 0
  %268 = vmatpush.bf16.msra.mxu0 0
  %269 = vmatpush.bf16.msra.mxu0 0
  %270 = vmatpush.bf16.msra.mxu0 0
  %271 = vmatpush.bf16.msra.mxu0 %v112
  %272 = vmatmul.bf16.gmra.mxu0 %v89
  %v273 = vpop.f32.mrf.mxu0
  %v274 = vadd.f32 %v35, %v273
  %v275 = vpop.f32.mrf.mxu0
  %v276 = vadd.f32 %v35, %v275
  %277 = vdwg.mxu0
  %278 = vmatpush.bf16.msra.mxu0 0
  %279 = vmatpush.bf16.msra.mxu0 0
  %280 = vmatpush.bf16.msra.mxu0 0
  %281 = vmatpush.bf16.msra.mxu0 0
  %282 = vmatpush.bf16.msra.mxu0 0
  %283 = vmatpush.bf16.msra.mxu0 0
  %284 = vmatpush.bf16.msra.mxu0 0
  %285 = vmatpush.bf16.msra.mxu0 %v114
  %286 = vmatmul.bf16.gmra.mxu0 %v89
  %v287 = vpop.f32.mrf.mxu0
  %v288 = vadd.f32 %v36, %v287
  %v289 = vpop.f32.mrf.mxu0
  %v290 = vadd.f32 %v36, %v289
  %291 = vdwg.mxu0
  %292 = vmatpush.bf16.msra.mxu0 0
  %293 = vmatpush.bf16.msra.mxu0 0
  %294 = vmatpush.bf16.msra.mxu0 0
  %295 = vmatpush.bf16.msra.mxu0 0
  %296 = vmatpush.bf16.msra.mxu0 0
  %297 = vmatpush.bf16.msra.mxu0 0
  %298 = vmatpush.bf16.msra.mxu0 0
  %299 = vmatpush.bf16.msra.mxu0 %v116
  %300 = vmatmul.bf16.gmra.mxu0 %v89
  %v301 = vpop.f32.mrf.mxu0
  %v302 = vadd.f32 %v37, %v301
  %v303 = vpop.f32.mrf.mxu0
  %v304 = vadd.f32 %v37, %v303
  %305 = vdwg.mxu0
  %306 = vmatpush.bf16.msra.mxu0 0
  %307 = vmatpush.bf16.msra.mxu0 0
  %308 = vmatpush.bf16.msra.mxu0 0
  %309 = vmatpush.bf16.msra.mxu0 0
  %310 = vmatpush.bf16.msra.mxu0 0
  %311 = vmatpush.bf16.msra.mxu0 0
  %312 = vmatpush.bf16.msra.mxu0 0
  %313 = vmatpush.bf16.msra.mxu0 %v118
  %314 = vmatmul.bf16.gmra.mxu0 %v89
  %v315 = vpop.f32.mrf.mxu0
  %v316 = vadd.f32 %v38, %v315
  %v317 = vpop.f32.mrf.mxu0
  %v318 = vadd.f32 %v38, %v317
  %319 = vdwg.mxu0
  %320 = vmatpush.bf16.msra.mxu0 0
  %321 = vmatpush.bf16.msra.mxu0 0
  %322 = vmatpush.bf16.msra.mxu0 0
  %323 = vmatpush.bf16.msra.mxu0 0
  %324 = vmatpush.bf16.msra.mxu0 0
  %325 = vmatpush.bf16.msra.mxu0 0
  %326 = vmatpush.bf16.msra.mxu0 0
  %327 = vmatpush.bf16.msra.mxu0 %v120
  %328 = vmatmul.bf16.gmra.mxu0 %v89
  %v329 = vpop.f32.mrf.mxu0
  %v330 = vadd.f32 %v39, %v329
  %v331 = vpop.f32.mrf.mxu0
  %v332 = vadd.f32 %v39, %v331
  %333 = vdwg.mxu0
  %334 = vmatpush.bf16.msra.mxu0 0
  %335 = vmatpush.bf16.msra.mxu0 0
  %336 = vmatpush.bf16.msra.mxu0 0
  %337 = vmatpush.bf16.msra.mxu0 0
  %338 = vmatpush.bf16.msra.mxu0 0
  %339 = vmatpush.bf16.msra.mxu0 0
  %340 = vmatpush.bf16.msra.mxu0 0
  %341 = vmatpush.bf16.msra.mxu0 %v122
  %342 = vmatmul.bf16.gmra.mxu0 %v89
  %v343 = vpop.f32.mrf.mxu0
  %v344 = vadd.f32 %v40, %v343
  %v345 = vpop.f32.mrf.mxu0
  %v346 = vadd.f32 %v40, %v345
  %347 = vdwg.mxu0
  %v348 = vpack.c.bf16 %v148, %v134
  %v349 = vpack.c.bf16 %v176, %v162
  %v350 = vpack.c.bf16 %v204, %v190
  %v351 = vpack.c.bf16 %v232, %v218
  %v352 = vpack.c.bf16 %v260, %v246
  %v353 = vpack.c.bf16 %v288, %v274
  %v354 = vpack.c.bf16 %v316, %v302
  %v355 = vpack.c.bf16 %v344, %v330
  %v356 = vpack.c.bf16 %v150, %v136
  %v357 = vpack.c.bf16 %v178, %v164
  %v358 = vpack.c.bf16 %v206, %v192
  %v359 = vpack.c.bf16 %v234, %v220
  %v360 = vpack.c.bf16 %v262, %v248
  %v361 = vpack.c.bf16 %v290, %v276
  %v362 = vpack.c.bf16 %v318, %v304
  %v363 = vpack.c.bf16 %v346, %v332
  %364 = vst [vmem:[%s3] sm:$0xff] %v348
  %365 = vst [vmem:[%s3 + $0x8] sm:$0xff] %v349
  %366 = vst [vmem:[%s3 + $0x10] sm:$0xff] %v350
  %367 = vst [vmem:[%s3 + $0x18] sm:$0xff] %v351
  %368 = vst [vmem:[%s3 + $0x20] sm:$0xff] %v352
  %369 = vst [vmem:[%s3 + $0x28] sm:$0xff] %v353
  %370 = vst [vmem:[%s3 + $0x30] sm:$0xff] %v354
  %371 = vst [vmem:[%s3 + $0x38] sm:$0xff] %v355
  %372 = vst [vmem:[%s3 + $0x40] sm:$0xff] %v356
  %373 = vst [vmem:[%s3 + $0x48] sm:$0xff] %v357
  %374 = vst [vmem:[%s3 + $0x50] sm:$0xff] %v358
  %375 = vst [vmem:[%s3 + $0x58] sm:$0xff] %v359
  %376 = vst [vmem:[%s3 + $0x60] sm:$0xff] %v360
  %377 = vst [vmem:[%s3 + $0x68] sm:$0xff] %v361
  %378 = vst [vmem:[%s3 + $0x70] sm:$0xff] %v362
  %379 = vst [vmem:[%s3 + $0x78] sm:$0xff] %v363
  // Predicated region
  $region14: #{deeplab_forward.30} parent=0 // pred_check
    _
  $region15: #{deeplab_forward.30} parent=0 // pred_check_branch
    %381 = sbr.rel (0) target = $region17
  $region16: #{deeplab_forward.30} parent=0 // pred_region
    _
  $region17: #{deeplab_forward.30} parent=0 // pred_fallthru
    _
  // Predicated region
  $region18: #{deeplab_forward.30} parent=0 // pred_check
    _
  $region19: #{deeplab_forward.30} parent=0 // pred_check_branch
    %383 = sbr.rel (0) target = $region21
  $region20: #{deeplab_forward.30} parent=0 // pred_region
    _
  $region21: #{deeplab_forward.30} parent=0 // pred_fallthru
    _

// kernel: deeplab_forward.28
$region0: #{deeplab_forward.28}
  #allocation0 [shape = 'u32[]', space=smem, size = 0x4, offset = 0x4, fixed_abs, tag = 'smem constant byte address 0x4 - core index']
  #allocation1 [shape = 'u32[72,128]{1,0:T(1,128)}', space=vmem, size = 0x9000, scoped, tag = 'internal scratch']
  %s0 = inlined_call_operand.vmem [shape: bf16[512,32], index: 0, kind: input, shape index: {}]
  %s1 = inlined_call_operand.vmem [shape: bf16[32,48], index: 1, kind: input, shape index: {}]
  %s2 = inlined_call_operand.vmem [shape: f32[1,48], index: 2, kind: input, shape index: {}]
  %s3 = inlined_call_operand.vmem [shape: bf16[512,48], index: 3, kind: output, shape index: {}]
  %s4 = sld [smem:[#allocation0]]
  $region45: #{deeplab_forward.28} parent=0
    _
  %s6 = ssub.s32 1, %s4
  %s7 = scalar_select 0, %s6, %s4
  loop: start=0, step=1, limit=4
  $region2: #{deeplab_forward.28} parent=0 // loop_pre_header
    _
  $region3: #{deeplab_forward.28} parent=0 // loop_header
    %s9 = sphi 0, %s13
    %p10 = scmp.ge.s32.totalorder %s9, 4
    %s19 = sphi 0, %s21
    %s22 = sphi 0, %s19
    %s23 = sphi 0, %s22
    %s39 = sphi 0, %s23
    %s43 = sphi 0, %s43
    %s45 = sphi 0, %s43
    %s46 = sphi 0, %s45
    %s60 = sphi 0, %s46
    %s64 = sphi 0, %s64
    %s66 = sphi 0, %s64
    %s67 = sphi 0, %s66
    %s81 = sphi 0, %s67
    %s87 = sphi 0, %s89
    %s90 = sphi 0, %s87
    %s91 = sphi 0, %s90
    %s107 = sphi 0, %s91
  $region4: #{deeplab_forward.28} parent=0 // loop_header_branch
    %12 = sbr.rel (%p10) target = $region8
  $region5: #{deeplab_forward.28} parent=0 // loop_body
    %s14 = ssub.s32 %s9, 1
    %s15 = ssub.s32 %s9, 2
    %s16 = sadd.s32 %s9, 1
    %s17 = ssub.s32 %s9, %s16
    %p18 = scmp.eq.s32.totalorder %s17, 0
    %s20 = sadd.s32 %s19, 1
    %s21 = scalar_select %p18, %s19, %s20
    %p24 = pneg %p18
    %p25 = scmp.eq.s32.totalorder %s9, 1
    %p26 = por %p24, %p25
    %p27 = scmp.ne.s32.totalorder %s19, %s22
    %p28 = scmp.eq.s32.totalorder %s9, 0
    %p29 = por %p27, %p28
    %p30 = scmp.ne.s32.totalorder %s19, %s22
    %p31 = scmp.eq.s32.totalorder %s14, 1
    %p32 = por %p30, %p31
    %p33 = scmp.ne.s32.totalorder %s22, %s23
    %p34 = scmp.eq.s32.totalorder %s14, 0
    %p35 = por %p33, %p34
    %p36 = scmp.ne.s32.totalorder %s22, %s23
    %p37 = scmp.eq.s32.totalorder %s15, 1
    %p38 = por %p36, %p37
    %p40 = scmp.ne.s32.totalorder %s23, %s39
    %p41 = scmp.eq.s32.totalorder %s15, 0
    %p42 = por %p40, %p41
    %s44 = sadd.s32 %s43, 1
    %p47 = scmp.eq.s32.totalorder %s9, 1
    %p48 = scmp.ne.s32.totalorder %s43, %s45
    %p49 = scmp.eq.s32.totalorder %s9, 0
    %p50 = por %p48, %p49
    %p51 = scmp.ne.s32.totalorder %s43, %s45
    %p52 = scmp.eq.s32.totalorder %s14, 1
    %p53 = por %p51, %p52
    %p54 = scmp.ne.s32.totalorder %s45, %s46
    %p55 = scmp.eq.s32.totalorder %s14, 0
    %p56 = por %p54, %p55
    %p57 = scmp.ne.s32.totalorder %s45, %s46
    %p58 = scmp.eq.s32.totalorder %s15, 1
    %p59 = por %p57, %p58
    %p61 = scmp.ne.s32.totalorder %s46, %s60
    %p62 = scmp.eq.s32.totalorder %s15, 0
    %p63 = por %p61, %p62
    %s65 = sadd.s32 %s64, 1
    %p68 = scmp.eq.s32.totalorder %s9, 1
    %p69 = scmp.ne.s32.totalorder %s64, %s66
    %p70 = scmp.eq.s32.totalorder %s9, 0
    %p71 = por %p69, %p70
    %p72 = scmp.ne.s32.totalorder %s64, %s66
    %p73 = scmp.eq.s32.totalorder %s14, 1
    %p74 = por %p72, %p73
    %p75 = scmp.ne.s32.totalorder %s66, %s67
    %p76 = scmp.eq.s32.totalorder %s14, 0
    %p77 = por %p75, %p76
    %p78 = scmp.ne.s32.totalorder %s66, %s67
    %p79 = scmp.eq.s32.totalorder %s15, 1
    %p80 = por %p78, %p79
    %p82 = scmp.ne.s32.totalorder %s67, %s81
    %p83 = scmp.eq.s32.totalorder %s15, 0
    %p84 = por %p82, %p83
    %s85 = ssub.s32 %s9, %s16
    %p86 = scmp.eq.s32.totalorder %s85, 0
    %s88 = sadd.s32 %s87, 1
    %s89 = scalar_select %p86, %s87, %s88
    %p92 = pneg %p86
    %p93 = scmp.eq.s32.totalorder %s9, 1
    %p94 = por %p92, %p93
    %p95 = scmp.ne.s32.totalorder %s87, %s90
    %p96 = scmp.eq.s32.totalorder %s9, 0
    %p97 = por %p95, %p96
    %p98 = scmp.ne.s32.totalorder %s87, %s90
    %p99 = scmp.eq.s32.totalorder %s14, 1
    %p100 = por %p98, %p99
    %p101 = scmp.ne.s32.totalorder %s90, %s91
    %p102 = scmp.eq.s32.totalorder %s14, 0
    %p103 = por %p101, %p102
    %p104 = scmp.ne.s32.totalorder %s90, %s91
    %p105 = scmp.eq.s32.totalorder %s15, 1
    %p106 = por %p104, %p105
    %p108 = scmp.ne.s32.totalorder %s91, %s107
    %p109 = scmp.eq.s32.totalorder %s15, 0
    %p110 = por %p108, %p109
    %p111 = scmp.le.s32.totalorder 1, %s9
    %p112 = scmp.lt.s32.totalorder %s9, 3
    %p113 = pnand %p111, %p112
    %p114 = pneg %p113
    // Predicated region
    $region9: #{deeplab_forward.28} parent=5 // pred_check
      _
    $region10: #{deeplab_forward.28} parent=5 // pred_check_branch
      %116 = sbr.rel (%p113) target = $region12
    $region11: #{deeplab_forward.28} parent=5 // pred_region
      %s117 = ssub.s32 %s9, 1
      // Predicated region
      $region13: #{deeplab_forward.28} parent=11 // pred_check
        %p118 = pneg %p56
      $region14: #{deeplab_forward.28} parent=11 // pred_check_branch
        %120 = sbr.rel (%p118) target = $region16
      $region15: #{deeplab_forward.28} parent=11 // pred_region
        _
      $region16: #{deeplab_forward.28} parent=11 // pred_fallthru
        _
      // Predicated region
      $region17: #{deeplab_forward.28} parent=11 // pred_check
        %p121 = pneg %p77
      $region18: #{deeplab_forward.28} parent=11 // pred_check_branch
        %123 = sbr.rel (%p121) target = $region20
      $region19: #{deeplab_forward.28} parent=11 // pred_region
        _
      $region20: #{deeplab_forward.28} parent=11 // pred_fallthru
        _
    $region12: #{deeplab_forward.28} parent=5 // pred_fallthru
      _
    %p124 = scmp.lt.s32.totalorder %s9, 2
    // Predicated region
    $region21: #{deeplab_forward.28} parent=5 // pred_check
      %p125 = pneg %p124
    $region22: #{deeplab_forward.28} parent=5 // pred_check_branch
      %127 = sbr.rel (%p125) target = $region24
    $region23: #{deeplab_forward.28} parent=5 // pred_region
      // Predicated region
      $region25: #{deeplab_forward.28} parent=23 // pred_check
        %p128 = pneg %p29
      $region26: #{deeplab_forward.28} parent=23 // pred_check_branch
        %130 = sbr.rel (%p128) target = $region28
      $region27: #{deeplab_forward.28} parent=23 // pred_region
        %s131 = smul.u32 32, %s9
        %p132 = scmp.lt.s32.totalorder %s131, 63
        %s133 = scalar_select %p132, %s131, 63
        %s134 = smul.addr %s133, 4
        %s135 = scalar_lea.vmem %s0, %s134
        %s136 = smul.u32 32, %s9
      $region28: #{deeplab_forward.28} parent=23 // pred_fallthru
        _
    $region24: #{deeplab_forward.28} parent=5 // pred_fallthru
      _
    %p137 = scmp.le.s32.totalorder 1, %s9
    %p138 = scmp.lt.s32.totalorder %s9, 3
    %p139 = pnand %p137, %p138
    %p140 = pneg %p139
    // Predicated region
    $region29: #{deeplab_forward.28} parent=5 // pred_check
      _
    $region30: #{deeplab_forward.28} parent=5 // pred_check_branch
      %142 = sbr.rel (%p139) target = $region32
    $region31: #{deeplab_forward.28} parent=5 // pred_region
      %s143 = ssub.s32 %s9, 1
      %s144 = smul.u32 32, %s14
      %p145 = scmp.lt.s32.totalorder %s144, 63
      %s146 = scalar_select %p145, %s144, 63
      %s147 = smul.addr %s146, 4
      %s148 = scalar_lea.vmem %s0, %s147
      %p149 = pneg %p35
      %p150 = pneg %p32
      %p151 = pneg %p56
      %p152 = pneg %p53
      %p153 = pneg %p77
      %p154 = pneg %p74
      %p155 = pneg %p103
      %p156 = pneg %p100
      %s157 = smul.u32 32, %s14
      %p158 = scmp.lt.s32.totalorder %s157, 63
      %s159 = scalar_select %p158, %s157, 63
      %s160 = smul.addr %s159, 4
      %s161 = scalar_lea.vmem %s3, %s160
      %s162 = smul.u32 32, %s14
      %p163 = scmp.lt.s32.totalorder %s162, 63
      %s164 = scalar_select %p163, %s162, 63
      %s165 = smul.addr %s164, 4
      %s166 = scalar_lea.vmem %s0, %s165
      %s167 = smul.u32 32, %s14
      %s168 = smul.u32 32, %s14
      %p169 = scmp.lt.s32.totalorder %s168, 63
      %s170 = scalar_select %p169, %s168, 63
      %s171 = smul.addr %s170, 4
      %s172 = scalar_lea.vmem %s3, %s171
      %s173 = smul.u32 32, %s14
      %v175 = vld [vmem:[%s166] sm:$0xf]
      %v176 = vld [vmem:[%s166 + $0x4] sm:$0xf]
      %v177 = vld [vmem:[%s166 + $0x8] sm:$0xf]
      %v178 = vld [vmem:[%s166 + $0xc] sm:$0xf]
      %v179 = vld [vmem:[%s166 + $0x10] sm:$0xf]
      %v180 = vld [vmem:[%s166 + $0x14] sm:$0xf]
      %v181 = vld [vmem:[%s166 + $0x18] sm:$0xf]
      %v182 = vld [vmem:[%s166 + $0x1c] sm:$0xf]
      %v183 = vld [vmem:[%s166 + $0x20] sm:$0xf]
      %v184 = vld [vmem:[%s166 + $0x24] sm:$0xf]
      %v185 = vld [vmem:[%s166 + $0x28] sm:$0xf]
      %v186 = vld [vmem:[%s166 + $0x2c] sm:$0xf]
      %v187 = vld [vmem:[%s166 + $0x30] sm:$0xf]
      %v188 = vld [vmem:[%s166 + $0x34] sm:$0xf]
      %v189 = vld [vmem:[%s166 + $0x38] sm:$0xf]
      %v190 = vld [vmem:[%s166 + $0x3c] sm:$0xf]
      %v191 = vld [vmem:[%s166 + $0x40] sm:$0xf]
      %v192 = vld [vmem:[%s166 + $0x44] sm:$0xf]
      %v193 = vld [vmem:[%s166 + $0x48] sm:$0xf]
      %v194 = vld [vmem:[%s166 + $0x4c] sm:$0xf]
      %v195 = vld [vmem:[%s166 + $0x50] sm:$0xf]
      %v196 = vld [vmem:[%s166 + $0x54] sm:$0xf]
      %v197 = vld [vmem:[%s166 + $0x58] sm:$0xf]
      %v198 = vld [vmem:[%s166 + $0x5c] sm:$0xf]
      %v199 = vld [vmem:[%s166 + $0x60] sm:$0xf]
      %v200 = vld [vmem:[%s166 + $0x64] sm:$0xf]
      %v201 = vld [vmem:[%s166 + $0x68] sm:$0xf]
      %v202 = vld [vmem:[%s166 + $0x6c] sm:$0xf]
      %v203 = vld [vmem:[%s166 + $0x70] sm:$0xf]
      %v204 = vld [vmem:[%s166 + $0x74] sm:$0xf]
      %v205 = vld [vmem:[%s166 + $0x78] sm:$0xf]
      %v206 = vld [vmem:[%s166 + $0x7c] sm:$0xf]
      %v207 = vld [vmem:[%s1] sm:$0xf]
      %v208 = vld [vmem:[%s1 + $0x4] sm:$0xf]
      %v209 = vld [vmem:[%s1 + $0x8] sm:$0xf]
      %v210 = vld [vmem:[%s1 + $0xc] sm:$0xf]
      %v211 = vld [vmem:[%s2] sm:$0x1]
      %v213 = vperm.slane %v211, 0
      %v247 = vunpack.c.l.b16 %v175
      %v248 = vunpack.c.l.b16 %v176
      %v249 = vunpack.c.l.b16 %v177
      %v250 = vunpack.c.l.b16 %v178
      %v251 = vunpack.c.l.b16 %v179
      %v252 = vunpack.c.l.b16 %v180
      %v253 = vunpack.c.l.b16 %v181
      %v254 = vunpack.c.l.b16 %v182
      %v255 = vunpack.c.l.b16 %v183
      %v256 = vunpack.c.l.b16 %v184
      %v257 = vunpack.c.l.b16 %v185
      %v258 = vunpack.c.l.b16 %v186
      %v259 = vunpack.c.l.b16 %v187
      %v260 = vunpack.c.l.b16 %v188
      %v261 = vunpack.c.l.b16 %v189
      %v262 = vunpack.c.l.b16 %v190
      %v263 = vunpack.c.l.b16 %v191
      %v264 = vunpack.c.l.b16 %v192
      %v265 = vunpack.c.l.b16 %v193
      %v266 = vunpack.c.l.b16 %v194
      %v267 = vunpack.c.l.b16 %v195
      %v268 = vunpack.c.l.b16 %v196
      %v269 = vunpack.c.l.b16 %v197
      %v270 = vunpack.c.l.b16 %v198
      %v271 = vunpack.c.l.b16 %v199
      %v272 = vunpack.c.l.b16 %v200
      %v273 = vunpack.c.l.b16 %v201
      %v274 = vunpack.c.l.b16 %v202
      %v275 = vunpack.c.l.b16 %v203
      %v276 = vunpack.c.l.b16 %v204
      %v277 = vunpack.c.l.b16 %v205
      %v278 = vunpack.c.l.b16 %v206
      %v279 = vpack.c.b16 %v248, %v247
      %v280 = vpack.c.b16 %v250, %v249
      %v281 = vpack.c.b16 %v252, %v251
      %v282 = vpack.c.b16 %v254, %v253
      %v283 = vpack.c.b16 %v256, %v255
      %v284 = vpack.c.b16 %v258, %v257
      %v285 = vpack.c.b16 %v260, %v259
      %v286 = vpack.c.b16 %v262, %v261
      %v287 = vpack.c.b16 %v264, %v263
      %v288 = vpack.c.b16 %v266, %v265
      %v289 = vpack.c.b16 %v268, %v267
      %v290 = vpack.c.b16 %v270, %v269
      %v291 = vpack.c.b16 %v272, %v271
      %v292 = vpack.c.b16 %v274, %v273
      %v293 = vpack.c.b16 %v276, %v275
      %v294 = vpack.c.b16 %v278, %v277
      %v299 = vunpack.c.l.b16 %v207
      %v300 = vunpack.c.l.b16 %v208
      %v301 = vunpack.c.l.b16 %v209
      %v302 = vunpack.c.l.b16 %v210
      %v303 = vpack.c.b16 %v300, %v299
      %v304 = vpack.c.b16 %v302, %v301
      %vm307 = vcmask 261120
      %v309 = vsel %vm307, %v279, 0
      %v312 = vsel %vm307, %v280, 0
      %v315 = vsel %vm307, %v281, 0
      %v318 = vsel %vm307, %v282, 0
      %v321 = vsel %vm307, %v283, 0
      %v324 = vsel %vm307, %v284, 0
      %v327 = vsel %vm307, %v285, 0
      %v330 = vsel %vm307, %v286, 0
      %v333 = vsel %vm307, %v287, 0
      %v336 = vsel %vm307, %v288, 0
      %v339 = vsel %vm307, %v289, 0
      %v342 = vsel %vm307, %v290, 0
      %v345 = vsel %vm307, %v291, 0
      %v348 = vsel %vm307, %v292, 0
      %v351 = vsel %vm307, %v293, 0
      %v354 = vsel %vm307, %v294, 0
      %356 = vmatpush.bf16.msra.mxu0 0
      %357 = vmatpush.bf16.msra.mxu0 0
      %358 = vmatpush.bf16.msra.mxu0 0
      %359 = vmatpush.bf16.msra.mxu0 0
      %360 = vmatpush.bf16.msra.mxu0 0
      %361 = vmatpush.bf16.msra.mxu0 0
      %362 = vmatpush.bf16.msra.mxu0 %v304
      %363 = vmatpush.bf16.msra.mxu0 %v303
      %364 = vmatmul.bf16.gmra.mxu0 %v309
      %v365 = vpop.f32.mrf.mxu0
      %v366 = vadd.f32 %v213, %v365
      %v367 = vpop.f32.mrf.mxu0
      %v368 = vadd.f32 %v213, %v367
      %369 = vmatmul.bf16.gmra.mxu0 %v312
      %v370 = vpop.f32.mrf.mxu0
      %v371 = vadd.f32 %v213, %v370
      %v372 = vpop.f32.mrf.mxu0
      %v373 = vadd.f32 %v213, %v372
      %374 = vmatmul.bf16.gmra.mxu0 %v315
      %v375 = vpop.f32.mrf.mxu0
      %v376 = vadd.f32 %v213, %v375
      %v377 = vpop.f32.mrf.mxu0
      %v378 = vadd.f32 %v213, %v377
      %379 = vmatmul.bf16.gmra.mxu0 %v318
      %v380 = vpop.f32.mrf.mxu0
      %v381 = vadd.f32 %v213, %v380
      %v382 = vpop.f32.mrf.mxu0
      %v383 = vadd.f32 %v213, %v382
      %384 = vmatmul.bf16.gmra.mxu0 %v321
      %v385 = vpop.f32.mrf.mxu0
      %v386 = vadd.f32 %v213, %v385
      %v387 = vpop.f32.mrf.mxu0
      %v388 = vadd.f32 %v213, %v387
      %389 = vmatmul.bf16.gmra.mxu0 %v324
      %v390 = vpop.f32.mrf.mxu0
      %v391 = vadd.f32 %v213, %v390
      %v392 = vpop.f32.mrf.mxu0
      %v393 = vadd.f32 %v213, %v392
      %394 = vmatmul.bf16.gmra.mxu0 %v327
      %v395 = vpop.f32.mrf.mxu0
      %v396 = vadd.f32 %v213, %v395
      %v397 = vpop.f32.mrf.mxu0
      %v398 = vadd.f32 %v213, %v397
      %399 = vmatmul.bf16.gmra.mxu0 %v330
      %v400 = vpop.f32.mrf.mxu0
      %v401 = vadd.f32 %v213, %v400
      %v402 = vpop.f32.mrf.mxu0
      %v403 = vadd.f32 %v213, %v402
      %404 = vmatmul.bf16.gmra.mxu0 %v333
      %v405 = vpop.f32.mrf.mxu0
      %v406 = vadd.f32 %v213, %v405
      %v407 = vpop.f32.mrf.mxu0
      %v408 = vadd.f32 %v213, %v407
      %409 = vmatmul.bf16.gmra.mxu0 %v336
      %v410 = vpop.f32.mrf.mxu0
      %v411 = vadd.f32 %v213, %v410
      %v412 = vpop.f32.mrf.mxu0
      %v413 = vadd.f32 %v213, %v412
      %414 = vmatmul.bf16.gmra.mxu0 %v339
      %v415 = vpop.f32.mrf.mxu0
      %v416 = vadd.f32 %v213, %v415
      %v417 = vpop.f32.mrf.mxu0
      %v418 = vadd.f32 %v213, %v417
      %419 = vmatmul.bf16.gmra.mxu0 %v342
      %v420 = vpop.f32.mrf.mxu0
      %v421 = vadd.f32 %v213, %v420
      %v422 = vpop.f32.mrf.mxu0
      %v423 = vadd.f32 %v213, %v422
      %424 = vmatmul.bf16.gmra.mxu0 %v345
      %v425 = vpop.f32.mrf.mxu0
      %v426 = vadd.f32 %v213, %v425
      %v427 = vpop.f32.mrf.mxu0
      %v428 = vadd.f32 %v213, %v427
      %429 = vmatmul.bf16.gmra.mxu0 %v348
      %v430 = vpop.f32.mrf.mxu0
      %v431 = vadd.f32 %v213, %v430
      %v432 = vpop.f32.mrf.mxu0
      %v433 = vadd.f32 %v213, %v432
      %434 = vmatmul.bf16.gmra.mxu0 %v351
      %v435 = vpop.f32.mrf.mxu0
      %v436 = vadd.f32 %v213, %v435
      %v437 = vpop.f32.mrf.mxu0
      %v438 = vadd.f32 %v213, %v437
      %439 = vmatmul.bf16.gmra.mxu0 %v354
      %v440 = vpop.f32.mrf.mxu0
      %v441 = vadd.f32 %v213, %v440
      %v442 = vpop.f32.mrf.mxu0
      %v443 = vadd.f32 %v213, %v442
      %444 = vdwg.mxu0
      %v445 = vmax.f32 %v366, 0.0
      %v446 = vmax.f32 %v368, 0.0
      %v447 = vmax.f32 %v371, 0.0
      %v448 = vmax.f32 %v373, 0.0
      %v449 = vmax.f32 %v376, 0.0
      %v450 = vmax.f32 %v378, 0.0
      %v451 = vmax.f32 %v381, 0.0
      %v452 = vmax.f32 %v383, 0.0
      %v453 = vmax.f32 %v386, 0.0
      %v454 = vmax.f32 %v388, 0.0
      %v455 = vmax.f32 %v391, 0.0
      %v456 = vmax.f32 %v393, 0.0
      %v457 = vmax.f32 %v396, 0.0
      %v458 = vmax.f32 %v398, 0.0
      %v459 = vmax.f32 %v401, 0.0
      %v460 = vmax.f32 %v403, 0.0
      %v461 = vmax.f32 %v406, 0.0
      %v462 = vmax.f32 %v408, 0.0
      %v463 = vmax.f32 %v411, 0.0
      %v464 = vmax.f32 %v413, 0.0
      %v465 = vmax.f32 %v416, 0.0
      %v466 = vmax.f32 %v418, 0.0
      %v467 = vmax.f32 %v421, 0.0
      %v468 = vmax.f32 %v423, 0.0
      %v469 = vmax.f32 %v426, 0.0
      %v470 = vmax.f32 %v428, 0.0
      %v471 = vmax.f32 %v431, 0.0
      %v472 = vmax.f32 %v433, 0.0
      %v473 = vmax.f32 %v436, 0.0
      %v474 = vmax.f32 %v438, 0.0
      %v475 = vmax.f32 %v441, 0.0
      %v476 = vmax.f32 %v443, 0.0
      %v477 = vpack.c.bf16 %v445, %v445
      %v478 = vpack.c.bf16 %v446, %v446
      %v479 = vpack.c.bf16 %v447, %v447
      %v480 = vpack.c.bf16 %v448, %v448
      %v481 = vpack.c.bf16 %v449, %v449
      %v482 = vpack.c.bf16 %v450, %v450
      %v483 = vpack.c.bf16 %v451, %v451
      %v484 = vpack.c.bf16 %v452, %v452
      %v485 = vpack.c.bf16 %v453, %v453
      %v486 = vpack.c.bf16 %v454, %v454
      %v487 = vpack.c.bf16 %v455, %v455
      %v488 = vpack.c.bf16 %v456, %v456
      %v489 = vpack.c.bf16 %v457, %v457
      %v490 = vpack.c.bf16 %v458, %v458
      %v491 = vpack.c.bf16 %v459, %v459
      %v492 = vpack.c.bf16 %v460, %v460
      %v493 = vpack.c.bf16 %v461, %v461
      %v494 = vpack.c.bf16 %v462, %v462
      %v495 = vpack.c.bf16 %v463, %v463
      %v496 = vpack.c.bf16 %v464, %v464
      %v497 = vpack.c.bf16 %v465, %v465
      %v498 = vpack.c.bf16 %v466, %v466
      %v499 = vpack.c.bf16 %v467, %v467
      %v500 = vpack.c.bf16 %v468, %v468
      %v501 = vpack.c.bf16 %v469, %v469
      %v502 = vpack.c.bf16 %v470, %v470
      %v503 = vpack.c.bf16 %v471, %v471
      %v504 = vpack.c.bf16 %v472, %v472
      %v505 = vpack.c.bf16 %v473, %v473
      %v506 = vpack.c.bf16 %v474, %v474
      %v507 = vpack.c.bf16 %v475, %v475
      %v508 = vpack.c.bf16 %v476, %v476
      %vm509 = vcmask 388096
      %510 = vst.msk [vmem:[%s172] sm:$0xf] %vm509, %v477
      %511 = vst.msk [vmem:[%s172 + $0x4] sm:$0xf] %vm509, %v478
      %512 = vst.msk [vmem:[%s172 + $0x8] sm:$0xf] %vm509, %v479
      %513 = vst.msk [vmem:[%s172 + $0xc] sm:$0xf] %vm509, %v480
      %514 = vst.msk [vmem:[%s172 + $0x10] sm:$0xf] %vm509, %v481
      %515 = vst.msk [vmem:[%s172 + $0x14] sm:$0xf] %vm509, %v482
      %516 = vst.msk [vmem:[%s172 + $0x18] sm:$0xf] %vm509, %v483
      %517 = vst.msk [vmem:[%s172 + $0x1c] sm:$0xf] %vm509, %v484
      %518 = vst.msk [vmem:[%s172 + $0x20] sm:$0xf] %vm509, %v485
      %519 = vst.msk [vmem:[%s172 + $0x24] sm:$0xf] %vm509, %v486
      %520 = vst.msk [vmem:[%s172 + $0x28] sm:$0xf] %vm509, %v487
      %521 = vst.msk [vmem:[%s172 + $0x2c] sm:$0xf] %vm509, %v488
      %522 = vst.msk [vmem:[%s172 + $0x30] sm:$0xf] %vm509, %v489
      %523 = vst.msk [vmem:[%s172 + $0x34] sm:$0xf] %vm509, %v490
      %524 = vst.msk [vmem:[%s172 + $0x38] sm:$0xf] %vm509, %v491
      %525 = vst.msk [vmem:[%s172 + $0x3c] sm:$0xf] %vm509, %v492
      %526 = vst.msk [vmem:[%s172 + $0x40] sm:$0xf] %vm509, %v493
      %527 = vst.msk [vmem:[%s172 + $0x44] sm:$0xf] %vm509, %v494
      %528 = vst.msk [vmem:[%s172 + $0x48] sm:$0xf] %vm509, %v495
      %529 = vst.msk [vmem:[%s172 + $0x4c] sm:$0xf] %vm509, %v496
      %530 = vst.msk [vmem:[%s172 + $0x50] sm:$0xf] %vm509, %v497
      %531 = vst.msk [vmem:[%s172 + $0x54] sm:$0xf] %vm509, %v498
      %532 = vst.msk [vmem:[%s172 + $0x58] sm:$0xf] %vm509, %v499
      %533 = vst.msk [vmem:[%s172 + $0x5c] sm:$0xf] %vm509, %v500
      %534 = vst.msk [vmem:[%s172 + $0x60] sm:$0xf] %vm509, %v501
      %535 = vst.msk [vmem:[%s172 + $0x64] sm:$0xf] %vm509, %v502
      %536 = vst.msk [vmem:[%s172 + $0x68] sm:$0xf] %vm509, %v503
      %537 = vst.msk [vmem:[%s172 + $0x6c] sm:$0xf] %vm509, %v504
      %538 = vst.msk [vmem:[%s172 + $0x70] sm:$0xf] %vm509, %v505
      %539 = vst.msk [vmem:[%s172 + $0x74] sm:$0xf] %vm509, %v506
      %540 = vst.msk [vmem:[%s172 + $0x78] sm:$0xf] %vm509, %v507
      %541 = vst.msk [vmem:[%s172 + $0x7c] sm:$0xf] %vm509, %v508
      %s542 = smul.u32 32, %s14
      %p543 = scmp.lt.s32.totalorder %s542, 63
      %s544 = scalar_select %p543, %s542, 63
      %s545 = smul.addr %s544, 4
      %s546 = scalar_lea.vmem %s3, %s545
      // Predicated region
      $region33: #{deeplab_forward.28} parent=31 // pred_check
        %p547 = pneg %p100
      $region34: #{deeplab_forward.28} parent=31 // pred_check_branch
        %549 = sbr.rel (%p547) target = $region36
      $region35: #{deeplab_forward.28} parent=31 // pred_region
        %s550 = smul.u32 32, %s14
      $region36: #{deeplab_forward.28} parent=31 // pred_fallthru
        _
    $region32: #{deeplab_forward.28} parent=5 // pred_fallthru
      _
    %p551 = scmp.le.s32.totalorder 2, %s9
    // Predicated region
    $region37: #{deeplab_forward.28} parent=5 // pred_check
      %p552 = pneg %p551
    $region38: #{deeplab_forward.28} parent=5 // pred_check_branch
      %554 = sbr.rel (%p552) target = $region40
    $region39: #{deeplab_forward.28} parent=5 // pred_region
      %s555 = ssub.s32 %s9, 2
      // Predicated region
      $region41: #{deeplab_forward.28} parent=39 // pred_check
        %p556 = pneg %p106
      $region42: #{deeplab_forward.28} parent=39 // pred_check_branch
        %558 = sbr.rel (%p556) target = $region44
      $region43: #{deeplab_forward.28} parent=39 // pred_region
        %s559 = smul.u32 32, %s15
        %p560 = scmp.lt.s32.totalorder %s559, 63
        %s561 = scalar_select %p560, %s559, 63
        %s562 = smul.addr %s561, 4
        %s563 = scalar_lea.vmem %s3, %s562
      $region44: #{deeplab_forward.28} parent=39 // pred_fallthru
        _
    $region40: #{deeplab_forward.28} parent=5 // pred_fallthru
      _
  $region6: #{deeplab_forward.28} parent=0 // loop_footer
    %s13 = sadd.s32 1, %s9
  $region7: #{deeplab_forward.28} parent=0 // loop_footer_branch
    %8 = sbr.rel target = $region3
  $region8: #{deeplab_forward.28} parent=0 // loop_exit
    _

// kernel: deeplab_forward.31
$region0: #{deeplab_forward.31}
  #allocation0 [shape = 'u32[]', space=smem, size = 0x4, offset = 0x4, fixed_abs, tag = 'smem constant byte address 0x4 - core index']
  #allocation1 [shape = 'u32[72,128]{1,0:T(1,128)}', space=vmem, size = 0x9000, scoped, tag = 'internal scratch']
  %s0 = inlined_call_operand.vmem [shape: bf16[512,1008], index: 0, kind: input, shape index: {}]
  %s1 = inlined_call_operand.vmem [shape: bf16[1008,64], index: 1, kind: input, shape index: {}]
  %s2 = inlined_call_operand.vmem [shape: f32[1,64], index: 2, kind: input, shape index: {}]
  %s3 = inlined_call_operand.vmem [shape: bf16[512,64], index: 3, kind: output, shape index: {}]
  %s4 = sld [smem:[#allocation0]]
  $region45: #{deeplab_forward.31} parent=0
    _
  %s6 = ssub.s32 1, %s4
  %s7 = scalar_select 0, %s6, %s4
  loop: start=0, step=1, limit=4
  $region2: #{deeplab_forward.31} parent=0 // loop_pre_header
    _
  $region3: #{deeplab_forward.31} parent=0 // loop_header
    %s9 = sphi 0, %s13
    %p10 = scmp.ge.s32.totalorder %s9, 4
    %s19 = sphi 0, %s21
    %s22 = sphi 0, %s19
    %s23 = sphi 0, %s22
    %s39 = sphi 0, %s23
    %s43 = sphi 0, %s43
    %s45 = sphi 0, %s43
    %s46 = sphi 0, %s45
    %s60 = sphi 0, %s46
    %s64 = sphi 0, %s64
    %s66 = sphi 0, %s64
    %s67 = sphi 0, %s66
    %s81 = sphi 0, %s67
    %s87 = sphi 0, %s89
    %s90 = sphi 0, %s87
    %s91 = sphi 0, %s90
    %s107 = sphi 0, %s91
  $region4: #{deeplab_forward.31} parent=0 // loop_header_branch
    %12 = sbr.rel (%p10) target = $region8
  $region5: #{deeplab_forward.31} parent=0 // loop_body
    %s14 = ssub.s32 %s9, 1
    %s15 = ssub.s32 %s9, 2
    %s16 = sadd.s32 %s9, 1
    %s17 = ssub.s32 %s9, %s16
    %p18 = scmp.eq.s32.totalorder %s17, 0
    %s20 = sadd.s32 %s19, 1
    %s21 = scalar_select %p18, %s19, %s20
    %p24 = pneg %p18
    %p25 = scmp.eq.s32.totalorder %s9, 1
    %p26 = por %p24, %p25
    %p27 = scmp.ne.s32.totalorder %s19, %s22
    %p28 = scmp.eq.s32.totalorder %s9, 0
    %p29 = por %p27, %p28
    %p30 = scmp.ne.s32.totalorder %s19, %s22
    %p31 = scmp.eq.s32.totalorder %s14, 1
    %p32 = por %p30, %p31
    %p33 = scmp.ne.s32.totalorder %s22, %s23
    %p34 = scmp.eq.s32.totalorder %s14, 0
    %p35 = por %p33, %p34
    %p36 = scmp.ne.s32.totalorder %s22, %s23
    %p37 = scmp.eq.s32.totalorder %s15, 1
    %p38 = por %p36, %p37
    %p40 = scmp.ne.s32.totalorder %s23, %s39
    %p41 = scmp.eq.s32.totalorder %s15, 0
    %p42 = por %p40, %p41
    %s44 = sadd.s32 %s43, 1
    %p47 = scmp.eq.s32.totalorder %s9, 1
    %p48 = scmp.ne.s32.totalorder %s43, %s45
    %p49 = scmp.eq.s32.totalorder %s9, 0
    %p50 = por %p48, %p49
    %p51 = scmp.ne.s32.totalorder %s43, %s45
    %p52 = scmp.eq.s32.totalorder %s14, 1
    %p53 = por %p51, %p52
    %p54 = scmp.ne.s32.totalorder %s45, %s46
    %p55 = scmp.eq.s32.totalorder %s14, 0
    %p56 = por %p54, %p55
    %p57 = scmp.ne.s32.totalorder %s45, %s46
    %p58 = scmp.eq.s32.totalorder %s15, 1
    %p59 = por %p57, %p58
    %p61 = scmp.ne.s32.totalorder %s46, %s60
    %p62 = scmp.eq.s32.totalorder %s15, 0
    %p63 = por %p61, %p62
    %s65 = sadd.s32 %s64, 1
    %p68 = scmp.eq.s32.totalorder %s9, 1
    %p69 = scmp.ne.s32.totalorder %s64, %s66
    %p70 = scmp.eq.s32.totalorder %s9, 0
    %p71 = por %p69, %p70
    %p72 = scmp.ne.s32.totalorder %s64, %s66
    %p73 = scmp.eq.s32.totalorder %s14, 1
    %p74 = por %p72, %p73
    %p75 = scmp.ne.s32.totalorder %s66, %s67
    %p76 = scmp.eq.s32.totalorder %s14, 0
    %p77 = por %p75, %p76
    %p78 = scmp.ne.s32.totalorder %s66, %s67
    %p79 = scmp.eq.s32.totalorder %s15, 1
    %p80 = por %p78, %p79
    %p82 = scmp.ne.s32.totalorder %s67, %s81
    %p83 = scmp.eq.s32.totalorder %s15, 0
    %p84 = por %p82, %p83
    %s85 = ssub.s32 %s9, %s16
    %p86 = scmp.eq.s32.totalorder %s85, 0
    %s88 = sadd.s32 %s87, 1
    %s89 = scalar_select %p86, %s87, %s88
    %p92 = pneg %p86
    %p93 = scmp.eq.s32.totalorder %s9, 1
    %p94 = por %p92, %p93
    %p95 = scmp.ne.s32.totalorder %s87, %s90
    %p96 = scmp.eq.s32.totalorder %s9, 0
    %p97 = por %p95, %p96
    %p98 = scmp.ne.s32.totalorder %s87, %s90
    %p99 = scmp.eq.s32.totalorder %s14, 1
    %p100 = por %p98, %p99
    %p101 = scmp.ne.s32.totalorder %s90, %s91
    %p102 = scmp.eq.s32.totalorder %s14, 0
    %p103 = por %p101, %p102
    %p104 = scmp.ne.s32.totalorder %s90, %s91
    %p105 = scmp.eq.s32.totalorder %s15, 1
    %p106 = por %p104, %p105
    %p108 = scmp.ne.s32.totalorder %s91, %s107
    %p109 = scmp.eq.s32.totalorder %s15, 0
    %p110 = por %p108, %p109
    %p111 = scmp.le.s32.totalorder 1, %s9
    %p112 = scmp.lt.s32.totalorder %s9, 3
    %p113 = pnand %p111, %p112
    %p114 = pneg %p113
    // Predicated region
    $region9: #{deeplab_forward.31} parent=5 // pred_check
      _
    $region10: #{deeplab_forward.31} parent=5 // pred_check_branch
      %116 = sbr.rel (%p113) target = $region12
    $region11: #{deeplab_forward.31} parent=5 // pred_region
      %s117 = ssub.s32 %s9, 1
      // Predicated region
      $region13: #{deeplab_forward.31} parent=11 // pred_check
        %p118 = pneg %p56
      $region14: #{deeplab_forward.31} parent=11 // pred_check_branch
        %120 = sbr.rel (%p118) target = $region16
      $region15: #{deeplab_forward.31} parent=11 // pred_region
        _
      $region16: #{deeplab_forward.31} parent=11 // pred_fallthru
        _
      // Predicated region
      $region17: #{deeplab_forward.31} parent=11 // pred_check
        %p121 = pneg %p77
      $region18: #{deeplab_forward.31} parent=11 // pred_check_branch
        %123 = sbr.rel (%p121) target = $region20
      $region19: #{deeplab_forward.31} parent=11 // pred_region
        _
      $region20: #{deeplab_forward.31} parent=11 // pred_fallthru
        _
    $region12: #{deeplab_forward.31} parent=5 // pred_fallthru
      _
    %p124 = scmp.lt.s32.totalorder %s9, 2
    // Predicated region
    $region21: #{deeplab_forward.31} parent=5 // pred_check
      %p125 = pneg %p124
    $region22: #{deeplab_forward.31} parent=5 // pred_check_branch
      %127 = sbr.rel (%p125) target = $region24
    $region23: #{deeplab_forward.31} parent=5 // pred_region
      // Predicated region
      $region25: #{deeplab_forward.31} parent=23 // pred_check
        %p128 = pneg %p29
      $region26: #{deeplab_forward.31} parent=23 // pred_check_branch
        %130 = sbr.rel (%p128) target = $region28
      $region27: #{deeplab_forward.31} parent=23 // pred_region
        %s131 = smul.u32 32, %s9
        %p132 = scmp.lt.s32.totalorder %s131, 63
        %s133 = scalar_select %p132, %s131, 63
        %s134 = smul.addr %s133, 8
        %s135 = smul.addr %s134, 4
        %s136 = scalar_lea.vmem %s0, %s135
        %s137 = smul.u32 32, %s9
      $region28: #{deeplab_forward.31} parent=23 // pred_fallthru
        _
    $region24: #{deeplab_forward.31} parent=5 // pred_fallthru
      _
    %p138 = scmp.le.s32.totalorder 1, %s9
    %p139 = scmp.lt.s32.totalorder %s9, 3
    %p140 = pnand %p138, %p139
    %p141 = pneg %p140
    // Predicated region
    $region29: #{deeplab_forward.31} parent=5 // pred_check
      _
    $region30: #{deeplab_forward.31} parent=5 // pred_check_branch
      %143 = sbr.rel (%p140) target = $region32
    $region31: #{deeplab_forward.31} parent=5 // pred_region
      %s144 = ssub.s32 %s9, 1
      %s145 = smul.u32 32, %s14
      %p146 = scmp.lt.s32.totalorder %s145, 63
      %s147 = scalar_select %p146, %s145, 63
      %s148 = smul.addr %s147, 8
      %s149 = smul.addr %s148, 4
      %s150 = scalar_lea.vmem %s0, %s149
      %p151 = pneg %p35
      %p152 = pneg %p32
      %p153 = pneg %p56
      %p154 = pneg %p53
      %p155 = pneg %p77
      %p156 = pneg %p74
      %p157 = pneg %p103
      %p158 = pneg %p100
      %s159 = smul.u32 32, %s14
      %p160 = scmp.lt.s32.totalorder %s159, 63
      %s161 = scalar_select %p160, %s159, 63
      %s162 = smul.addr %s161, 4
      %s163 = scalar_lea.vmem %s3, %s162
      %s164 = smul.u32 32, %s14
      %p165 = scmp.lt.s32.totalorder %s164, 63
      %s166 = scalar_select %p165, %s164, 63
      %s167 = smul.addr %s166, 8
      %s168 = smul.addr %s167, 4
      %s169 = scalar_lea.vmem %s0, %s168
      %s170 = smul.u32 32, %s14
      %s171 = smul.u32 32, %s14
      %p172 = scmp.lt.s32.totalorder %s171, 63
      %s173 = scalar_select %p172, %s171, 63
      %s174 = smul.addr %s173, 4
      %s175 = scalar_lea.vmem %s3, %s174
      %s176 = smul.u32 32, %s14
      %v178 = vld [vmem:[%s169] sm:$0xff]
      %v179 = vld [vmem:[%s169 + $0x8] sm:$0xff]
      %v180 = vld [vmem:[%s169 + $0x10] sm:$0xff]
      %v181 = vld [vmem:[%s169 + $0x18] sm:$0xff]
      %v182 = vld [vmem:[%s169 + $0x20] sm:$0xff]
      %v183 = vld [vmem:[%s169 + $0x28] sm:$0xff]
      %v184 = vld [vmem:[%s169 + $0x30] sm:$0xff]
      %v185 = vld [vmem:[%s169 + $0x38] sm:$0xff]
      %v186 = vld [vmem:[%s169 + $0x40] sm:$0xff]
      %v187 = vld [vmem:[%s169 + $0x48] sm:$0xff]
      %v188 = vld [vmem:[%s169 + $0x50] sm:$0xff]
      %v189 = vld [vmem:[%s169 + $0x58] sm:$0xff]
      %v190 = vld [vmem:[%s169 + $0x60] sm:$0xff]
      %v191 = vld [vmem:[%s169 + $0x68] sm:$0xff]
      %v192 = vld [vmem:[%s169 + $0x70] sm:$0xff]
      %v193 = vld [vmem:[%s169 + $0x78] sm:$0xff]
      %v194 = vld [vmem:[%s169 + $0x80] sm:$0xff]
      %v195 = vld [vmem:[%s169 + $0x88] sm:$0xff]
      %v196 = vld [vmem:[%s169 + $0x90] sm:$0xff]
      %v197 = vld [vmem:[%s169 + $0x98] sm:$0xff]
      %v198 = vld [vmem:[%s169 + $0xa0] sm:$0xff]
      %v199 = vld [vmem:[%s169 + $0xa8] sm:$0xff]
      %v200 = vld [vmem:[%s169 + $0xb0] sm:$0xff]
      %v201 = vld [vmem:[%s169 + $0xb8] sm:$0xff]
      %v202 = vld [vmem:[%s169 + $0xc0] sm:$0xff]
      %v203 = vld [vmem:[%s169 + $0xc8] sm:$0xff]
      %v204 = vld [vmem:[%s169 + $0xd0] sm:$0xff]
      %v205 = vld [vmem:[%s169 + $0xd8] sm:$0xff]
      %v206 = vld [vmem:[%s169 + $0xe0] sm:$0xff]
      %v207 = vld [vmem:[%s169 + $0xe8] sm:$0xff]
      %v208 = vld [vmem:[%s169 + $0xf0] sm:$0xff]
      %v209 = vld [vmem:[%s169 + $0xf8] sm:$0xff]
      %v210 = vld [vmem:[%s169 + $0x100] sm:$0xff]
      %v211 = vld [vmem:[%s169 + $0x108] sm:$0xff]
      %v212 = vld [vmem:[%s169 + $0x110] sm:$0xff]
      %v213 = vld [vmem:[%s169 + $0x118] sm:$0xff]
      %v214 = vld [vmem:[%s169 + $0x120] sm:$0xff]
      %v215 = vld [vmem:[%s169 + $0x128] sm:$0xff]
      %v216 = vld [vmem:[%s169 + $0x130] sm:$0xff]
      %v217 = vld [vmem:[%s169 + $0x138] sm:$0xff]
      %v218 = vld [vmem:[%s169 + $0x140] sm:$0xff]
      %v219 = vld [vmem:[%s169 + $0x148] sm:$0xff]
      %v220 = vld [vmem:[%s169 + $0x150] sm:$0xff]
      %v221 = vld [vmem:[%s169 + $0x158] sm:$0xff]
      %v222 = vld [vmem:[%s169 + $0x160] sm:$0xff]
      %v223 = vld [vmem:[%s169 + $0x168] sm:$0xff]
      %v224 = vld [vmem:[%s169 + $0x170] sm:$0xff]
      %v225 = vld [vmem:[%s169 + $0x178] sm:$0xff]
      %v226 = vld [vmem:[%s169 + $0x180] sm:$0xff]
      %v227 = vld [vmem:[%s169 + $0x188] sm:$0xff]
      %v228 = vld [vmem:[%s169 + $0x190] sm:$0xff]
      %v229 = vld [vmem:[%s169 + $0x198] sm:$0xff]
      %v230 = vld [vmem:[%s169 + $0x1a0] sm:$0xff]
      %v231 = vld [vmem:[%s169 + $0x1a8] sm:$0xff]
      %v232 = vld [vmem:[%s169 + $0x1b0] sm:$0xff]
      %v233 = vld [vmem:[%s169 + $0x1b8] sm:$0xff]
      %v234 = vld [vmem:[%s169 + $0x1c0] sm:$0xff]
      %v235 = vld [vmem:[%s169 + $0x1c8] sm:$0xff]
      %v236 = vld [vmem:[%s169 + $0x1d0] sm:$0xff]
      %v237 = vld [vmem:[%s169 + $0x1d8] sm:$0xff]
      %v238 = vld [vmem:[%s169 + $0x1e0] sm:$0xff]
      %v239 = vld [vmem:[%s169 + $0x1e8] sm:$0xff]
      %v240 = vld [vmem:[%s169 + $0x1f0] sm:$0xff]
      %v241 = vld [vmem:[%s169 + $0x1f8] sm:$0xff]
      %v242 = vld [vmem:[%s169 + $0x200] sm:$0xff]
      %v243 = vld [vmem:[%s169 + $0x208] sm:$0xff]
      %v244 = vld [vmem:[%s169 + $0x210] sm:$0xff]
      %v245 = vld [vmem:[%s169 + $0x218] sm:$0xff]
      %v246 = vld [vmem:[%s169 + $0x220] sm:$0xff]
      %v247 = vld [vmem:[%s169 + $0x228] sm:$0xff]
      %v248 = vld [vmem:[%s169 + $0x230] sm:$0xff]
      %v249 = vld [vmem:[%s169 + $0x238] sm:$0xff]
      %v250 = vld [vmem:[%s169 + $0x240] sm:$0xff]
      %v251 = vld [vmem:[%s169 + $0x248] sm:$0xff]
      %v252 = vld [vmem:[%s169 + $0x250] sm:$0xff]
      %v253 = vld [vmem:[%s169 + $0x258] sm:$0xff]
      %v254 = vld [vmem:[%s169 + $0x260] sm:$0xff]
      %v255 = vld [vmem:[%s169 + $0x268] sm:$0xff]
      %v256 = vld [vmem:[%s169 + $0x270] sm:$0xff]
      %v257 = vld [vmem:[%s169 + $0x278] sm:$0xff]
      %v258 = vld [vmem:[%s169 + $0x280] sm:$0xff]
      %v259 = vld [vmem:[%s169 + $0x288] sm:$0xff]
      %v260 = vld [vmem:[%s169 + $0x290] sm:$0xff]
      %v261 = vld [vmem:[%s169 + $0x298] sm:$0xff]
      %v262 = vld [vmem:[%s169 + $0x2a0] sm:$0xff]
      %v263 = vld [vmem:[%s169 + $0x2a8] sm:$0xff]
      %v264 = vld [vmem:[%s169 + $0x2b0] sm:$0xff]
      %v265 = vld [vmem:[%s169 + $0x2b8] sm:$0xff]
      %v266 = vld [vmem:[%s169 + $0x2c0] sm:$0xff]
      %v267 = vld [vmem:[%s169 + $0x2c8] sm:$0xff]
      %v268 = vld [vmem:[%s169 + $0x2d0] sm:$0xff]
      %v269 = vld [vmem:[%s169 + $0x2d8] sm:$0xff]
      %v270 = vld [vmem:[%s169 + $0x2e0] sm:$0xff]
      %v271 = vld [vmem:[%s169 + $0x2e8] sm:$0xff]
      %v272 = vld [vmem:[%s169 + $0x2f0] sm:$0xff]
      %v273 = vld [vmem:[%s169 + $0x2f8] sm:$0xff]
      %v274 = vld [vmem:[%s169 + $0x300] sm:$0xff]
      %v275 = vld [vmem:[%s169 + $0x308] sm:$0xff]
      %v276 = vld [vmem:[%s169 + $0x310] sm:$0xff]
      %v277 = vld [vmem:[%s169 + $0x318] sm:$0xff]
      %v278 = vld [vmem:[%s169 + $0x320] sm:$0xff]
      %v279 = vld [vmem:[%s169 + $0x328] sm:$0xff]
      %v280 = vld [vmem:[%s169 + $0x330] sm:$0xff]
      %v281 = vld [vmem:[%s169 + $0x338] sm:$0xff]
      %v282 = vld [vmem:[%s169 + $0x340] sm:$0xff]
      %v283 = vld [vmem:[%s169 + $0x348] sm:$0xff]
      %v284 = vld [vmem:[%s169 + $0x350] sm:$0xff]
      %v285 = vld [vmem:[%s169 + $0x358] sm:$0xff]
      %v286 = vld [vmem:[%s169 + $0x360] sm:$0xff]
      %v287 = vld [vmem:[%s169 + $0x368] sm:$0xff]
      %v288 = vld [vmem:[%s169 + $0x370] sm:$0xff]
      %v289 = vld [vmem:[%s169 + $0x378] sm:$0xff]
      %v290 = vld [vmem:[%s169 + $0x380] sm:$0xff]
      %v291 = vld [vmem:[%s169 + $0x388] sm:$0xff]
      %v292 = vld [vmem:[%s169 + $0x390] sm:$0xff]
      %v293 = vld [vmem:[%s169 + $0x398] sm:$0xff]
      %v294 = vld [vmem:[%s169 + $0x3a0] sm:$0xff]
      %v295 = vld [vmem:[%s169 + $0x3a8] sm:$0xff]
      %v296 = vld [vmem:[%s169 + $0x3b0] sm:$0xff]
      %v297 = vld [vmem:[%s169 + $0x3b8] sm:$0xff]
      %v298 = vld [vmem:[%s169 + $0x3c0] sm:$0xff]
      %v299 = vld [vmem:[%s169 + $0x3c8] sm:$0xff]
      %v300 = vld [vmem:[%s169 + $0x3d0] sm:$0xff]
      %v301 = vld [vmem:[%s169 + $0x3d8] sm:$0xff]
      %v302 = vld [vmem:[%s169 + $0x3e0] sm:$0xff]
      %v303 = vld [vmem:[%s169 + $0x3e8] sm:$0xff]
      %v304 = vld [vmem:[%s169 + $0x3f0] sm:$0xff]
      %v305 = vld [vmem:[%s169 + $0x3f8] sm:$0xff]
      %v306 = vld [vmem:[%s1] sm:$0xf]
      %v307 = vld [vmem:[%s1 + $0x4] sm:$0xf]
      %v308 = vld [vmem:[%s1 + $0x8] sm:$0xf]
      %v309 = vld [vmem:[%s1 + $0xc] sm:$0xf]
      %v310 = vld [vmem:[%s1 + $0x10] sm:$0xf]
      %v311 = vld [vmem:[%s1 + $0x14] sm:$0xf]
      %v312 = vld [vmem:[%s1 + $0x18] sm:$0xf]
      %v313 = vld [vmem:[%s1 + $0x1c] sm:$0xf]
      %v314 = vld [vmem:[%s1 + $0x20] sm:$0xf]
      %v315 = vld [vmem:[%s1 + $0x24] sm:$0xf]
      %v316 = vld [vmem:[%s1 + $0x28] sm:$0xf]
      %v317 = vld [vmem:[%s1 + $0x2c] sm:$0xf]
      %v318 = vld [vmem:[%s1 + $0x30] sm:$0xf]
      %v319 = vld [vmem:[%s1 + $0x34] sm:$0xf]
      %v320 = vld [vmem:[%s1 + $0x38] sm:$0xf]
      %v321 = vld [vmem:[%s1 + $0x3c] sm:$0xf]
      %v322 = vld [vmem:[%s1 + $0x40] sm:$0xf]
      %v323 = vld [vmem:[%s1 + $0x44] sm:$0xf]
      %v324 = vld [vmem:[%s1 + $0x48] sm:$0xf]
      %v325 = vld [vmem:[%s1 + $0x4c] sm:$0xf]
      %v326 = vld [vmem:[%s1 + $0x50] sm:$0xf]
      %v327 = vld [vmem:[%s1 + $0x54] sm:$0xf]
      %v328 = vld [vmem:[%s1 + $0x58] sm:$0xf]
      %v329 = vld [vmem:[%s1 + $0x5c] sm:$0xf]
      %v330 = vld [vmem:[%s1 + $0x60] sm:$0xf]
      %v331 = vld [vmem:[%s1 + $0x64] sm:$0xf]
      %v332 = vld [vmem:[%s1 + $0x68] sm:$0xf]
      %v333 = vld [vmem:[%s1 + $0x6c] sm:$0xf]
      %v334 = vld [vmem:[%s1 + $0x70] sm:$0xf]
      %v335 = vld [vmem:[%s1 + $0x74] sm:$0xf]
      %v336 = vld [vmem:[%s1 + $0x78] sm:$0xf]
      %v337 = vld [vmem:[%s1 + $0x7c] sm:$0xf]
      %v338 = vld [vmem:[%s1 + $0x80] sm:$0xf]
      %v339 = vld [vmem:[%s1 + $0x84] sm:$0xf]
      %v340 = vld [vmem:[%s1 + $0x88] sm:$0xf]
      %v341 = vld [vmem:[%s1 + $0x8c] sm:$0xf]
      %v342 = vld [vmem:[%s1 + $0x90] sm:$0xf]
      %v343 = vld [vmem:[%s1 + $0x94] sm:$0xf]
      %v344 = vld [vmem:[%s1 + $0x98] sm:$0xf]
      %v345 = vld [vmem:[%s1 + $0x9c] sm:$0xf]
      %v346 = vld [vmem:[%s1 + $0xa0] sm:$0xf]
      %v347 = vld [vmem:[%s1 + $0xa4] sm:$0xf]
      %v348 = vld [vmem:[%s1 + $0xa8] sm:$0xf]
      %v349 = vld [vmem:[%s1 + $0xac] sm:$0xf]
      %v350 = vld [vmem:[%s1 + $0xb0] sm:$0xf]
      %v351 = vld [vmem:[%s1 + $0xb4] sm:$0xf]
      %v352 = vld [vmem:[%s1 + $0xb8] sm:$0xf]
      %v353 = vld [vmem:[%s1 + $0xbc] sm:$0xf]
      %v354 = vld [vmem:[%s1 + $0xc0] sm:$0xf]
      %v355 = vld [vmem:[%s1 + $0xc4] sm:$0xf]
      %v356 = vld [vmem:[%s1 + $0xc8] sm:$0xf]
      %v357 = vld [vmem:[%s1 + $0xcc] sm:$0xf]
      %v358 = vld [vmem:[%s1 + $0xd0] sm:$0xf]
      %v359 = vld [vmem:[%s1 + $0xd4] sm:$0xf]
      %v360 = vld [vmem:[%s1 + $0xd8] sm:$0xf]
      %v361 = vld [vmem:[%s1 + $0xdc] sm:$0xf]
      %v362 = vld [vmem:[%s1 + $0xe0] sm:$0xf]
      %v363 = vld [vmem:[%s1 + $0xe4] sm:$0xf]
      %v364 = vld [vmem:[%s1 + $0xe8] sm:$0xf]
      %v365 = vld [vmem:[%s1 + $0xec] sm:$0xf]
      %v366 = vld [vmem:[%s1 + $0xf0] sm:$0xf]
      %v367 = vld [vmem:[%s1 + $0xf4] sm:$0xf]
      %v368 = vld [vmem:[%s1 + $0xf8] sm:$0xf]
      %v369 = vld [vmem:[%s1 + $0xfc] sm:$0xf]
      %v370 = vld [vmem:[%s1 + $0x100] sm:$0xf]
      %v371 = vld [vmem:[%s1 + $0x104] sm:$0xf]
      %v372 = vld [vmem:[%s1 + $0x108] sm:$0xf]
      %v373 = vld [vmem:[%s1 + $0x10c] sm:$0xf]
      %v374 = vld [vmem:[%s1 + $0x110] sm:$0xf]
      %v375 = vld [vmem:[%s1 + $0x114] sm:$0xf]
      %v376 = vld [vmem:[%s1 + $0x118] sm:$0xf]
      %v377 = vld [vmem:[%s1 + $0x11c] sm:$0xf]
      %v378 = vld [vmem:[%s1 + $0x120] sm:$0xf]
      %v379 = vld [vmem:[%s1 + $0x124] sm:$0xf]
      %v380 = vld [vmem:[%s1 + $0x128] sm:$0xf]
      %v381 = vld [vmem:[%s1 + $0x12c] sm:$0xf]
      %v382 = vld [vmem:[%s1 + $0x130] sm:$0xf]
      %v383 = vld [vmem:[%s1 + $0x134] sm:$0xf]
      %v384 = vld [vmem:[%s1 + $0x138] sm:$0xf]
      %v385 = vld [vmem:[%s1 + $0x13c] sm:$0xf]
      %v386 = vld [vmem:[%s1 + $0x140] sm:$0xf]
      %v387 = vld [vmem:[%s1 + $0x144] sm:$0xf]
      %v388 = vld [vmem:[%s1 + $0x148] sm:$0xf]
      %v389 = vld [vmem:[%s1 + $0x14c] sm:$0xf]
      %v390 = vld [vmem:[%s1 + $0x150] sm:$0xf]
      %v391 = vld [vmem:[%s1 + $0x154] sm:$0xf]
      %v392 = vld [vmem:[%s1 + $0x158] sm:$0xf]
      %v393 = vld [vmem:[%s1 + $0x15c] sm:$0xf]
      %v394 = vld [vmem:[%s1 + $0x160] sm:$0xf]
      %v395 = vld [vmem:[%s1 + $0x164] sm:$0xf]
      %v396 = vld [vmem:[%s1 + $0x168] sm:$0xf]
      %v397 = vld [vmem:[%s1 + $0x16c] sm:$0xf]
      %v398 = vld [vmem:[%s1 + $0x170] sm:$0xf]
      %v399 = vld [vmem:[%s1 + $0x174] sm:$0xf]
      %v400 = vld [vmem:[%s1 + $0x178] sm:$0xf]
      %v401 = vld [vmem:[%s1 + $0x17c] sm:$0xf]
      %v402 = vld [vmem:[%s1 + $0x180] sm:$0xf]
      %v403 = vld [vmem:[%s1 + $0x184] sm:$0xf]
      %v404 = vld [vmem:[%s1 + $0x188] sm:$0xf]
      %v405 = vld [vmem:[%s1 + $0x18c] sm:$0xf]
      %v406 = vld [vmem:[%s1 + $0x190] sm:$0xf]
      %v407 = vld [vmem:[%s1 + $0x194] sm:$0xf]
      %v408 = vld [vmem:[%s1 + $0x198] sm:$0xf]
      %v409 = vld [vmem:[%s1 + $0x19c] sm:$0xf]
      %v410 = vld [vmem:[%s1 + $0x1a0] sm:$0xf]
      %v411 = vld [vmem:[%s1 + $0x1a4] sm:$0xf]
      %v412 = vld [vmem:[%s1 + $0x1a8] sm:$0xf]
      %v413 = vld [vmem:[%s1 + $0x1ac] sm:$0xf]
      %v414 = vld [vmem:[%s1 + $0x1b0] sm:$0xf]
      %v415 = vld [vmem:[%s1 + $0x1b4] sm:$0xf]
      %v416 = vld [vmem:[%s1 + $0x1b8] sm:$0xf]
      %v417 = vld [vmem:[%s1 + $0x1bc] sm:$0xf]
      %v418 = vld [vmem:[%s1 + $0x1c0] sm:$0xf]
      %v419 = vld [vmem:[%s1 + $0x1c4] sm:$0xf]
      %v420 = vld [vmem:[%s1 + $0x1c8] sm:$0xf]
      %v421 = vld [vmem:[%s1 + $0x1cc] sm:$0xf]
      %v422 = vld [vmem:[%s1 + $0x1d0] sm:$0xf]
      %v423 = vld [vmem:[%s1 + $0x1d4] sm:$0xf]
      %v424 = vld [vmem:[%s1 + $0x1d8] sm:$0xf]
      %v425 = vld [vmem:[%s1 + $0x1dc] sm:$0xf]
      %v426 = vld [vmem:[%s1 + $0x1e0] sm:$0xf]
      %v427 = vld [vmem:[%s1 + $0x1e4] sm:$0xf]
      %v428 = vld [vmem:[%s1 + $0x1e8] sm:$0xf]
      %v429 = vld [vmem:[%s1 + $0x1ec] sm:$0xf]
      %v430 = vld [vmem:[%s1 + $0x1f0] sm:$0xf]
      %v431 = vld [vmem:[%s1 + $0x1f4] sm:$0xf]
      %v432 = vld [vmem:[%s2] sm:$0x1]
      %v434 = vperm.slane %v432, 0
      %v564 = vunpack.c.l.b16 %v178
      %v565 = vunpack.c.h.b16 %v178
      %v566 = vunpack.c.l.b16 %v179
      %v567 = vunpack.c.h.b16 %v179
      %v568 = vunpack.c.l.b16 %v180
      %v569 = vunpack.c.h.b16 %v180
      %v570 = vunpack.c.l.b16 %v181
      %v571 = vunpack.c.h.b16 %v181
      %v572 = vunpack.c.l.b16 %v182
      %v573 = vunpack.c.h.b16 %v182
      %v574 = vunpack.c.l.b16 %v183
      %v575 = vunpack.c.h.b16 %v183
      %v576 = vunpack.c.l.b16 %v184
      %v577 = vunpack.c.h.b16 %v184
      %v578 = vunpack.c.l.b16 %v185
      %v579 = vunpack.c.h.b16 %v185
      %v580 = vunpack.c.l.b16 %v186
      %v581 = vunpack.c.h.b16 %v186
      %v582 = vunpack.c.l.b16 %v187
      %v583 = vunpack.c.h.b16 %v187
      %v584 = vunpack.c.l.b16 %v188
      %v585 = vunpack.c.h.b16 %v188
      %v586 = vunpack.c.l.b16 %v189
      %v587 = vunpack.c.h.b16 %v189
      %v588 = vunpack.c.l.b16 %v190
      %v589 = vunpack.c.h.b16 %v190
      %v590 = vunpack.c.l.b16 %v191
      %v591 = vunpack.c.h.b16 %v191
      %v592 = vunpack.c.l.b16 %v192
      %v593 = vunpack.c.h.b16 %v192
      %v594 = vunpack.c.l.b16 %v193
      %v595 = vunpack.c.h.b16 %v193
      %v596 = vunpack.c.l.b16 %v194
      %v597 = vunpack.c.h.b16 %v194
      %v598 = vunpack.c.l.b16 %v195
      %v599 = vunpack.c.h.b16 %v195
      %v600 = vunpack.c.l.b16 %v196
      %v601 = vunpack.c.h.b16 %v196
      %v602 = vunpack.c.l.b16 %v197
      %v603 = vunpack.c.h.b16 %v197
      %v604 = vunpack.c.l.b16 %v198
      %v605 = vunpack.c.h.b16 %v198
      %v606 = vunpack.c.l.b16 %v199
      %v607 = vunpack.c.h.b16 %v199
      %v608 = vunpack.c.l.b16 %v200
      %v609 = vunpack.c.h.b16 %v200
      %v610 = vunpack.c.l.b16 %v201
      %v611 = vunpack.c.h.b16 %v201
      %v612 = vunpack.c.l.b16 %v202
      %v613 = vunpack.c.h.b16 %v202
      %v614 = vunpack.c.l.b16 %v203
      %v615 = vunpack.c.h.b16 %v203
      %v616 = vunpack.c.l.b16 %v204
      %v617 = vunpack.c.h.b16 %v204
      %v618 = vunpack.c.l.b16 %v205
      %v619 = vunpack.c.h.b16 %v205
      %v620 = vunpack.c.l.b16 %v206
      %v621 = vunpack.c.h.b16 %v206
      %v622 = vunpack.c.l.b16 %v207
      %v623 = vunpack.c.h.b16 %v207
      %v624 = vunpack.c.l.b16 %v208
      %v625 = vunpack.c.h.b16 %v208
      %v626 = vunpack.c.l.b16 %v209
      %v627 = vunpack.c.h.b16 %v209
      %v628 = vunpack.c.l.b16 %v210
      %v629 = vunpack.c.h.b16 %v210
      %v630 = vunpack.c.l.b16 %v211
      %v631 = vunpack.c.h.b16 %v211
      %v632 = vunpack.c.l.b16 %v212
      %v633 = vunpack.c.h.b16 %v212
      %v634 = vunpack.c.l.b16 %v213
      %v635 = vunpack.c.h.b16 %v213
      %v636 = vunpack.c.l.b16 %v214
      %v637 = vunpack.c.h.b16 %v214
      %v638 = vunpack.c.l.b16 %v215
      %v639 = vunpack.c.h.b16 %v215
      %v640 = vunpack.c.l.b16 %v216
      %v641 = vunpack.c.h.b16 %v216
      %v642 = vunpack.c.l.b16 %v217
      %v643 = vunpack.c.h.b16 %v217
      %v644 = vunpack.c.l.b16 %v218
      %v645 = vunpack.c.h.b16 %v218
      %v646 = vunpack.c.l.b16 %v219
      %v647 = vunpack.c.h.b16 %v219
      %v648 = vunpack.c.l.b16 %v220
      %v649 = vunpack.c.h.b16 %v220
      %v650 = vunpack.c.l.b16 %v221
      %v651 = vunpack.c.h.b16 %v221
      %v652 = vunpack.c.l.b16 %v222
      %v653 = vunpack.c.h.b16 %v222
      %v654 = vunpack.c.l.b16 %v223
      %v655 = vunpack.c.h.b16 %v223
      %v656 = vunpack.c.l.b16 %v224
      %v657 = vunpack.c.h.b16 %v224
      %v658 = vunpack.c.l.b16 %v225
      %v659 = vunpack.c.h.b16 %v225
      %v660 = vunpack.c.l.b16 %v226
      %v661 = vunpack.c.h.b16 %v226
      %v662 = vunpack.c.l.b16 %v227
      %v663 = vunpack.c.h.b16 %v227
      %v664 = vunpack.c.l.b16 %v228
      %v665 = vunpack.c.h.b16 %v228
      %v666 = vunpack.c.l.b16 %v229
      %v667 = vunpack.c.h.b16 %v229
      %v668 = vunpack.c.l.b16 %v230
      %v669 = vunpack.c.h.b16 %v230
      %v670 = vunpack.c.l.b16 %v231
      %v671 = vunpack.c.h.b16 %v231
      %v672 = vunpack.c.l.b16 %v232
      %v673 = vunpack.c.h.b16 %v232
      %v674 = vunpack.c.l.b16 %v233
      %v675 = vunpack.c.h.b16 %v233
      %v676 = vunpack.c.l.b16 %v234
      %v677 = vunpack.c.h.b16 %v234
      %v678 = vunpack.c.l.b16 %v235
      %v679 = vunpack.c.h.b16 %v235
      %v680 = vunpack.c.l.b16 %v236
      %v681 = vunpack.c.h.b16 %v236
      %v682 = vunpack.c.l.b16 %v237
      %v683 = vunpack.c.h.b16 %v237
      %v684 = vunpack.c.l.b16 %v238
      %v685 = vunpack.c.h.b16 %v238
      %v686 = vunpack.c.l.b16 %v239
      %v687 = vunpack.c.h.b16 %v239
      %v688 = vunpack.c.l.b16 %v240
      %v689 = vunpack.c.h.b16 %v240
      %v690 = vunpack.c.l.b16 %v241
      %v691 = vunpack.c.h.b16 %v241
      %v692 = vunpack.c.l.b16 %v242
      %v693 = vunpack.c.h.b16 %v242
      %v694 = vunpack.c.l.b16 %v243
      %v695 = vunpack.c.h.b16 %v243
      %v696 = vunpack.c.l.b16 %v244
      %v697 = vunpack.c.h.b16 %v244
      %v698 = vunpack.c.l.b16 %v245
      %v699 = vunpack.c.h.b16 %v245
      %v700 = vunpack.c.l.b16 %v246
      %v701 = vunpack.c.h.b16 %v246
      %v702 = vunpack.c.l.b16 %v247
      %v703 = vunpack.c.h.b16 %v247
      %v704 = vunpack.c.l.b16 %v248
      %v705 = vunpack.c.h.b16 %v248
      %v706 = vunpack.c.l.b16 %v249
      %v707 = vunpack.c.h.b16 %v249
      %v708 = vunpack.c.l.b16 %v250
      %v709 = vunpack.c.h.b16 %v250
      %v710 = vunpack.c.l.b16 %v251
      %v711 = vunpack.c.h.b16 %v251
      %v712 = vunpack.c.l.b16 %v252
      %v713 = vunpack.c.h.b16 %v252
      %v714 = vunpack.c.l.b16 %v253
      %v715 = vunpack.c.h.b16 %v253
      %v716 = vunpack.c.l.b16 %v254
      %v717 = vunpack.c.h.b16 %v254
      %v718 = vunpack.c.l.b16 %v255
      %v719 = vunpack.c.h.b16 %v255
      %v720 = vunpack.c.l.b16 %v256
      %v721 = vunpack.c.h.b16 %v256
      %v722 = vunpack.c.l.b16 %v257
      %v723 = vunpack.c.h.b16 %v257
      %v724 = vunpack.c.l.b16 %v258
      %v725 = vunpack.c.h.b16 %v258
      %v726 = vunpack.c.l.b16 %v259
      %v727 = vunpack.c.h.b16 %v259
      %v728 = vunpack.c.l.b16 %v260
      %v729 = vunpack.c.h.b16 %v260
      %v730 = vunpack.c.l.b16 %v261
      %v731 = vunpack.c.h.b16 %v261
      %v732 = vunpack.c.l.b16 %v262
      %v733 = vunpack.c.h.b16 %v262
      %v734 = vunpack.c.l.b16 %v263
      %v735 = vunpack.c.h.b16 %v263
      %v736 = vunpack.c.l.b16 %v264
      %v737 = vunpack.c.h.b16 %v264
      %v738 = vunpack.c.l.b16 %v265
      %v739 = vunpack.c.h.b16 %v265
      %v740 = vunpack.c.l.b16 %v266
      %v741 = vunpack.c.h.b16 %v266
      %v742 = vunpack.c.l.b16 %v267
      %v743 = vunpack.c.h.b16 %v267
      %v744 = vunpack.c.l.b16 %v268
      %v745 = vunpack.c.h.b16 %v268
      %v746 = vunpack.c.l.b16 %v269
      %v747 = vunpack.c.h.b16 %v269
      %v748 = vunpack.c.l.b16 %v270
      %v749 = vunpack.c.h.b16 %v270
      %v750 = vunpack.c.l.b16 %v271
      %v751 = vunpack.c.h.b16 %v271
      %v752 = vunpack.c.l.b16 %v272
      %v753 = vunpack.c.h.b16 %v272
      %v754 = vunpack.c.l.b16 %v273
      %v755 = vunpack.c.h.b16 %v273
      %v756 = vunpack.c.l.b16 %v274
      %v757 = vunpack.c.h.b16 %v274
      %v758 = vunpack.c.l.b16 %v275
      %v759 = vunpack.c.h.b16 %v275
      %v760 = vunpack.c.l.b16 %v276
      %v761 = vunpack.c.h.b16 %v276
      %v762 = vunpack.c.l.b16 %v277
      %v763 = vunpack.c.h.b16 %v277
      %v764 = vunpack.c.l.b16 %v278
      %v765 = vunpack.c.h.b16 %v278
      %v766 = vunpack.c.l.b16 %v279
      %v767 = vunpack.c.h.b16 %v279
      %v768 = vunpack.c.l.b16 %v280
      %v769 = vunpack.c.h.b16 %v280
      %v770 = vunpack.c.l.b16 %v281
      %v771 = vunpack.c.h.b16 %v281
      %v772 = vunpack.c.l.b16 %v282
      %v773 = vunpack.c.h.b16 %v282
      %v774 = vunpack.c.l.b16 %v283
      %v775 = vunpack.c.h.b16 %v283
      %v776 = vunpack.c.l.b16 %v284
      %v777 = vunpack.c.h.b16 %v284
      %v778 = vunpack.c.l.b16 %v285
      %v779 = vunpack.c.h.b16 %v285
      %v780 = vunpack.c.l.b16 %v286
      %v781 = vunpack.c.h.b16 %v286
      %v782 = vunpack.c.l.b16 %v287
      %v783 = vunpack.c.h.b16 %v287
      %v784 = vunpack.c.l.b16 %v288
      %v785 = vunpack.c.h.b16 %v288
      %v786 = vunpack.c.l.b16 %v289
      %v787 = vunpack.c.h.b16 %v289
      %v788 = vunpack.c.l.b16 %v290
      %v789 = vunpack.c.h.b16 %v290
      %v790 = vunpack.c.l.b16 %v291
      %v791 = vunpack.c.h.b16 %v291
      %v792 = vunpack.c.l.b16 %v292
      %v793 = vunpack.c.h.b16 %v292
      %v794 = vunpack.c.l.b16 %v293
      %v795 = vunpack.c.h.b16 %v293
      %v796 = vunpack.c.l.b16 %v294
      %v797 = vunpack.c.h.b16 %v294
      %v798 = vunpack.c.l.b16 %v295
      %v799 = vunpack.c.h.b16 %v295
      %v800 = vunpack.c.l.b16 %v296
      %v801 = vunpack.c.h.b16 %v296
      %v802 = vunpack.c.l.b16 %v297
      %v803 = vunpack.c.h.b16 %v297
      %v804 = vunpack.c.l.b16 %v298
      %v805 = vunpack.c.h.b16 %v298
      %v806 = vunpack.c.l.b16 %v299
      %v807 = vunpack.c.h.b16 %v299
      %v808 = vunpack.c.l.b16 %v300
      %v809 = vunpack.c.h.b16 %v300
      %v810 = vunpack.c.l.b16 %v301
      %v811 = vunpack.c.h.b16 %v301
      %v812 = vunpack.c.l.b16 %v302
      %v813 = vunpack.c.h.b16 %v302
      %v814 = vunpack.c.l.b16 %v303
      %v815 = vunpack.c.h.b16 %v303
      %v816 = vunpack.c.l.b16 %v304
      %v817 = vunpack.c.h.b16 %v304
      %v818 = vunpack.c.l.b16 %v305
      %v819 = vunpack.c.h.b16 %v305
      %v820 = vpack.c.b16 %v572, %v564
      %v821 = vpack.c.b16 %v573, %v565
      %v822 = vpack.c.b16 %v574, %v566
      %v823 = vpack.c.b16 %v575, %v567
      %v824 = vpack.c.b16 %v576, %v568
      %v825 = vpack.c.b16 %v577, %v569
      %v826 = vpack.c.b16 %v578, %v570
      %v827 = vpack.c.b16 %v579, %v571
      %v828 = vpack.c.b16 %v588, %v580
      %v829 = vpack.c.b16 %v589, %v581
      %v830 = vpack.c.b16 %v590, %v582
      %v831 = vpack.c.b16 %v591, %v583
      %v832 = vpack.c.b16 %v592, %v584
      %v833 = vpack.c.b16 %v593, %v585
      %v834 = vpack.c.b16 %v594, %v586
      %v835 = vpack.c.b16 %v595, %v587
      %v836 = vpack.c.b16 %v604, %v596
      %v837 = vpack.c.b16 %v605, %v597
      %v838 = vpack.c.b16 %v606, %v598
      %v839 = vpack.c.b16 %v607, %v599
      %v840 = vpack.c.b16 %v608, %v600
      %v841 = vpack.c.b16 %v609, %v601
      %v842 = vpack.c.b16 %v610, %v602
      %v843 = vpack.c.b16 %v611, %v603
      %v844 = vpack.c.b16 %v620, %v612
      %v845 = vpack.c.b16 %v621, %v613
      %v846 = vpack.c.b16 %v622, %v614
      %v847 = vpack.c.b16 %v623, %v615
      %v848 = vpack.c.b16 %v624, %v616
      %v849 = vpack.c.b16 %v625, %v617
      %v850 = vpack.c.b16 %v626, %v618
      %v851 = vpack.c.b16 %v627, %v619
      %v852 = vpack.c.b16 %v636, %v628
      %v853 = vpack.c.b16 %v637, %v629
      %v854 = vpack.c.b16 %v638, %v630
      %v855 = vpack.c.b16 %v639, %v631
      %v856 = vpack.c.b16 %v640, %v632
      %v857 = vpack.c.b16 %v641, %v633
      %v858 = vpack.c.b16 %v642, %v634
      %v859 = vpack.c.b16 %v643, %v635
      %v860 = vpack.c.b16 %v652, %v644
      %v861 = vpack.c.b16 %v653, %v645
      %v862 = vpack.c.b16 %v654, %v646
      %v863 = vpack.c.b16 %v655, %v647
      %v864 = vpack.c.b16 %v656, %v648
      %v865 = vpack.c.b16 %v657, %v649
      %v866 = vpack.c.b16 %v658, %v650
      %v867 = vpack.c.b16 %v659, %v651
      %v868 = vpack.c.b16 %v668, %v660
      %v869 = vpack.c.b16 %v669, %v661
      %v870 = vpack.c.b16 %v670, %v662
      %v871 = vpack.c.b16 %v671, %v663
      %v872 = vpack.c.b16 %v672, %v664
      %v873 = vpack.c.b16 %v673, %v665
      %v874 = vpack.c.b16 %v674, %v666
      %v875 = vpack.c.b16 %v675, %v667
      %v876 = vpack.c.b16 %v684, %v676
      %v877 = vpack.c.b16 %v685, %v677
      %v878 = vpack.c.b16 %v686, %v678
      %v879 = vpack.c.b16 %v687, %v679
      %v880 = vpack.c.b16 %v688, %v680
      %v881 = vpack.c.b16 %v689, %v681
      %v882 = vpack.c.b16 %v690, %v682
      %v883 = vpack.c.b16 %v691, %v683
      %v884 = vpack.c.b16 %v700, %v692
      %v885 = vpack.c.b16 %v701, %v693
      %v886 = vpack.c.b16 %v702, %v694
      %v887 = vpack.c.b16 %v703, %v695
      %v888 = vpack.c.b16 %v704, %v696
      %v889 = vpack.c.b16 %v705, %v697
      %v890 = vpack.c.b16 %v706, %v698
      %v891 = vpack.c.b16 %v707, %v699
      %v892 = vpack.c.b16 %v716, %v708
      %v893 = vpack.c.b16 %v717, %v709
      %v894 = vpack.c.b16 %v718, %v710
      %v895 = vpack.c.b16 %v719, %v711
      %v896 = vpack.c.b16 %v720, %v712
      %v897 = vpack.c.b16 %v721, %v713
      %v898 = vpack.c.b16 %v722, %v714
      %v899 = vpack.c.b16 %v723, %v715
      %v900 = vpack.c.b16 %v732, %v724
      %v901 = vpack.c.b16 %v733, %v725
      %v902 = vpack.c.b16 %v734, %v726
      %v903 = vpack.c.b16 %v735, %v727
      %v904 = vpack.c.b16 %v736, %v728
      %v905 = vpack.c.b16 %v737, %v729
      %v906 = vpack.c.b16 %v738, %v730
      %v907 = vpack.c.b16 %v739, %v731
      %v908 = vpack.c.b16 %v748, %v740
      %v909 = vpack.c.b16 %v749, %v741
      %v910 = vpack.c.b16 %v750, %v742
      %v911 = vpack.c.b16 %v751, %v743
      %v912 = vpack.c.b16 %v752, %v744
      %v913 = vpack.c.b16 %v753, %v745
      %v914 = vpack.c.b16 %v754, %v746
      %v915 = vpack.c.b16 %v755, %v747
      %v916 = vpack.c.b16 %v764, %v756
      %v917 = vpack.c.b16 %v765, %v757
      %v918 = vpack.c.b16 %v766, %v758
      %v919 = vpack.c.b16 %v767, %v759
      %v920 = vpack.c.b16 %v768, %v760
      %v921 = vpack.c.b16 %v769, %v761
      %v922 = vpack.c.b16 %v770, %v762
      %v923 = vpack.c.b16 %v771, %v763
      %v924 = vpack.c.b16 %v780, %v772
      %v925 = vpack.c.b16 %v781, %v773
      %v926 = vpack.c.b16 %v782, %v774
      %v927 = vpack.c.b16 %v783, %v775
      %v928 = vpack.c.b16 %v784, %v776
      %v929 = vpack.c.b16 %v785, %v777
      %v930 = vpack.c.b16 %v786, %v778
      %v931 = vpack.c.b16 %v787, %v779
      %v932 = vpack.c.b16 %v796, %v788
      %v933 = vpack.c.b16 %v797, %v789
      %v934 = vpack.c.b16 %v798, %v790
      %v935 = vpack.c.b16 %v799, %v791
      %v936 = vpack.c.b16 %v800, %v792
      %v937 = vpack.c.b16 %v801, %v793
      %v938 = vpack.c.b16 %v802, %v794
      %v939 = vpack.c.b16 %v803, %v795
      %v940 = vpack.c.b16 %v812, %v804
      %v941 = vpack.c.b16 %v813, %v805
      %v942 = vpack.c.b16 %v814, %v806
      %v943 = vpack.c.b16 %v815, %v807
      %v944 = vpack.c.b16 %v816, %v808
      %v945 = vpack.c.b16 %v817, %v809
      %v946 = vpack.c.b16 %v818, %v810
      %v947 = vpack.c.b16 %v819, %v811
      %v1186 = vunpack.c.l.b16 %v306
      %v1187 = vunpack.c.l.b16 %v307
      %v1188 = vunpack.c.l.b16 %v308
      %v1189 = vunpack.c.l.b16 %v309
      %v1190 = vunpack.c.l.b16 %v310
      %v1191 = vunpack.c.l.b16 %v311
      %v1192 = vunpack.c.l.b16 %v312
      %v1193 = vunpack.c.l.b16 %v313
      %v1194 = vunpack.c.l.b16 %v314
      %v1195 = vunpack.c.l.b16 %v315
      %v1196 = vunpack.c.l.b16 %v316
      %v1197 = vunpack.c.l.b16 %v317
      %v1198 = vunpack.c.l.b16 %v318
      %v1199 = vunpack.c.l.b16 %v319
      %v1200 = vunpack.c.l.b16 %v320
      %v1201 = vunpack.c.l.b16 %v321
      %v1202 = vunpack.c.l.b16 %v322
      %v1203 = vunpack.c.l.b16 %v323
      %v1204 = vunpack.c.l.b16 %v324
      %v1205 = vunpack.c.l.b16 %v325
      %v1206 = vunpack.c.l.b16 %v326
      %v1207 = vunpack.c.l.b16 %v327
      %v1208 = vunpack.c.l.b16 %v328
      %v1209 = vunpack.c.l.b16 %v329
      %v1210 = vunpack.c.l.b16 %v330
      %v1211 = vunpack.c.l.b16 %v331
      %v1212 = vunpack.c.l.b16 %v332
      %v1213 = vunpack.c.l.b16 %v333
      %v1214 = vunpack.c.l.b16 %v334
      %v1215 = vunpack.c.l.b16 %v335
      %v1216 = vunpack.c.l.b16 %v336
      %v1217 = vunpack.c.l.b16 %v337
      %v1218 = vunpack.c.l.b16 %v338
      %v1219 = vunpack.c.l.b16 %v339
      %v1220 = vunpack.c.l.b16 %v340
      %v1221 = vunpack.c.l.b16 %v341
      %v1222 = vunpack.c.l.b16 %v342
      %v1223 = vunpack.c.l.b16 %v343
      %v1224 = vunpack.c.l.b16 %v344
      %v1225 = vunpack.c.l.b16 %v345
      %v1226 = vunpack.c.l.b16 %v346
      %v1227 = vunpack.c.l.b16 %v347
      %v1228 = vunpack.c.l.b16 %v348
      %v1229 = vunpack.c.l.b16 %v349
      %v1230 = vunpack.c.l.b16 %v350
      %v1231 = vunpack.c.l.b16 %v351
      %v1232 = vunpack.c.l.b16 %v352
      %v1233 = vunpack.c.l.b16 %v353
      %v1234 = vunpack.c.l.b16 %v354
      %v1235 = vunpack.c.l.b16 %v355
      %v1236 = vunpack.c.l.b16 %v356
      %v1237 = vunpack.c.l.b16 %v357
      %v1238 = vunpack.c.l.b16 %v358
      %v1239 = vunpack.c.l.b16 %v359
      %v1240 = vunpack.c.l.b16 %v360
      %v1241 = vunpack.c.l.b16 %v361
      %v1242 = vunpack.c.l.b16 %v362
      %v1243 = vunpack.c.l.b16 %v363
      %v1244 = vunpack.c.l.b16 %v364
      %v1245 = vunpack.c.l.b16 %v365
      %v1246 = vunpack.c.l.b16 %v366
      %v1247 = vunpack.c.l.b16 %v367
      %v1248 = vunpack.c.l.b16 %v368
      %v1249 = vunpack.c.l.b16 %v369
      %v1250 = vunpack.c.l.b16 %v370
      %v1251 = vunpack.c.l.b16 %v371
      %v1252 = vunpack.c.l.b16 %v372
      %v1253 = vunpack.c.l.b16 %v373
      %v1254 = vunpack.c.l.b16 %v374
      %v1255 = vunpack.c.l.b16 %v375
      %v1256 = vunpack.c.l.b16 %v376
      %v1257 = vunpack.c.l.b16 %v377
      %v1258 = vunpack.c.l.b16 %v378
      %v1259 = vunpack.c.l.b16 %v379
      %v1260 = vunpack.c.l.b16 %v380
      %v1261 = vunpack.c.l.b16 %v381
      %v1262 = vunpack.c.l.b16 %v382
      %v1263 = vunpack.c.l.b16 %v383
      %v1264 = vunpack.c.l.b16 %v384
      %v1265 = vunpack.c.l.b16 %v385
      %v1266 = vunpack.c.l.b16 %v386
      %v1267 = vunpack.c.l.b16 %v387
      %v1268 = vunpack.c.l.b16 %v388
      %v1269 = vunpack.c.l.b16 %v389
      %v1270 = vunpack.c.l.b16 %v390
      %v1271 = vunpack.c.l.b16 %v391
      %v1272 = vunpack.c.l.b16 %v392
      %v1273 = vunpack.c.l.b16 %v393
      %v1274 = vunpack.c.l.b16 %v394
      %v1275 = vunpack.c.l.b16 %v395
      %v1276 = vunpack.c.l.b16 %v396
      %v1277 = vunpack.c.l.b16 %v397
      %v1278 = vunpack.c.l.b16 %v398
      %v1279 = vunpack.c.l.b16 %v399
      %v1280 = vunpack.c.l.b16 %v400
      %v1281 = vunpack.c.l.b16 %v401
      %v1282 = vunpack.c.l.b16 %v402
      %v1283 = vunpack.c.l.b16 %v403
      %v1284 = vunpack.c.l.b16 %v404
      %v1285 = vunpack.c.l.b16 %v405
      %v1286 = vunpack.c.l.b16 %v406
      %v1287 = vunpack.c.l.b16 %v407
      %v1288 = vunpack.c.l.b16 %v408
      %v1289 = vunpack.c.l.b16 %v409
      %v1290 = vunpack.c.l.b16 %v410
      %v1291 = vunpack.c.l.b16 %v411
      %v1292 = vunpack.c.l.b16 %v412
      %v1293 = vunpack.c.l.b16 %v413
      %v1294 = vunpack.c.l.b16 %v414
      %v1295 = vunpack.c.l.b16 %v415
      %v1296 = vunpack.c.l.b16 %v416
      %v1297 = vunpack.c.l.b16 %v417
      %v1298 = vunpack.c.l.b16 %v418
      %v1299 = vunpack.c.l.b16 %v419
      %v1300 = vunpack.c.l.b16 %v420
      %v1301 = vunpack.c.l.b16 %v421
      %v1302 = vunpack.c.l.b16 %v422
      %v1303 = vunpack.c.l.b16 %v423
      %v1304 = vunpack.c.l.b16 %v424
      %v1305 = vunpack.c.l.b16 %v425
      %v1306 = vunpack.c.l.b16 %v426
      %v1307 = vunpack.c.l.b16 %v427
      %v1308 = vunpack.c.l.b16 %v428
      %v1309 = vunpack.c.l.b16 %v429
      %v1310 = vunpack.c.l.b16 %v430
      %v1311 = vunpack.c.l.b16 %v431
      %v1312 = vpack.c.b16 %v1187, %v1186
      %v1313 = vpack.c.b16 %v1189, %v1188
      %v1314 = vpack.c.b16 %v1191, %v1190
      %v1315 = vpack.c.b16 %v1193, %v1192
      %v1316 = vpack.c.b16 %v1195, %v1194
      %v1317 = vpack.c.b16 %v1197, %v1196
      %v1318 = vpack.c.b16 %v1199, %v1198
      %v1319 = vpack.c.b16 %v1201, %v1200
      %v1320 = vpack.c.b16 %v1203, %v1202
      %v1321 = vpack.c.b16 %v1205, %v1204
      %v1322 = vpack.c.b16 %v1207, %v1206
      %v1323 = vpack.c.b16 %v1209, %v1208
      %v1324 = vpack.c.b16 %v1211, %v1210
      %v1325 = vpack.c.b16 %v1213, %v1212
      %v1326 = vpack.c.b16 %v1215, %v1214
      %v1327 = vpack.c.b16 %v1217, %v1216
      %v1328 = vpack.c.b16 %v1219, %v1218
      %v1329 = vpack.c.b16 %v1221, %v1220
      %v1330 = vpack.c.b16 %v1223, %v1222
      %v1331 = vpack.c.b16 %v1225, %v1224
      %v1332 = vpack.c.b16 %v1227, %v1226
      %v1333 = vpack.c.b16 %v1229, %v1228
      %v1334 = vpack.c.b16 %v1231, %v1230
      %v1335 = vpack.c.b16 %v1233, %v1232
      %v1336 = vpack.c.b16 %v1235, %v1234
      %v1337 = vpack.c.b16 %v1237, %v1236
      %v1338 = vpack.c.b16 %v1239, %v1238
      %v1339 = vpack.c.b16 %v1241, %v1240
      %v1340 = vpack.c.b16 %v1243, %v1242
      %v1341 = vpack.c.b16 %v1245, %v1244
      %v1342 = vpack.c.b16 %v1247, %v1246
      %v1343 = vpack.c.b16 %v1249, %v1248
      %v1344 = vpack.c.b16 %v1251, %v1250
      %v1345 = vpack.c.b16 %v1253, %v1252
      %v1346 = vpack.c.b16 %v1255, %v1254
      %v1347 = vpack.c.b16 %v1257, %v1256
      %v1348 = vpack.c.b16 %v1259, %v1258
      %v1349 = vpack.c.b16 %v1261, %v1260
      %v1350 = vpack.c.b16 %v1263, %v1262
      %v1351 = vpack.c.b16 %v1265, %v1264
      %v1352 = vpack.c.b16 %v1267, %v1266
      %v1353 = vpack.c.b16 %v1269, %v1268
      %v1354 = vpack.c.b16 %v1271, %v1270
      %v1355 = vpack.c.b16 %v1273, %v1272
      %v1356 = vpack.c.b16 %v1275, %v1274
      %v1357 = vpack.c.b16 %v1277, %v1276
      %v1358 = vpack.c.b16 %v1279, %v1278
      %v1359 = vpack.c.b16 %v1281, %v1280
      %v1360 = vpack.c.b16 %v1283, %v1282
      %v1361 = vpack.c.b16 %v1285, %v1284
      %v1362 = vpack.c.b16 %v1287, %v1286
      %v1363 = vpack.c.b16 %v1289, %v1288
      %v1364 = vpack.c.b16 %v1291, %v1290
      %v1365 = vpack.c.b16 %v1293, %v1292
      %v1366 = vpack.c.b16 %v1295, %v1294
      %v1367 = vpack.c.b16 %v1297, %v1296
      %v1368 = vpack.c.b16 %v1299, %v1298
      %v1369 = vpack.c.b16 %v1301, %v1300
      %v1370 = vpack.c.b16 %v1303, %v1302
      %v1371 = vpack.c.b16 %v1305, %v1304
      %v1372 = vpack.c.b16 %v1307, %v1306
      %v1373 = vpack.c.b16 %v1309, %v1308
      %v1374 = vpack.c.b16 %v1311, %v1310
      %vm1438 = vcmask 916480
      %v1440 = vsel %vm1438, %v827, 0
      %v1443 = vsel %vm1438, %v835, 0
      %v1446 = vsel %vm1438, %v843, 0
      %v1449 = vsel %vm1438, %v851, 0
      %v1452 = vsel %vm1438, %v859, 0
      %v1455 = vsel %vm1438, %v867, 0
      %v1458 = vsel %vm1438, %v875, 0
      %v1461 = vsel %vm1438, %v883, 0
      %v1464 = vsel %vm1438, %v891, 0
      %v1467 = vsel %vm1438, %v899, 0
      %v1470 = vsel %vm1438, %v907, 0
      %v1473 = vsel %vm1438, %v915, 0
      %v1476 = vsel %vm1438, %v923, 0
      %v1479 = vsel %vm1438, %v931, 0
      %v1482 = vsel %vm1438, %v939, 0
      %v1485 = vsel %vm1438, %v947, 0
      %1487 = vmatpush.bf16.msra.mxu0 %v1319
      %1488 = vmatpush.bf16.msra.mxu0 %v1318
      %1489 = vmatpush.bf16.msra.mxu0 %v1317
      %1490 = vmatpush.bf16.msra.mxu0 %v1316
      %1491 = vmatpush.bf16.msra.mxu0 %v1315
      %1492 = vmatpush.bf16.msra.mxu0 %v1314
      %1493 = vmatpush.bf16.msra.mxu0 %v1313
      %1494 = vmatpush.bf16.msra.mxu0 %v1312
      %1495 = vmatmul.bf16.gmra.mxu0 %v820
      %v1496 = vpop.f32.mrf.mxu0
      %v1497 = vadd.f32 %v434, %v1496
      %v1498 = vpop.f32.mrf.mxu0
      %v1499 = vadd.f32 %v434, %v1498
      %1500 = vmatmul.bf16.gmra.mxu0 %v828
      %v1501 = vpop.f32.mrf.mxu0
      %v1502 = vadd.f32 %v434, %v1501
      %v1503 = vpop.f32.mrf.mxu0
      %v1504 = vadd.f32 %v434, %v1503
      %1505 = vmatmul.bf16.gmra.mxu0 %v836
      %v1506 = vpop.f32.mrf.mxu0
      %v1507 = vadd.f32 %v434, %v1506
      %v1508 = vpop.f32.mrf.mxu0
      %v1509 = vadd.f32 %v434, %v1508
      %1510 = vmatmul.bf16.gmra.mxu0 %v844
      %v1511 = vpop.f32.mrf.mxu0
      %v1512 = vadd.f32 %v434, %v1511
      %v1513 = vpop.f32.mrf.mxu0
      %v1514 = vadd.f32 %v434, %v1513
      %1515 = vmatmul.bf16.gmra.mxu0 %v852
      %v1516 = vpop.f32.mrf.mxu0
      %v1517 = vadd.f32 %v434, %v1516
      %v1518 = vpop.f32.mrf.mxu0
      %v1519 = vadd.f32 %v434, %v1518
      %1520 = vmatmul.bf16.gmra.mxu0 %v860
      %v1521 = vpop.f32.mrf.mxu0
      %v1522 = vadd.f32 %v434, %v1521
      %v1523 = vpop.f32.mrf.mxu0
      %v1524 = vadd.f32 %v434, %v1523
      %1525 = vmatmul.bf16.gmra.mxu0 %v868
      %v1526 = vpop.f32.mrf.mxu0
      %v1527 = vadd.f32 %v434, %v1526
      %v1528 = vpop.f32.mrf.mxu0
      %v1529 = vadd.f32 %v434, %v1528
      %1530 = vmatmul.bf16.gmra.mxu0 %v876
      %v1531 = vpop.f32.mrf.mxu0
      %v1532 = vadd.f32 %v434, %v1531
      %v1533 = vpop.f32.mrf.mxu0
      %v1534 = vadd.f32 %v434, %v1533
      %1535 = vmatmul.bf16.gmra.mxu0 %v884
      %v1536 = vpop.f32.mrf.mxu0
      %v1537 = vadd.f32 %v434, %v1536
      %v1538 = vpop.f32.mrf.mxu0
      %v1539 = vadd.f32 %v434, %v1538
      %1540 = vmatmul.bf16.gmra.mxu0 %v892
      %v1541 = vpop.f32.mrf.mxu0
      %v1542 = vadd.f32 %v434, %v1541
      %v1543 = vpop.f32.mrf.mxu0
      %v1544 = vadd.f32 %v434, %v1543
      %1545 = vmatmul.bf16.gmra.mxu0 %v900
      %v1546 = vpop.f32.mrf.mxu0
      %v1547 = vadd.f32 %v434, %v1546
      %v1548 = vpop.f32.mrf.mxu0
      %v1549 = vadd.f32 %v434, %v1548
      %1550 = vmatmul.bf16.gmra.mxu0 %v908
      %v1551 = vpop.f32.mrf.mxu0
      %v1552 = vadd.f32 %v434, %v1551
      %v1553 = vpop.f32.mrf.mxu0
      %v1554 = vadd.f32 %v434, %v1553
      %1555 = vmatmul.bf16.gmra.mxu0 %v916
      %v1556 = vpop.f32.mrf.mxu0
      %v1557 = vadd.f32 %v434, %v1556
      %v1558 = vpop.f32.mrf.mxu0
      %v1559 = vadd.f32 %v434, %v1558
      %1560 = vmatmul.bf16.gmra.mxu0 %v924
      %v1561 = vpop.f32.mrf.mxu0
      %v1562 = vadd.f32 %v434, %v1561
      %v1563 = vpop.f32.mrf.mxu0
      %v1564 = vadd.f32 %v434, %v1563
      %1565 = vmatmul.bf16.gmra.mxu0 %v932
      %v1566 = vpop.f32.mrf.mxu0
      %v1567 = vadd.f32 %v434, %v1566
      %v1568 = vpop.f32.mrf.mxu0
      %v1569 = vadd.f32 %v434, %v1568
      %1570 = vmatmul.bf16.gmra.mxu0 %v940
      %v1571 = vpop.f32.mrf.mxu0
      %v1572 = vadd.f32 %v434, %v1571
      %v1573 = vpop.f32.mrf.mxu0
      %v1574 = vadd.f32 %v434, %v1573
      %1575 = vdwg.mxu0
      %1576 = vmatpush.bf16.msra.mxu0 %v1327
      %1577 = vmatpush.bf16.msra.mxu0 %v1326
      %1578 = vmatpush.bf16.msra.mxu0 %v1325
      %1579 = vmatpush.bf16.msra.mxu0 %v1324
      %1580 = vmatpush.bf16.msra.mxu0 %v1323
      %1581 = vmatpush.bf16.msra.mxu0 %v1322
      %1582 = vmatpush.bf16.msra.mxu0 %v1321
      %1583 = vmatpush.bf16.msra.mxu0 %v1320
      %1584 = vmatmul.bf16.gmra.mxu0 %v821
      %v1585 = vpop.f32.mrf.mxu0
      %v1586 = vadd.f32 %v1497, %v1585
      %v1587 = vpop.f32.mrf.mxu0
      %v1588 = vadd.f32 %v1499, %v1587
      %1589 = vmatmul.bf16.gmra.mxu0 %v829
      %v1590 = vpop.f32.mrf.mxu0
      %v1591 = vadd.f32 %v1502, %v1590
      %v1592 = vpop.f32.mrf.mxu0
      %v1593 = vadd.f32 %v1504, %v1592
      %1594 = vmatmul.bf16.gmra.mxu0 %v837
      %v1595 = vpop.f32.mrf.mxu0
      %v1596 = vadd.f32 %v1507, %v1595
      %v1597 = vpop.f32.mrf.mxu0
      %v1598 = vadd.f32 %v1509, %v1597
      %1599 = vmatmul.bf16.gmra.mxu0 %v845
      %v1600 = vpop.f32.mrf.mxu0
      %v1601 = vadd.f32 %v1512, %v1600
      %v1602 = vpop.f32.mrf.mxu0
      %v1603 = vadd.f32 %v1514, %v1602
      %1604 = vmatmul.bf16.gmra.mxu0 %v853
      %v1605 = vpop.f32.mrf.mxu0
      %v1606 = vadd.f32 %v1517, %v1605
      %v1607 = vpop.f32.mrf.mxu0
      %v1608 = vadd.f32 %v1519, %v1607
      %1609 = vmatmul.bf16.gmra.mxu0 %v861
      %v1610 = vpop.f32.mrf.mxu0
      %v1611 = vadd.f32 %v1522, %v1610
      %v1612 = vpop.f32.mrf.mxu0
      %v1613 = vadd.f32 %v1524, %v1612
      %1614 = vmatmul.bf16.gmra.mxu0 %v869
      %v1615 = vpop.f32.mrf.mxu0
      %v1616 = vadd.f32 %v1527, %v1615
      %v1617 = vpop.f32.mrf.mxu0
      %v1618 = vadd.f32 %v1529, %v1617
      %1619 = vmatmul.bf16.gmra.mxu0 %v877
      %v1620 = vpop.f32.mrf.mxu0
      %v1621 = vadd.f32 %v1532, %v1620
      %v1622 = vpop.f32.mrf.mxu0
      %v1623 = vadd.f32 %v1534, %v1622
      %1624 = vmatmul.bf16.gmra.mxu0 %v885
      %v1625 = vpop.f32.mrf.mxu0
      %v1626 = vadd.f32 %v1537, %v1625
      %v1627 = vpop.f32.mrf.mxu0
      %v1628 = vadd.f32 %v1539, %v1627
      %1629 = vmatmul.bf16.gmra.mxu0 %v893
      %v1630 = vpop.f32.mrf.mxu0
      %v1631 = vadd.f32 %v1542, %v1630
      %v1632 = vpop.f32.mrf.mxu0
      %v1633 = vadd.f32 %v1544, %v1632
      %1634 = vmatmul.bf16.gmra.mxu0 %v901
      %v1635 = vpop.f32.mrf.mxu0
      %v1636 = vadd.f32 %v1547, %v1635
      %v1637 = vpop.f32.mrf.mxu0
      %v1638 = vadd.f32 %v1549, %v1637
      %1639 = vmatmul.bf16.gmra.mxu0 %v909
      %v1640 = vpop.f32.mrf.mxu0
      %v1641 = vadd.f32 %v1552, %v1640
      %v1642 = vpop.f32.mrf.mxu0
      %v1643 = vadd.f32 %v1554, %v1642
      %1644 = vmatmul.bf16.gmra.mxu0 %v917
      %v1645 = vpop.f32.mrf.mxu0
      %v1646 = vadd.f32 %v1557, %v1645
      %v1647 = vpop.f32.mrf.mxu0
      %v1648 = vadd.f32 %v1559, %v1647
      %1649 = vmatmul.bf16.gmra.mxu0 %v925
      %v1650 = vpop.f32.mrf.mxu0
      %v1651 = vadd.f32 %v1562, %v1650
      %v1652 = vpop.f32.mrf.mxu0
      %v1653 = vadd.f32 %v1564, %v1652
      %1654 = vmatmul.bf16.gmra.mxu0 %v933
      %v1655 = vpop.f32.mrf.mxu0
      %v1656 = vadd.f32 %v1567, %v1655
      %v1657 = vpop.f32.mrf.mxu0
      %v1658 = vadd.f32 %v1569, %v1657
      %1659 = vmatmul.bf16.gmra.mxu0 %v941
      %v1660 = vpop.f32.mrf.mxu0
      %v1661 = vadd.f32 %v1572, %v1660
      %v1662 = vpop.f32.mrf.mxu0
      %v1663 = vadd.f32 %v1574, %v1662
      %1664 = vdwg.mxu0
      %1665 = vmatpush.bf16.msra.mxu0 %v1335
      %1666 = vmatpush.bf16.msra.mxu0 %v1334
      %1667 = vmatpush.bf16.msra.mxu0 %v1333
      %1668 = vmatpush.bf16.msra.mxu0 %v1332
      %1669 = vmatpush.bf16.msra.mxu0 %v1331
      %1670 = vmatpush.bf16.msra.mxu0 %v1330
      %1671 = vmatpush.bf16.msra.mxu0 %v1329
      %1672 = vmatpush.bf16.msra.mxu0 %v1328
      %1673 = vmatmul.bf16.gmra.mxu0 %v822
      %v1674 = vpop.f32.mrf.mxu0
      %v1675 = vadd.f32 %v1586, %v1674
      %v1676 = vpop.f32.mrf.mxu0
      %v1677 = vadd.f32 %v1588, %v1676
      %1678 = vmatmul.bf16.gmra.mxu0 %v830
      %v1679 = vpop.f32.mrf.mxu0
      %v1680 = vadd.f32 %v1591, %v1679
      %v1681 = vpop.f32.mrf.mxu0
      %v1682 = vadd.f32 %v1593, %v1681
      %1683 = vmatmul.bf16.gmra.mxu0 %v838
      %v1684 = vpop.f32.mrf.mxu0
      %v1685 = vadd.f32 %v1596, %v1684
      %v1686 = vpop.f32.mrf.mxu0
      %v1687 = vadd.f32 %v1598, %v1686
      %1688 = vmatmul.bf16.gmra.mxu0 %v846
      %v1689 = vpop.f32.mrf.mxu0
      %v1690 = vadd.f32 %v1601, %v1689
      %v1691 = vpop.f32.mrf.mxu0
      %v1692 = vadd.f32 %v1603, %v1691
      %1693 = vmatmul.bf16.gmra.mxu0 %v854
      %v1694 = vpop.f32.mrf.mxu0
      %v1695 = vadd.f32 %v1606, %v1694
      %v1696 = vpop.f32.mrf.mxu0
      %v1697 = vadd.f32 %v1608, %v1696
      %1698 = vmatmul.bf16.gmra.mxu0 %v862
      %v1699 = vpop.f32.mrf.mxu0
      %v1700 = vadd.f32 %v1611, %v1699
      %v1701 = vpop.f32.mrf.mxu0
      %v1702 = vadd.f32 %v1613, %v1701
      %1703 = vmatmul.bf16.gmra.mxu0 %v870
      %v1704 = vpop.f32.mrf.mxu0
      %v1705 = vadd.f32 %v1616, %v1704
      %v1706 = vpop.f32.mrf.mxu0
      %v1707 = vadd.f32 %v1618, %v1706
      %1708 = vmatmul.bf16.gmra.mxu0 %v878
      %v1709 = vpop.f32.mrf.mxu0
      %v1710 = vadd.f32 %v1621, %v1709
      %v1711 = vpop.f32.mrf.mxu0
      %v1712 = vadd.f32 %v1623, %v1711
      %1713 = vmatmul.bf16.gmra.mxu0 %v886
      %v1714 = vpop.f32.mrf.mxu0
      %v1715 = vadd.f32 %v1626, %v1714
      %v1716 = vpop.f32.mrf.mxu0
      %v1717 = vadd.f32 %v1628, %v1716
      %1718 = vmatmul.bf16.gmra.mxu0 %v894
      %v1719 = vpop.f32.mrf.mxu0
      %v1720 = vadd.f32 %v1631, %v1719
      %v1721 = vpop.f32.mrf.mxu0
      %v1722 = vadd.f32 %v1633, %v1721
      %1723 = vmatmul.bf16.gmra.mxu0 %v902
      %v1724 = vpop.f32.mrf.mxu0
      %v1725 = vadd.f32 %v1636, %v1724
      %v1726 = vpop.f32.mrf.mxu0
      %v1727 = vadd.f32 %v1638, %v1726
      %1728 = vmatmul.bf16.gmra.mxu0 %v910
      %v1729 = vpop.f32.mrf.mxu0
      %v1730 = vadd.f32 %v1641, %v1729
      %v1731 = vpop.f32.mrf.mxu0
      %v1732 = vadd.f32 %v1643, %v1731
      %1733 = vmatmul.bf16.gmra.mxu0 %v918
      %v1734 = vpop.f32.mrf.mxu0
      %v1735 = vadd.f32 %v1646, %v1734
      %v1736 = vpop.f32.mrf.mxu0
      %v1737 = vadd.f32 %v1648, %v1736
      %1738 = vmatmul.bf16.gmra.mxu0 %v926
      %v1739 = vpop.f32.mrf.mxu0
      %v1740 = vadd.f32 %v1651, %v1739
      %v1741 = vpop.f32.mrf.mxu0
      %v1742 = vadd.f32 %v1653, %v1741
      %1743 = vmatmul.bf16.gmra.mxu0 %v934
      %v1744 = vpop.f32.mrf.mxu0
      %v1745 = vadd.f32 %v1656, %v1744
      %v1746 = vpop.f32.mrf.mxu0
      %v1747 = vadd.f32 %v1658, %v1746
      %1748 = vmatmul.bf16.gmra.mxu0 %v942
      %v1749 = vpop.f32.mrf.mxu0
      %v1750 = vadd.f32 %v1661, %v1749
      %v1751 = vpop.f32.mrf.mxu0
      %v1752 = vadd.f32 %v1663, %v1751
      %1753 = vdwg.mxu0
      %1754 = vmatpush.bf16.msra.mxu0 %v1343
      %1755 = vmatpush.bf16.msra.mxu0 %v1342
      %1756 = vmatpush.bf16.msra.mxu0 %v1341
      %1757 = vmatpush.bf16.msra.mxu0 %v1340
      %1758 = vmatpush.bf16.msra.mxu0 %v1339
      %1759 = vmatpush.bf16.msra.mxu0 %v1338
      %1760 = vmatpush.bf16.msra.mxu0 %v1337
      %1761 = vmatpush.bf16.msra.mxu0 %v1336
      %1762 = vmatmul.bf16.gmra.mxu0 %v823
      %v1763 = vpop.f32.mrf.mxu0
      %v1764 = vadd.f32 %v1675, %v1763
      %v1765 = vpop.f32.mrf.mxu0
      %v1766 = vadd.f32 %v1677, %v1765
      %1767 = vmatmul.bf16.gmra.mxu0 %v831
      %v1768 = vpop.f32.mrf.mxu0
      %v1769 = vadd.f32 %v1680, %v1768
      %v1770 = vpop.f32.mrf.mxu0
      %v1771 = vadd.f32 %v1682, %v1770
      %1772 = vmatmul.bf16.gmra.mxu0 %v839
      %v1773 = vpop.f32.mrf.mxu0
      %v1774 = vadd.f32 %v1685, %v1773
      %v1775 = vpop.f32.mrf.mxu0
      %v1776 = vadd.f32 %v1687, %v1775
      %1777 = vmatmul.bf16.gmra.mxu0 %v847
      %v1778 = vpop.f32.mrf.mxu0
      %v1779 = vadd.f32 %v1690, %v1778
      %v1780 = vpop.f32.mrf.mxu0
      %v1781 = vadd.f32 %v1692, %v1780
      %1782 = vmatmul.bf16.gmra.mxu0 %v855
      %v1783 = vpop.f32.mrf.mxu0
      %v1784 = vadd.f32 %v1695, %v1783
      %v1785 = vpop.f32.mrf.mxu0
      %v1786 = vadd.f32 %v1697, %v1785
      %1787 = vmatmul.bf16.gmra.mxu0 %v863
      %v1788 = vpop.f32.mrf.mxu0
      %v1789 = vadd.f32 %v1700, %v1788
      %v1790 = vpop.f32.mrf.mxu0
      %v1791 = vadd.f32 %v1702, %v1790
      %1792 = vmatmul.bf16.gmra.mxu0 %v871
      %v1793 = vpop.f32.mrf.mxu0
      %v1794 = vadd.f32 %v1705, %v1793
      %v1795 = vpop.f32.mrf.mxu0
      %v1796 = vadd.f32 %v1707, %v1795
      %1797 = vmatmul.bf16.gmra.mxu0 %v879
      %v1798 = vpop.f32.mrf.mxu0
      %v1799 = vadd.f32 %v1710, %v1798
      %v1800 = vpop.f32.mrf.mxu0
      %v1801 = vadd.f32 %v1712, %v1800
      %1802 = vmatmul.bf16.gmra.mxu0 %v887
      %v1803 = vpop.f32.mrf.mxu0
      %v1804 = vadd.f32 %v1715, %v1803
      %v1805 = vpop.f32.mrf.mxu0
      %v1806 = vadd.f32 %v1717, %v1805
      %1807 = vmatmul.bf16.gmra.mxu0 %v895
      %v1808 = vpop.f32.mrf.mxu0
      %v1809 = vadd.f32 %v1720, %v1808
      %v1810 = vpop.f32.mrf.mxu0
      %v1811 = vadd.f32 %v1722, %v1810
      %1812 = vmatmul.bf16.gmra.mxu0 %v903
      %v1813 = vpop.f32.mrf.mxu0
      %v1814 = vadd.f32 %v1725, %v1813
      %v1815 = vpop.f32.mrf.mxu0
      %v1816 = vadd.f32 %v1727, %v1815
      %1817 = vmatmul.bf16.gmra.mxu0 %v911
      %v1818 = vpop.f32.mrf.mxu0
      %v1819 = vadd.f32 %v1730, %v1818
      %v1820 = vpop.f32.mrf.mxu0
      %v1821 = vadd.f32 %v1732, %v1820
      %1822 = vmatmul.bf16.gmra.mxu0 %v919
      %v1823 = vpop.f32.mrf.mxu0
      %v1824 = vadd.f32 %v1735, %v1823
      %v1825 = vpop.f32.mrf.mxu0
      %v1826 = vadd.f32 %v1737, %v1825
      %1827 = vmatmul.bf16.gmra.mxu0 %v927
      %v1828 = vpop.f32.mrf.mxu0
      %v1829 = vadd.f32 %v1740, %v1828
      %v1830 = vpop.f32.mrf.mxu0
      %v1831 = vadd.f32 %v1742, %v1830
      %1832 = vmatmul.bf16.gmra.mxu0 %v935
      %v1833 = vpop.f32.mrf.mxu0
      %v1834 = vadd.f32 %v1745, %v1833
      %v1835 = vpop.f32.mrf.mxu0
      %v1836 = vadd.f32 %v1747, %v1835
      %1837 = vmatmul.bf16.gmra.mxu0 %v943
      %v1838 = vpop.f32.mrf.mxu0
      %v1839 = vadd.f32 %v1750, %v1838
      %v1840 = vpop.f32.mrf.mxu0
      %v1841 = vadd.f32 %v1752, %v1840
      %1842 = vdwg.mxu0
      %1843 = vmatpush.bf16.msra.mxu0 %v1351
      %1844 = vmatpush.bf16.msra.mxu0 %v1350
      %1845 = vmatpush.bf16.msra.mxu0 %v1349
      %1846 = vmatpush.bf16.msra.mxu0 %v1348
      %1847 = vmatpush.bf16.msra.mxu0 %v1347
      %1848 = vmatpush.bf16.msra.mxu0 %v1346
      %1849 = vmatpush.bf16.msra.mxu0 %v1345
      %1850 = vmatpush.bf16.msra.mxu0 %v1344
      %1851 = vmatmul.bf16.gmra.mxu0 %v824
      %v1852 = vpop.f32.mrf.mxu0
      %v1853 = vadd.f32 %v1764, %v1852
      %v1854 = vpop.f32.mrf.mxu0
      %v1855 = vadd.f32 %v1766, %v1854
      %1856 = vmatmul.bf16.gmra.mxu0 %v832
      %v1857 = vpop.f32.mrf.mxu0
      %v1858 = vadd.f32 %v1769, %v1857
      %v1859 = vpop.f32.mrf.mxu0
      %v1860 = vadd.f32 %v1771, %v1859
      %1861 = vmatmul.bf16.gmra.mxu0 %v840
      %v1862 = vpop.f32.mrf.mxu0
      %v1863 = vadd.f32 %v1774, %v1862
      %v1864 = vpop.f32.mrf.mxu0
      %v1865 = vadd.f32 %v1776, %v1864
      %1866 = vmatmul.bf16.gmra.mxu0 %v848
      %v1867 = vpop.f32.mrf.mxu0
      %v1868 = vadd.f32 %v1779, %v1867
      %v1869 = vpop.f32.mrf.mxu0
      %v1870 = vadd.f32 %v1781, %v1869
      %1871 = vmatmul.bf16.gmra.mxu0 %v856
      %v1872 = vpop.f32.mrf.mxu0
      %v1873 = vadd.f32 %v1784, %v1872
      %v1874 = vpop.f32.mrf.mxu0
      %v1875 = vadd.f32 %v1786, %v1874
      %1876 = vmatmul.bf16.gmra.mxu0 %v864
      %v1877 = vpop.f32.mrf.mxu0
      %v1878 = vadd.f32 %v1789, %v1877
      %v1879 = vpop.f32.mrf.mxu0
      %v1880 = vadd.f32 %v1791, %v1879
      %1881 = vmatmul.bf16.gmra.mxu0 %v872
      %v1882 = vpop.f32.mrf.mxu0
      %v1883 = vadd.f32 %v1794, %v1882
      %v1884 = vpop.f32.mrf.mxu0
      %v1885 = vadd.f32 %v1796, %v1884
      %1886 = vmatmul.bf16.gmra.mxu0 %v880
      %v1887 = vpop.f32.mrf.mxu0
      %v1888 = vadd.f32 %v1799, %v1887
      %v1889 = vpop.f32.mrf.mxu0
      %v1890 = vadd.f32 %v1801, %v1889
      %1891 = vmatmul.bf16.gmra.mxu0 %v888
      %v1892 = vpop.f32.mrf.mxu0
      %v1893 = vadd.f32 %v1804, %v1892
      %v1894 = vpop.f32.mrf.mxu0
      %v1895 = vadd.f32 %v1806, %v1894
      %1896 = vmatmul.bf16.gmra.mxu0 %v896
      %v1897 = vpop.f32.mrf.mxu0
      %v1898 = vadd.f32 %v1809, %v1897
      %v1899 = vpop.f32.mrf.mxu0
      %v1900 = vadd.f32 %v1811, %v1899
      %1901 = vmatmul.bf16.gmra.mxu0 %v904
      %v1902 = vpop.f32.mrf.mxu0
      %v1903 = vadd.f32 %v1814, %v1902
      %v1904 = vpop.f32.mrf.mxu0
      %v1905 = vadd.f32 %v1816, %v1904
      %1906 = vmatmul.bf16.gmra.mxu0 %v912
      %v1907 = vpop.f32.mrf.mxu0
      %v1908 = vadd.f32 %v1819, %v1907
      %v1909 = vpop.f32.mrf.mxu0
      %v1910 = vadd.f32 %v1821, %v1909
      %1911 = vmatmul.bf16.gmra.mxu0 %v920
      %v1912 = vpop.f32.mrf.mxu0
      %v1913 = vadd.f32 %v1824, %v1912
      %v1914 = vpop.f32.mrf.mxu0
      %v1915 = vadd.f32 %v1826, %v1914
      %1916 = vmatmul.bf16.gmra.mxu0 %v928
      %v1917 = vpop.f32.mrf.mxu0
      %v1918 = vadd.f32 %v1829, %v1917
      %v1919 = vpop.f32.mrf.mxu0
      %v1920 = vadd.f32 %v1831, %v1919
      %1921 = vmatmul.bf16.gmra.mxu0 %v936
      %v1922 = vpop.f32.mrf.mxu0
      %v1923 = vadd.f32 %v1834, %v1922
      %v1924 = vpop.f32.mrf.mxu0
      %v1925 = vadd.f32 %v1836, %v1924
      %1926 = vmatmul.bf16.gmra.mxu0 %v944
      %v1927 = vpop.f32.mrf.mxu0
      %v1928 = vadd.f32 %v1839, %v1927
      %v1929 = vpop.f32.mrf.mxu0
      %v1930 = vadd.f32 %v1841, %v1929
      %1931 = vdwg.mxu0
      %1932 = vmatpush.bf16.msra.mxu0 %v1359
      %1933 = vmatpush.bf16.msra.mxu0 %v1358
      %1934 = vmatpush.bf16.msra.mxu0 %v1357
      %1935 = vmatpush.bf16.msra.mxu0 %v1356
      %1936 = vmatpush.bf16.msra.mxu0 %v1355
      %1937 = vmatpush.bf16.msra.mxu0 %v1354
      %1938 = vmatpush.bf16.msra.mxu0 %v1353
      %1939 = vmatpush.bf16.msra.mxu0 %v1352
      %1940 = vmatmul.bf16.gmra.mxu0 %v825
      %v1941 = vpop.f32.mrf.mxu0
      %v1942 = vadd.f32 %v1853, %v1941
      %v1943 = vpop.f32.mrf.mxu0
      %v1944 = vadd.f32 %v1855, %v1943
      %1945 = vmatmul.bf16.gmra.mxu0 %v833
      %v1946 = vpop.f32.mrf.mxu0
      %v1947 = vadd.f32 %v1858, %v1946
      %v1948 = vpop.f32.mrf.mxu0
      %v1949 = vadd.f32 %v1860, %v1948
      %1950 = vmatmul.bf16.gmra.mxu0 %v841
      %v1951 = vpop.f32.mrf.mxu0
      %v1952 = vadd.f32 %v1863, %v1951
      %v1953 = vpop.f32.mrf.mxu0
      %v1954 = vadd.f32 %v1865, %v1953
      %1955 = vmatmul.bf16.gmra.mxu0 %v849
      %v1956 = vpop.f32.mrf.mxu0
      %v1957 = vadd.f32 %v1868, %v1956
      %v1958 = vpop.f32.mrf.mxu0
      %v1959 = vadd.f32 %v1870, %v1958
      %1960 = vmatmul.bf16.gmra.mxu0 %v857
      %v1961 = vpop.f32.mrf.mxu0
      %v1962 = vadd.f32 %v1873, %v1961
      %v1963 = vpop.f32.mrf.mxu0
      %v1964 = vadd.f32 %v1875, %v1963
      %1965 = vmatmul.bf16.gmra.mxu0 %v865
      %v1966 = vpop.f32.mrf.mxu0
      %v1967 = vadd.f32 %v1878, %v1966
      %v1968 = vpop.f32.mrf.mxu0
      %v1969 = vadd.f32 %v1880, %v1968
      %1970 = vmatmul.bf16.gmra.mxu0 %v873
      %v1971 = vpop.f32.mrf.mxu0
      %v1972 = vadd.f32 %v1883, %v1971
      %v1973 = vpop.f32.mrf.mxu0
      %v1974 = vadd.f32 %v1885, %v1973
      %1975 = vmatmul.bf16.gmra.mxu0 %v881
      %v1976 = vpop.f32.mrf.mxu0
      %v1977 = vadd.f32 %v1888, %v1976
      %v1978 = vpop.f32.mrf.mxu0
      %v1979 = vadd.f32 %v1890, %v1978
      %1980 = vmatmul.bf16.gmra.mxu0 %v889
      %v1981 = vpop.f32.mrf.mxu0
      %v1982 = vadd.f32 %v1893, %v1981
      %v1983 = vpop.f32.mrf.mxu0
      %v1984 = vadd.f32 %v1895, %v1983
      %1985 = vmatmul.bf16.gmra.mxu0 %v897
      %v1986 = vpop.f32.mrf.mxu0
      %v1987 = vadd.f32 %v1898, %v1986
      %v1988 = vpop.f32.mrf.mxu0
      %v1989 = vadd.f32 %v1900, %v1988
      %1990 = vmatmul.bf16.gmra.mxu0 %v905
      %v1991 = vpop.f32.mrf.mxu0
      %v1992 = vadd.f32 %v1903, %v1991
      %v1993 = vpop.f32.mrf.mxu0
      %v1994 = vadd.f32 %v1905, %v1993
      %1995 = vmatmul.bf16.gmra.mxu0 %v913
      %v1996 = vpop.f32.mrf.mxu0
      %v1997 = vadd.f32 %v1908, %v1996
      %v1998 = vpop.f32.mrf.mxu0
      %v1999 = vadd.f32 %v1910, %v1998
      %2000 = vmatmul.bf16.gmra.mxu0 %v921
      %v2001 = vpop.f32.mrf.mxu0
      %v2002 = vadd.f32 %v1913, %v2001
      %v2003 = vpop.f32.mrf.mxu0
      %v2004 = vadd.f32 %v1915, %v2003
      %2005 = vmatmul.bf16.gmra.mxu0 %v929
      %v2006 = vpop.f32.mrf.mxu0
      %v2007 = vadd.f32 %v1918, %v2006
      %v2008 = vpop.f32.mrf.mxu0
      %v2009 = vadd.f32 %v1920, %v2008
      %2010 = vmatmul.bf16.gmra.mxu0 %v937
      %v2011 = vpop.f32.mrf.mxu0
      %v2012 = vadd.f32 %v1923, %v2011
      %v2013 = vpop.f32.mrf.mxu0
      %v2014 = vadd.f32 %v1925, %v2013
      %2015 = vmatmul.bf16.gmra.mxu0 %v945
      %v2016 = vpop.f32.mrf.mxu0
      %v2017 = vadd.f32 %v1928, %v2016
      %v2018 = vpop.f32.mrf.mxu0
      %v2019 = vadd.f32 %v1930, %v2018
      %2020 = vdwg.mxu0
      %2021 = vmatpush.bf16.msra.mxu0 %v1367
      %2022 = vmatpush.bf16.msra.mxu0 %v1366
      %2023 = vmatpush.bf16.msra.mxu0 %v1365
      %2024 = vmatpush.bf16.msra.mxu0 %v1364
      %2025 = vmatpush.bf16.msra.mxu0 %v1363
      %2026 = vmatpush.bf16.msra.mxu0 %v1362
      %2027 = vmatpush.bf16.msra.mxu0 %v1361
      %2028 = vmatpush.bf16.msra.mxu0 %v1360
      %2029 = vmatmul.bf16.gmra.mxu0 %v826
      %v2030 = vpop.f32.mrf.mxu0
      %v2031 = vadd.f32 %v1942, %v2030
      %v2032 = vpop.f32.mrf.mxu0
      %v2033 = vadd.f32 %v1944, %v2032
      %2034 = vmatmul.bf16.gmra.mxu0 %v834
      %v2035 = vpop.f32.mrf.mxu0
      %v2036 = vadd.f32 %v1947, %v2035
      %v2037 = vpop.f32.mrf.mxu0
      %v2038 = vadd.f32 %v1949, %v2037
      %2039 = vmatmul.bf16.gmra.mxu0 %v842
      %v2040 = vpop.f32.mrf.mxu0
      %v2041 = vadd.f32 %v1952, %v2040
      %v2042 = vpop.f32.mrf.mxu0
      %v2043 = vadd.f32 %v1954, %v2042
      %2044 = vmatmul.bf16.gmra.mxu0 %v850
      %v2045 = vpop.f32.mrf.mxu0
      %v2046 = vadd.f32 %v1957, %v2045
      %v2047 = vpop.f32.mrf.mxu0
      %v2048 = vadd.f32 %v1959, %v2047
      %2049 = vmatmul.bf16.gmra.mxu0 %v858
      %v2050 = vpop.f32.mrf.mxu0
      %v2051 = vadd.f32 %v1962, %v2050
      %v2052 = vpop.f32.mrf.mxu0
      %v2053 = vadd.f32 %v1964, %v2052
      %2054 = vmatmul.bf16.gmra.mxu0 %v866
      %v2055 = vpop.f32.mrf.mxu0
      %v2056 = vadd.f32 %v1967, %v2055
      %v2057 = vpop.f32.mrf.mxu0
      %v2058 = vadd.f32 %v1969, %v2057
      %2059 = vmatmul.bf16.gmra.mxu0 %v874
      %v2060 = vpop.f32.mrf.mxu0
      %v2061 = vadd.f32 %v1972, %v2060
      %v2062 = vpop.f32.mrf.mxu0
      %v2063 = vadd.f32 %v1974, %v2062
      %2064 = vmatmul.bf16.gmra.mxu0 %v882
      %v2065 = vpop.f32.mrf.mxu0
      %v2066 = vadd.f32 %v1977, %v2065
      %v2067 = vpop.f32.mrf.mxu0
      %v2068 = vadd.f32 %v1979, %v2067
      %2069 = vmatmul.bf16.gmra.mxu0 %v890
      %v2070 = vpop.f32.mrf.mxu0
      %v2071 = vadd.f32 %v1982, %v2070
      %v2072 = vpop.f32.mrf.mxu0
      %v2073 = vadd.f32 %v1984, %v2072
      %2074 = vmatmul.bf16.gmra.mxu0 %v898
      %v2075 = vpop.f32.mrf.mxu0
      %v2076 = vadd.f32 %v1987, %v2075
      %v2077 = vpop.f32.mrf.mxu0
      %v2078 = vadd.f32 %v1989, %v2077
      %2079 = vmatmul.bf16.gmra.mxu0 %v906
      %v2080 = vpop.f32.mrf.mxu0
      %v2081 = vadd.f32 %v1992, %v2080
      %v2082 = vpop.f32.mrf.mxu0
      %v2083 = vadd.f32 %v1994, %v2082
      %2084 = vmatmul.bf16.gmra.mxu0 %v914
      %v2085 = vpop.f32.mrf.mxu0
      %v2086 = vadd.f32 %v1997, %v2085
      %v2087 = vpop.f32.mrf.mxu0
      %v2088 = vadd.f32 %v1999, %v2087
      %2089 = vmatmul.bf16.gmra.mxu0 %v922
      %v2090 = vpop.f32.mrf.mxu0
      %v2091 = vadd.f32 %v2002, %v2090
      %v2092 = vpop.f32.mrf.mxu0
      %v2093 = vadd.f32 %v2004, %v2092
      %2094 = vmatmul.bf16.gmra.mxu0 %v930
      %v2095 = vpop.f32.mrf.mxu0
      %v2096 = vadd.f32 %v2007, %v2095
      %v2097 = vpop.f32.mrf.mxu0
      %v2098 = vadd.f32 %v2009, %v2097
      %2099 = vmatmul.bf16.gmra.mxu0 %v938
      %v2100 = vpop.f32.mrf.mxu0
      %v2101 = vadd.f32 %v2012, %v2100
      %v2102 = vpop.f32.mrf.mxu0
      %v2103 = vadd.f32 %v2014, %v2102
      %2104 = vmatmul.bf16.gmra.mxu0 %v946
      %v2105 = vpop.f32.mrf.mxu0
      %v2106 = vadd.f32 %v2017, %v2105
      %v2107 = vpop.f32.mrf.mxu0
      %v2108 = vadd.f32 %v2019, %v2107
      %2109 = vdwg.mxu0
      %2110 = vmatpush.bf16.msra.mxu0 0
      %2111 = vmatpush.bf16.msra.mxu0 %v1374
      %2112 = vmatpush.bf16.msra.mxu0 %v1373
      %2113 = vmatpush.bf16.msra.mxu0 %v1372
      %2114 = vmatpush.bf16.msra.mxu0 %v1371
      %2115 = vmatpush.bf16.msra.mxu0 %v1370
      %2116 = vmatpush.bf16.msra.mxu0 %v1369
      %2117 = vmatpush.bf16.msra.mxu0 %v1368
      %2118 = vmatmul.bf16.gmra.mxu0 %v1440
      %v2119 = vpop.f32.mrf.mxu0
      %v2120 = vadd.f32 %v2031, %v2119
      %v2121 = vpop.f32.mrf.mxu0
      %v2122 = vadd.f32 %v2033, %v2121
      %2123 = vmatmul.bf16.gmra.mxu0 %v1443
      %v2124 = vpop.f32.mrf.mxu0
      %v2125 = vadd.f32 %v2036, %v2124
      %v2126 = vpop.f32.mrf.mxu0
      %v2127 = vadd.f32 %v2038, %v2126
      %2128 = vmatmul.bf16.gmra.mxu0 %v1446
      %v2129 = vpop.f32.mrf.mxu0
      %v2130 = vadd.f32 %v2041, %v2129
      %v2131 = vpop.f32.mrf.mxu0
      %v2132 = vadd.f32 %v2043, %v2131
      %2133 = vmatmul.bf16.gmra.mxu0 %v1449
      %v2134 = vpop.f32.mrf.mxu0
      %v2135 = vadd.f32 %v2046, %v2134
      %v2136 = vpop.f32.mrf.mxu0
      %v2137 = vadd.f32 %v2048, %v2136
      %2138 = vmatmul.bf16.gmra.mxu0 %v1452
      %v2139 = vpop.f32.mrf.mxu0
      %v2140 = vadd.f32 %v2051, %v2139
      %v2141 = vpop.f32.mrf.mxu0
      %v2142 = vadd.f32 %v2053, %v2141
      %2143 = vmatmul.bf16.gmra.mxu0 %v1455
      %v2144 = vpop.f32.mrf.mxu0
      %v2145 = vadd.f32 %v2056, %v2144
      %v2146 = vpop.f32.mrf.mxu0
      %v2147 = vadd.f32 %v2058, %v2146
      %2148 = vmatmul.bf16.gmra.mxu0 %v1458
      %v2149 = vpop.f32.mrf.mxu0
      %v2150 = vadd.f32 %v2061, %v2149
      %v2151 = vpop.f32.mrf.mxu0
      %v2152 = vadd.f32 %v2063, %v2151
      %2153 = vmatmul.bf16.gmra.mxu0 %v1461
      %v2154 = vpop.f32.mrf.mxu0
      %v2155 = vadd.f32 %v2066, %v2154
      %v2156 = vpop.f32.mrf.mxu0
      %v2157 = vadd.f32 %v2068, %v2156
      %2158 = vmatmul.bf16.gmra.mxu0 %v1464
      %v2159 = vpop.f32.mrf.mxu0
      %v2160 = vadd.f32 %v2071, %v2159
      %v2161 = vpop.f32.mrf.mxu0
      %v2162 = vadd.f32 %v2073, %v2161
      %2163 = vmatmul.bf16.gmra.mxu0 %v1467
      %v2164 = vpop.f32.mrf.mxu0
      %v2165 = vadd.f32 %v2076, %v2164
      %v2166 = vpop.f32.mrf.mxu0
      %v2167 = vadd.f32 %v2078, %v2166
      %2168 = vmatmul.bf16.gmra.mxu0 %v1470
      %v2169 = vpop.f32.mrf.mxu0
      %v2170 = vadd.f32 %v2081, %v2169
      %v2171 = vpop.f32.mrf.mxu0
      %v2172 = vadd.f32 %v2083, %v2171
      %2173 = vmatmul.bf16.gmra.mxu0 %v1473
      %v2174 = vpop.f32.mrf.mxu0
      %v2175 = vadd.f32 %v2086, %v2174
      %v2176 = vpop.f32.mrf.mxu0
      %v2177 = vadd.f32 %v2088, %v2176
      %2178 = vmatmul.bf16.gmra.mxu0 %v1476
      %v2179 = vpop.f32.mrf.mxu0
      %v2180 = vadd.f32 %v2091, %v2179
      %v2181 = vpop.f32.mrf.mxu0
      %v2182 = vadd.f32 %v2093, %v2181
      %2183 = vmatmul.bf16.gmra.mxu0 %v1479
      %v2184 = vpop.f32.mrf.mxu0
      %v2185 = vadd.f32 %v2096, %v2184
      %v2186 = vpop.f32.mrf.mxu0
      %v2187 = vadd.f32 %v2098, %v2186
      %2188 = vmatmul.bf16.gmra.mxu0 %v1482
      %v2189 = vpop.f32.mrf.mxu0
      %v2190 = vadd.f32 %v2101, %v2189
      %v2191 = vpop.f32.mrf.mxu0
      %v2192 = vadd.f32 %v2103, %v2191
      %2193 = vmatmul.bf16.gmra.mxu0 %v1485
      %v2194 = vpop.f32.mrf.mxu0
      %v2195 = vadd.f32 %v2106, %v2194
      %v2196 = vpop.f32.mrf.mxu0
      %v2197 = vadd.f32 %v2108, %v2196
      %2198 = vdwg.mxu0
      %v2199 = vmax.f32 %v2120, 0.0
      %v2200 = vmax.f32 %v2122, 0.0
      %v2201 = vmax.f32 %v2125, 0.0
      %v2202 = vmax.f32 %v2127, 0.0
      %v2203 = vmax.f32 %v2130, 0.0
      %v2204 = vmax.f32 %v2132, 0.0
      %v2205 = vmax.f32 %v2135, 0.0
      %v2206 = vmax.f32 %v2137, 0.0
      %v2207 = vmax.f32 %v2140, 0.0
      %v2208 = vmax.f32 %v2142, 0.0
      %v2209 = vmax.f32 %v2145, 0.0
      %v2210 = vmax.f32 %v2147, 0.0
      %v2211 = vmax.f32 %v2150, 0.0
      %v2212 = vmax.f32 %v2152, 0.0
      %v2213 = vmax.f32 %v2155, 0.0
      %v2214 = vmax.f32 %v2157, 0.0
      %v2215 = vmax.f32 %v2160, 0.0
      %v2216 = vmax.f32 %v2162, 0.0
      %v2217 = vmax.f32 %v2165, 0.0
      %v2218 = vmax.f32 %v2167, 0.0
      %v2219 = vmax.f32 %v2170, 0.0
      %v2220 = vmax.f32 %v2172, 0.0
      %v2221 = vmax.f32 %v2175, 0.0
      %v2222 = vmax.f32 %v2177, 0.0
      %v2223 = vmax.f32 %v2180, 0.0
      %v2224 = vmax.f32 %v2182, 0.0
      %v2225 = vmax.f32 %v2185, 0.0
      %v2226 = vmax.f32 %v2187, 0.0
      %v2227 = vmax.f32 %v2190, 0.0
      %v2228 = vmax.f32 %v2192, 0.0
      %v2229 = vmax.f32 %v2195, 0.0
      %v2230 = vmax.f32 %v2197, 0.0
      %v2231 = vpack.c.bf16 %v2199, %v2199
      %v2232 = vpack.c.bf16 %v2200, %v2200
      %v2233 = vpack.c.bf16 %v2201, %v2201
      %v2234 = vpack.c.bf16 %v2202, %v2202
      %v2235 = vpack.c.bf16 %v2203, %v2203
      %v2236 = vpack.c.bf16 %v2204, %v2204
      %v2237 = vpack.c.bf16 %v2205, %v2205
      %v2238 = vpack.c.bf16 %v2206, %v2206
      %v2239 = vpack.c.bf16 %v2207, %v2207
      %v2240 = vpack.c.bf16 %v2208, %v2208
      %v2241 = vpack.c.bf16 %v2209, %v2209
      %v2242 = vpack.c.bf16 %v2210, %v2210
      %v2243 = vpack.c.bf16 %v2211, %v2211
      %v2244 = vpack.c.bf16 %v2212, %v2212
      %v2245 = vpack.c.bf16 %v2213, %v2213
      %v2246 = vpack.c.bf16 %v2214, %v2214
      %v2247 = vpack.c.bf16 %v2215, %v2215
      %v2248 = vpack.c.bf16 %v2216, %v2216
      %v2249 = vpack.c.bf16 %v2217, %v2217
      %v2250 = vpack.c.bf16 %v2218, %v2218
      %v2251 = vpack.c.bf16 %v2219, %v2219
      %v2252 = vpack.c.bf16 %v2220, %v2220
      %v2253 = vpack.c.bf16 %v2221, %v2221
      %v2254 = vpack.c.bf16 %v2222, %v2222
      %v2255 = vpack.c.bf16 %v2223, %v2223
      %v2256 = vpack.c.bf16 %v2224, %v2224
      %v2257 = vpack.c.bf16 %v2225, %v2225
      %v2258 = vpack.c.bf16 %v2226, %v2226
      %v2259 = vpack.c.bf16 %v2227, %v2227
      %v2260 = vpack.c.bf16 %v2228, %v2228
      %v2261 = vpack.c.bf16 %v2229, %v2229
      %v2262 = vpack.c.bf16 %v2230, %v2230
      %vm2263 = vcmask 519168
      %2264 = vst.msk [vmem:[%s175] sm:$0xf] %vm2263, %v2231
      %2265 = vst.msk [vmem:[%s175 + $0x4] sm:$0xf] %vm2263, %v2232
      %2266 = vst.msk [vmem:[%s175 + $0x8] sm:$0xf] %vm2263, %v2233
      %2267 = vst.msk [vmem:[%s175 + $0xc] sm:$0xf] %vm2263, %v2234
      %2268 = vst.msk [vmem:[%s175 + $0x10] sm:$0xf] %vm2263, %v2235
      %2269 = vst.msk [vmem:[%s175 + $0x14] sm:$0xf] %vm2263, %v2236
      %2270 = vst.msk [vmem:[%s175 + $0x18] sm:$0xf] %vm2263, %v2237
      %2271 = vst.msk [vmem:[%s175 + $0x1c] sm:$0xf] %vm2263, %v2238
      %2272 = vst.msk [vmem:[%s175 + $0x20] sm:$0xf] %vm2263, %v2239
      %2273 = vst.msk [vmem:[%s175 + $0x24] sm:$0xf] %vm2263, %v2240
      %2274 = vst.msk [vmem:[%s175 + $0x28] sm:$0xf] %vm2263, %v2241
      %2275 = vst.msk [vmem:[%s175 + $0x2c] sm:$0xf] %vm2263, %v2242
      %2276 = vst.msk [vmem:[%s175 + $0x30] sm:$0xf] %vm2263, %v2243
      %2277 = vst.msk [vmem:[%s175 + $0x34] sm:$0xf] %vm2263, %v2244
      %2278 = vst.msk [vmem:[%s175 + $0x38] sm:$0xf] %vm2263, %v2245
      %2279 = vst.msk [vmem:[%s175 + $0x3c] sm:$0xf] %vm2263, %v2246
      %2280 = vst.msk [vmem:[%s175 + $0x40] sm:$0xf] %vm2263, %v2247
      %2281 = vst.msk [vmem:[%s175 + $0x44] sm:$0xf] %vm2263, %v2248
      %2282 = vst.msk [vmem:[%s175 + $0x48] sm:$0xf] %vm2263, %v2249
      %2283 = vst.msk [vmem:[%s175 + $0x4c] sm:$0xf] %vm2263, %v2250
      %2284 = vst.msk [vmem:[%s175 + $0x50] sm:$0xf] %vm2263, %v2251
      %2285 = vst.msk [vmem:[%s175 + $0x54] sm:$0xf] %vm2263, %v2252
      %2286 = vst.msk [vmem:[%s175 + $0x58] sm:$0xf] %vm2263, %v2253
      %2287 = vst.msk [vmem:[%s175 + $0x5c] sm:$0xf] %vm2263, %v2254
      %2288 = vst.msk [vmem:[%s175 + $0x60] sm:$0xf] %vm2263, %v2255
      %2289 = vst.msk [vmem:[%s175 + $0x64] sm:$0xf] %vm2263, %v2256
      %2290 = vst.msk [vmem:[%s175 + $0x68] sm:$0xf] %vm2263, %v2257
      %2291 = vst.msk [vmem:[%s175 + $0x6c] sm:$0xf] %vm2263, %v2258
      %2292 = vst.msk [vmem:[%s175 + $0x70] sm:$0xf] %vm2263, %v2259
      %2293 = vst.msk [vmem:[%s175 + $0x74] sm:$0xf] %vm2263, %v2260
      %2294 = vst.msk [vmem:[%s175 + $0x78] sm:$0xf] %vm2263, %v2261
      %2295 = vst.msk [vmem:[%s175 + $0x7c] sm:$0xf] %vm2263, %v2262
      %s2296 = smul.u32 32, %s14
      %p2297 = scmp.lt.s32.totalorder %s2296, 63
      %s2298 = scalar_select %p2297, %s2296, 63
      %s2299 = smul.addr %s2298, 4
      %s2300 = scalar_lea.vmem %s3, %s2299
      // Predicated region
      $region33: #{deeplab_forward.31} parent=31 // pred_check
        %p2301 = pneg %p100
      $region34: #{deeplab_forward.31} parent=31 // pred_check_branch
        %2303 = sbr.rel (%p2301) target = $region36
      $region35: #{deeplab_forward.31} parent=31 // pred_region
        %s2304 = smul.u32 32, %s14
      $region36: #{deeplab_forward.31} parent=31 // pred_fallthru
        _
    $region32: #{deeplab_forward.31} parent=5 // pred_fallthru
      _
    %p2305 = scmp.le.s32.totalorder 2, %s9
    // Predicated region
    $region37: #{deeplab_forward.31} parent=5 // pred_check
      %p2306 = pneg %p2305
    $region38: #{deeplab_forward.31} parent=5 // pred_check_branch
      %2308 = sbr.rel (%p2306) target = $region40
    $region39: #{deeplab_forward.31} parent=5 // pred_region
      %s2309 = ssub.s32 %s9, 2
      // Predicated region
      $region41: #{deeplab_forward.31} parent=39 // pred_check
        %p2310 = pneg %p106
      $region42: #{deeplab_forward.31} parent=39 // pred_check_branch
        %2312 = sbr.rel (%p2310) target = $region44
      $region43: #{deeplab_forward.31} parent=39 // pred_region
        %s2313 = smul.u32 32, %s15
        %p2314 = scmp.lt.s32.totalorder %s2313, 63
        %s2315 = scalar_select %p2314, %s2313, 63
        %s2316 = smul.addr %s2315, 4
        %s2317 = scalar_lea.vmem %s3, %s2316
      $region44: #{deeplab_forward.31} parent=39 // pred_fallthru
        _
    $region40: #{deeplab_forward.31} parent=5 // pred_fallthru
      _
  $region6: #{deeplab_forward.31} parent=0 // loop_footer
    %s13 = sadd.s32 1, %s9
  $region7: #{deeplab_forward.31} parent=0 // loop_footer_branch
    %8 = sbr.rel target = $region3
  $region8: #{deeplab_forward.31} parent=0 // loop_exit
    _

// kernel: deeplab_forward.33
$region0: #{deeplab_forward.33}
  #allocation0 [shape = 'u32[]', space=smem, size = 0x4, offset = 0x4, fixed_abs, tag = 'smem constant byte address 0x4 - core index']
  #allocation1 [shape = 'u32[72,128]{1,0:T(1,128)}', space=vmem, size = 0x9000, scoped, tag = 'internal scratch']
  %s0 = inlined_call_operand.vmem [shape: bf16[512,64], index: 0, kind: input, shape index: {}]
  %s1 = inlined_call_operand.vmem [shape: bf16[64,2], index: 1, kind: input, shape index: {}]
  %s2 = inlined_call_operand.vmem [shape: f32[1,2], index: 2, kind: input, shape index: {}]
  %s3 = inlined_call_operand.vmem [shape: f32[512,2], index: 3, kind: output, shape index: {}]
  %s4 = sld [smem:[#allocation0]]
  $region45: #{deeplab_forward.33} parent=0
    _
  %s6 = ssub.s32 1, %s4
  %s7 = scalar_select 0, %s6, %s4
  loop: start=0, step=1, limit=4
  $region2: #{deeplab_forward.33} parent=0 // loop_pre_header
    _
  $region3: #{deeplab_forward.33} parent=0 // loop_header
    %s9 = sphi 0, %s13
    %p10 = scmp.ge.s32.totalorder %s9, 4
    %s19 = sphi 0, %s21
    %s22 = sphi 0, %s19
    %s23 = sphi 0, %s22
    %s39 = sphi 0, %s23
    %s43 = sphi 0, %s43
    %s45 = sphi 0, %s43
    %s46 = sphi 0, %s45
    %s60 = sphi 0, %s46
    %s64 = sphi 0, %s64
    %s66 = sphi 0, %s64
    %s67 = sphi 0, %s66
    %s81 = sphi 0, %s67
    %s87 = sphi 0, %s89
    %s90 = sphi 0, %s87
    %s91 = sphi 0, %s90
    %s107 = sphi 0, %s91
  $region4: #{deeplab_forward.33} parent=0 // loop_header_branch
    %12 = sbr.rel (%p10) target = $region8
  $region5: #{deeplab_forward.33} parent=0 // loop_body
    %s14 = ssub.s32 %s9, 1
    %s15 = ssub.s32 %s9, 2
    %s16 = sadd.s32 %s9, 1
    %s17 = ssub.s32 %s9, %s16
    %p18 = scmp.eq.s32.totalorder %s17, 0
    %s20 = sadd.s32 %s19, 1
    %s21 = scalar_select %p18, %s19, %s20
    %p24 = pneg %p18
    %p25 = scmp.eq.s32.totalorder %s9, 1
    %p26 = por %p24, %p25
    %p27 = scmp.ne.s32.totalorder %s19, %s22
    %p28 = scmp.eq.s32.totalorder %s9, 0
    %p29 = por %p27, %p28
    %p30 = scmp.ne.s32.totalorder %s19, %s22
    %p31 = scmp.eq.s32.totalorder %s14, 1
    %p32 = por %p30, %p31
    %p33 = scmp.ne.s32.totalorder %s22, %s23
    %p34 = scmp.eq.s32.totalorder %s14, 0
    %p35 = por %p33, %p34
    %p36 = scmp.ne.s32.totalorder %s22, %s23
    %p37 = scmp.eq.s32.totalorder %s15, 1
    %p38 = por %p36, %p37
    %p40 = scmp.ne.s32.totalorder %s23, %s39
    %p41 = scmp.eq.s32.totalorder %s15, 0
    %p42 = por %p40, %p41
    %s44 = sadd.s32 %s43, 1
    %p47 = scmp.eq.s32.totalorder %s9, 1
    %p48 = scmp.ne.s32.totalorder %s43, %s45
    %p49 = scmp.eq.s32.totalorder %s9, 0
    %p50 = por %p48, %p49
    %p51 = scmp.ne.s32.totalorder %s43, %s45
    %p52 = scmp.eq.s32.totalorder %s14, 1
    %p53 = por %p51, %p52
    %p54 = scmp.ne.s32.totalorder %s45, %s46
    %p55 = scmp.eq.s32.totalorder %s14, 0
    %p56 = por %p54, %p55
    %p57 = scmp.ne.s32.totalorder %s45, %s46
    %p58 = scmp.eq.s32.totalorder %s15, 1
    %p59 = por %p57, %p58
    %p61 = scmp.ne.s32.totalorder %s46, %s60
    %p62 = scmp.eq.s32.totalorder %s15, 0
    %p63 = por %p61, %p62
    %s65 = sadd.s32 %s64, 1
    %p68 = scmp.eq.s32.totalorder %s9, 1
    %p69 = scmp.ne.s32.totalorder %s64, %s66
    %p70 = scmp.eq.s32.totalorder %s9, 0
    %p71 = por %p69, %p70
    %p72 = scmp.ne.s32.totalorder %s64, %s66
    %p73 = scmp.eq.s32.totalorder %s14, 1
    %p74 = por %p72, %p73
    %p75 = scmp.ne.s32.totalorder %s66, %s67
    %p76 = scmp.eq.s32.totalorder %s14, 0
    %p77 = por %p75, %p76
    %p78 = scmp.ne.s32.totalorder %s66, %s67
    %p79 = scmp.eq.s32.totalorder %s15, 1
    %p80 = por %p78, %p79
    %p82 = scmp.ne.s32.totalorder %s67, %s81
    %p83 = scmp.eq.s32.totalorder %s15, 0
    %p84 = por %p82, %p83
    %s85 = ssub.s32 %s9, %s16
    %p86 = scmp.eq.s32.totalorder %s85, 0
    %s88 = sadd.s32 %s87, 1
    %s89 = scalar_select %p86, %s87, %s88
    %p92 = pneg %p86
    %p93 = scmp.eq.s32.totalorder %s9, 1
    %p94 = por %p92, %p93
    %p95 = scmp.ne.s32.totalorder %s87, %s90
    %p96 = scmp.eq.s32.totalorder %s9, 0
    %p97 = por %p95, %p96
    %p98 = scmp.ne.s32.totalorder %s87, %s90
    %p99 = scmp.eq.s32.totalorder %s14, 1
    %p100 = por %p98, %p99
    %p101 = scmp.ne.s32.totalorder %s90, %s91
    %p102 = scmp.eq.s32.totalorder %s14, 0
    %p103 = por %p101, %p102
    %p104 = scmp.ne.s32.totalorder %s90, %s91
    %p105 = scmp.eq.s32.totalorder %s15, 1
    %p106 = por %p104, %p105
    %p108 = scmp.ne.s32.totalorder %s91, %s107
    %p109 = scmp.eq.s32.totalorder %s15, 0
    %p110 = por %p108, %p109
    %p111 = scmp.le.s32.totalorder 1, %s9
    %p112 = scmp.lt.s32.totalorder %s9, 3
    %p113 = pnand %p111, %p112
    %p114 = pneg %p113
    // Predicated region
    $region9: #{deeplab_forward.33} parent=5 // pred_check
      _
    $region10: #{deeplab_forward.33} parent=5 // pred_check_branch
      %116 = sbr.rel (%p113) target = $region12
    $region11: #{deeplab_forward.33} parent=5 // pred_region
      %s117 = ssub.s32 %s9, 1
      // Predicated region
      $region13: #{deeplab_forward.33} parent=11 // pred_check
        %p118 = pneg %p56
      $region14: #{deeplab_forward.33} parent=11 // pred_check_branch
        %120 = sbr.rel (%p118) target = $region16
      $region15: #{deeplab_forward.33} parent=11 // pred_region
        _
      $region16: #{deeplab_forward.33} parent=11 // pred_fallthru
        _
      // Predicated region
      $region17: #{deeplab_forward.33} parent=11 // pred_check
        %p121 = pneg %p77
      $region18: #{deeplab_forward.33} parent=11 // pred_check_branch
        %123 = sbr.rel (%p121) target = $region20
      $region19: #{deeplab_forward.33} parent=11 // pred_region
        _
      $region20: #{deeplab_forward.33} parent=11 // pred_fallthru
        _
    $region12: #{deeplab_forward.33} parent=5 // pred_fallthru
      _
    %p124 = scmp.lt.s32.totalorder %s9, 2
    // Predicated region
    $region21: #{deeplab_forward.33} parent=5 // pred_check
      %p125 = pneg %p124
    $region22: #{deeplab_forward.33} parent=5 // pred_check_branch
      %127 = sbr.rel (%p125) target = $region24
    $region23: #{deeplab_forward.33} parent=5 // pred_region
      // Predicated region
      $region25: #{deeplab_forward.33} parent=23 // pred_check
        %p128 = pneg %p29
      $region26: #{deeplab_forward.33} parent=23 // pred_check_branch
        %130 = sbr.rel (%p128) target = $region28
      $region27: #{deeplab_forward.33} parent=23 // pred_region
        %s131 = smul.u32 32, %s9
        %p132 = scmp.lt.s32.totalorder %s131, 63
        %s133 = scalar_select %p132, %s131, 63
        %s134 = smul.addr %s133, 4
        %s135 = scalar_lea.vmem %s0, %s134
        %s136 = smul.u32 32, %s9
      $region28: #{deeplab_forward.33} parent=23 // pred_fallthru
        _
    $region24: #{deeplab_forward.33} parent=5 // pred_fallthru
      _
    %p137 = scmp.le.s32.totalorder 1, %s9
    %p138 = scmp.lt.s32.totalorder %s9, 3
    %p139 = pnand %p137, %p138
    %p140 = pneg %p139
    // Predicated region
    $region29: #{deeplab_forward.33} parent=5 // pred_check
      _
    $region30: #{deeplab_forward.33} parent=5 // pred_check_branch
      %142 = sbr.rel (%p139) target = $region32
    $region31: #{deeplab_forward.33} parent=5 // pred_region
      %s143 = ssub.s32 %s9, 1
      %s144 = smul.u32 32, %s14
      %p145 = scmp.lt.s32.totalorder %s144, 63
      %s146 = scalar_select %p145, %s144, 63
      %s147 = smul.addr %s146, 4
      %s148 = scalar_lea.vmem %s0, %s147
      %p149 = pneg %p35
      %p150 = pneg %p32
      %p151 = pneg %p56
      %p152 = pneg %p53
      %p153 = pneg %p77
      %p154 = pneg %p74
      %p155 = pneg %p103
      %p156 = pneg %p100
      %s157 = smul.u32 32, %s14
      %p158 = scmp.lt.s32.totalorder %s157, 63
      %s159 = scalar_select %p158, %s157, 63
      %s160 = smul.addr %s159, 8
      %s161 = scalar_lea.vmem %s3, %s160
      %s162 = smul.u32 32, %s14
      %p163 = scmp.lt.s32.totalorder %s162, 63
      %s164 = scalar_select %p163, %s162, 63
      %s165 = smul.addr %s164, 4
      %s166 = scalar_lea.vmem %s0, %s165
      %s167 = smul.u32 32, %s14
      %s168 = smul.u32 32, %s14
      %p169 = scmp.lt.s32.totalorder %s168, 63
      %s170 = scalar_select %p169, %s168, 63
      %s171 = smul.addr %s170, 8
      %s172 = scalar_lea.vmem %s3, %s171
      %s173 = smul.u32 32, %s14
      %v175 = vld [vmem:[%s166] sm:$0xf]
      %v176 = vld [vmem:[%s166 + $0x4] sm:$0xf]
      %v177 = vld [vmem:[%s166 + $0x8] sm:$0xf]
      %v178 = vld [vmem:[%s166 + $0xc] sm:$0xf]
      %v179 = vld [vmem:[%s166 + $0x10] sm:$0xf]
      %v180 = vld [vmem:[%s166 + $0x14] sm:$0xf]
      %v181 = vld [vmem:[%s166 + $0x18] sm:$0xf]
      %v182 = vld [vmem:[%s166 + $0x1c] sm:$0xf]
      %v183 = vld [vmem:[%s166 + $0x20] sm:$0xf]
      %v184 = vld [vmem:[%s166 + $0x24] sm:$0xf]
      %v185 = vld [vmem:[%s166 + $0x28] sm:$0xf]
      %v186 = vld [vmem:[%s166 + $0x2c] sm:$0xf]
      %v187 = vld [vmem:[%s166 + $0x30] sm:$0xf]
      %v188 = vld [vmem:[%s166 + $0x34] sm:$0xf]
      %v189 = vld [vmem:[%s166 + $0x38] sm:$0xf]
      %v190 = vld [vmem:[%s166 + $0x3c] sm:$0xf]
      %v191 = vld [vmem:[%s166 + $0x40] sm:$0xf]
      %v192 = vld [vmem:[%s166 + $0x44] sm:$0xf]
      %v193 = vld [vmem:[%s166 + $0x48] sm:$0xf]
      %v194 = vld [vmem:[%s166 + $0x4c] sm:$0xf]
      %v195 = vld [vmem:[%s166 + $0x50] sm:$0xf]
      %v196 = vld [vmem:[%s166 + $0x54] sm:$0xf]
      %v197 = vld [vmem:[%s166 + $0x58] sm:$0xf]
      %v198 = vld [vmem:[%s166 + $0x5c] sm:$0xf]
      %v199 = vld [vmem:[%s166 + $0x60] sm:$0xf]
      %v200 = vld [vmem:[%s166 + $0x64] sm:$0xf]
      %v201 = vld [vmem:[%s166 + $0x68] sm:$0xf]
      %v202 = vld [vmem:[%s166 + $0x6c] sm:$0xf]
      %v203 = vld [vmem:[%s166 + $0x70] sm:$0xf]
      %v204 = vld [vmem:[%s166 + $0x74] sm:$0xf]
      %v205 = vld [vmem:[%s166 + $0x78] sm:$0xf]
      %v206 = vld [vmem:[%s166 + $0x7c] sm:$0xf]
      %v207 = vld [vmem:[%s1] sm:$0xf]
      %v208 = vld [vmem:[%s1 + $0x4] sm:$0xf]
      %v209 = vld [vmem:[%s1 + $0x8] sm:$0xf]
      %v210 = vld [vmem:[%s1 + $0xc] sm:$0xf]
      %v211 = vld [vmem:[%s1 + $0x10] sm:$0xf]
      %v212 = vld [vmem:[%s1 + $0x14] sm:$0xf]
      %v213 = vld [vmem:[%s1 + $0x18] sm:$0xf]
      %v214 = vld [vmem:[%s1 + $0x1c] sm:$0xf]
      %v215 = vld [vmem:[%s2] sm:$0x1]
      %v217 = vperm.slane %v215, 0
      %v251 = vunpack.c.l.b16 %v175
      %v252 = vunpack.c.l.b16 %v176
      %v253 = vunpack.c.l.b16 %v177
      %v254 = vunpack.c.l.b16 %v178
      %v255 = vunpack.c.l.b16 %v179
      %v256 = vunpack.c.l.b16 %v180
      %v257 = vunpack.c.l.b16 %v181
      %v258 = vunpack.c.l.b16 %v182
      %v259 = vunpack.c.l.b16 %v183
      %v260 = vunpack.c.l.b16 %v184
      %v261 = vunpack.c.l.b16 %v185
      %v262 = vunpack.c.l.b16 %v186
      %v263 = vunpack.c.l.b16 %v187
      %v264 = vunpack.c.l.b16 %v188
      %v265 = vunpack.c.l.b16 %v189
      %v266 = vunpack.c.l.b16 %v190
      %v267 = vunpack.c.l.b16 %v191
      %v268 = vunpack.c.l.b16 %v192
      %v269 = vunpack.c.l.b16 %v193
      %v270 = vunpack.c.l.b16 %v194
      %v271 = vunpack.c.l.b16 %v195
      %v272 = vunpack.c.l.b16 %v196
      %v273 = vunpack.c.l.b16 %v197
      %v274 = vunpack.c.l.b16 %v198
      %v275 = vunpack.c.l.b16 %v199
      %v276 = vunpack.c.l.b16 %v200
      %v277 = vunpack.c.l.b16 %v201
      %v278 = vunpack.c.l.b16 %v202
      %v279 = vunpack.c.l.b16 %v203
      %v280 = vunpack.c.l.b16 %v204
      %v281 = vunpack.c.l.b16 %v205
      %v282 = vunpack.c.l.b16 %v206
      %v283 = vpack.c.b16 %v252, %v251
      %v284 = vpack.c.b16 %v254, %v253
      %v285 = vpack.c.b16 %v256, %v255
      %v286 = vpack.c.b16 %v258, %v257
      %v287 = vpack.c.b16 %v260, %v259
      %v288 = vpack.c.b16 %v262, %v261
      %v289 = vpack.c.b16 %v264, %v263
      %v290 = vpack.c.b16 %v266, %v265
      %v291 = vpack.c.b16 %v268, %v267
      %v292 = vpack.c.b16 %v270, %v269
      %v293 = vpack.c.b16 %v272, %v271
      %v294 = vpack.c.b16 %v274, %v273
      %v295 = vpack.c.b16 %v276, %v275
      %v296 = vpack.c.b16 %v278, %v277
      %v297 = vpack.c.b16 %v280, %v279
      %v298 = vpack.c.b16 %v282, %v281
      %v307 = vunpack.c.l.b16 %v207
      %v308 = vunpack.c.l.b16 %v208
      %v309 = vunpack.c.l.b16 %v209
      %v310 = vunpack.c.l.b16 %v210
      %v311 = vunpack.c.l.b16 %v211
      %v312 = vunpack.c.l.b16 %v212
      %v313 = vunpack.c.l.b16 %v213
      %v314 = vunpack.c.l.b16 %v214
      %v315 = vpack.c.b16 %v308, %v307
      %v316 = vpack.c.b16 %v310, %v309
      %v317 = vpack.c.b16 %v312, %v311
      %v318 = vpack.c.b16 %v314, %v313
      %vm323 = vcmask 523264
      %v325 = vsel %vm323, %v283, 0
      %v328 = vsel %vm323, %v284, 0
      %v331 = vsel %vm323, %v285, 0
      %v334 = vsel %vm323, %v286, 0
      %v337 = vsel %vm323, %v287, 0
      %v340 = vsel %vm323, %v288, 0
      %v343 = vsel %vm323, %v289, 0
      %v346 = vsel %vm323, %v290, 0
      %v349 = vsel %vm323, %v291, 0
      %v352 = vsel %vm323, %v292, 0
      %v355 = vsel %vm323, %v293, 0
      %v358 = vsel %vm323, %v294, 0
      %v361 = vsel %vm323, %v295, 0
      %v364 = vsel %vm323, %v296, 0
      %v367 = vsel %vm323, %v297, 0
      %v370 = vsel %vm323, %v298, 0
      %372 = vmatpush.bf16.msra.mxu0 0
      %373 = vmatpush.bf16.msra.mxu0 0
      %374 = vmatpush.bf16.msra.mxu0 0
      %375 = vmatpush.bf16.msra.mxu0 0
      %376 = vmatpush.bf16.msra.mxu0 %v318
      %377 = vmatpush.bf16.msra.mxu0 %v317
      %378 = vmatpush.bf16.msra.mxu0 %v316
      %379 = vmatpush.bf16.msra.mxu0 %v315
      %380 = vmatmul.bf16.gmra.mxu0 %v325
      %v381 = vpop.f32.mrf.mxu0
      %v382 = vadd.f32 %v217, %v381
      %v383 = vpop.f32.mrf.mxu0
      %v384 = vadd.f32 %v217, %v383
      %385 = vmatmul.bf16.gmra.mxu0 %v328
      %v386 = vpop.f32.mrf.mxu0
      %v387 = vadd.f32 %v217, %v386
      %v388 = vpop.f32.mrf.mxu0
      %v389 = vadd.f32 %v217, %v388
      %390 = vmatmul.bf16.gmra.mxu0 %v331
      %v391 = vpop.f32.mrf.mxu0
      %v392 = vadd.f32 %v217, %v391
      %v393 = vpop.f32.mrf.mxu0
      %v394 = vadd.f32 %v217, %v393
      %395 = vmatmul.bf16.gmra.mxu0 %v334
      %v396 = vpop.f32.mrf.mxu0
      %v397 = vadd.f32 %v217, %v396
      %v398 = vpop.f32.mrf.mxu0
      %v399 = vadd.f32 %v217, %v398
      %400 = vmatmul.bf16.gmra.mxu0 %v337
      %v401 = vpop.f32.mrf.mxu0
      %v402 = vadd.f32 %v217, %v401
      %v403 = vpop.f32.mrf.mxu0
      %v404 = vadd.f32 %v217, %v403
      %405 = vmatmul.bf16.gmra.mxu0 %v340
      %v406 = vpop.f32.mrf.mxu0
      %v407 = vadd.f32 %v217, %v406
      %v408 = vpop.f32.mrf.mxu0
      %v409 = vadd.f32 %v217, %v408
      %410 = vmatmul.bf16.gmra.mxu0 %v343
      %v411 = vpop.f32.mrf.mxu0
      %v412 = vadd.f32 %v217, %v411
      %v413 = vpop.f32.mrf.mxu0
      %v414 = vadd.f32 %v217, %v413
      %415 = vmatmul.bf16.gmra.mxu0 %v346
      %v416 = vpop.f32.mrf.mxu0
      %v417 = vadd.f32 %v217, %v416
      %v418 = vpop.f32.mrf.mxu0
      %v419 = vadd.f32 %v217, %v418
      %420 = vmatmul.bf16.gmra.mxu0 %v349
      %v421 = vpop.f32.mrf.mxu0
      %v422 = vadd.f32 %v217, %v421
      %v423 = vpop.f32.mrf.mxu0
      %v424 = vadd.f32 %v217, %v423
      %425 = vmatmul.bf16.gmra.mxu0 %v352
      %v426 = vpop.f32.mrf.mxu0
      %v427 = vadd.f32 %v217, %v426
      %v428 = vpop.f32.mrf.mxu0
      %v429 = vadd.f32 %v217, %v428
      %430 = vmatmul.bf16.gmra.mxu0 %v355
      %v431 = vpop.f32.mrf.mxu0
      %v432 = vadd.f32 %v217, %v431
      %v433 = vpop.f32.mrf.mxu0
      %v434 = vadd.f32 %v217, %v433
      %435 = vmatmul.bf16.gmra.mxu0 %v358
      %v436 = vpop.f32.mrf.mxu0
      %v437 = vadd.f32 %v217, %v436
      %v438 = vpop.f32.mrf.mxu0
      %v439 = vadd.f32 %v217, %v438
      %440 = vmatmul.bf16.gmra.mxu0 %v361
      %v441 = vpop.f32.mrf.mxu0
      %v442 = vadd.f32 %v217, %v441
      %v443 = vpop.f32.mrf.mxu0
      %v444 = vadd.f32 %v217, %v443
      %445 = vmatmul.bf16.gmra.mxu0 %v364
      %v446 = vpop.f32.mrf.mxu0
      %v447 = vadd.f32 %v217, %v446
      %v448 = vpop.f32.mrf.mxu0
      %v449 = vadd.f32 %v217, %v448
      %450 = vmatmul.bf16.gmra.mxu0 %v367
      %v451 = vpop.f32.mrf.mxu0
      %v452 = vadd.f32 %v217, %v451
      %v453 = vpop.f32.mrf.mxu0
      %v454 = vadd.f32 %v217, %v453
      %455 = vmatmul.bf16.gmra.mxu0 %v370
      %v456 = vpop.f32.mrf.mxu0
      %v457 = vadd.f32 %v217, %v456
      %v458 = vpop.f32.mrf.mxu0
      %v459 = vadd.f32 %v217, %v458
      %460 = vdwg.mxu0
      %vm461 = vcmask 15360
      %462 = vst.msk [vmem:[%s172] sm:$0xff] %vm461, %v382
      %463 = vst.msk [vmem:[%s172 + $0x8] sm:$0xff] %vm461, %v384
      %464 = vst.msk [vmem:[%s172 + $0x10] sm:$0xff] %vm461, %v387
      %465 = vst.msk [vmem:[%s172 + $0x18] sm:$0xff] %vm461, %v389
      %466 = vst.msk [vmem:[%s172 + $0x20] sm:$0xff] %vm461, %v392
      %467 = vst.msk [vmem:[%s172 + $0x28] sm:$0xff] %vm461, %v394
      %468 = vst.msk [vmem:[%s172 + $0x30] sm:$0xff] %vm461, %v397
      %469 = vst.msk [vmem:[%s172 + $0x38] sm:$0xff] %vm461, %v399
      %470 = vst.msk [vmem:[%s172 + $0x40] sm:$0xff] %vm461, %v402
      %471 = vst.msk [vmem:[%s172 + $0x48] sm:$0xff] %vm461, %v404
      %472 = vst.msk [vmem:[%s172 + $0x50] sm:$0xff] %vm461, %v407
      %473 = vst.msk [vmem:[%s172 + $0x58] sm:$0xff] %vm461, %v409
      %474 = vst.msk [vmem:[%s172 + $0x60] sm:$0xff] %vm461, %v412
      %475 = vst.msk [vmem:[%s172 + $0x68] sm:$0xff] %vm461, %v414
      %476 = vst.msk [vmem:[%s172 + $0x70] sm:$0xff] %vm461, %v417
      %477 = vst.msk [vmem:[%s172 + $0x78] sm:$0xff] %vm461, %v419
      %478 = vst.msk [vmem:[%s172 + $0x80] sm:$0xff] %vm461, %v422
      %479 = vst.msk [vmem:[%s172 + $0x88] sm:$0xff] %vm461, %v424
      %480 = vst.msk [vmem:[%s172 + $0x90] sm:$0xff] %vm461, %v427
      %481 = vst.msk [vmem:[%s172 + $0x98] sm:$0xff] %vm461, %v429
      %482 = vst.msk [vmem:[%s172 + $0xa0] sm:$0xff] %vm461, %v432
      %483 = vst.msk [vmem:[%s172 + $0xa8] sm:$0xff] %vm461, %v434
      %484 = vst.msk [vmem:[%s172 + $0xb0] sm:$0xff] %vm461, %v437
      %485 = vst.msk [vmem:[%s172 + $0xb8] sm:$0xff] %vm461, %v439
      %486 = vst.msk [vmem:[%s172 + $0xc0] sm:$0xff] %vm461, %v442
      %487 = vst.msk [vmem:[%s172 + $0xc8] sm:$0xff] %vm461, %v444
      %488 = vst.msk [vmem:[%s172 + $0xd0] sm:$0xff] %vm461, %v447
      %489 = vst.msk [vmem:[%s172 + $0xd8] sm:$0xff] %vm461, %v449
      %490 = vst.msk [vmem:[%s172 + $0xe0] sm:$0xff] %vm461, %v452
      %491 = vst.msk [vmem:[%s172 + $0xe8] sm:$0xff] %vm461, %v454
      %492 = vst.msk [vmem:[%s172 + $0xf0] sm:$0xff] %vm461, %v457
      %493 = vst.msk [vmem:[%s172 + $0xf8] sm:$0xff] %vm461, %v459
      %s494 = smul.u32 32, %s14
      %p495 = scmp.lt.s32.totalorder %s494, 63
      %s496 = scalar_select %p495, %s494, 63
      %s497 = smul.addr %s496, 8
      %s498 = scalar_lea.vmem %s3, %s497
      // Predicated region
      $region33: #{deeplab_forward.33} parent=31 // pred_check
        %p499 = pneg %p100
      $region34: #{deeplab_forward.33} parent=31 // pred_check_branch
        %501 = sbr.rel (%p499) target = $region36
      $region35: #{deeplab_forward.33} parent=31 // pred_region
        %s502 = smul.u32 32, %s14
      $region36: #{deeplab_forward.33} parent=31 // pred_fallthru
        _
    $region32: #{deeplab_forward.33} parent=5 // pred_fallthru
      _
    %p503 = scmp.le.s32.totalorder 2, %s9
    // Predicated region
    $region37: #{deeplab_forward.33} parent=5 // pred_check
      %p504 = pneg %p503
    $region38: #{deeplab_forward.33} parent=5 // pred_check_branch
      %506 = sbr.rel (%p504) target = $region40
    $region39: #{deeplab_forward.33} parent=5 // pred_region
      %s507 = ssub.s32 %s9, 2
      // Predicated region
      $region41: #{deeplab_forward.33} parent=39 // pred_check
        %p508 = pneg %p106
      $region42: #{deeplab_forward.33} parent=39 // pred_check_branch
        %510 = sbr.rel (%p508) target = $region44
      $region43: #{deeplab_forward.33} parent=39 // pred_region
        %s511 = smul.u32 32, %s15
        %p512 = scmp.lt.s32.totalorder %s511, 63
        %s513 = scalar_select %p512, %s511, 63
        %s514 = smul.addr %s513, 8
        %s515 = scalar_lea.vmem %s3, %s514
      $region44: #{deeplab_forward.33} parent=39 // pred_fallthru
        _
    $region40: #{deeplab_forward.33} parent=5 // pred_fallthru
      _
  $region6: #{deeplab_forward.33} parent=0 // loop_footer
    %s13 = sadd.s32 1, %s9
  $region7: #{deeplab_forward.33} parent=0 // loop_footer_branch
    %8 = sbr.rel target = $region3
  $region8: #{deeplab_forward.33} parent=0 // loop_exit
    _

// kernel: deeplab_forward.32
$region0: #{deeplab_forward.32}
  #allocation0 [shape = 'u32[]', space=smem, size = 0x4, offset = 0x4, fixed_abs, tag = 'smem constant byte address 0x4 - core index']
  #allocation1 [shape = 'u32[72,128]{1,0:T(1,128)}', space=vmem, size = 0x9000, scoped, tag = 'internal scratch']
  %s0 = inlined_call_operand.vmem [shape: bf16[512,576], index: 0, kind: input, shape index: {}]
  %s1 = inlined_call_operand.vmem [shape: bf16[576,64], index: 1, kind: input, shape index: {}]
  %s2 = inlined_call_operand.vmem [shape: f32[1,64], index: 2, kind: input, shape index: {}]
  %s3 = inlined_call_operand.vmem [shape: bf16[512,64], index: 3, kind: output, shape index: {}]
  %s4 = sld [smem:[#allocation0]]
  $region45: #{deeplab_forward.32} parent=0
    _
  %s6 = ssub.s32 1, %s4
  %s7 = scalar_select 0, %s6, %s4
  loop: start=0, step=1, limit=4
  $region2: #{deeplab_forward.32} parent=0 // loop_pre_header
    _
  $region3: #{deeplab_forward.32} parent=0 // loop_header
    %s9 = sphi 0, %s13
    %p10 = scmp.ge.s32.totalorder %s9, 4
    %s19 = sphi 0, %s21
    %s22 = sphi 0, %s19
    %s23 = sphi 0, %s22
    %s39 = sphi 0, %s23
    %s43 = sphi 0, %s43
    %s45 = sphi 0, %s43
    %s46 = sphi 0, %s45
    %s60 = sphi 0, %s46
    %s64 = sphi 0, %s64
    %s66 = sphi 0, %s64
    %s67 = sphi 0, %s66
    %s81 = sphi 0, %s67
    %s87 = sphi 0, %s89
    %s90 = sphi 0, %s87
    %s91 = sphi 0, %s90
    %s107 = sphi 0, %s91
  $region4: #{deeplab_forward.32} parent=0 // loop_header_branch
    %12 = sbr.rel (%p10) target = $region8
  $region5: #{deeplab_forward.32} parent=0 // loop_body
    %s14 = ssub.s32 %s9, 1
    %s15 = ssub.s32 %s9, 2
    %s16 = sadd.s32 %s9, 1
    %s17 = ssub.s32 %s9, %s16
    %p18 = scmp.eq.s32.totalorder %s17, 0
    %s20 = sadd.s32 %s19, 1
    %s21 = scalar_select %p18, %s19, %s20
    %p24 = pneg %p18
    %p25 = scmp.eq.s32.totalorder %s9, 1
    %p26 = por %p24, %p25
    %p27 = scmp.ne.s32.totalorder %s19, %s22
    %p28 = scmp.eq.s32.totalorder %s9, 0
    %p29 = por %p27, %p28
    %p30 = scmp.ne.s32.totalorder %s19, %s22
    %p31 = scmp.eq.s32.totalorder %s14, 1
    %p32 = por %p30, %p31
    %p33 = scmp.ne.s32.totalorder %s22, %s23
    %p34 = scmp.eq.s32.totalorder %s14, 0
    %p35 = por %p33, %p34
    %p36 = scmp.ne.s32.totalorder %s22, %s23
    %p37 = scmp.eq.s32.totalorder %s15, 1
    %p38 = por %p36, %p37
    %p40 = scmp.ne.s32.totalorder %s23, %s39
    %p41 = scmp.eq.s32.totalorder %s15, 0
    %p42 = por %p40, %p41
    %s44 = sadd.s32 %s43, 1
    %p47 = scmp.eq.s32.totalorder %s9, 1
    %p48 = scmp.ne.s32.totalorder %s43, %s45
    %p49 = scmp.eq.s32.totalorder %s9, 0
    %p50 = por %p48, %p49
    %p51 = scmp.ne.s32.totalorder %s43, %s45
    %p52 = scmp.eq.s32.totalorder %s14, 1
    %p53 = por %p51, %p52
    %p54 = scmp.ne.s32.totalorder %s45, %s46
    %p55 = scmp.eq.s32.totalorder %s14, 0
    %p56 = por %p54, %p55
    %p57 = scmp.ne.s32.totalorder %s45, %s46
    %p58 = scmp.eq.s32.totalorder %s15, 1
    %p59 = por %p57, %p58
    %p61 = scmp.ne.s32.totalorder %s46, %s60
    %p62 = scmp.eq.s32.totalorder %s15, 0
    %p63 = por %p61, %p62
    %s65 = sadd.s32 %s64, 1
    %p68 = scmp.eq.s32.totalorder %s9, 1
    %p69 = scmp.ne.s32.totalorder %s64, %s66
    %p70 = scmp.eq.s32.totalorder %s9, 0
    %p71 = por %p69, %p70
    %p72 = scmp.ne.s32.totalorder %s64, %s66
    %p73 = scmp.eq.s32.totalorder %s14, 1
    %p74 = por %p72, %p73
    %p75 = scmp.ne.s32.totalorder %s66, %s67
    %p76 = scmp.eq.s32.totalorder %s14, 0
    %p77 = por %p75, %p76
    %p78 = scmp.ne.s32.totalorder %s66, %s67
    %p79 = scmp.eq.s32.totalorder %s15, 1
    %p80 = por %p78, %p79
    %p82 = scmp.ne.s32.totalorder %s67, %s81
    %p83 = scmp.eq.s32.totalorder %s15, 0
    %p84 = por %p82, %p83
    %s85 = ssub.s32 %s9, %s16
    %p86 = scmp.eq.s32.totalorder %s85, 0
    %s88 = sadd.s32 %s87, 1
    %s89 = scalar_select %p86, %s87, %s88
    %p92 = pneg %p86
    %p93 = scmp.eq.s32.totalorder %s9, 1
    %p94 = por %p92, %p93
    %p95 = scmp.ne.s32.totalorder %s87, %s90
    %p96 = scmp.eq.s32.totalorder %s9, 0
    %p97 = por %p95, %p96
    %p98 = scmp.ne.s32.totalorder %s87, %s90
    %p99 = scmp.eq.s32.totalorder %s14, 1
    %p100 = por %p98, %p99
    %p101 = scmp.ne.s32.totalorder %s90, %s91
    %p102 = scmp.eq.s32.totalorder %s14, 0
    %p103 = por %p101, %p102
    %p104 = scmp.ne.s32.totalorder %s90, %s91
    %p105 = scmp.eq.s32.totalorder %s15, 1
    %p106 = por %p104, %p105
    %p108 = scmp.ne.s32.totalorder %s91, %s107
    %p109 = scmp.eq.s32.totalorder %s15, 0
    %p110 = por %p108, %p109
    %p111 = scmp.le.s32.totalorder 1, %s9
    %p112 = scmp.lt.s32.totalorder %s9, 3
    %p113 = pnand %p111, %p112
    %p114 = pneg %p113
    // Predicated region
    $region9: #{deeplab_forward.32} parent=5 // pred_check
      _
    $region10: #{deeplab_forward.32} parent=5 // pred_check_branch
      %116 = sbr.rel (%p113) target = $region12
    $region11: #{deeplab_forward.32} parent=5 // pred_region
      %s117 = ssub.s32 %s9, 1
      // Predicated region
      $region13: #{deeplab_forward.32} parent=11 // pred_check
        %p118 = pneg %p56
      $region14: #{deeplab_forward.32} parent=11 // pred_check_branch
        %120 = sbr.rel (%p118) target = $region16
      $region15: #{deeplab_forward.32} parent=11 // pred_region
        _
      $region16: #{deeplab_forward.32} parent=11 // pred_fallthru
        _
      // Predicated region
      $region17: #{deeplab_forward.32} parent=11 // pred_check
        %p121 = pneg %p77
      $region18: #{deeplab_forward.32} parent=11 // pred_check_branch
        %123 = sbr.rel (%p121) target = $region20
      $region19: #{deeplab_forward.32} parent=11 // pred_region
        _
      $region20: #{deeplab_forward.32} parent=11 // pred_fallthru
        _
    $region12: #{deeplab_forward.32} parent=5 // pred_fallthru
      _
    %p124 = scmp.lt.s32.totalorder %s9, 2
    // Predicated region
    $region21: #{deeplab_forward.32} parent=5 // pred_check
      %p125 = pneg %p124
    $region22: #{deeplab_forward.32} parent=5 // pred_check_branch
      %127 = sbr.rel (%p125) target = $region24
    $region23: #{deeplab_forward.32} parent=5 // pred_region
      // Predicated region
      $region25: #{deeplab_forward.32} parent=23 // pred_check
        %p128 = pneg %p29
      $region26: #{deeplab_forward.32} parent=23 // pred_check_branch
        %130 = sbr.rel (%p128) target = $region28
      $region27: #{deeplab_forward.32} parent=23 // pred_region
        %s131 = smul.u32 32, %s9
        %p132 = scmp.lt.s32.totalorder %s131, 63
        %s133 = scalar_select %p132, %s131, 63
        %s134 = smul.addr %s133, 5
        %s135 = smul.addr %s134, 4
        %s136 = scalar_lea.vmem %s0, %s135
        %s137 = smul.u32 32, %s9
      $region28: #{deeplab_forward.32} parent=23 // pred_fallthru
        _
    $region24: #{deeplab_forward.32} parent=5 // pred_fallthru
      _
    %p138 = scmp.le.s32.totalorder 1, %s9
    %p139 = scmp.lt.s32.totalorder %s9, 3
    %p140 = pnand %p138, %p139
    %p141 = pneg %p140
    // Predicated region
    $region29: #{deeplab_forward.32} parent=5 // pred_check
      _
    $region30: #{deeplab_forward.32} parent=5 // pred_check_branch
      %143 = sbr.rel (%p140) target = $region32
    $region31: #{deeplab_forward.32} parent=5 // pred_region
      %s144 = ssub.s32 %s9, 1
      %s145 = smul.u32 32, %s14
      %p146 = scmp.lt.s32.totalorder %s145, 63
      %s147 = scalar_select %p146, %s145, 63
      %s148 = smul.addr %s147, 5
      %s149 = smul.addr %s148, 4
      %s150 = scalar_lea.vmem %s0, %s149
      %p151 = pneg %p35
      %p152 = pneg %p32
      %p153 = pneg %p56
      %p154 = pneg %p53
      %p155 = pneg %p77
      %p156 = pneg %p74
      %p157 = pneg %p103
      %p158 = pneg %p100
      %s159 = smul.u32 32, %s14
      %p160 = scmp.lt.s32.totalorder %s159, 63
      %s161 = scalar_select %p160, %s159, 63
      %s162 = smul.addr %s161, 4
      %s163 = scalar_lea.vmem %s3, %s162
      %s164 = smul.u32 32, %s14
      %p165 = scmp.lt.s32.totalorder %s164, 63
      %s166 = scalar_select %p165, %s164, 63
      %s167 = smul.addr %s166, 5
      %s168 = smul.addr %s167, 4
      %s169 = scalar_lea.vmem %s0, %s168
      %s170 = smul.u32 32, %s14
      %s171 = smul.u32 32, %s14
      %p172 = scmp.lt.s32.totalorder %s171, 63
      %s173 = scalar_select %p172, %s171, 63
      %s174 = smul.addr %s173, 4
      %s175 = scalar_lea.vmem %s3, %s174
      %s176 = smul.u32 32, %s14
      %v178 = vld [vmem:[%s169] sm:$0xff]
      %v179 = vld [vmem:[%s169 + $0x8] sm:$0xff]
      %v180 = vld [vmem:[%s169 + $0x10] sm:$0xf]
      %v181 = vld [vmem:[%s169 + $0x14] sm:$0xff]
      %v182 = vld [vmem:[%s169 + $0x1c] sm:$0xff]
      %v183 = vld [vmem:[%s169 + $0x24] sm:$0xf]
      %v184 = vld [vmem:[%s169 + $0x28] sm:$0xff]
      %v185 = vld [vmem:[%s169 + $0x30] sm:$0xff]
      %v186 = vld [vmem:[%s169 + $0x38] sm:$0xf]
      %v187 = vld [vmem:[%s169 + $0x3c] sm:$0xff]
      %v188 = vld [vmem:[%s169 + $0x44] sm:$0xff]
      %v189 = vld [vmem:[%s169 + $0x4c] sm:$0xf]
      %v190 = vld [vmem:[%s169 + $0x50] sm:$0xff]
      %v191 = vld [vmem:[%s169 + $0x58] sm:$0xff]
      %v192 = vld [vmem:[%s169 + $0x60] sm:$0xf]
      %v193 = vld [vmem:[%s169 + $0x64] sm:$0xff]
      %v194 = vld [vmem:[%s169 + $0x6c] sm:$0xff]
      %v195 = vld [vmem:[%s169 + $0x74] sm:$0xf]
      %v196 = vld [vmem:[%s169 + $0x78] sm:$0xff]
      %v197 = vld [vmem:[%s169 + $0x80] sm:$0xff]
      %v198 = vld [vmem:[%s169 + $0x88] sm:$0xf]
      %v199 = vld [vmem:[%s169 + $0x8c] sm:$0xff]
      %v200 = vld [vmem:[%s169 + $0x94] sm:$0xff]
      %v201 = vld [vmem:[%s169 + $0x9c] sm:$0xf]
      %v202 = vld [vmem:[%s169 + $0xa0] sm:$0xff]
      %v203 = vld [vmem:[%s169 + $0xa8] sm:$0xff]
      %v204 = vld [vmem:[%s169 + $0xb0] sm:$0xf]
      %v205 = vld [vmem:[%s169 + $0xb4] sm:$0xff]
      %v206 = vld [vmem:[%s169 + $0xbc] sm:$0xff]
      %v207 = vld [vmem:[%s169 + $0xc4] sm:$0xf]
      %v208 = vld [vmem:[%s169 + $0xc8] sm:$0xff]
      %v209 = vld [vmem:[%s169 + $0xd0] sm:$0xff]
      %v210 = vld [vmem:[%s169 + $0xd8] sm:$0xf]
      %v211 = vld [vmem:[%s169 + $0xdc] sm:$0xff]
      %v212 = vld [vmem:[%s169 + $0xe4] sm:$0xff]
      %v213 = vld [vmem:[%s169 + $0xec] sm:$0xf]
      %v214 = vld [vmem:[%s169 + $0xf0] sm:$0xff]
      %v215 = vld [vmem:[%s169 + $0xf8] sm:$0xff]
      %v216 = vld [vmem:[%s169 + $0x100] sm:$0xf]
      %v217 = vld [vmem:[%s169 + $0x104] sm:$0xff]
      %v218 = vld [vmem:[%s169 + $0x10c] sm:$0xff]
      %v219 = vld [vmem:[%s169 + $0x114] sm:$0xf]
      %v220 = vld [vmem:[%s169 + $0x118] sm:$0xff]
      %v221 = vld [vmem:[%s169 + $0x120] sm:$0xff]
      %v222 = vld [vmem:[%s169 + $0x128] sm:$0xf]
      %v223 = vld [vmem:[%s169 + $0x12c] sm:$0xff]
      %v224 = vld [vmem:[%s169 + $0x134] sm:$0xff]
      %v225 = vld [vmem:[%s169 + $0x13c] sm:$0xf]
      %v226 = vld [vmem:[%s169 + $0x140] sm:$0xff]
      %v227 = vld [vmem:[%s169 + $0x148] sm:$0xff]
      %v228 = vld [vmem:[%s169 + $0x150] sm:$0xf]
      %v229 = vld [vmem:[%s169 + $0x154] sm:$0xff]
      %v230 = vld [vmem:[%s169 + $0x15c] sm:$0xff]
      %v231 = vld [vmem:[%s169 + $0x164] sm:$0xf]
      %v232 = vld [vmem:[%s169 + $0x168] sm:$0xff]
      %v233 = vld [vmem:[%s169 + $0x170] sm:$0xff]
      %v234 = vld [vmem:[%s169 + $0x178] sm:$0xf]
      %v235 = vld [vmem:[%s169 + $0x17c] sm:$0xff]
      %v236 = vld [vmem:[%s169 + $0x184] sm:$0xff]
      %v237 = vld [vmem:[%s169 + $0x18c] sm:$0xf]
      %v238 = vld [vmem:[%s169 + $0x190] sm:$0xff]
      %v239 = vld [vmem:[%s169 + $0x198] sm:$0xff]
      %v240 = vld [vmem:[%s169 + $0x1a0] sm:$0xf]
      %v241 = vld [vmem:[%s169 + $0x1a4] sm:$0xff]
      %v242 = vld [vmem:[%s169 + $0x1ac] sm:$0xff]
      %v243 = vld [vmem:[%s169 + $0x1b4] sm:$0xf]
      %v244 = vld [vmem:[%s169 + $0x1b8] sm:$0xff]
      %v245 = vld [vmem:[%s169 + $0x1c0] sm:$0xff]
      %v246 = vld [vmem:[%s169 + $0x1c8] sm:$0xf]
      %v247 = vld [vmem:[%s169 + $0x1cc] sm:$0xff]
      %v248 = vld [vmem:[%s169 + $0x1d4] sm:$0xff]
      %v249 = vld [vmem:[%s169 + $0x1dc] sm:$0xf]
      %v250 = vld [vmem:[%s169 + $0x1e0] sm:$0xff]
      %v251 = vld [vmem:[%s169 + $0x1e8] sm:$0xff]
      %v252 = vld [vmem:[%s169 + $0x1f0] sm:$0xf]
      %v253 = vld [vmem:[%s169 + $0x1f4] sm:$0xff]
      %v254 = vld [vmem:[%s169 + $0x1fc] sm:$0xff]
      %v255 = vld [vmem:[%s169 + $0x204] sm:$0xf]
      %v256 = vld [vmem:[%s169 + $0x208] sm:$0xff]
      %v257 = vld [vmem:[%s169 + $0x210] sm:$0xff]
      %v258 = vld [vmem:[%s169 + $0x218] sm:$0xf]
      %v259 = vld [vmem:[%s169 + $0x21c] sm:$0xff]
      %v260 = vld [vmem:[%s169 + $0x224] sm:$0xff]
      %v261 = vld [vmem:[%s169 + $0x22c] sm:$0xf]
      %v262 = vld [vmem:[%s169 + $0x230] sm:$0xff]
      %v263 = vld [vmem:[%s169 + $0x238] sm:$0xff]
      %v264 = vld [vmem:[%s169 + $0x240] sm:$0xf]
      %v265 = vld [vmem:[%s169 + $0x244] sm:$0xff]
      %v266 = vld [vmem:[%s169 + $0x24c] sm:$0xff]
      %v267 = vld [vmem:[%s169 + $0x254] sm:$0xf]
      %v268 = vld [vmem:[%s169 + $0x258] sm:$0xff]
      %v269 = vld [vmem:[%s169 + $0x260] sm:$0xff]
      %v270 = vld [vmem:[%s169 + $0x268] sm:$0xf]
      %v271 = vld [vmem:[%s169 + $0x26c] sm:$0xff]
      %v272 = vld [vmem:[%s169 + $0x274] sm:$0xff]
      %v273 = vld [vmem:[%s169 + $0x27c] sm:$0xf]
      %v274 = vld [vmem:[%s1] sm:$0xf]
      %v275 = vld [vmem:[%s1 + $0x4] sm:$0xf]
      %v276 = vld [vmem:[%s1 + $0x8] sm:$0xf]
      %v277 = vld [vmem:[%s1 + $0xc] sm:$0xf]
      %v278 = vld [vmem:[%s1 + $0x10] sm:$0xf]
      %v279 = vld [vmem:[%s1 + $0x14] sm:$0xf]
      %v280 = vld [vmem:[%s1 + $0x18] sm:$0xf]
      %v281 = vld [vmem:[%s1 + $0x1c] sm:$0xf]
      %v282 = vld [vmem:[%s1 + $0x20] sm:$0xf]
      %v283 = vld [vmem:[%s1 + $0x24] sm:$0xf]
      %v284 = vld [vmem:[%s1 + $0x28] sm:$0xf]
      %v285 = vld [vmem:[%s1 + $0x2c] sm:$0xf]
      %v286 = vld [vmem:[%s1 + $0x30] sm:$0xf]
      %v287 = vld [vmem:[%s1 + $0x34] sm:$0xf]
      %v288 = vld [vmem:[%s1 + $0x38] sm:$0xf]
      %v289 = vld [vmem:[%s1 + $0x3c] sm:$0xf]
      %v290 = vld [vmem:[%s1 + $0x40] sm:$0xf]
      %v291 = vld [vmem:[%s1 + $0x44] sm:$0xf]
      %v292 = vld [vmem:[%s1 + $0x48] sm:$0xf]
      %v293 = vld [vmem:[%s1 + $0x4c] sm:$0xf]
      %v294 = vld [vmem:[%s1 + $0x50] sm:$0xf]
      %v295 = vld [vmem:[%s1 + $0x54] sm:$0xf]
      %v296 = vld [vmem:[%s1 + $0x58] sm:$0xf]
      %v297 = vld [vmem:[%s1 + $0x5c] sm:$0xf]
      %v298 = vld [vmem:[%s1 + $0x60] sm:$0xf]
      %v299 = vld [vmem:[%s1 + $0x64] sm:$0xf]
      %v300 = vld [vmem:[%s1 + $0x68] sm:$0xf]
      %v301 = vld [vmem:[%s1 + $0x6c] sm:$0xf]
      %v302 = vld [vmem:[%s1 + $0x70] sm:$0xf]
      %v303 = vld [vmem:[%s1 + $0x74] sm:$0xf]
      %v304 = vld [vmem:[%s1 + $0x78] sm:$0xf]
      %v305 = vld [vmem:[%s1 + $0x7c] sm:$0xf]
      %v306 = vld [vmem:[%s1 + $0x80] sm:$0xf]
      %v307 = vld [vmem:[%s1 + $0x84] sm:$0xf]
      %v308 = vld [vmem:[%s1 + $0x88] sm:$0xf]
      %v309 = vld [vmem:[%s1 + $0x8c] sm:$0xf]
      %v310 = vld [vmem:[%s1 + $0x90] sm:$0xf]
      %v311 = vld [vmem:[%s1 + $0x94] sm:$0xf]
      %v312 = vld [vmem:[%s1 + $0x98] sm:$0xf]
      %v313 = vld [vmem:[%s1 + $0x9c] sm:$0xf]
      %v314 = vld [vmem:[%s1 + $0xa0] sm:$0xf]
      %v315 = vld [vmem:[%s1 + $0xa4] sm:$0xf]
      %v316 = vld [vmem:[%s1 + $0xa8] sm:$0xf]
      %v317 = vld [vmem:[%s1 + $0xac] sm:$0xf]
      %v318 = vld [vmem:[%s1 + $0xb0] sm:$0xf]
      %v319 = vld [vmem:[%s1 + $0xb4] sm:$0xf]
      %v320 = vld [vmem:[%s1 + $0xb8] sm:$0xf]
      %v321 = vld [vmem:[%s1 + $0xbc] sm:$0xf]
      %v322 = vld [vmem:[%s1 + $0xc0] sm:$0xf]
      %v323 = vld [vmem:[%s1 + $0xc4] sm:$0xf]
      %v324 = vld [vmem:[%s1 + $0xc8] sm:$0xf]
      %v325 = vld [vmem:[%s1 + $0xcc] sm:$0xf]
      %v326 = vld [vmem:[%s1 + $0xd0] sm:$0xf]
      %v327 = vld [vmem:[%s1 + $0xd4] sm:$0xf]
      %v328 = vld [vmem:[%s1 + $0xd8] sm:$0xf]
      %v329 = vld [vmem:[%s1 + $0xdc] sm:$0xf]
      %v330 = vld [vmem:[%s1 + $0xe0] sm:$0xf]
      %v331 = vld [vmem:[%s1 + $0xe4] sm:$0xf]
      %v332 = vld [vmem:[%s1 + $0xe8] sm:$0xf]
      %v333 = vld [vmem:[%s1 + $0xec] sm:$0xf]
      %v334 = vld [vmem:[%s1 + $0xf0] sm:$0xf]
      %v335 = vld [vmem:[%s1 + $0xf4] sm:$0xf]
      %v336 = vld [vmem:[%s1 + $0xf8] sm:$0xf]
      %v337 = vld [vmem:[%s1 + $0xfc] sm:$0xf]
      %v338 = vld [vmem:[%s1 + $0x100] sm:$0xf]
      %v339 = vld [vmem:[%s1 + $0x104] sm:$0xf]
      %v340 = vld [vmem:[%s1 + $0x108] sm:$0xf]
      %v341 = vld [vmem:[%s1 + $0x10c] sm:$0xf]
      %v342 = vld [vmem:[%s1 + $0x110] sm:$0xf]
      %v343 = vld [vmem:[%s1 + $0x114] sm:$0xf]
      %v344 = vld [vmem:[%s1 + $0x118] sm:$0xf]
      %v345 = vld [vmem:[%s1 + $0x11c] sm:$0xf]
      %v346 = vld [vmem:[%s2] sm:$0x1]
      %v348 = vperm.slane %v346, 0
      %v446 = vunpack.c.l.b16 %v178
      %v447 = vunpack.c.h.b16 %v178
      %v448 = vunpack.c.l.b16 %v179
      %v449 = vunpack.c.h.b16 %v179
      %v450 = vunpack.c.l.b16 %v180
      %v451 = vunpack.c.l.b16 %v181
      %v452 = vunpack.c.h.b16 %v181
      %v453 = vunpack.c.l.b16 %v182
      %v454 = vunpack.c.h.b16 %v182
      %v455 = vunpack.c.l.b16 %v183
      %v456 = vunpack.c.l.b16 %v184
      %v457 = vunpack.c.h.b16 %v184
      %v458 = vunpack.c.l.b16 %v185
      %v459 = vunpack.c.h.b16 %v185
      %v460 = vunpack.c.l.b16 %v186
      %v461 = vunpack.c.l.b16 %v187
      %v462 = vunpack.c.h.b16 %v187
      %v463 = vunpack.c.l.b16 %v188
      %v464 = vunpack.c.h.b16 %v188
      %v465 = vunpack.c.l.b16 %v189
      %v466 = vunpack.c.l.b16 %v190
      %v467 = vunpack.c.h.b16 %v190
      %v468 = vunpack.c.l.b16 %v191
      %v469 = vunpack.c.h.b16 %v191
      %v470 = vunpack.c.l.b16 %v192
      %v471 = vunpack.c.l.b16 %v193
      %v472 = vunpack.c.h.b16 %v193
      %v473 = vunpack.c.l.b16 %v194
      %v474 = vunpack.c.h.b16 %v194
      %v475 = vunpack.c.l.b16 %v195
      %v476 = vunpack.c.l.b16 %v196
      %v477 = vunpack.c.h.b16 %v196
      %v478 = vunpack.c.l.b16 %v197
      %v479 = vunpack.c.h.b16 %v197
      %v480 = vunpack.c.l.b16 %v198
      %v481 = vunpack.c.l.b16 %v199
      %v482 = vunpack.c.h.b16 %v199
      %v483 = vunpack.c.l.b16 %v200
      %v484 = vunpack.c.h.b16 %v200
      %v485 = vunpack.c.l.b16 %v201
      %v486 = vunpack.c.l.b16 %v202
      %v487 = vunpack.c.h.b16 %v202
      %v488 = vunpack.c.l.b16 %v203
      %v489 = vunpack.c.h.b16 %v203
      %v490 = vunpack.c.l.b16 %v204
      %v491 = vunpack.c.l.b16 %v205
      %v492 = vunpack.c.h.b16 %v205
      %v493 = vunpack.c.l.b16 %v206
      %v494 = vunpack.c.h.b16 %v206
      %v495 = vunpack.c.l.b16 %v207
      %v496 = vunpack.c.l.b16 %v208
      %v497 = vunpack.c.h.b16 %v208
      %v498 = vunpack.c.l.b16 %v209
      %v499 = vunpack.c.h.b16 %v209
      %v500 = vunpack.c.l.b16 %v210
      %v501 = vunpack.c.l.b16 %v211
      %v502 = vunpack.c.h.b16 %v211
      %v503 = vunpack.c.l.b16 %v212
      %v504 = vunpack.c.h.b16 %v212
      %v505 = vunpack.c.l.b16 %v213
      %v506 = vunpack.c.l.b16 %v214
      %v507 = vunpack.c.h.b16 %v214
      %v508 = vunpack.c.l.b16 %v215
      %v509 = vunpack.c.h.b16 %v215
      %v510 = vunpack.c.l.b16 %v216
      %v511 = vunpack.c.l.b16 %v217
      %v512 = vunpack.c.h.b16 %v217
      %v513 = vunpack.c.l.b16 %v218
      %v514 = vunpack.c.h.b16 %v218
      %v515 = vunpack.c.l.b16 %v219
      %v516 = vunpack.c.l.b16 %v220
      %v517 = vunpack.c.h.b16 %v220
      %v518 = vunpack.c.l.b16 %v221
      %v519 = vunpack.c.h.b16 %v221
      %v520 = vunpack.c.l.b16 %v222
      %v521 = vunpack.c.l.b16 %v223
      %v522 = vunpack.c.h.b16 %v223
      %v523 = vunpack.c.l.b16 %v224
      %v524 = vunpack.c.h.b16 %v224
      %v525 = vunpack.c.l.b16 %v225
      %v526 = vunpack.c.l.b16 %v226
      %v527 = vunpack.c.h.b16 %v226
      %v528 = vunpack.c.l.b16 %v227
      %v529 = vunpack.c.h.b16 %v227
      %v530 = vunpack.c.l.b16 %v228
      %v531 = vunpack.c.l.b16 %v229
      %v532 = vunpack.c.h.b16 %v229
      %v533 = vunpack.c.l.b16 %v230
      %v534 = vunpack.c.h.b16 %v230
      %v535 = vunpack.c.l.b16 %v231
      %v536 = vunpack.c.l.b16 %v232
      %v537 = vunpack.c.h.b16 %v232
      %v538 = vunpack.c.l.b16 %v233
      %v539 = vunpack.c.h.b16 %v233
      %v540 = vunpack.c.l.b16 %v234
      %v541 = vunpack.c.l.b16 %v235
      %v542 = vunpack.c.h.b16 %v235
      %v543 = vunpack.c.l.b16 %v236
      %v544 = vunpack.c.h.b16 %v236
      %v545 = vunpack.c.l.b16 %v237
      %v546 = vunpack.c.l.b16 %v238
      %v547 = vunpack.c.h.b16 %v238
      %v548 = vunpack.c.l.b16 %v239
      %v549 = vunpack.c.h.b16 %v239
      %v550 = vunpack.c.l.b16 %v240
      %v551 = vunpack.c.l.b16 %v241
      %v552 = vunpack.c.h.b16 %v241
      %v553 = vunpack.c.l.b16 %v242
      %v554 = vunpack.c.h.b16 %v242
      %v555 = vunpack.c.l.b16 %v243
      %v556 = vunpack.c.l.b16 %v244
      %v557 = vunpack.c.h.b16 %v244
      %v558 = vunpack.c.l.b16 %v245
      %v559 = vunpack.c.h.b16 %v245
      %v560 = vunpack.c.l.b16 %v246
      %v561 = vunpack.c.l.b16 %v247
      %v562 = vunpack.c.h.b16 %v247
      %v563 = vunpack.c.l.b16 %v248
      %v564 = vunpack.c.h.b16 %v248
      %v565 = vunpack.c.l.b16 %v249
      %v566 = vunpack.c.l.b16 %v250
      %v567 = vunpack.c.h.b16 %v250
      %v568 = vunpack.c.l.b16 %v251
      %v569 = vunpack.c.h.b16 %v251
      %v570 = vunpack.c.l.b16 %v252
      %v571 = vunpack.c.l.b16 %v253
      %v572 = vunpack.c.h.b16 %v253
      %v573 = vunpack.c.l.b16 %v254
      %v574 = vunpack.c.h.b16 %v254
      %v575 = vunpack.c.l.b16 %v255
      %v576 = vunpack.c.l.b16 %v256
      %v577 = vunpack.c.h.b16 %v256
      %v578 = vunpack.c.l.b16 %v257
      %v579 = vunpack.c.h.b16 %v257
      %v580 = vunpack.c.l.b16 %v258
      %v581 = vunpack.c.l.b16 %v259
      %v582 = vunpack.c.h.b16 %v259
      %v583 = vunpack.c.l.b16 %v260
      %v584 = vunpack.c.h.b16 %v260
      %v585 = vunpack.c.l.b16 %v261
      %v586 = vunpack.c.l.b16 %v262
      %v587 = vunpack.c.h.b16 %v262
      %v588 = vunpack.c.l.b16 %v263
      %v589 = vunpack.c.h.b16 %v263
      %v590 = vunpack.c.l.b16 %v264
      %v591 = vunpack.c.l.b16 %v265
      %v592 = vunpack.c.h.b16 %v265
      %v593 = vunpack.c.l.b16 %v266
      %v594 = vunpack.c.h.b16 %v266
      %v595 = vunpack.c.l.b16 %v267
      %v596 = vunpack.c.l.b16 %v268
      %v597 = vunpack.c.h.b16 %v268
      %v598 = vunpack.c.l.b16 %v269
      %v599 = vunpack.c.h.b16 %v269
      %v600 = vunpack.c.l.b16 %v270
      %v601 = vunpack.c.l.b16 %v271
      %v602 = vunpack.c.h.b16 %v271
      %v603 = vunpack.c.l.b16 %v272
      %v604 = vunpack.c.h.b16 %v272
      %v605 = vunpack.c.l.b16 %v273
      %v606 = vpack.c.b16 %v451, %v446
      %v607 = vpack.c.b16 %v452, %v447
      %v608 = vpack.c.b16 %v453, %v448
      %v609 = vpack.c.b16 %v454, %v449
      %v610 = vpack.c.b16 %v455, %v450
      %v611 = vpack.c.b16 %v461, %v456
      %v612 = vpack.c.b16 %v462, %v457
      %v613 = vpack.c.b16 %v463, %v458
      %v614 = vpack.c.b16 %v464, %v459
      %v615 = vpack.c.b16 %v465, %v460
      %v616 = vpack.c.b16 %v471, %v466
      %v617 = vpack.c.b16 %v472, %v467
      %v618 = vpack.c.b16 %v473, %v468
      %v619 = vpack.c.b16 %v474, %v469
      %v620 = vpack.c.b16 %v475, %v470
      %v621 = vpack.c.b16 %v481, %v476
      %v622 = vpack.c.b16 %v482, %v477
      %v623 = vpack.c.b16 %v483, %v478
      %v624 = vpack.c.b16 %v484, %v479
      %v625 = vpack.c.b16 %v485, %v480
      %v626 = vpack.c.b16 %v491, %v486
      %v627 = vpack.c.b16 %v492, %v487
      %v628 = vpack.c.b16 %v493, %v488
      %v629 = vpack.c.b16 %v494, %v489
      %v630 = vpack.c.b16 %v495, %v490
      %v631 = vpack.c.b16 %v501, %v496
      %v632 = vpack.c.b16 %v502, %v497
      %v633 = vpack.c.b16 %v503, %v498
      %v634 = vpack.c.b16 %v504, %v499
      %v635 = vpack.c.b16 %v505, %v500
      %v636 = vpack.c.b16 %v511, %v506
      %v637 = vpack.c.b16 %v512, %v507
      %v638 = vpack.c.b16 %v513, %v508
      %v639 = vpack.c.b16 %v514, %v509
      %v640 = vpack.c.b16 %v515, %v510
      %v641 = vpack.c.b16 %v521, %v516
      %v642 = vpack.c.b16 %v522, %v517
      %v643 = vpack.c.b16 %v523, %v518
      %v644 = vpack.c.b16 %v524, %v519
      %v645 = vpack.c.b16 %v525, %v520
      %v646 = vpack.c.b16 %v531, %v526
      %v647 = vpack.c.b16 %v532, %v527
      %v648 = vpack.c.b16 %v533, %v528
      %v649 = vpack.c.b16 %v534, %v529
      %v650 = vpack.c.b16 %v535, %v530
      %v651 = vpack.c.b16 %v541, %v536
      %v652 = vpack.c.b16 %v542, %v537
      %v653 = vpack.c.b16 %v543, %v538
      %v654 = vpack.c.b16 %v544, %v539
      %v655 = vpack.c.b16 %v545, %v540
      %v656 = vpack.c.b16 %v551, %v546
      %v657 = vpack.c.b16 %v552, %v547
      %v658 = vpack.c.b16 %v553, %v548
      %v659 = vpack.c.b16 %v554, %v549
      %v660 = vpack.c.b16 %v555, %v550
      %v661 = vpack.c.b16 %v561, %v556
      %v662 = vpack.c.b16 %v562, %v557
      %v663 = vpack.c.b16 %v563, %v558
      %v664 = vpack.c.b16 %v564, %v559
      %v665 = vpack.c.b16 %v565, %v560
      %v666 = vpack.c.b16 %v571, %v566
      %v667 = vpack.c.b16 %v572, %v567
      %v668 = vpack.c.b16 %v573, %v568
      %v669 = vpack.c.b16 %v574, %v569
      %v670 = vpack.c.b16 %v575, %v570
      %v671 = vpack.c.b16 %v581, %v576
      %v672 = vpack.c.b16 %v582, %v577
      %v673 = vpack.c.b16 %v583, %v578
      %v674 = vpack.c.b16 %v584, %v579
      %v675 = vpack.c.b16 %v585, %v580
      %v676 = vpack.c.b16 %v591, %v586
      %v677 = vpack.c.b16 %v592, %v587
      %v678 = vpack.c.b16 %v593, %v588
      %v679 = vpack.c.b16 %v594, %v589
      %v680 = vpack.c.b16 %v595, %v590
      %v681 = vpack.c.b16 %v601, %v596
      %v682 = vpack.c.b16 %v602, %v597
      %v683 = vpack.c.b16 %v603, %v598
      %v684 = vpack.c.b16 %v604, %v599
      %v685 = vpack.c.b16 %v605, %v600
      %v822 = vunpack.c.l.b16 %v274
      %v823 = vunpack.c.l.b16 %v275
      %v824 = vunpack.c.l.b16 %v276
      %v825 = vunpack.c.l.b16 %v277
      %v826 = vunpack.c.l.b16 %v278
      %v827 = vunpack.c.l.b16 %v279
      %v828 = vunpack.c.l.b16 %v280
      %v829 = vunpack.c.l.b16 %v281
      %v830 = vunpack.c.l.b16 %v282
      %v831 = vunpack.c.l.b16 %v283
      %v832 = vunpack.c.l.b16 %v284
      %v833 = vunpack.c.l.b16 %v285
      %v834 = vunpack.c.l.b16 %v286
      %v835 = vunpack.c.l.b16 %v287
      %v836 = vunpack.c.l.b16 %v288
      %v837 = vunpack.c.l.b16 %v289
      %v838 = vunpack.c.l.b16 %v290
      %v839 = vunpack.c.l.b16 %v291
      %v840 = vunpack.c.l.b16 %v292
      %v841 = vunpack.c.l.b16 %v293
      %v842 = vunpack.c.l.b16 %v294
      %v843 = vunpack.c.l.b16 %v295
      %v844 = vunpack.c.l.b16 %v296
      %v845 = vunpack.c.l.b16 %v297
      %v846 = vunpack.c.l.b16 %v298
      %v847 = vunpack.c.l.b16 %v299
      %v848 = vunpack.c.l.b16 %v300
      %v849 = vunpack.c.l.b16 %v301
      %v850 = vunpack.c.l.b16 %v302
      %v851 = vunpack.c.l.b16 %v303
      %v852 = vunpack.c.l.b16 %v304
      %v853 = vunpack.c.l.b16 %v305
      %v854 = vunpack.c.l.b16 %v306
      %v855 = vunpack.c.l.b16 %v307
      %v856 = vunpack.c.l.b16 %v308
      %v857 = vunpack.c.l.b16 %v309
      %v858 = vunpack.c.l.b16 %v310
      %v859 = vunpack.c.l.b16 %v311
      %v860 = vunpack.c.l.b16 %v312
      %v861 = vunpack.c.l.b16 %v313
      %v862 = vunpack.c.l.b16 %v314
      %v863 = vunpack.c.l.b16 %v315
      %v864 = vunpack.c.l.b16 %v316
      %v865 = vunpack.c.l.b16 %v317
      %v866 = vunpack.c.l.b16 %v318
      %v867 = vunpack.c.l.b16 %v319
      %v868 = vunpack.c.l.b16 %v320
      %v869 = vunpack.c.l.b16 %v321
      %v870 = vunpack.c.l.b16 %v322
      %v871 = vunpack.c.l.b16 %v323
      %v872 = vunpack.c.l.b16 %v324
      %v873 = vunpack.c.l.b16 %v325
      %v874 = vunpack.c.l.b16 %v326
      %v875 = vunpack.c.l.b16 %v327
      %v876 = vunpack.c.l.b16 %v328
      %v877 = vunpack.c.l.b16 %v329
      %v878 = vunpack.c.l.b16 %v330
      %v879 = vunpack.c.l.b16 %v331
      %v880 = vunpack.c.l.b16 %v332
      %v881 = vunpack.c.l.b16 %v333
      %v882 = vunpack.c.l.b16 %v334
      %v883 = vunpack.c.l.b16 %v335
      %v884 = vunpack.c.l.b16 %v336
      %v885 = vunpack.c.l.b16 %v337
      %v886 = vunpack.c.l.b16 %v338
      %v887 = vunpack.c.l.b16 %v339
      %v888 = vunpack.c.l.b16 %v340
      %v889 = vunpack.c.l.b16 %v341
      %v890 = vunpack.c.l.b16 %v342
      %v891 = vunpack.c.l.b16 %v343
      %v892 = vunpack.c.l.b16 %v344
      %v893 = vunpack.c.l.b16 %v345
      %v894 = vpack.c.b16 %v823, %v822
      %v895 = vpack.c.b16 %v825, %v824
      %v896 = vpack.c.b16 %v827, %v826
      %v897 = vpack.c.b16 %v829, %v828
      %v898 = vpack.c.b16 %v831, %v830
      %v899 = vpack.c.b16 %v833, %v832
      %v900 = vpack.c.b16 %v835, %v834
      %v901 = vpack.c.b16 %v837, %v836
      %v902 = vpack.c.b16 %v839, %v838
      %v903 = vpack.c.b16 %v841, %v840
      %v904 = vpack.c.b16 %v843, %v842
      %v905 = vpack.c.b16 %v845, %v844
      %v906 = vpack.c.b16 %v847, %v846
      %v907 = vpack.c.b16 %v849, %v848
      %v908 = vpack.c.b16 %v851, %v850
      %v909 = vpack.c.b16 %v853, %v852
      %v910 = vpack.c.b16 %v855, %v854
      %v911 = vpack.c.b16 %v857, %v856
      %v912 = vpack.c.b16 %v859, %v858
      %v913 = vpack.c.b16 %v861, %v860
      %v914 = vpack.c.b16 %v863, %v862
      %v915 = vpack.c.b16 %v865, %v864
      %v916 = vpack.c.b16 %v867, %v866
      %v917 = vpack.c.b16 %v869, %v868
      %v918 = vpack.c.b16 %v871, %v870
      %v919 = vpack.c.b16 %v873, %v872
      %v920 = vpack.c.b16 %v875, %v874
      %v921 = vpack.c.b16 %v877, %v876
      %v922 = vpack.c.b16 %v879, %v878
      %v923 = vpack.c.b16 %v881, %v880
      %v924 = vpack.c.b16 %v883, %v882
      %v925 = vpack.c.b16 %v885, %v884
      %v926 = vpack.c.b16 %v887, %v886
      %v927 = vpack.c.b16 %v889, %v888
      %v928 = vpack.c.b16 %v891, %v890
      %v929 = vpack.c.b16 %v893, %v892
      %vm966 = vcmask 523264
      %v968 = vsel %vm966, %v610, 0
      %v971 = vsel %vm966, %v615, 0
      %v974 = vsel %vm966, %v620, 0
      %v977 = vsel %vm966, %v625, 0
      %v980 = vsel %vm966, %v630, 0
      %v983 = vsel %vm966, %v635, 0
      %v986 = vsel %vm966, %v640, 0
      %v989 = vsel %vm966, %v645, 0
      %v992 = vsel %vm966, %v650, 0
      %v995 = vsel %vm966, %v655, 0
      %v998 = vsel %vm966, %v660, 0
      %v1001 = vsel %vm966, %v665, 0
      %v1004 = vsel %vm966, %v670, 0
      %v1007 = vsel %vm966, %v675, 0
      %v1010 = vsel %vm966, %v680, 0
      %v1013 = vsel %vm966, %v685, 0
      %1015 = vmatpush.bf16.msra.mxu0 %v901
      %1016 = vmatpush.bf16.msra.mxu0 %v900
      %1017 = vmatpush.bf16.msra.mxu0 %v899
      %1018 = vmatpush.bf16.msra.mxu0 %v898
      %1019 = vmatpush.bf16.msra.mxu0 %v897
      %1020 = vmatpush.bf16.msra.mxu0 %v896
      %1021 = vmatpush.bf16.msra.mxu0 %v895
      %1022 = vmatpush.bf16.msra.mxu0 %v894
      %1023 = vmatmul.bf16.gmra.mxu0 %v606
      %v1024 = vpop.f32.mrf.mxu0
      %v1025 = vadd.f32 %v348, %v1024
      %v1026 = vpop.f32.mrf.mxu0
      %v1027 = vadd.f32 %v348, %v1026
      %1028 = vmatmul.bf16.gmra.mxu0 %v611
      %v1029 = vpop.f32.mrf.mxu0
      %v1030 = vadd.f32 %v348, %v1029
      %v1031 = vpop.f32.mrf.mxu0
      %v1032 = vadd.f32 %v348, %v1031
      %1033 = vmatmul.bf16.gmra.mxu0 %v616
      %v1034 = vpop.f32.mrf.mxu0
      %v1035 = vadd.f32 %v348, %v1034
      %v1036 = vpop.f32.mrf.mxu0
      %v1037 = vadd.f32 %v348, %v1036
      %1038 = vmatmul.bf16.gmra.mxu0 %v621
      %v1039 = vpop.f32.mrf.mxu0
      %v1040 = vadd.f32 %v348, %v1039
      %v1041 = vpop.f32.mrf.mxu0
      %v1042 = vadd.f32 %v348, %v1041
      %1043 = vmatmul.bf16.gmra.mxu0 %v626
      %v1044 = vpop.f32.mrf.mxu0
      %v1045 = vadd.f32 %v348, %v1044
      %v1046 = vpop.f32.mrf.mxu0
      %v1047 = vadd.f32 %v348, %v1046
      %1048 = vmatmul.bf16.gmra.mxu0 %v631
      %v1049 = vpop.f32.mrf.mxu0
      %v1050 = vadd.f32 %v348, %v1049
      %v1051 = vpop.f32.mrf.mxu0
      %v1052 = vadd.f32 %v348, %v1051
      %1053 = vmatmul.bf16.gmra.mxu0 %v636
      %v1054 = vpop.f32.mrf.mxu0
      %v1055 = vadd.f32 %v348, %v1054
      %v1056 = vpop.f32.mrf.mxu0
      %v1057 = vadd.f32 %v348, %v1056
      %1058 = vmatmul.bf16.gmra.mxu0 %v641
      %v1059 = vpop.f32.mrf.mxu0
      %v1060 = vadd.f32 %v348, %v1059
      %v1061 = vpop.f32.mrf.mxu0
      %v1062 = vadd.f32 %v348, %v1061
      %1063 = vmatmul.bf16.gmra.mxu0 %v646
      %v1064 = vpop.f32.mrf.mxu0
      %v1065 = vadd.f32 %v348, %v1064
      %v1066 = vpop.f32.mrf.mxu0
      %v1067 = vadd.f32 %v348, %v1066
      %1068 = vmatmul.bf16.gmra.mxu0 %v651
      %v1069 = vpop.f32.mrf.mxu0
      %v1070 = vadd.f32 %v348, %v1069
      %v1071 = vpop.f32.mrf.mxu0
      %v1072 = vadd.f32 %v348, %v1071
      %1073 = vmatmul.bf16.gmra.mxu0 %v656
      %v1074 = vpop.f32.mrf.mxu0
      %v1075 = vadd.f32 %v348, %v1074
      %v1076 = vpop.f32.mrf.mxu0
      %v1077 = vadd.f32 %v348, %v1076
      %1078 = vmatmul.bf16.gmra.mxu0 %v661
      %v1079 = vpop.f32.mrf.mxu0
      %v1080 = vadd.f32 %v348, %v1079
      %v1081 = vpop.f32.mrf.mxu0
      %v1082 = vadd.f32 %v348, %v1081
      %1083 = vmatmul.bf16.gmra.mxu0 %v666
      %v1084 = vpop.f32.mrf.mxu0
      %v1085 = vadd.f32 %v348, %v1084
      %v1086 = vpop.f32.mrf.mxu0
      %v1087 = vadd.f32 %v348, %v1086
      %1088 = vmatmul.bf16.gmra.mxu0 %v671
      %v1089 = vpop.f32.mrf.mxu0
      %v1090 = vadd.f32 %v348, %v1089
      %v1091 = vpop.f32.mrf.mxu0
      %v1092 = vadd.f32 %v348, %v1091
      %1093 = vmatmul.bf16.gmra.mxu0 %v676
      %v1094 = vpop.f32.mrf.mxu0
      %v1095 = vadd.f32 %v348, %v1094
      %v1096 = vpop.f32.mrf.mxu0
      %v1097 = vadd.f32 %v348, %v1096
      %1098 = vmatmul.bf16.gmra.mxu0 %v681
      %v1099 = vpop.f32.mrf.mxu0
      %v1100 = vadd.f32 %v348, %v1099
      %v1101 = vpop.f32.mrf.mxu0
      %v1102 = vadd.f32 %v348, %v1101
      %1103 = vdwg.mxu0
      %1104 = vmatpush.bf16.msra.mxu0 %v909
      %1105 = vmatpush.bf16.msra.mxu0 %v908
      %1106 = vmatpush.bf16.msra.mxu0 %v907
      %1107 = vmatpush.bf16.msra.mxu0 %v906
      %1108 = vmatpush.bf16.msra.mxu0 %v905
      %1109 = vmatpush.bf16.msra.mxu0 %v904
      %1110 = vmatpush.bf16.msra.mxu0 %v903
      %1111 = vmatpush.bf16.msra.mxu0 %v902
      %1112 = vmatmul.bf16.gmra.mxu0 %v607
      %v1113 = vpop.f32.mrf.mxu0
      %v1114 = vadd.f32 %v1025, %v1113
      %v1115 = vpop.f32.mrf.mxu0
      %v1116 = vadd.f32 %v1027, %v1115
      %1117 = vmatmul.bf16.gmra.mxu0 %v612
      %v1118 = vpop.f32.mrf.mxu0
      %v1119 = vadd.f32 %v1030, %v1118
      %v1120 = vpop.f32.mrf.mxu0
      %v1121 = vadd.f32 %v1032, %v1120
      %1122 = vmatmul.bf16.gmra.mxu0 %v617
      %v1123 = vpop.f32.mrf.mxu0
      %v1124 = vadd.f32 %v1035, %v1123
      %v1125 = vpop.f32.mrf.mxu0
      %v1126 = vadd.f32 %v1037, %v1125
      %1127 = vmatmul.bf16.gmra.mxu0 %v622
      %v1128 = vpop.f32.mrf.mxu0
      %v1129 = vadd.f32 %v1040, %v1128
      %v1130 = vpop.f32.mrf.mxu0
      %v1131 = vadd.f32 %v1042, %v1130
      %1132 = vmatmul.bf16.gmra.mxu0 %v627
      %v1133 = vpop.f32.mrf.mxu0
      %v1134 = vadd.f32 %v1045, %v1133
      %v1135 = vpop.f32.mrf.mxu0
      %v1136 = vadd.f32 %v1047, %v1135
      %1137 = vmatmul.bf16.gmra.mxu0 %v632
      %v1138 = vpop.f32.mrf.mxu0
      %v1139 = vadd.f32 %v1050, %v1138
      %v1140 = vpop.f32.mrf.mxu0
      %v1141 = vadd.f32 %v1052, %v1140
      %1142 = vmatmul.bf16.gmra.mxu0 %v637
      %v1143 = vpop.f32.mrf.mxu0
      %v1144 = vadd.f32 %v1055, %v1143
      %v1145 = vpop.f32.mrf.mxu0
      %v1146 = vadd.f32 %v1057, %v1145
      %1147 = vmatmul.bf16.gmra.mxu0 %v642
      %v1148 = vpop.f32.mrf.mxu0
      %v1149 = vadd.f32 %v1060, %v1148
      %v1150 = vpop.f32.mrf.mxu0
      %v1151 = vadd.f32 %v1062, %v1150
      %1152 = vmatmul.bf16.gmra.mxu0 %v647
      %v1153 = vpop.f32.mrf.mxu0
      %v1154 = vadd.f32 %v1065, %v1153
      %v1155 = vpop.f32.mrf.mxu0
      %v1156 = vadd.f32 %v1067, %v1155
      %1157 = vmatmul.bf16.gmra.mxu0 %v652
      %v1158 = vpop.f32.mrf.mxu0
      %v1159 = vadd.f32 %v1070, %v1158
      %v1160 = vpop.f32.mrf.mxu0
      %v1161 = vadd.f32 %v1072, %v1160
      %1162 = vmatmul.bf16.gmra.mxu0 %v657
      %v1163 = vpop.f32.mrf.mxu0
      %v1164 = vadd.f32 %v1075, %v1163
      %v1165 = vpop.f32.mrf.mxu0
      %v1166 = vadd.f32 %v1077, %v1165
      %1167 = vmatmul.bf16.gmra.mxu0 %v662
      %v1168 = vpop.f32.mrf.mxu0
      %v1169 = vadd.f32 %v1080, %v1168
      %v1170 = vpop.f32.mrf.mxu0
      %v1171 = vadd.f32 %v1082, %v1170
      %1172 = vmatmul.bf16.gmra.mxu0 %v667
      %v1173 = vpop.f32.mrf.mxu0
      %v1174 = vadd.f32 %v1085, %v1173
      %v1175 = vpop.f32.mrf.mxu0
      %v1176 = vadd.f32 %v1087, %v1175
      %1177 = vmatmul.bf16.gmra.mxu0 %v672
      %v1178 = vpop.f32.mrf.mxu0
      %v1179 = vadd.f32 %v1090, %v1178
      %v1180 = vpop.f32.mrf.mxu0
      %v1181 = vadd.f32 %v1092, %v1180
      %1182 = vmatmul.bf16.gmra.mxu0 %v677
      %v1183 = vpop.f32.mrf.mxu0
      %v1184 = vadd.f32 %v1095, %v1183
      %v1185 = vpop.f32.mrf.mxu0
      %v1186 = vadd.f32 %v1097, %v1185
      %1187 = vmatmul.bf16.gmra.mxu0 %v682
      %v1188 = vpop.f32.mrf.mxu0
      %v1189 = vadd.f32 %v1100, %v1188
      %v1190 = vpop.f32.mrf.mxu0
      %v1191 = vadd.f32 %v1102, %v1190
      %1192 = vdwg.mxu0
      %1193 = vmatpush.bf16.msra.mxu0 %v917
      %1194 = vmatpush.bf16.msra.mxu0 %v916
      %1195 = vmatpush.bf16.msra.mxu0 %v915
      %1196 = vmatpush.bf16.msra.mxu0 %v914
      %1197 = vmatpush.bf16.msra.mxu0 %v913
      %1198 = vmatpush.bf16.msra.mxu0 %v912
      %1199 = vmatpush.bf16.msra.mxu0 %v911
      %1200 = vmatpush.bf16.msra.mxu0 %v910
      %1201 = vmatmul.bf16.gmra.mxu0 %v608
      %v1202 = vpop.f32.mrf.mxu0
      %v1203 = vadd.f32 %v1114, %v1202
      %v1204 = vpop.f32.mrf.mxu0
      %v1205 = vadd.f32 %v1116, %v1204
      %1206 = vmatmul.bf16.gmra.mxu0 %v613
      %v1207 = vpop.f32.mrf.mxu0
      %v1208 = vadd.f32 %v1119, %v1207
      %v1209 = vpop.f32.mrf.mxu0
      %v1210 = vadd.f32 %v1121, %v1209
      %1211 = vmatmul.bf16.gmra.mxu0 %v618
      %v1212 = vpop.f32.mrf.mxu0
      %v1213 = vadd.f32 %v1124, %v1212
      %v1214 = vpop.f32.mrf.mxu0
      %v1215 = vadd.f32 %v1126, %v1214
      %1216 = vmatmul.bf16.gmra.mxu0 %v623
      %v1217 = vpop.f32.mrf.mxu0
      %v1218 = vadd.f32 %v1129, %v1217
      %v1219 = vpop.f32.mrf.mxu0
      %v1220 = vadd.f32 %v1131, %v1219
      %1221 = vmatmul.bf16.gmra.mxu0 %v628
      %v1222 = vpop.f32.mrf.mxu0
      %v1223 = vadd.f32 %v1134, %v1222
      %v1224 = vpop.f32.mrf.mxu0
      %v1225 = vadd.f32 %v1136, %v1224
      %1226 = vmatmul.bf16.gmra.mxu0 %v633
      %v1227 = vpop.f32.mrf.mxu0
      %v1228 = vadd.f32 %v1139, %v1227
      %v1229 = vpop.f32.mrf.mxu0
      %v1230 = vadd.f32 %v1141, %v1229
      %1231 = vmatmul.bf16.gmra.mxu0 %v638
      %v1232 = vpop.f32.mrf.mxu0
      %v1233 = vadd.f32 %v1144, %v1232
      %v1234 = vpop.f32.mrf.mxu0
      %v1235 = vadd.f32 %v1146, %v1234
      %1236 = vmatmul.bf16.gmra.mxu0 %v643
      %v1237 = vpop.f32.mrf.mxu0
      %v1238 = vadd.f32 %v1149, %v1237
      %v1239 = vpop.f32.mrf.mxu0
      %v1240 = vadd.f32 %v1151, %v1239
      %1241 = vmatmul.bf16.gmra.mxu0 %v648
      %v1242 = vpop.f32.mrf.mxu0
      %v1243 = vadd.f32 %v1154, %v1242
      %v1244 = vpop.f32.mrf.mxu0
      %v1245 = vadd.f32 %v1156, %v1244
      %1246 = vmatmul.bf16.gmra.mxu0 %v653
      %v1247 = vpop.f32.mrf.mxu0
      %v1248 = vadd.f32 %v1159, %v1247
      %v1249 = vpop.f32.mrf.mxu0
      %v1250 = vadd.f32 %v1161, %v1249
      %1251 = vmatmul.bf16.gmra.mxu0 %v658
      %v1252 = vpop.f32.mrf.mxu0
      %v1253 = vadd.f32 %v1164, %v1252
      %v1254 = vpop.f32.mrf.mxu0
      %v1255 = vadd.f32 %v1166, %v1254
      %1256 = vmatmul.bf16.gmra.mxu0 %v663
      %v1257 = vpop.f32.mrf.mxu0
      %v1258 = vadd.f32 %v1169, %v1257
      %v1259 = vpop.f32.mrf.mxu0
      %v1260 = vadd.f32 %v1171, %v1259
      %1261 = vmatmul.bf16.gmra.mxu0 %v668
      %v1262 = vpop.f32.mrf.mxu0
      %v1263 = vadd.f32 %v1174, %v1262
      %v1264 = vpop.f32.mrf.mxu0
      %v1265 = vadd.f32 %v1176, %v1264
      %1266 = vmatmul.bf16.gmra.mxu0 %v673
      %v1267 = vpop.f32.mrf.mxu0
      %v1268 = vadd.f32 %v1179, %v1267
      %v1269 = vpop.f32.mrf.mxu0
      %v1270 = vadd.f32 %v1181, %v1269
      %1271 = vmatmul.bf16.gmra.mxu0 %v678
      %v1272 = vpop.f32.mrf.mxu0
      %v1273 = vadd.f32 %v1184, %v1272
      %v1274 = vpop.f32.mrf.mxu0
      %v1275 = vadd.f32 %v1186, %v1274
      %1276 = vmatmul.bf16.gmra.mxu0 %v683
      %v1277 = vpop.f32.mrf.mxu0
      %v1278 = vadd.f32 %v1189, %v1277
      %v1279 = vpop.f32.mrf.mxu0
      %v1280 = vadd.f32 %v1191, %v1279
      %1281 = vdwg.mxu0
      %1282 = vmatpush.bf16.msra.mxu0 %v925
      %1283 = vmatpush.bf16.msra.mxu0 %v924
      %1284 = vmatpush.bf16.msra.mxu0 %v923
      %1285 = vmatpush.bf16.msra.mxu0 %v922
      %1286 = vmatpush.bf16.msra.mxu0 %v921
      %1287 = vmatpush.bf16.msra.mxu0 %v920
      %1288 = vmatpush.bf16.msra.mxu0 %v919
      %1289 = vmatpush.bf16.msra.mxu0 %v918
      %1290 = vmatmul.bf16.gmra.mxu0 %v609
      %v1291 = vpop.f32.mrf.mxu0
      %v1292 = vadd.f32 %v1203, %v1291
      %v1293 = vpop.f32.mrf.mxu0
      %v1294 = vadd.f32 %v1205, %v1293
      %1295 = vmatmul.bf16.gmra.mxu0 %v614
      %v1296 = vpop.f32.mrf.mxu0
      %v1297 = vadd.f32 %v1208, %v1296
      %v1298 = vpop.f32.mrf.mxu0
      %v1299 = vadd.f32 %v1210, %v1298
      %1300 = vmatmul.bf16.gmra.mxu0 %v619
      %v1301 = vpop.f32.mrf.mxu0
      %v1302 = vadd.f32 %v1213, %v1301
      %v1303 = vpop.f32.mrf.mxu0
      %v1304 = vadd.f32 %v1215, %v1303
      %1305 = vmatmul.bf16.gmra.mxu0 %v624
      %v1306 = vpop.f32.mrf.mxu0
      %v1307 = vadd.f32 %v1218, %v1306
      %v1308 = vpop.f32.mrf.mxu0
      %v1309 = vadd.f32 %v1220, %v1308
      %1310 = vmatmul.bf16.gmra.mxu0 %v629
      %v1311 = vpop.f32.mrf.mxu0
      %v1312 = vadd.f32 %v1223, %v1311
      %v1313 = vpop.f32.mrf.mxu0
      %v1314 = vadd.f32 %v1225, %v1313
      %1315 = vmatmul.bf16.gmra.mxu0 %v634
      %v1316 = vpop.f32.mrf.mxu0
      %v1317 = vadd.f32 %v1228, %v1316
      %v1318 = vpop.f32.mrf.mxu0
      %v1319 = vadd.f32 %v1230, %v1318
      %1320 = vmatmul.bf16.gmra.mxu0 %v639
      %v1321 = vpop.f32.mrf.mxu0
      %v1322 = vadd.f32 %v1233, %v1321
      %v1323 = vpop.f32.mrf.mxu0
      %v1324 = vadd.f32 %v1235, %v1323
      %1325 = vmatmul.bf16.gmra.mxu0 %v644
      %v1326 = vpop.f32.mrf.mxu0
      %v1327 = vadd.f32 %v1238, %v1326
      %v1328 = vpop.f32.mrf.mxu0
      %v1329 = vadd.f32 %v1240, %v1328
      %1330 = vmatmul.bf16.gmra.mxu0 %v649
      %v1331 = vpop.f32.mrf.mxu0
      %v1332 = vadd.f32 %v1243, %v1331
      %v1333 = vpop.f32.mrf.mxu0
      %v1334 = vadd.f32 %v1245, %v1333
      %1335 = vmatmul.bf16.gmra.mxu0 %v654
      %v1336 = vpop.f32.mrf.mxu0
      %v1337 = vadd.f32 %v1248, %v1336
      %v1338 = vpop.f32.mrf.mxu0
      %v1339 = vadd.f32 %v1250, %v1338
      %1340 = vmatmul.bf16.gmra.mxu0 %v659
      %v1341 = vpop.f32.mrf.mxu0
      %v1342 = vadd.f32 %v1253, %v1341
      %v1343 = vpop.f32.mrf.mxu0
      %v1344 = vadd.f32 %v1255, %v1343
      %1345 = vmatmul.bf16.gmra.mxu0 %v664
      %v1346 = vpop.f32.mrf.mxu0
      %v1347 = vadd.f32 %v1258, %v1346
      %v1348 = vpop.f32.mrf.mxu0
      %v1349 = vadd.f32 %v1260, %v1348
      %1350 = vmatmul.bf16.gmra.mxu0 %v669
      %v1351 = vpop.f32.mrf.mxu0
      %v1352 = vadd.f32 %v1263, %v1351
      %v1353 = vpop.f32.mrf.mxu0
      %v1354 = vadd.f32 %v1265, %v1353
      %1355 = vmatmul.bf16.gmra.mxu0 %v674
      %v1356 = vpop.f32.mrf.mxu0
      %v1357 = vadd.f32 %v1268, %v1356
      %v1358 = vpop.f32.mrf.mxu0
      %v1359 = vadd.f32 %v1270, %v1358
      %1360 = vmatmul.bf16.gmra.mxu0 %v679
      %v1361 = vpop.f32.mrf.mxu0
      %v1362 = vadd.f32 %v1273, %v1361
      %v1363 = vpop.f32.mrf.mxu0
      %v1364 = vadd.f32 %v1275, %v1363
      %1365 = vmatmul.bf16.gmra.mxu0 %v684
      %v1366 = vpop.f32.mrf.mxu0
      %v1367 = vadd.f32 %v1278, %v1366
      %v1368 = vpop.f32.mrf.mxu0
      %v1369 = vadd.f32 %v1280, %v1368
      %1370 = vdwg.mxu0
      %1371 = vmatpush.bf16.msra.mxu0 0
      %1372 = vmatpush.bf16.msra.mxu0 0
      %1373 = vmatpush.bf16.msra.mxu0 0
      %1374 = vmatpush.bf16.msra.mxu0 0
      %1375 = vmatpush.bf16.msra.mxu0 %v929
      %1376 = vmatpush.bf16.msra.mxu0 %v928
      %1377 = vmatpush.bf16.msra.mxu0 %v927
      %1378 = vmatpush.bf16.msra.mxu0 %v926
      %1379 = vmatmul.bf16.gmra.mxu0 %v968
      %v1380 = vpop.f32.mrf.mxu0
      %v1381 = vadd.f32 %v1292, %v1380
      %v1382 = vpop.f32.mrf.mxu0
      %v1383 = vadd.f32 %v1294, %v1382
      %1384 = vmatmul.bf16.gmra.mxu0 %v971
      %v1385 = vpop.f32.mrf.mxu0
      %v1386 = vadd.f32 %v1297, %v1385
      %v1387 = vpop.f32.mrf.mxu0
      %v1388 = vadd.f32 %v1299, %v1387
      %1389 = vmatmul.bf16.gmra.mxu0 %v974
      %v1390 = vpop.f32.mrf.mxu0
      %v1391 = vadd.f32 %v1302, %v1390
      %v1392 = vpop.f32.mrf.mxu0
      %v1393 = vadd.f32 %v1304, %v1392
      %1394 = vmatmul.bf16.gmra.mxu0 %v977
      %v1395 = vpop.f32.mrf.mxu0
      %v1396 = vadd.f32 %v1307, %v1395
      %v1397 = vpop.f32.mrf.mxu0
      %v1398 = vadd.f32 %v1309, %v1397
      %1399 = vmatmul.bf16.gmra.mxu0 %v980
      %v1400 = vpop.f32.mrf.mxu0
      %v1401 = vadd.f32 %v1312, %v1400
      %v1402 = vpop.f32.mrf.mxu0
      %v1403 = vadd.f32 %v1314, %v1402
      %1404 = vmatmul.bf16.gmra.mxu0 %v983
      %v1405 = vpop.f32.mrf.mxu0
      %v1406 = vadd.f32 %v1317, %v1405
      %v1407 = vpop.f32.mrf.mxu0
      %v1408 = vadd.f32 %v1319, %v1407
      %1409 = vmatmul.bf16.gmra.mxu0 %v986
      %v1410 = vpop.f32.mrf.mxu0
      %v1411 = vadd.f32 %v1322, %v1410
      %v1412 = vpop.f32.mrf.mxu0
      %v1413 = vadd.f32 %v1324, %v1412
      %1414 = vmatmul.bf16.gmra.mxu0 %v989
      %v1415 = vpop.f32.mrf.mxu0
      %v1416 = vadd.f32 %v1327, %v1415
      %v1417 = vpop.f32.mrf.mxu0
      %v1418 = vadd.f32 %v1329, %v1417
      %1419 = vmatmul.bf16.gmra.mxu0 %v992
      %v1420 = vpop.f32.mrf.mxu0
      %v1421 = vadd.f32 %v1332, %v1420
      %v1422 = vpop.f32.mrf.mxu0
      %v1423 = vadd.f32 %v1334, %v1422
      %1424 = vmatmul.bf16.gmra.mxu0 %v995
      %v1425 = vpop.f32.mrf.mxu0
      %v1426 = vadd.f32 %v1337, %v1425
      %v1427 = vpop.f32.mrf.mxu0
      %v1428 = vadd.f32 %v1339, %v1427
      %1429 = vmatmul.bf16.gmra.mxu0 %v998
      %v1430 = vpop.f32.mrf.mxu0
      %v1431 = vadd.f32 %v1342, %v1430
      %v1432 = vpop.f32.mrf.mxu0
      %v1433 = vadd.f32 %v1344, %v1432
      %1434 = vmatmul.bf16.gmra.mxu0 %v1001
      %v1435 = vpop.f32.mrf.mxu0
      %v1436 = vadd.f32 %v1347, %v1435
      %v1437 = vpop.f32.mrf.mxu0
      %v1438 = vadd.f32 %v1349, %v1437
      %1439 = vmatmul.bf16.gmra.mxu0 %v1004
      %v1440 = vpop.f32.mrf.mxu0
      %v1441 = vadd.f32 %v1352, %v1440
      %v1442 = vpop.f32.mrf.mxu0
      %v1443 = vadd.f32 %v1354, %v1442
      %1444 = vmatmul.bf16.gmra.mxu0 %v1007
      %v1445 = vpop.f32.mrf.mxu0
      %v1446 = vadd.f32 %v1357, %v1445
      %v1447 = vpop.f32.mrf.mxu0
      %v1448 = vadd.f32 %v1359, %v1447
      %1449 = vmatmul.bf16.gmra.mxu0 %v1010
      %v1450 = vpop.f32.mrf.mxu0
      %v1451 = vadd.f32 %v1362, %v1450
      %v1452 = vpop.f32.mrf.mxu0
      %v1453 = vadd.f32 %v1364, %v1452
      %1454 = vmatmul.bf16.gmra.mxu0 %v1013
      %v1455 = vpop.f32.mrf.mxu0
      %v1456 = vadd.f32 %v1367, %v1455
      %v1457 = vpop.f32.mrf.mxu0
      %v1458 = vadd.f32 %v1369, %v1457
      %1459 = vdwg.mxu0
      %v1460 = vmax.f32 %v1381, 0.0
      %v1461 = vmax.f32 %v1383, 0.0
      %v1462 = vmax.f32 %v1386, 0.0
      %v1463 = vmax.f32 %v1388, 0.0
      %v1464 = vmax.f32 %v1391, 0.0
      %v1465 = vmax.f32 %v1393, 0.0
      %v1466 = vmax.f32 %v1396, 0.0
      %v1467 = vmax.f32 %v1398, 0.0
      %v1468 = vmax.f32 %v1401, 0.0
      %v1469 = vmax.f32 %v1403, 0.0
      %v1470 = vmax.f32 %v1406, 0.0
      %v1471 = vmax.f32 %v1408, 0.0
      %v1472 = vmax.f32 %v1411, 0.0
      %v1473 = vmax.f32 %v1413, 0.0
      %v1474 = vmax.f32 %v1416, 0.0
      %v1475 = vmax.f32 %v1418, 0.0
      %v1476 = vmax.f32 %v1421, 0.0
      %v1477 = vmax.f32 %v1423, 0.0
      %v1478 = vmax.f32 %v1426, 0.0
      %v1479 = vmax.f32 %v1428, 0.0
      %v1480 = vmax.f32 %v1431, 0.0
      %v1481 = vmax.f32 %v1433, 0.0
      %v1482 = vmax.f32 %v1436, 0.0
      %v1483 = vmax.f32 %v1438, 0.0
      %v1484 = vmax.f32 %v1441, 0.0
      %v1485 = vmax.f32 %v1443, 0.0
      %v1486 = vmax.f32 %v1446, 0.0
      %v1487 = vmax.f32 %v1448, 0.0
      %v1488 = vmax.f32 %v1451, 0.0
      %v1489 = vmax.f32 %v1453, 0.0
      %v1490 = vmax.f32 %v1456, 0.0
      %v1491 = vmax.f32 %v1458, 0.0
      %v1492 = vpack.c.bf16 %v1460, %v1460
      %v1493 = vpack.c.bf16 %v1461, %v1461
      %v1494 = vpack.c.bf16 %v1462, %v1462
      %v1495 = vpack.c.bf16 %v1463, %v1463
      %v1496 = vpack.c.bf16 %v1464, %v1464
      %v1497 = vpack.c.bf16 %v1465, %v1465
      %v1498 = vpack.c.bf16 %v1466, %v1466
      %v1499 = vpack.c.bf16 %v1467, %v1467
      %v1500 = vpack.c.bf16 %v1468, %v1468
      %v1501 = vpack.c.bf16 %v1469, %v1469
      %v1502 = vpack.c.bf16 %v1470, %v1470
      %v1503 = vpack.c.bf16 %v1471, %v1471
      %v1504 = vpack.c.bf16 %v1472, %v1472
      %v1505 = vpack.c.bf16 %v1473, %v1473
      %v1506 = vpack.c.bf16 %v1474, %v1474
      %v1507 = vpack.c.bf16 %v1475, %v1475
      %v1508 = vpack.c.bf16 %v1476, %v1476
      %v1509 = vpack.c.bf16 %v1477, %v1477
      %v1510 = vpack.c.bf16 %v1478, %v1478
      %v1511 = vpack.c.bf16 %v1479, %v1479
      %v1512 = vpack.c.bf16 %v1480, %v1480
      %v1513 = vpack.c.bf16 %v1481, %v1481
      %v1514 = vpack.c.bf16 %v1482, %v1482
      %v1515 = vpack.c.bf16 %v1483, %v1483
      %v1516 = vpack.c.bf16 %v1484, %v1484
      %v1517 = vpack.c.bf16 %v1485, %v1485
      %v1518 = vpack.c.bf16 %v1486, %v1486
      %v1519 = vpack.c.bf16 %v1487, %v1487
      %v1520 = vpack.c.bf16 %v1488, %v1488
      %v1521 = vpack.c.bf16 %v1489, %v1489
      %v1522 = vpack.c.bf16 %v1490, %v1490
      %v1523 = vpack.c.bf16 %v1491, %v1491
      %vm1524 = vcmask 519168
      %1525 = vst.msk [vmem:[%s175] sm:$0xf] %vm1524, %v1492
      %1526 = vst.msk [vmem:[%s175 + $0x4] sm:$0xf] %vm1524, %v1493
      %1527 = vst.msk [vmem:[%s175 + $0x8] sm:$0xf] %vm1524, %v1494
      %1528 = vst.msk [vmem:[%s175 + $0xc] sm:$0xf] %vm1524, %v1495
      %1529 = vst.msk [vmem:[%s175 + $0x10] sm:$0xf] %vm1524, %v1496
      %1530 = vst.msk [vmem:[%s175 + $0x14] sm:$0xf] %vm1524, %v1497
      %1531 = vst.msk [vmem:[%s175 + $0x18] sm:$0xf] %vm1524, %v1498
      %1532 = vst.msk [vmem:[%s175 + $0x1c] sm:$0xf] %vm1524, %v1499
      %1533 = vst.msk [vmem:[%s175 + $0x20] sm:$0xf] %vm1524, %v1500
      %1534 = vst.msk [vmem:[%s175 + $0x24] sm:$0xf] %vm1524, %v1501
      %1535 = vst.msk [vmem:[%s175 + $0x28] sm:$0xf] %vm1524, %v1502
      %1536 = vst.msk [vmem:[%s175 + $0x2c] sm:$0xf] %vm1524, %v1503
      %1537 = vst.msk [vmem:[%s175 + $0x30] sm:$0xf] %vm1524, %v1504
      %1538 = vst.msk [vmem:[%s175 + $0x34] sm:$0xf] %vm1524, %v1505
      %1539 = vst.msk [vmem:[%s175 + $0x38] sm:$0xf] %vm1524, %v1506
      %1540 = vst.msk [vmem:[%s175 + $0x3c] sm:$0xf] %vm1524, %v1507
      %1541 = vst.msk [vmem:[%s175 + $0x40] sm:$0xf] %vm1524, %v1508
      %1542 = vst.msk [vmem:[%s175 + $0x44] sm:$0xf] %vm1524, %v1509
      %1543 = vst.msk [vmem:[%s175 + $0x48] sm:$0xf] %vm1524, %v1510
      %1544 = vst.msk [vmem:[%s175 + $0x4c] sm:$0xf] %vm1524, %v1511
      %1545 = vst.msk [vmem:[%s175 + $0x50] sm:$0xf] %vm1524, %v1512
      %1546 = vst.msk [vmem:[%s175 + $0x54] sm:$0xf] %vm1524, %v1513
      %1547 = vst.msk [vmem:[%s175 + $0x58] sm:$0xf] %vm1524, %v1514
      %1548 = vst.msk [vmem:[%s175 + $0x5c] sm:$0xf] %vm1524, %v1515
      %1549 = vst.msk [vmem:[%s175 + $0x60] sm:$0xf] %vm1524, %v1516
      %1550 = vst.msk [vmem:[%s175 + $0x64] sm:$0xf] %vm1524, %v1517
      %1551 = vst.msk [vmem:[%s175 + $0x68] sm:$0xf] %vm1524, %v1518
      %1552 = vst.msk [vmem:[%s175 + $0x6c] sm:$0xf] %vm1524, %v1519
      %1553 = vst.msk [vmem:[%s175 + $0x70] sm:$0xf] %vm1524, %v1520
      %1554 = vst.msk [vmem:[%s175 + $0x74] sm:$0xf] %vm1524, %v1521
      %1555 = vst.msk [vmem:[%s175 + $0x78] sm:$0xf] %vm1524, %v1522
      %1556 = vst.msk [vmem:[%s175 + $0x7c] sm:$0xf] %vm1524, %v1523
      %s1557 = smul.u32 32, %s14
      %p1558 = scmp.lt.s32.totalorder %s1557, 63
      %s1559 = scalar_select %p1558, %s1557, 63
      %s1560 = smul.addr %s1559, 4
      %s1561 = scalar_lea.vmem %s3, %s1560
      // Predicated region
      $region33: #{deeplab_forward.32} parent=31 // pred_check
        %p1562 = pneg %p100
      $region34: #{deeplab_forward.32} parent=31 // pred_check_branch
        %1564 = sbr.rel (%p1562) target = $region36
      $region35: #{deeplab_forward.32} parent=31 // pred_region
        %s1565 = smul.u32 32, %s14
      $region36: #{deeplab_forward.32} parent=31 // pred_fallthru
        _
    $region32: #{deeplab_forward.32} parent=5 // pred_fallthru
      _
    %p1566 = scmp.le.s32.totalorder 2, %s9
    // Predicated region
    $region37: #{deeplab_forward.32} parent=5 // pred_check
      %p1567 = pneg %p1566
    $region38: #{deeplab_forward.32} parent=5 // pred_check_branch
      %1569 = sbr.rel (%p1567) target = $region40
    $region39: #{deeplab_forward.32} parent=5 // pred_region
      %s1570 = ssub.s32 %s9, 2
      // Predicated region
      $region41: #{deeplab_forward.32} parent=39 // pred_check
        %p1571 = pneg %p106
      $region42: #{deeplab_forward.32} parent=39 // pred_check_branch
        %1573 = sbr.rel (%p1571) target = $region44
      $region43: #{deeplab_forward.32} parent=39 // pred_region
        %s1574 = smul.u32 32, %s15
        %p1575 = scmp.lt.s32.totalorder %s1574, 63
        %s1576 = scalar_select %p1575, %s1574, 63
        %s1577 = smul.addr %s1576, 4
        %s1578 = scalar_lea.vmem %s3, %s1577
      $region44: #{deeplab_forward.32} parent=39 // pred_fallthru
        _
    $region40: #{deeplab_forward.32} parent=5 // pred_fallthru
      _
  $region6: #{deeplab_forward.32} parent=0 // loop_footer
    %s13 = sadd.s32 1, %s9
  $region7: #{deeplab_forward.32} parent=0 // loop_footer_branch
    %8 = sbr.rel target = $region3
  $region8: #{deeplab_forward.32} parent=0 // loop_exit
    _

// kernel: deeplab_forward.35
$region0: #{deeplab_forward.35}
  #allocation0 [shape = 'u32[]', space=smem, size = 0x4, offset = 0x4, fixed_abs, tag = 'smem constant byte address 0x4 - core index']
  #allocation1 [shape = 'u32[72,128]{1,0:T(1,128)}', space=vmem, size = 0x9000, scoped, tag = 'internal scratch']
  %s0 = inlined_call_operand.vmem [shape: f32[64,16], index: 0, kind: input, shape index: {}]
  %s1 = inlined_call_operand.vmem [shape: f32[16,256], index: 1, kind: input, shape index: {}]
  %s2 = inlined_call_operand.vmem [shape: f32[1,256], index: 2, kind: input, shape index: {}]
  %s3 = inlined_call_operand.vmem [shape: f32[64,256], index: 3, kind: output, shape index: {}]
  %s4 = sld [smem:[#allocation0]]
  $region22: #{deeplab_forward.35} parent=0
    _
  %s6 = ssub.s32 1, %s4
  %s7 = scalar_select 0, %s6, %s4
  // Predicated region
  $region2: #{deeplab_forward.35} parent=0 // pred_check
    _
  $region3: #{deeplab_forward.35} parent=0 // pred_check_branch
    %9 = sbr.rel (0) target = $region5
  $region4: #{deeplab_forward.35} parent=0 // pred_region
    _
  $region5: #{deeplab_forward.35} parent=0 // pred_fallthru
    _
  // Predicated region
  $region6: #{deeplab_forward.35} parent=0 // pred_check
    _
  $region7: #{deeplab_forward.35} parent=0 // pred_check_branch
    %11 = sbr.rel (0) target = $region9
  $region8: #{deeplab_forward.35} parent=0 // pred_region
    _
  $region9: #{deeplab_forward.35} parent=0 // pred_fallthru
    _
  // Predicated region
  $region10: #{deeplab_forward.35} parent=0 // pred_check
    _
  $region11: #{deeplab_forward.35} parent=0 // pred_check_branch
    %13 = sbr.rel (0) target = $region13
  $region12: #{deeplab_forward.35} parent=0 // pred_region
    _
  $region13: #{deeplab_forward.35} parent=0 // pred_fallthru
    _
  %v14 = vld [vmem:[%s0] sm:$0xff]
  %v15 = vld [vmem:[%s0 + $0x8] sm:$0xff]
  %v16 = vld [vmem:[%s0 + $0x10] sm:$0xff]
  %v17 = vld [vmem:[%s0 + $0x18] sm:$0xff]
  %v18 = vld [vmem:[%s0 + $0x20] sm:$0xff]
  %v19 = vld [vmem:[%s0 + $0x28] sm:$0xff]
  %v20 = vld [vmem:[%s0 + $0x30] sm:$0xff]
  %v21 = vld [vmem:[%s0 + $0x38] sm:$0xff]
  %v22 = vld [vmem:[%s1] sm:$0xff]
  %v23 = vld [vmem:[%s1 + $0x8] sm:$0xff]
  %v24 = vld [vmem:[%s1 + $0x10] sm:$0xff]
  %v25 = vld [vmem:[%s1 + $0x18] sm:$0xff]
  %v26 = vld [vmem:[%s2] sm:$0x3]
  %v28 = vperm.slane %v26, 0
  %v29 = vperm.slane %v26, 1
  %vm32 = vcmask 130048
  %v34 = vsel %vm32, %v14, 0
  %v37 = vsel %vm32, %v15, 0
  %v40 = vsel %vm32, %v16, 0
  %v43 = vsel %vm32, %v17, 0
  %v46 = vsel %vm32, %v18, 0
  %v49 = vsel %vm32, %v19, 0
  %v52 = vsel %vm32, %v20, 0
  %v55 = vsel %vm32, %v21, 0
  %57 = vmatpush.msra.mxu0 0.0
  %58 = vmatpush.msra.mxu0 0.0
  %59 = vmatpush.msra.mxu0 0.0
  %60 = vmatpush.msra.mxu0 0.0
  %61 = vmatpush.msra.mxu0 0.0
  %62 = vmatpush.msra.mxu0 0.0
  %63 = vmatpush.msra.mxu0 0.0
  %64 = vmatpush.msra.mxu0 0.0
  %65 = vmatpush.msra.mxu0 0.0
  %66 = vmatpush.msra.mxu0 0.0
  %67 = vmatpush.msra.mxu0 0.0
  %68 = vmatpush.msra.mxu0 0.0
  %69 = vmatpush.msra.mxu0 0.0
  %70 = vmatpush.msra.mxu0 0.0
  %71 = vmatpush.msra.mxu0 %v24
  %72 = vmatpush.msra.mxu0 %v22
  %73 = vmatmul.f32.gmra.mxu0 %v34
  %v74 = vpop.f32.mrf.mxu0
  %v75 = vadd.f32 %v28, %v74
  %76 = vmatmul.f32.gmra.mxu0 %v37
  %v77 = vpop.f32.mrf.mxu0
  %v78 = vadd.f32 %v28, %v77
  %79 = vmatmul.f32.gmra.mxu0 %v40
  %v80 = vpop.f32.mrf.mxu0
  %v81 = vadd.f32 %v28, %v80
  %82 = vmatmul.f32.gmra.mxu0 %v43
  %v83 = vpop.f32.mrf.mxu0
  %v84 = vadd.f32 %v28, %v83
  %85 = vmatmul.f32.gmra.mxu0 %v46
  %v86 = vpop.f32.mrf.mxu0
  %v87 = vadd.f32 %v28, %v86
  %88 = vmatmul.f32.gmra.mxu0 %v49
  %v89 = vpop.f32.mrf.mxu0
  %v90 = vadd.f32 %v28, %v89
  %91 = vmatmul.f32.gmra.mxu0 %v52
  %v92 = vpop.f32.mrf.mxu0
  %v93 = vadd.f32 %v28, %v92
  %94 = vmatmul.f32.gmra.mxu0 %v55
  %v95 = vpop.f32.mrf.mxu0
  %v96 = vadd.f32 %v28, %v95
  %97 = vdwg.mxu0
  %98 = vmatpush.msra.mxu0 0.0
  %99 = vmatpush.msra.mxu0 0.0
  %100 = vmatpush.msra.mxu0 0.0
  %101 = vmatpush.msra.mxu0 0.0
  %102 = vmatpush.msra.mxu0 0.0
  %103 = vmatpush.msra.mxu0 0.0
  %104 = vmatpush.msra.mxu0 0.0
  %105 = vmatpush.msra.mxu0 0.0
  %106 = vmatpush.msra.mxu0 0.0
  %107 = vmatpush.msra.mxu0 0.0
  %108 = vmatpush.msra.mxu0 0.0
  %109 = vmatpush.msra.mxu0 0.0
  %110 = vmatpush.msra.mxu0 0.0
  %111 = vmatpush.msra.mxu0 0.0
  %112 = vmatpush.msra.mxu0 %v25
  %113 = vmatpush.msra.mxu0 %v23
  %114 = vmatmul.f32.gmra.mxu0 %v34
  %v115 = vpop.f32.mrf.mxu0
  %v116 = vadd.f32 %v29, %v115
  %117 = vmatmul.f32.gmra.mxu0 %v37
  %v118 = vpop.f32.mrf.mxu0
  %v119 = vadd.f32 %v29, %v118
  %120 = vmatmul.f32.gmra.mxu0 %v40
  %v121 = vpop.f32.mrf.mxu0
  %v122 = vadd.f32 %v29, %v121
  %123 = vmatmul.f32.gmra.mxu0 %v43
  %v124 = vpop.f32.mrf.mxu0
  %v125 = vadd.f32 %v29, %v124
  %126 = vmatmul.f32.gmra.mxu0 %v46
  %v127 = vpop.f32.mrf.mxu0
  %v128 = vadd.f32 %v29, %v127
  %129 = vmatmul.f32.gmra.mxu0 %v49
  %v130 = vpop.f32.mrf.mxu0
  %v131 = vadd.f32 %v29, %v130
  %132 = vmatmul.f32.gmra.mxu0 %v52
  %v133 = vpop.f32.mrf.mxu0
  %v134 = vadd.f32 %v29, %v133
  %135 = vmatmul.f32.gmra.mxu0 %v55
  %v136 = vpop.f32.mrf.mxu0
  %v137 = vadd.f32 %v29, %v136
  %138 = vdwg.mxu0
  %139 = vst [vmem:[%s3] sm:$0xff] %v75
  %140 = vst [vmem:[%s3 + $0x8] sm:$0xff] %v116
  %141 = vst [vmem:[%s3 + $0x10] sm:$0xff] %v78
  %142 = vst [vmem:[%s3 + $0x18] sm:$0xff] %v119
  %143 = vst [vmem:[%s3 + $0x20] sm:$0xff] %v81
  %144 = vst [vmem:[%s3 + $0x28] sm:$0xff] %v122
  %145 = vst [vmem:[%s3 + $0x30] sm:$0xff] %v84
  %146 = vst [vmem:[%s3 + $0x38] sm:$0xff] %v125
  %147 = vst [vmem:[%s3 + $0x40] sm:$0xff] %v87
  %148 = vst [vmem:[%s3 + $0x48] sm:$0xff] %v128
  %149 = vst [vmem:[%s3 + $0x50] sm:$0xff] %v90
  %150 = vst [vmem:[%s3 + $0x58] sm:$0xff] %v131
  %151 = vst [vmem:[%s3 + $0x60] sm:$0xff] %v93
  %152 = vst [vmem:[%s3 + $0x68] sm:$0xff] %v134
  %153 = vst [vmem:[%s3 + $0x70] sm:$0xff] %v96
  %154 = vst [vmem:[%s3 + $0x78] sm:$0xff] %v137
  // Predicated region
  $region14: #{deeplab_forward.35} parent=0 // pred_check
    _
  $region15: #{deeplab_forward.35} parent=0 // pred_check_branch
    %156 = sbr.rel (0) target = $region17
  $region16: #{deeplab_forward.35} parent=0 // pred_region
    _
  $region17: #{deeplab_forward.35} parent=0 // pred_fallthru
    _
  // Predicated region
  $region18: #{deeplab_forward.35} parent=0 // pred_check
    _
  $region19: #{deeplab_forward.35} parent=0 // pred_check_branch
    %158 = sbr.rel (0) target = $region21
  $region20: #{deeplab_forward.35} parent=0 // pred_region
    _
  $region21: #{deeplab_forward.35} parent=0 // pred_fallthru
    _

// kernel: deeplab_forward.34
$region0: #{deeplab_forward.34}
  #allocation0 [shape = 'u32[]', space=smem, size = 0x4, offset = 0x4, fixed_abs, tag = 'smem constant byte address 0x4 - core index']
  #allocation1 [shape = 'u32[72,128]{1,0:T(1,128)}', space=vmem, size = 0x9000, scoped, tag = 'internal scratch']
  %s0 = inlined_call_operand.vmem [shape: f32[64,16], index: 0, kind: input, shape index: {}]
  %s1 = inlined_call_operand.vmem [shape: f32[16,64], index: 1, kind: input, shape index: {}]
  %s2 = inlined_call_operand.vmem [shape: f32[1,64], index: 2, kind: input, shape index: {}]
  %s3 = inlined_call_operand.vmem [shape: f32[64,64], index: 3, kind: output, shape index: {}]
  %s4 = sld [smem:[#allocation0]]
  $region22: #{deeplab_forward.34} parent=0
    _
  %s6 = ssub.s32 1, %s4
  %s7 = scalar_select 0, %s6, %s4
  // Predicated region
  $region2: #{deeplab_forward.34} parent=0 // pred_check
    _
  $region3: #{deeplab_forward.34} parent=0 // pred_check_branch
    %9 = sbr.rel (0) target = $region5
  $region4: #{deeplab_forward.34} parent=0 // pred_region
    _
  $region5: #{deeplab_forward.34} parent=0 // pred_fallthru
    _
  // Predicated region
  $region6: #{deeplab_forward.34} parent=0 // pred_check
    _
  $region7: #{deeplab_forward.34} parent=0 // pred_check_branch
    %11 = sbr.rel (0) target = $region9
  $region8: #{deeplab_forward.34} parent=0 // pred_region
    _
  $region9: #{deeplab_forward.34} parent=0 // pred_fallthru
    _
  // Predicated region
  $region10: #{deeplab_forward.34} parent=0 // pred_check
    _
  $region11: #{deeplab_forward.34} parent=0 // pred_check_branch
    %13 = sbr.rel (0) target = $region13
  $region12: #{deeplab_forward.34} parent=0 // pred_region
    _
  $region13: #{deeplab_forward.34} parent=0 // pred_fallthru
    _
  %v14 = vld [vmem:[%s0] sm:$0xff]
  %v15 = vld [vmem:[%s0 + $0x8] sm:$0xff]
  %v16 = vld [vmem:[%s0 + $0x10] sm:$0xff]
  %v17 = vld [vmem:[%s0 + $0x18] sm:$0xff]
  %v18 = vld [vmem:[%s0 + $0x20] sm:$0xff]
  %v19 = vld [vmem:[%s0 + $0x28] sm:$0xff]
  %v20 = vld [vmem:[%s0 + $0x30] sm:$0xff]
  %v21 = vld [vmem:[%s0 + $0x38] sm:$0xff]
  %v22 = vld [vmem:[%s1] sm:$0xff]
  %v23 = vld [vmem:[%s1 + $0x8] sm:$0xff]
  %v24 = vld [vmem:[%s2] sm:$0x1]
  %v26 = vperm.slane %v24, 0
  %vm28 = vcmask 130048
  %v30 = vsel %vm28, %v14, 0
  %v33 = vsel %vm28, %v15, 0
  %v36 = vsel %vm28, %v16, 0
  %v39 = vsel %vm28, %v17, 0
  %v42 = vsel %vm28, %v18, 0
  %v45 = vsel %vm28, %v19, 0
  %v48 = vsel %vm28, %v20, 0
  %v51 = vsel %vm28, %v21, 0
  %53 = vmatpush.msra.mxu0 0.0
  %54 = vmatpush.msra.mxu0 0.0
  %55 = vmatpush.msra.mxu0 0.0
  %56 = vmatpush.msra.mxu0 0.0
  %57 = vmatpush.msra.mxu0 0.0
  %58 = vmatpush.msra.mxu0 0.0
  %59 = vmatpush.msra.mxu0 0.0
  %60 = vmatpush.msra.mxu0 0.0
  %61 = vmatpush.msra.mxu0 0.0
  %62 = vmatpush.msra.mxu0 0.0
  %63 = vmatpush.msra.mxu0 0.0
  %64 = vmatpush.msra.mxu0 0.0
  %65 = vmatpush.msra.mxu0 0.0
  %66 = vmatpush.msra.mxu0 0.0
  %67 = vmatpush.msra.mxu0 %v23
  %68 = vmatpush.msra.mxu0 %v22
  %69 = vmatmul.f32.gmra.mxu0 %v30
  %v70 = vpop.f32.mrf.mxu0
  %v71 = vadd.f32 %v26, %v70
  %72 = vmatmul.f32.gmra.mxu0 %v33
  %v73 = vpop.f32.mrf.mxu0
  %v74 = vadd.f32 %v26, %v73
  %75 = vmatmul.f32.gmra.mxu0 %v36
  %v76 = vpop.f32.mrf.mxu0
  %v77 = vadd.f32 %v26, %v76
  %78 = vmatmul.f32.gmra.mxu0 %v39
  %v79 = vpop.f32.mrf.mxu0
  %v80 = vadd.f32 %v26, %v79
  %81 = vmatmul.f32.gmra.mxu0 %v42
  %v82 = vpop.f32.mrf.mxu0
  %v83 = vadd.f32 %v26, %v82
  %84 = vmatmul.f32.gmra.mxu0 %v45
  %v85 = vpop.f32.mrf.mxu0
  %v86 = vadd.f32 %v26, %v85
  %87 = vmatmul.f32.gmra.mxu0 %v48
  %v88 = vpop.f32.mrf.mxu0
  %v89 = vadd.f32 %v26, %v88
  %90 = vmatmul.f32.gmra.mxu0 %v51
  %v91 = vpop.f32.mrf.mxu0
  %v92 = vadd.f32 %v26, %v91
  %93 = vdwg.mxu0
  %vm94 = vcmask 523264
  %95 = vst.msk [vmem:[%s3] sm:$0xff] %vm94, %v71
  %96 = vst.msk [vmem:[%s3 + $0x8] sm:$0xff] %vm94, %v74
  %97 = vst.msk [vmem:[%s3 + $0x10] sm:$0xff] %vm94, %v77
  %98 = vst.msk [vmem:[%s3 + $0x18] sm:$0xff] %vm94, %v80
  %99 = vst.msk [vmem:[%s3 + $0x20] sm:$0xff] %vm94, %v83
  %100 = vst.msk [vmem:[%s3 + $0x28] sm:$0xff] %vm94, %v86
  %101 = vst.msk [vmem:[%s3 + $0x30] sm:$0xff] %vm94, %v89
  %102 = vst.msk [vmem:[%s3 + $0x38] sm:$0xff] %vm94, %v92
  // Predicated region
  $region14: #{deeplab_forward.34} parent=0 // pred_check
    _
  $region15: #{deeplab_forward.34} parent=0 // pred_check_branch
    %104 = sbr.rel (0) target = $region17
  $region16: #{deeplab_forward.34} parent=0 // pred_region
    _
  $region17: #{deeplab_forward.34} parent=0 // pred_fallthru
    _
  // Predicated region
  $region18: #{deeplab_forward.34} parent=0 // pred_check
    _
  $region19: #{deeplab_forward.34} parent=0 // pred_check_branch
    %106 = sbr.rel (0) target = $region21
  $region20: #{deeplab_forward.34} parent=0 // pred_region
    _
  $region21: #{deeplab_forward.34} parent=0 // pred_fallthru
    _

</llo_original>
